<compile_context>
chip_gen: v6e
topology: v6e:2x2x1
jax: 0.10.0
libtpu: 0.0.40
codegen_flags: <defaults>
</compile_context>

<pallas_src>
import jax
import jax.numpy as jnp
from jax import lax
from jax.experimental import pallas as pl
from jax.experimental.pallas import tpu as pltpu

F32 = jnp.float32
BN_EPS = 1e-5
VOCAB = 256


def _conv_out_len(l_in, k, stride, pad):
    return (l_in + 2 * pad - k) // stride + 1


# ---------------------------------------------------------------------------
# In-kernel helpers (operate on traced, VMEM-resident values / refs)
# ---------------------------------------------------------------------------
def _sample_index(idx_f32, block_len, batch):
    """Which sample a flattened row/col belongs to, without vector int div:
    count of thresholds crossed (batch is a small static int)."""
    b_idx = jnp.zeros_like(idx_f32)
    for j in range(1, batch):
        b_idx = b_idx + (idx_f32 >= float(j * block_len)).astype(F32)
    return b_idx


def _tap_gather(x, *, batch, l_in, l_out, stride, offset):
    """Rows `stride*o + offset` of each sample's block of the (batch*l_in, C)
    channels-last activation -> (batch*l_out, C).  Out-of-range (zero-pad)
    taps give zero rows.  Index math is exact small-integer f32 arithmetic;
    the gather itself is one tiny constant-pattern matmul."""
    n_out, n_in = batch * l_out, batch * l_in
    r = lax.broadcasted_iota(jnp.int32, (n_out, 1), 0).astype(F32)
    b_idx = _sample_index(r, l_out, batch)                       # sample id
    src = (r - b_idx * float(l_out)) * float(stride) + float(offset)
    valid = (src >= 0.0) & (src <= float(l_in - 1))              # (n_out, 1)
    col = b_idx * float(l_in) + src                              # flat src row
    c = lax.broadcasted_iota(jnp.int32, (n_out, n_in), 1).astype(F32)
    sel = ((c == col) & valid).astype(F32)                       # 0/1 matrix
    return jnp.dot(sel, x, preferred_element_type=F32), valid


def _conv1d(x, w_ref, b_ref, *, batch, l_in, stride):
    """Channels-last Conv1d.  x:(batch*l_in, Cin)  w_ref:(K, Cin, Cout)
    b_ref:(1, Cout).  padding = (K-1)//2, matching the PyTorch module."""
    k_size, _, cout = w_ref.shape
    pad = (k_size - 1) // 2
    l_out = _conv_out_len(l_in, k_size, stride, pad)
    acc = jnp.zeros((batch * l_out, cout), F32)
    for k in range(k_size):
        off = k - pad
        # statically skip taps that are out of range for every output position
        if not any(0 <= stride * o + off < l_in for o in range(l_out)):
            continue
        g, _ = _tap_gather(x, batch=batch, l_in=l_in, l_out=l_out,
                           stride=stride, offset=off)
        acc = acc + jnp.dot(g, w_ref[k], preferred_element_type=F32)
    return acc + b_ref[...], l_out


def _batchnorm(y, gamma_ref, beta_ref, *, residual=None, relu=True):
    """Training-mode BatchNorm1d (batch statistics over B*L, biased variance)
    fused with the affine, optional residual add and optional ReLU."""
    mean = jnp.mean(y, axis=0, keepdims=True)
    var = jnp.mean(jnp.square(y - mean), axis=0, keepdims=True)
    out = (y - mean) * (gamma_ref[...] * lax.rsqrt(var + BN_EPS)) + beta_ref[...]
    if residual is not None:
        out = out + residual
    if relu:
        out = jnp.maximum(out, 0.0)
    return out


def _maxpool1d(x, *, batch, l_in, k_size=3, stride=2, pad=1):
    l_out = _conv_out_len(l_in, k_size, stride, pad)
    m = None
    for k in range(k_size):
        off = k - pad
        if not any(0 <= stride * o + off < l_in for o in range(l_out)):
            continue
        g, valid = _tap_gather(x, batch=batch, l_in=l_in, l_out=l_out,
                               stride=stride, offset=off)
        g = g + jnp.where(valid, 0.0, -1e30)      # pad positions never win
        m = g if m is None else jnp.maximum(m, g)
    return m, l_out


def _per_sample_mean(x, *, batch, l_in):
    """AdaptiveAvgPool1d(1) on the flattened layout: (batch*l_in, C) -> (batch, C)."""
    n_in = batch * l_in
    r = lax.broadcasted_iota(jnp.int32, (batch, n_in), 0).astype(F32)
    c = lax.broadcasted_iota(jnp.int32, (batch, n_in), 1).astype(F32)
    same = (_sample_index(c, l_in, batch) == r).astype(F32)
    return jnp.dot(same * (1.0 / float(l_in)), x, preferred_element_type=F32)


# ---------------------------------------------------------------------------
# Parameter init (PyTorch-like layout: conv w (K, Cin, Cout), per-channel BN)
# ---------------------------------------------------------------------------
def init_params(key, embedding_dim, channel_dims, depths, classes, kernel_size=3):
    keys = iter(jax.random.split(key, 128))

    def conv_p(cin, cout, k):
        w = jax.random.normal(next(keys), (k, cin, cout), F32) / jnp.sqrt(float(cin * k))
        b = jax.random.normal(next(keys), (cout,), F32) * 0.05
        return w, b

    def bn_p(c):  # PyTorch BatchNorm init: gamma=1, beta=0
        return jnp.ones((c,), F32), jnp.zeros((c,), F32)

    params = {"emb": jax.random.normal(next(keys), (VOCAB, embedding_dim), F32)}
    params["stem_w"], params["stem_b"] = conv_p(embedding_dim, channel_dims[0], kernel_size)
    params["stem_g"], params["stem_be"] = bn_p(channel_dims[0])

    layers, in_c, strides = [], channel_dims[0], [1, 2, 2, 2]
    for out_c, depth, stride in zip(channel_dims, depths, strides):
        blocks = []
        for d in range(depth):
            s = stride if d == 0 else 1
            cin = in_c if d == 0 else out_c
            blk = {}
            blk["w1"], blk["b1"] = conv_p(cin, out_c, kernel_size)
            blk["g1"], blk["be1"] = bn_p(out_c)
            blk["w2"], blk["b2"] = conv_p(out_c, out_c, kernel_size)
            blk["g2"], blk["be2"] = bn_p(out_c)
            if s != 1 or cin != out_c:
                blk["wd"], blk["bd"] = conv_p(cin, out_c, 1)
                blk["gd"], blk["bed"] = bn_p(out_c)
            blocks.append(blk)
        layers.append(blocks)
        in_c = out_c
    params["layers"] = layers
    params["fc_w"] = jax.random.normal(next(keys), (channel_dims[3], classes), F32) * 0.1
    params["fc_b"] = jnp.zeros((classes,), F32)
    return params


# ---------------------------------------------------------------------------
# Fused forward: one pallas_call for the whole network
# ---------------------------------------------------------------------------
def forward(params, ids, target, class_sigmas, *, training=True, noise_key=None):
    batch, seq = ids.shape
    ks = params["stem_w"].shape[0]
    pad = (ks - 1) // 2
    classes = params["fc_w"].shape[1]
    strides = [1, 2, 2, 2]

    # static per-block metadata (mirrors ResNet1d_AdaptiveNoise._make_layer)
    layer_meta = []
    for li, blocks in enumerate(params["layers"]):
        layer_meta.append([{"stride": strides[li] if d == 0 else 1,
                            "has_ds": "wd" in blk}
                           for d, blk in enumerate(blocks)])

    # length schedule (for the adaptive-noise shape after layer3)
    l = _conv_out_len(seq, ks, 1, pad)        # stem conv
    l = _conv_out_len(l, 3, 2, 1)             # stem maxpool
    lens = []
    for metas in layer_meta:
        for m in metas:
            l = _conv_out_len(l, ks, m["stride"], pad)   # conv1
            l = _conv_out_len(l, ks, 1, pad)             # conv2
        lens.append(l)
    l_noise = lens[2]
    c_noise = params["layers"][2][-1]["w2"].shape[-1]

    # --- flat input list (order mirrors the kernel's consumption order) ----
    row2 = lambda v: v.reshape(1, -1).astype(F32)
    flat = [ids.reshape(batch * seq, 1).astype(jnp.int32), params["emb"].astype(F32)]
    if training:
        sigma = class_sigmas.astype(F32)[target]                         # (B,)
        sigma_rows = jnp.repeat(sigma, l_noise).reshape(batch * l_noise, 1)
        noise = jax.random.normal(noise_key, (batch * l_noise, c_noise), F32)
        flat += [noise, sigma_rows]
    flat += [params["stem_w"].astype(F32), row2(params["stem_b"]),
             row2(params["stem_g"]), row2(params["stem_be"])]
    for blocks in params["layers"]:
        for blk in blocks:
            flat += [blk["w1"].astype(F32), row2(blk["b1"]),
                     row2(blk["g1"]), row2(blk["be1"]),
                     blk["w2"].astype(F32), row2(blk["b2"]),
                     row2(blk["g2"]), row2(blk["be2"])]
            if "wd" in blk:
                flat += [blk["wd"].astype(F32), row2(blk["bd"]),
                         row2(blk["gd"]), row2(blk["bed"])]
    flat += [params["fc_w"].astype(F32), row2(params["fc_b"])]

    def kernel(*refs):
        out_ref = refs[-1]
        it = iter(refs[:-1])

        ids_ref, emb_ref = next(it), next(it)
        if training:
            noise_ref, sigma_ref = next(it), next(it)

        # embedding lookup: one-hot built in vregs, contracted on the MXU
        vocab_iota = lax.broadcasted_iota(jnp.int32, (batch * seq, VOCAB), 1)
        onehot = (ids_ref[...] == vocab_iota).astype(F32)
        x = jnp.dot(onehot, emb_ref[...], preferred_element_type=F32)  # (B*L, E)
        cur_l = seq

        # stem: conv -> BN -> ReLU -> MaxPool1d(3, 2, 1)
        w, b, g, be = next(it), next(it), next(it), next(it)
        x, cur_l = _conv1d(x, w, b, batch=batch, l_in=cur_l, stride=1)
        x = _batchnorm(x, g, be, relu=True)
        x, cur_l = _maxpool1d(x, batch=batch, l_in=cur_l)

        for li, metas in enumerate(layer_meta):
            for m in metas:
                w1, b1, g1, be1 = next(it), next(it), next(it), next(it)
                w2, b2, g2, be2 = next(it), next(it), next(it), next(it)
                if m["has_ds"]:
                    wd, bd, gd, bed = next(it), next(it), next(it), next(it)
                residual, res_l = x, cur_l
                x, cur_l = _conv1d(x, w1, b1, batch=batch, l_in=cur_l,
                                   stride=m["stride"])
                x = _batchnorm(x, g1, be1, relu=True)
                x, cur_l = _conv1d(x, w2, b2, batch=batch, l_in=cur_l, stride=1)
                if m["has_ds"]:
                    r, _ = _conv1d(residual, wd, bd, batch=batch, l_in=res_l,
                                   stride=m["stride"])
                    residual = _batchnorm(r, gd, bed, relu=False)
                x = _batchnorm(x, g2, be2, residual=residual, relu=True)
            if li == 2 and training:
                # adaptive per-sample Gaussian noise, fused after layer3
                x = x + noise_ref[...] * sigma_ref[...]

        fc_w, fc_b = next(it), next(it)
        pooled = _per_sample_mean(x, batch=batch, l_in=cur_l)          # (B, C)
        out_ref[...] = (jnp.dot(pooled, fc_w[...], preferred_element_type=F32)
                        + fc_b[...])

    vmem = pltpu.MemorySpace.VMEM
    return pl.pallas_call(
        kernel,
        out_shape=jax.ShapeDtypeStruct((batch, classes), F32),
        in_specs=[pl.BlockSpec(memory_space=vmem)] * len(flat),
        out_specs=pl.BlockSpec(memory_space=vmem),
        compiler_params=pltpu.CompilerParams(vmem_limit_bytes=32 * 1024 * 1024),
    )(*flat)


if __name__ == "__main__":
    key = jax.random.PRNGKey(0)
    k_param, k_ids, k_tgt, k_noise = jax.random.split(key, 4)

    B, L = 2, 16
    embedding_dim = 8
    channel_dims = [8, 16, 32, 64]
    depths = [1, 1, 1, 1]
    classes = 4

    params = init_params(k_param, embedding_dim, channel_dims, depths, classes)
    ids = jax.random.randint(k_ids, (B, L), 0, 256, dtype=jnp.int32)       # token ids
    target = jax.random.randint(k_tgt, (B,), 0, classes, dtype=jnp.int32)  # class labels
    # stand-in for `class_losses[c].avg` (per-class running loss averages)
    class_sigmas = jnp.array([0.10, 0.25, 0.05, 0.40], F32)

    out = forward(params, ids, target, class_sigmas, training=True, noise_key=k_noise)
    out = jax.block_until_ready(out)
    assert out.shape == (B, classes) and out.dtype == F32
    assert bool(jnp.all(jnp.isfinite(out)))
    print("KERNEL_OK")
</pallas_src>

<mosaic_0001>
module attributes {stable_mosaic.version = 11 : i64} {
  func.func @kernel(%arg0: memref<32x1xi32, #tpu.memory_space<vmem>>, %arg1: memref<256x8xf32, #tpu.memory_space<vmem>>, %arg2: memref<4x32xf32, #tpu.memory_space<vmem>>, %arg3: memref<4x1xf32, #tpu.memory_space<vmem>>, %arg4: memref<3x8x8xf32, #tpu.memory_space<vmem>>, %arg5: memref<1x8xf32, #tpu.memory_space<vmem>>, %arg6: memref<1x8xf32, #tpu.memory_space<vmem>>, %arg7: memref<1x8xf32, #tpu.memory_space<vmem>>, %arg8: memref<3x8x8xf32, #tpu.memory_space<vmem>>, %arg9: memref<1x8xf32, #tpu.memory_space<vmem>>, %arg10: memref<1x8xf32, #tpu.memory_space<vmem>>, %arg11: memref<1x8xf32, #tpu.memory_space<vmem>>, %arg12: memref<3x8x8xf32, #tpu.memory_space<vmem>>, %arg13: memref<1x8xf32, #tpu.memory_space<vmem>>, %arg14: memref<1x8xf32, #tpu.memory_space<vmem>>, %arg15: memref<1x8xf32, #tpu.memory_space<vmem>>, %arg16: memref<3x8x16xf32, #tpu.memory_space<vmem>>, %arg17: memref<1x16xf32, #tpu.memory_space<vmem>>, %arg18: memref<1x16xf32, #tpu.memory_space<vmem>>, %arg19: memref<1x16xf32, #tpu.memory_space<vmem>>, %arg20: memref<3x16x16xf32, #tpu.memory_space<vmem>>, %arg21: memref<1x16xf32, #tpu.memory_space<vmem>>, %arg22: memref<1x16xf32, #tpu.memory_space<vmem>>, %arg23: memref<1x16xf32, #tpu.memory_space<vmem>>, %arg24: memref<1x8x16xf32, #tpu.memory_space<vmem>>, %arg25: memref<1x16xf32, #tpu.memory_space<vmem>>, %arg26: memref<1x16xf32, #tpu.memory_space<vmem>>, %arg27: memref<1x16xf32, #tpu.memory_space<vmem>>, %arg28: memref<3x16x32xf32, #tpu.memory_space<vmem>>, %arg29: memref<1x32xf32, #tpu.memory_space<vmem>>, %arg30: memref<1x32xf32, #tpu.memory_space<vmem>>, %arg31: memref<1x32xf32, #tpu.memory_space<vmem>>, %arg32: memref<3x32x32xf32, #tpu.memory_space<vmem>>, %arg33: memref<1x32xf32, #tpu.memory_space<vmem>>, %arg34: memref<1x32xf32, #tpu.memory_space<vmem>>, %arg35: memref<1x32xf32, #tpu.memory_space<vmem>>, %arg36: memref<1x16x32xf32, #tpu.memory_space<vmem>>, %arg37: memref<1x32xf32, #tpu.memory_space<vmem>>, %arg38: memref<1x32xf32, #tpu.memory_space<vmem>>, %arg39: memref<1x32xf32, #tpu.memory_space<vmem>>, %arg40: memref<3x32x64xf32, #tpu.memory_space<vmem>>, %arg41: memref<1x64xf32, #tpu.memory_space<vmem>>, %arg42: memref<1x64xf32, #tpu.memory_space<vmem>>, %arg43: memref<1x64xf32, #tpu.memory_space<vmem>>, %arg44: memref<3x64x64xf32, #tpu.memory_space<vmem>>, %arg45: memref<1x64xf32, #tpu.memory_space<vmem>>, %arg46: memref<1x64xf32, #tpu.memory_space<vmem>>, %arg47: memref<1x64xf32, #tpu.memory_space<vmem>>, %arg48: memref<1x32x64xf32, #tpu.memory_space<vmem>>, %arg49: memref<1x64xf32, #tpu.memory_space<vmem>>, %arg50: memref<1x64xf32, #tpu.memory_space<vmem>>, %arg51: memref<1x64xf32, #tpu.memory_space<vmem>>, %arg52: memref<64x4xf32, #tpu.memory_space<vmem>>, %arg53: memref<1x4xf32, #tpu.memory_space<vmem>>, %arg54: memref<2x4xf32, #tpu.memory_space<vmem>>) attributes {dimension_semantics = [], scalar_prefetch = 0 : i64, scratch_operands = 0 : i64, tpu.core_type = #tpu.core_type<tc>} {
    %0 = tpu.iota {dimensions = array<i32: 1>} : vector<32x256xi32>
    %c0 = arith.constant 0 : index
    %c0_0 = arith.constant 0 : index
    %1 = vector.load %arg0[%c0, %c0_0] : memref<32x1xi32, #tpu.memory_space<vmem>>, vector<32x1xi32>
    %2 = vector.broadcast %1 : vector<32x1xi32> to vector<32x256xi32>
    %3 = arith.cmpi eq, %2, %0 : vector<32x256xi32>
    %4 = arith.extui %3 : vector<32x256xi1> to vector<32x256xi32>
    %5 = arith.sitofp %4 : vector<32x256xi32> to vector<32x256xf32>
    %c0_1 = arith.constant 0 : index
    %c0_2 = arith.constant 0 : index
    %6 = vector.load %arg1[%c0_1, %c0_2] : memref<256x8xf32, #tpu.memory_space<vmem>>, vector<256x8xf32>
    %cst = arith.constant dense<0.000000e+00> : vector<32x8xf32>
    %7 = tpu.matmul %5, %6, %cst {dimension_numbers = #tpu.dot_dimension_numbers<[1], [0], [0], [1], [0, 0, 1, 1], [], []>} : vector<32x256xf32>, vector<256x8xf32>, vector<32x8xf32> -> vector<32x8xf32>
    %cst_3 = arith.constant 0.000000e+00 : f32
    %8 = vector.broadcast %cst_3 : f32 to vector<32x8xf32>
    %9 = tpu.iota {dimensions = array<i32: 0>} : vector<32x1xi32>
    %10 = arith.sitofp %9 : vector<32x1xi32> to vector<32x1xf32>
    %cst_4 = arith.constant 0.000000e+00 : f32
    %11 = vector.broadcast %cst_4 : f32 to vector<32x1xf32>
    %cst_5 = arith.constant 1.600000e+01 : f32
    %12 = vector.broadcast %cst_5 : f32 to vector<32x1xf32>
    %13 = arith.cmpf oge, %10, %12 : vector<32x1xf32>
    %14 = arith.extui %13 : vector<32x1xi1> to vector<32x1xi32>
    %15 = arith.sitofp %14 : vector<32x1xi32> to vector<32x1xf32>
    %16 = arith.addf %11, %15 : vector<32x1xf32>
    %cst_6 = arith.constant 1.600000e+01 : f32
    %17 = vector.broadcast %cst_6 : f32 to vector<32x1xf32>
    %18 = arith.mulf %16, %17 : vector<32x1xf32>
    %19 = arith.subf %10, %18 : vector<32x1xf32>
    %cst_7 = arith.constant 1.000000e+00 : f32
    %20 = vector.broadcast %cst_7 : f32 to vector<32x1xf32>
    %21 = arith.mulf %19, %20 : vector<32x1xf32>
    %cst_8 = arith.constant -1.000000e+00 : f32
    %22 = vector.broadcast %cst_8 : f32 to vector<32x1xf32>
    %23 = arith.addf %21, %22 : vector<32x1xf32>
    %cst_9 = arith.constant 0.000000e+00 : f32
    %24 = vector.broadcast %cst_9 : f32 to vector<32x1xf32>
    %25 = arith.cmpf oge, %23, %24 : vector<32x1xf32>
    %cst_10 = arith.constant 1.500000e+01 : f32
    %26 = vector.broadcast %cst_10 : f32 to vector<32x1xf32>
    %27 = arith.cmpf ole, %23, %26 : vector<32x1xf32>
    %28 = arith.andi %25, %27 : vector<32x1xi1>
    %cst_11 = arith.constant 1.600000e+01 : f32
    %29 = vector.broadcast %cst_11 : f32 to vector<32x1xf32>
    %30 = arith.mulf %16, %29 : vector<32x1xf32>
    %31 = arith.addf %30, %23 : vector<32x1xf32>
    %32 = tpu.iota {dimensions = array<i32: 1>} : vector<32x32xi32>
    %33 = arith.sitofp %32 : vector<32x32xi32> to vector<32x32xf32>
    %34 = vector.broadcast %31 : vector<32x1xf32> to vector<32x32xf32>
    %35 = arith.cmpf oeq, %33, %34 : vector<32x32xf32>
    %36 = vector.broadcast %28 : vector<32x1xi1> to vector<32x32xi1>
    %37 = arith.andi %35, %36 : vector<32x32xi1>
    %38 = arith.extui %37 : vector<32x32xi1> to vector<32x32xi32>
    %39 = arith.sitofp %38 : vector<32x32xi32> to vector<32x32xf32>
    %cst_12 = arith.constant dense<0.000000e+00> : vector<32x8xf32>
    %40 = tpu.matmul %39, %7, %cst_12 {dimension_numbers = #tpu.dot_dimension_numbers<[1], [0], [0], [1], [0, 0, 1, 1], [], []>} : vector<32x32xf32>, vector<32x8xf32>, vector<32x8xf32> -> vector<32x8xf32>
    %c0_13 = arith.constant 0 : index
    %c0_14 = arith.constant 0 : index
    %c0_15 = arith.constant 0 : index
    %41 = vector.load %arg4[%c0_13, %c0_14, %c0_15] : memref<3x8x8xf32, #tpu.memory_space<vmem>>, vector<1x8x8xf32>
    %42 = vector.shape_cast %41 : vector<1x8x8xf32> to vector<8x8xf32>
    %cst_16 = arith.constant dense<0.000000e+00> : vector<32x8xf32>
    %43 = tpu.matmul %40, %42, %cst_16 {dimension_numbers = #tpu.dot_dimension_numbers<[1], [0], [0], [1], [0, 0, 1, 1], [], []>} : vector<32x8xf32>, vector<8x8xf32>, vector<32x8xf32> -> vector<32x8xf32>
    %44 = arith.addf %8, %43 : vector<32x8xf32>
    %45 = tpu.iota {dimensions = array<i32: 0>} : vector<32x1xi32>
    %46 = arith.sitofp %45 : vector<32x1xi32> to vector<32x1xf32>
    %cst_17 = arith.constant 0.000000e+00 : f32
    %47 = vector.broadcast %cst_17 : f32 to vector<32x1xf32>
    %cst_18 = arith.constant 1.600000e+01 : f32
    %48 = vector.broadcast %cst_18 : f32 to vector<32x1xf32>
    %49 = arith.cmpf oge, %46, %48 : vector<32x1xf32>
    %50 = arith.extui %49 : vector<32x1xi1> to vector<32x1xi32>
    %51 = arith.sitofp %50 : vector<32x1xi32> to vector<32x1xf32>
    %52 = arith.addf %47, %51 : vector<32x1xf32>
    %cst_19 = arith.constant 1.600000e+01 : f32
    %53 = vector.broadcast %cst_19 : f32 to vector<32x1xf32>
    %54 = arith.mulf %52, %53 : vector<32x1xf32>
    %55 = arith.subf %46, %54 : vector<32x1xf32>
    %cst_20 = arith.constant 1.000000e+00 : f32
    %56 = vector.broadcast %cst_20 : f32 to vector<32x1xf32>
    %57 = arith.mulf %55, %56 : vector<32x1xf32>
    %cst_21 = arith.constant 0.000000e+00 : f32
    %58 = vector.broadcast %cst_21 : f32 to vector<32x1xf32>
    %59 = arith.addf %57, %58 : vector<32x1xf32>
    %cst_22 = arith.constant 0.000000e+00 : f32
    %60 = vector.broadcast %cst_22 : f32 to vector<32x1xf32>
    %61 = arith.cmpf oge, %59, %60 : vector<32x1xf32>
    %cst_23 = arith.constant 1.500000e+01 : f32
    %62 = vector.broadcast %cst_23 : f32 to vector<32x1xf32>
    %63 = arith.cmpf ole, %59, %62 : vector<32x1xf32>
    %64 = arith.andi %61, %63 : vector<32x1xi1>
    %cst_24 = arith.constant 1.600000e+01 : f32
    %65 = vector.broadcast %cst_24 : f32 to vector<32x1xf32>
    %66 = arith.mulf %52, %65 : vector<32x1xf32>
    %67 = arith.addf %66, %59 : vector<32x1xf32>
    %68 = tpu.iota {dimensions = array<i32: 1>} : vector<32x32xi32>
    %69 = arith.sitofp %68 : vector<32x32xi32> to vector<32x32xf32>
    %70 = vector.broadcast %67 : vector<32x1xf32> to vector<32x32xf32>
    %71 = arith.cmpf oeq, %69, %70 : vector<32x32xf32>
    %72 = vector.broadcast %64 : vector<32x1xi1> to vector<32x32xi1>
    %73 = arith.andi %71, %72 : vector<32x32xi1>
    %74 = arith.extui %73 : vector<32x32xi1> to vector<32x32xi32>
    %75 = arith.sitofp %74 : vector<32x32xi32> to vector<32x32xf32>
    %cst_25 = arith.constant dense<0.000000e+00> : vector<32x8xf32>
    %76 = tpu.matmul %75, %7, %cst_25 {dimension_numbers = #tpu.dot_dimension_numbers<[1], [0], [0], [1], [0, 0, 1, 1], [], []>} : vector<32x32xf32>, vector<32x8xf32>, vector<32x8xf32> -> vector<32x8xf32>
    %c1 = arith.constant 1 : index
    %c0_26 = arith.constant 0 : index
    %c0_27 = arith.constant 0 : index
    %77 = vector.load %arg4[%c1, %c0_26, %c0_27] : memref<3x8x8xf32, #tpu.memory_space<vmem>>, vector<1x8x8xf32>
    %78 = vector.shape_cast %77 : vector<1x8x8xf32> to vector<8x8xf32>
    %cst_28 = arith.constant dense<0.000000e+00> : vector<32x8xf32>
    %79 = tpu.matmul %76, %78, %cst_28 {dimension_numbers = #tpu.dot_dimension_numbers<[1], [0], [0], [1], [0, 0, 1, 1], [], []>} : vector<32x8xf32>, vector<8x8xf32>, vector<32x8xf32> -> vector<32x8xf32>
    %80 = arith.addf %44, %79 : vector<32x8xf32>
    %81 = tpu.iota {dimensions = array<i32: 0>} : vector<32x1xi32>
    %82 = arith.sitofp %81 : vector<32x1xi32> to vector<32x1xf32>
    %cst_29 = arith.constant 0.000000e+00 : f32
    %83 = vector.broadcast %cst_29 : f32 to vector<32x1xf32>
    %cst_30 = arith.constant 1.600000e+01 : f32
    %84 = vector.broadcast %cst_30 : f32 to vector<32x1xf32>
    %85 = arith.cmpf oge, %82, %84 : vector<32x1xf32>
    %86 = arith.extui %85 : vector<32x1xi1> to vector<32x1xi32>
    %87 = arith.sitofp %86 : vector<32x1xi32> to vector<32x1xf32>
    %88 = arith.addf %83, %87 : vector<32x1xf32>
    %cst_31 = arith.constant 1.600000e+01 : f32
    %89 = vector.broadcast %cst_31 : f32 to vector<32x1xf32>
    %90 = arith.mulf %88, %89 : vector<32x1xf32>
    %91 = arith.subf %82, %90 : vector<32x1xf32>
    %cst_32 = arith.constant 1.000000e+00 : f32
    %92 = vector.broadcast %cst_32 : f32 to vector<32x1xf32>
    %93 = arith.mulf %91, %92 : vector<32x1xf32>
    %cst_33 = arith.constant 1.000000e+00 : f32
    %94 = vector.broadcast %cst_33 : f32 to vector<32x1xf32>
    %95 = arith.addf %93, %94 : vector<32x1xf32>
    %cst_34 = arith.constant 0.000000e+00 : f32
    %96 = vector.broadcast %cst_34 : f32 to vector<32x1xf32>
    %97 = arith.cmpf oge, %95, %96 : vector<32x1xf32>
    %cst_35 = arith.constant 1.500000e+01 : f32
    %98 = vector.broadcast %cst_35 : f32 to vector<32x1xf32>
    %99 = arith.cmpf ole, %95, %98 : vector<32x1xf32>
    %100 = arith.andi %97, %99 : vector<32x1xi1>
    %cst_36 = arith.constant 1.600000e+01 : f32
    %101 = vector.broadcast %cst_36 : f32 to vector<32x1xf32>
    %102 = arith.mulf %88, %101 : vector<32x1xf32>
    %103 = arith.addf %102, %95 : vector<32x1xf32>
    %104 = tpu.iota {dimensions = array<i32: 1>} : vector<32x32xi32>
    %105 = arith.sitofp %104 : vector<32x32xi32> to vector<32x32xf32>
    %106 = vector.broadcast %103 : vector<32x1xf32> to vector<32x32xf32>
    %107 = arith.cmpf oeq, %105, %106 : vector<32x32xf32>
    %108 = vector.broadcast %100 : vector<32x1xi1> to vector<32x32xi1>
    %109 = arith.andi %107, %108 : vector<32x32xi1>
    %110 = arith.extui %109 : vector<32x32xi1> to vector<32x32xi32>
    %111 = arith.sitofp %110 : vector<32x32xi32> to vector<32x32xf32>
    %cst_37 = arith.constant dense<0.000000e+00> : vector<32x8xf32>
    %112 = tpu.matmul %111, %7, %cst_37 {dimension_numbers = #tpu.dot_dimension_numbers<[1], [0], [0], [1], [0, 0, 1, 1], [], []>} : vector<32x32xf32>, vector<32x8xf32>, vector<32x8xf32> -> vector<32x8xf32>
    %c2 = arith.constant 2 : index
    %c0_38 = arith.constant 0 : index
    %c0_39 = arith.constant 0 : index
    %113 = vector.load %arg4[%c2, %c0_38, %c0_39] : memref<3x8x8xf32, #tpu.memory_space<vmem>>, vector<1x8x8xf32>
    %114 = vector.shape_cast %113 : vector<1x8x8xf32> to vector<8x8xf32>
    %cst_40 = arith.constant dense<0.000000e+00> : vector<32x8xf32>
    %115 = tpu.matmul %112, %114, %cst_40 {dimension_numbers = #tpu.dot_dimension_numbers<[1], [0], [0], [1], [0, 0, 1, 1], [], []>} : vector<32x8xf32>, vector<8x8xf32>, vector<32x8xf32> -> vector<32x8xf32>
    %116 = arith.addf %80, %115 : vector<32x8xf32>
    %c0_41 = arith.constant 0 : index
    %c0_42 = arith.constant 0 : index
    %117 = vector.load %arg5[%c0_41, %c0_42] : memref<1x8xf32, #tpu.memory_space<vmem>>, vector<1x8xf32>
    %118 = vector.broadcast %117 : vector<1x8xf32> to vector<32x8xf32>
    %119 = arith.addf %116, %118 : vector<32x8xf32>
    %cst_43 = arith.constant dense<0.000000e+00> : vector<8xf32>
    %120 = vector.multi_reduction <add>, %119, %cst_43 [0] : vector<32x8xf32> to vector<8xf32>
    %121 = vector.shape_cast %120 : vector<8xf32> to vector<1x8xf32>
    %cst_44 = arith.constant 3.200000e+01 : f32
    %122 = vector.broadcast %cst_44 : f32 to vector<1x8xf32>
    %123 = arith.divf %121, %122 : vector<1x8xf32>
    %124 = vector.broadcast %123 : vector<1x8xf32> to vector<32x8xf32>
    %125 = arith.subf %119, %124 : vector<32x8xf32>
    %126 = arith.mulf %125, %125 : vector<32x8xf32>
    %cst_45 = arith.constant dense<0.000000e+00> : vector<8xf32>
    %127 = vector.multi_reduction <add>, %126, %cst_45 [0] : vector<32x8xf32> to vector<8xf32>
    %128 = vector.shape_cast %127 : vector<8xf32> to vector<1x8xf32>
    %cst_46 = arith.constant 3.200000e+01 : f32
    %129 = vector.broadcast %cst_46 : f32 to vector<1x8xf32>
    %130 = arith.divf %128, %129 : vector<1x8xf32>
    %131 = vector.broadcast %123 : vector<1x8xf32> to vector<32x8xf32>
    %132 = arith.subf %119, %131 : vector<32x8xf32>
    %c0_47 = arith.constant 0 : index
    %c0_48 = arith.constant 0 : index
    %133 = vector.load %arg6[%c0_47, %c0_48] : memref<1x8xf32, #tpu.memory_space<vmem>>, vector<1x8xf32>
    %cst_49 = arith.constant 9.99999974E-6 : f32
    %134 = vector.broadcast %cst_49 : f32 to vector<1x8xf32>
    %135 = arith.addf %130, %134 : vector<1x8xf32>
    %136 = math.rsqrt %135 : vector<1x8xf32>
    %137 = arith.mulf %133, %136 : vector<1x8xf32>
    %138 = vector.broadcast %137 : vector<1x8xf32> to vector<32x8xf32>
    %139 = arith.mulf %132, %138 : vector<32x8xf32>
    %c0_50 = arith.constant 0 : index
    %c0_51 = arith.constant 0 : index
    %140 = vector.load %arg7[%c0_50, %c0_51] : memref<1x8xf32, #tpu.memory_space<vmem>>, vector<1x8xf32>
    %141 = vector.broadcast %140 : vector<1x8xf32> to vector<32x8xf32>
    %142 = arith.addf %139, %141 : vector<32x8xf32>
    %cst_52 = arith.constant 0.000000e+00 : f32
    %143 = vector.broadcast %cst_52 : f32 to vector<32x8xf32>
    %144 = arith.maximumf %142, %143 : vector<32x8xf32>
    %145 = tpu.iota {dimensions = array<i32: 0>} : vector<16x1xi32>
    %146 = arith.sitofp %145 : vector<16x1xi32> to vector<16x1xf32>
    %cst_53 = arith.constant 0.000000e+00 : f32
    %147 = vector.broadcast %cst_53 : f32 to vector<16x1xf32>
    %cst_54 = arith.constant 8.000000e+00 : f32
    %148 = vector.broadcast %cst_54 : f32 to vector<16x1xf32>
    %149 = arith.cmpf oge, %146, %148 : vector<16x1xf32>
    %150 = arith.extui %149 : vector<16x1xi1> to vector<16x1xi32>
    %151 = arith.sitofp %150 : vector<16x1xi32> to vector<16x1xf32>
    %152 = arith.addf %147, %151 : vector<16x1xf32>
    %cst_55 = arith.constant 8.000000e+00 : f32
    %153 = vector.broadcast %cst_55 : f32 to vector<16x1xf32>
    %154 = arith.mulf %152, %153 : vector<16x1xf32>
    %155 = arith.subf %146, %154 : vector<16x1xf32>
    %cst_56 = arith.constant 2.000000e+00 : f32
    %156 = vector.broadcast %cst_56 : f32 to vector<16x1xf32>
    %157 = arith.mulf %155, %156 : vector<16x1xf32>
    %cst_57 = arith.constant -1.000000e+00 : f32
    %158 = vector.broadcast %cst_57 : f32 to vector<16x1xf32>
    %159 = arith.addf %157, %158 : vector<16x1xf32>
    %cst_58 = arith.constant 0.000000e+00 : f32
    %160 = vector.broadcast %cst_58 : f32 to vector<16x1xf32>
    %161 = arith.cmpf oge, %159, %160 : vector<16x1xf32>
    %cst_59 = arith.constant 1.500000e+01 : f32
    %162 = vector.broadcast %cst_59 : f32 to vector<16x1xf32>
    %163 = arith.cmpf ole, %159, %162 : vector<16x1xf32>
    %164 = arith.andi %161, %163 : vector<16x1xi1>
    %cst_60 = arith.constant 1.600000e+01 : f32
    %165 = vector.broadcast %cst_60 : f32 to vector<16x1xf32>
    %166 = arith.mulf %152, %165 : vector<16x1xf32>
    %167 = arith.addf %166, %159 : vector<16x1xf32>
    %168 = tpu.iota {dimensions = array<i32: 1>} : vector<16x32xi32>
    %169 = arith.sitofp %168 : vector<16x32xi32> to vector<16x32xf32>
    %170 = vector.broadcast %167 : vector<16x1xf32> to vector<16x32xf32>
    %171 = arith.cmpf oeq, %169, %170 : vector<16x32xf32>
    %172 = vector.broadcast %164 : vector<16x1xi1> to vector<16x32xi1>
    %173 = arith.andi %171, %172 : vector<16x32xi1>
    %174 = arith.extui %173 : vector<16x32xi1> to vector<16x32xi32>
    %175 = arith.sitofp %174 : vector<16x32xi32> to vector<16x32xf32>
    %cst_61 = arith.constant dense<0.000000e+00> : vector<16x8xf32>
    %176 = tpu.matmul %175, %144, %cst_61 {dimension_numbers = #tpu.dot_dimension_numbers<[1], [0], [0], [1], [0, 0, 1, 1], [], []>} : vector<16x32xf32>, vector<32x8xf32>, vector<16x8xf32> -> vector<16x8xf32>
    %cst_62 = arith.constant 0.000000e+00 : f32
    %cst_63 = arith.constant -1.000000e+30 : f32
    %177 = vector.broadcast %cst_62 : f32 to vector<16x1xf32>
    %178 = vector.broadcast %cst_63 : f32 to vector<16x1xf32>
    %179 = arith.select %164, %177, %178 : vector<16x1xi1>, vector<16x1xf32>
    %180 = vector.broadcast %179 : vector<16x1xf32> to vector<16x8xf32>
    %181 = arith.addf %176, %180 : vector<16x8xf32>
    %182 = tpu.iota {dimensions = array<i32: 0>} : vector<16x1xi32>
    %183 = arith.sitofp %182 : vector<16x1xi32> to vector<16x1xf32>
    %cst_64 = arith.constant 0.000000e+00 : f32
    %184 = vector.broadcast %cst_64 : f32 to vector<16x1xf32>
    %cst_65 = arith.constant 8.000000e+00 : f32
    %185 = vector.broadcast %cst_65 : f32 to vector<16x1xf32>
    %186 = arith.cmpf oge, %183, %185 : vector<16x1xf32>
    %187 = arith.extui %186 : vector<16x1xi1> to vector<16x1xi32>
    %188 = arith.sitofp %187 : vector<16x1xi32> to vector<16x1xf32>
    %189 = arith.addf %184, %188 : vector<16x1xf32>
    %cst_66 = arith.constant 8.000000e+00 : f32
    %190 = vector.broadcast %cst_66 : f32 to vector<16x1xf32>
    %191 = arith.mulf %189, %190 : vector<16x1xf32>
    %192 = arith.subf %183, %191 : vector<16x1xf32>
    %cst_67 = arith.constant 2.000000e+00 : f32
    %193 = vector.broadcast %cst_67 : f32 to vector<16x1xf32>
    %194 = arith.mulf %192, %193 : vector<16x1xf32>
    %cst_68 = arith.constant 0.000000e+00 : f32
    %195 = vector.broadcast %cst_68 : f32 to vector<16x1xf32>
    %196 = arith.addf %194, %195 : vector<16x1xf32>
    %cst_69 = arith.constant 0.000000e+00 : f32
    %197 = vector.broadcast %cst_69 : f32 to vector<16x1xf32>
    %198 = arith.cmpf oge, %196, %197 : vector<16x1xf32>
    %cst_70 = arith.constant 1.500000e+01 : f32
    %199 = vector.broadcast %cst_70 : f32 to vector<16x1xf32>
    %200 = arith.cmpf ole, %196, %199 : vector<16x1xf32>
    %201 = arith.andi %198, %200 : vector<16x1xi1>
    %cst_71 = arith.constant 1.600000e+01 : f32
    %202 = vector.broadcast %cst_71 : f32 to vector<16x1xf32>
    %203 = arith.mulf %189, %202 : vector<16x1xf32>
    %204 = arith.addf %203, %196 : vector<16x1xf32>
    %205 = tpu.iota {dimensions = array<i32: 1>} : vector<16x32xi32>
    %206 = arith.sitofp %205 : vector<16x32xi32> to vector<16x32xf32>
    %207 = vector.broadcast %204 : vector<16x1xf32> to vector<16x32xf32>
    %208 = arith.cmpf oeq, %206, %207 : vector<16x32xf32>
    %209 = vector.broadcast %201 : vector<16x1xi1> to vector<16x32xi1>
    %210 = arith.andi %208, %209 : vector<16x32xi1>
    %211 = arith.extui %210 : vector<16x32xi1> to vector<16x32xi32>
    %212 = arith.sitofp %211 : vector<16x32xi32> to vector<16x32xf32>
    %cst_72 = arith.constant dense<0.000000e+00> : vector<16x8xf32>
    %213 = tpu.matmul %212, %144, %cst_72 {dimension_numbers = #tpu.dot_dimension_numbers<[1], [0], [0], [1], [0, 0, 1, 1], [], []>} : vector<16x32xf32>, vector<32x8xf32>, vector<16x8xf32> -> vector<16x8xf32>
    %cst_73 = arith.constant 0.000000e+00 : f32
    %cst_74 = arith.constant -1.000000e+30 : f32
    %214 = vector.broadcast %cst_73 : f32 to vector<16x1xf32>
    %215 = vector.broadcast %cst_74 : f32 to vector<16x1xf32>
    %216 = arith.select %201, %214, %215 : vector<16x1xi1>, vector<16x1xf32>
    %217 = vector.broadcast %216 : vector<16x1xf32> to vector<16x8xf32>
    %218 = arith.addf %213, %217 : vector<16x8xf32>
    %219 = arith.maximumf %181, %218 : vector<16x8xf32>
    %220 = tpu.iota {dimensions = array<i32: 0>} : vector<16x1xi32>
    %221 = arith.sitofp %220 : vector<16x1xi32> to vector<16x1xf32>
    %cst_75 = arith.constant 0.000000e+00 : f32
    %222 = vector.broadcast %cst_75 : f32 to vector<16x1xf32>
    %cst_76 = arith.constant 8.000000e+00 : f32
    %223 = vector.broadcast %cst_76 : f32 to vector<16x1xf32>
    %224 = arith.cmpf oge, %221, %223 : vector<16x1xf32>
    %225 = arith.extui %224 : vector<16x1xi1> to vector<16x1xi32>
    %226 = arith.sitofp %225 : vector<16x1xi32> to vector<16x1xf32>
    %227 = arith.addf %222, %226 : vector<16x1xf32>
    %cst_77 = arith.constant 8.000000e+00 : f32
    %228 = vector.broadcast %cst_77 : f32 to vector<16x1xf32>
    %229 = arith.mulf %227, %228 : vector<16x1xf32>
    %230 = arith.subf %221, %229 : vector<16x1xf32>
    %cst_78 = arith.constant 2.000000e+00 : f32
    %231 = vector.broadcast %cst_78 : f32 to vector<16x1xf32>
    %232 = arith.mulf %230, %231 : vector<16x1xf32>
    %cst_79 = arith.constant 1.000000e+00 : f32
    %233 = vector.broadcast %cst_79 : f32 to vector<16x1xf32>
    %234 = arith.addf %232, %233 : vector<16x1xf32>
    %cst_80 = arith.constant 0.000000e+00 : f32
    %235 = vector.broadcast %cst_80 : f32 to vector<16x1xf32>
    %236 = arith.cmpf oge, %234, %235 : vector<16x1xf32>
    %cst_81 = arith.constant 1.500000e+01 : f32
    %237 = vector.broadcast %cst_81 : f32 to vector<16x1xf32>
    %238 = arith.cmpf ole, %234, %237 : vector<16x1xf32>
    %239 = arith.andi %236, %238 : vector<16x1xi1>
    %cst_82 = arith.constant 1.600000e+01 : f32
    %240 = vector.broadcast %cst_82 : f32 to vector<16x1xf32>
    %241 = arith.mulf %227, %240 : vector<16x1xf32>
    %242 = arith.addf %241, %234 : vector<16x1xf32>
    %243 = tpu.iota {dimensions = array<i32: 1>} : vector<16x32xi32>
    %244 = arith.sitofp %243 : vector<16x32xi32> to vector<16x32xf32>
    %245 = vector.broadcast %242 : vector<16x1xf32> to vector<16x32xf32>
    %246 = arith.cmpf oeq, %244, %245 : vector<16x32xf32>
    %247 = vector.broadcast %239 : vector<16x1xi1> to vector<16x32xi1>
    %248 = arith.andi %246, %247 : vector<16x32xi1>
    %249 = arith.extui %248 : vector<16x32xi1> to vector<16x32xi32>
    %250 = arith.sitofp %249 : vector<16x32xi32> to vector<16x32xf32>
    %cst_83 = arith.constant dense<0.000000e+00> : vector<16x8xf32>
    %251 = tpu.matmul %250, %144, %cst_83 {dimension_numbers = #tpu.dot_dimension_numbers<[1], [0], [0], [1], [0, 0, 1, 1], [], []>} : vector<16x32xf32>, vector<32x8xf32>, vector<16x8xf32> -> vector<16x8xf32>
    %cst_84 = arith.constant 0.000000e+00 : f32
    %cst_85 = arith.constant -1.000000e+30 : f32
    %252 = vector.broadcast %cst_84 : f32 to vector<16x1xf32>
    %253 = vector.broadcast %cst_85 : f32 to vector<16x1xf32>
    %254 = arith.select %239, %252, %253 : vector<16x1xi1>, vector<16x1xf32>
    %255 = vector.broadcast %254 : vector<16x1xf32> to vector<16x8xf32>
    %256 = arith.addf %251, %255 : vector<16x8xf32>
    %257 = arith.maximumf %219, %256 : vector<16x8xf32>
    %cst_86 = arith.constant 0.000000e+00 : f32
    %258 = vector.broadcast %cst_86 : f32 to vector<16x8xf32>
    %259 = tpu.iota {dimensions = array<i32: 0>} : vector<16x1xi32>
    %260 = arith.sitofp %259 : vector<16x1xi32> to vector<16x1xf32>
    %cst_87 = arith.constant 0.000000e+00 : f32
    %261 = vector.broadcast %cst_87 : f32 to vector<16x1xf32>
    %cst_88 = arith.constant 8.000000e+00 : f32
    %262 = vector.broadcast %cst_88 : f32 to vector<16x1xf32>
    %263 = arith.cmpf oge, %260, %262 : vector<16x1xf32>
    %264 = arith.extui %263 : vector<16x1xi1> to vector<16x1xi32>
    %265 = arith.sitofp %264 : vector<16x1xi32> to vector<16x1xf32>
    %266 = arith.addf %261, %265 : vector<16x1xf32>
    %cst_89 = arith.constant 8.000000e+00 : f32
    %267 = vector.broadcast %cst_89 : f32 to vector<16x1xf32>
    %268 = arith.mulf %266, %267 : vector<16x1xf32>
    %269 = arith.subf %260, %268 : vector<16x1xf32>
    %cst_90 = arith.constant 1.000000e+00 : f32
    %270 = vector.broadcast %cst_90 : f32 to vector<16x1xf32>
    %271 = arith.mulf %269, %270 : vector<16x1xf32>
    %cst_91 = arith.constant -1.000000e+00 : f32
    %272 = vector.broadcast %cst_91 : f32 to vector<16x1xf32>
    %273 = arith.addf %271, %272 : vector<16x1xf32>
    %cst_92 = arith.constant 0.000000e+00 : f32
    %274 = vector.broadcast %cst_92 : f32 to vector<16x1xf32>
    %275 = arith.cmpf oge, %273, %274 : vector<16x1xf32>
    %cst_93 = arith.constant 7.000000e+00 : f32
    %276 = vector.broadcast %cst_93 : f32 to vector<16x1xf32>
    %277 = arith.cmpf ole, %273, %276 : vector<16x1xf32>
    %278 = arith.andi %275, %277 : vector<16x1xi1>
    %cst_94 = arith.constant 8.000000e+00 : f32
    %279 = vector.broadcast %cst_94 : f32 to vector<16x1xf32>
    %280 = arith.mulf %266, %279 : vector<16x1xf32>
    %281 = arith.addf %280, %273 : vector<16x1xf32>
    %282 = tpu.iota {dimensions = array<i32: 1>} : vector<16x16xi32>
    %283 = arith.sitofp %282 : vector<16x16xi32> to vector<16x16xf32>
    %284 = vector.broadcast %281 : vector<16x1xf32> to vector<16x16xf32>
    %285 = arith.cmpf oeq, %283, %284 : vector<16x16xf32>
    %286 = vector.broadcast %278 : vector<16x1xi1> to vector<16x16xi1>
    %287 = arith.andi %285, %286 : vector<16x16xi1>
    %288 = arith.extui %287 : vector<16x16xi1> to vector<16x16xi32>
    %289 = arith.sitofp %288 : vector<16x16xi32> to vector<16x16xf32>
    %cst_95 = arith.constant dense<0.000000e+00> : vector<16x8xf32>
    %290 = tpu.matmul %289, %257, %cst_95 {dimension_numbers = #tpu.dot_dimension_numbers<[1], [0], [0], [1], [0, 0, 1, 1], [], []>} : vector<16x16xf32>, vector<16x8xf32>, vector<16x8xf32> -> vector<16x8xf32>
    %c0_96 = arith.constant 0 : index
    %c0_97 = arith.constant 0 : index
    %c0_98 = arith.constant 0 : index
    %291 = vector.load %arg8[%c0_96, %c0_97, %c0_98] : memref<3x8x8xf32, #tpu.memory_space<vmem>>, vector<1x8x8xf32>
    %292 = vector.shape_cast %291 : vector<1x8x8xf32> to vector<8x8xf32>
    %cst_99 = arith.constant dense<0.000000e+00> : vector<16x8xf32>
    %293 = tpu.matmul %290, %292, %cst_99 {dimension_numbers = #tpu.dot_dimension_numbers<[1], [0], [0], [1], [0, 0, 1, 1], [], []>} : vector<16x8xf32>, vector<8x8xf32>, vector<16x8xf32> -> vector<16x8xf32>
    %294 = arith.addf %258, %293 : vector<16x8xf32>
    %295 = tpu.iota {dimensions = array<i32: 0>} : vector<16x1xi32>
    %296 = arith.sitofp %295 : vector<16x1xi32> to vector<16x1xf32>
    %cst_100 = arith.constant 0.000000e+00 : f32
    %297 = vector.broadcast %cst_100 : f32 to vector<16x1xf32>
    %cst_101 = arith.constant 8.000000e+00 : f32
    %298 = vector.broadcast %cst_101 : f32 to vector<16x1xf32>
    %299 = arith.cmpf oge, %296, %298 : vector<16x1xf32>
    %300 = arith.extui %299 : vector<16x1xi1> to vector<16x1xi32>
    %301 = arith.sitofp %300 : vector<16x1xi32> to vector<16x1xf32>
    %302 = arith.addf %297, %301 : vector<16x1xf32>
    %cst_102 = arith.constant 8.000000e+00 : f32
    %303 = vector.broadcast %cst_102 : f32 to vector<16x1xf32>
    %304 = arith.mulf %302, %303 : vector<16x1xf32>
    %305 = arith.subf %296, %304 : vector<16x1xf32>
    %cst_103 = arith.constant 1.000000e+00 : f32
    %306 = vector.broadcast %cst_103 : f32 to vector<16x1xf32>
    %307 = arith.mulf %305, %306 : vector<16x1xf32>
    %cst_104 = arith.constant 0.000000e+00 : f32
    %308 = vector.broadcast %cst_104 : f32 to vector<16x1xf32>
    %309 = arith.addf %307, %308 : vector<16x1xf32>
    %cst_105 = arith.constant 0.000000e+00 : f32
    %310 = vector.broadcast %cst_105 : f32 to vector<16x1xf32>
    %311 = arith.cmpf oge, %309, %310 : vector<16x1xf32>
    %cst_106 = arith.constant 7.000000e+00 : f32
    %312 = vector.broadcast %cst_106 : f32 to vector<16x1xf32>
    %313 = arith.cmpf ole, %309, %312 : vector<16x1xf32>
    %314 = arith.andi %311, %313 : vector<16x1xi1>
    %cst_107 = arith.constant 8.000000e+00 : f32
    %315 = vector.broadcast %cst_107 : f32 to vector<16x1xf32>
    %316 = arith.mulf %302, %315 : vector<16x1xf32>
    %317 = arith.addf %316, %309 : vector<16x1xf32>
    %318 = tpu.iota {dimensions = array<i32: 1>} : vector<16x16xi32>
    %319 = arith.sitofp %318 : vector<16x16xi32> to vector<16x16xf32>
    %320 = vector.broadcast %317 : vector<16x1xf32> to vector<16x16xf32>
    %321 = arith.cmpf oeq, %319, %320 : vector<16x16xf32>
    %322 = vector.broadcast %314 : vector<16x1xi1> to vector<16x16xi1>
    %323 = arith.andi %321, %322 : vector<16x16xi1>
    %324 = arith.extui %323 : vector<16x16xi1> to vector<16x16xi32>
    %325 = arith.sitofp %324 : vector<16x16xi32> to vector<16x16xf32>
    %cst_108 = arith.constant dense<0.000000e+00> : vector<16x8xf32>
    %326 = tpu.matmul %325, %257, %cst_108 {dimension_numbers = #tpu.dot_dimension_numbers<[1], [0], [0], [1], [0, 0, 1, 1], [], []>} : vector<16x16xf32>, vector<16x8xf32>, vector<16x8xf32> -> vector<16x8xf32>
    %c1_109 = arith.constant 1 : index
    %c0_110 = arith.constant 0 : index
    %c0_111 = arith.constant 0 : index
    %327 = vector.load %arg8[%c1_109, %c0_110, %c0_111] : memref<3x8x8xf32, #tpu.memory_space<vmem>>, vector<1x8x8xf32>
    %328 = vector.shape_cast %327 : vector<1x8x8xf32> to vector<8x8xf32>
    %cst_112 = arith.constant dense<0.000000e+00> : vector<16x8xf32>
    %329 = tpu.matmul %326, %328, %cst_112 {dimension_numbers = #tpu.dot_dimension_numbers<[1], [0], [0], [1], [0, 0, 1, 1], [], []>} : vector<16x8xf32>, vector<8x8xf32>, vector<16x8xf32> -> vector<16x8xf32>
    %330 = arith.addf %294, %329 : vector<16x8xf32>
    %331 = tpu.iota {dimensions = array<i32: 0>} : vector<16x1xi32>
    %332 = arith.sitofp %331 : vector<16x1xi32> to vector<16x1xf32>
    %cst_113 = arith.constant 0.000000e+00 : f32
    %333 = vector.broadcast %cst_113 : f32 to vector<16x1xf32>
    %cst_114 = arith.constant 8.000000e+00 : f32
    %334 = vector.broadcast %cst_114 : f32 to vector<16x1xf32>
    %335 = arith.cmpf oge, %332, %334 : vector<16x1xf32>
    %336 = arith.extui %335 : vector<16x1xi1> to vector<16x1xi32>
    %337 = arith.sitofp %336 : vector<16x1xi32> to vector<16x1xf32>
    %338 = arith.addf %333, %337 : vector<16x1xf32>
    %cst_115 = arith.constant 8.000000e+00 : f32
    %339 = vector.broadcast %cst_115 : f32 to vector<16x1xf32>
    %340 = arith.mulf %338, %339 : vector<16x1xf32>
    %341 = arith.subf %332, %340 : vector<16x1xf32>
    %cst_116 = arith.constant 1.000000e+00 : f32
    %342 = vector.broadcast %cst_116 : f32 to vector<16x1xf32>
    %343 = arith.mulf %341, %342 : vector<16x1xf32>
    %cst_117 = arith.constant 1.000000e+00 : f32
    %344 = vector.broadcast %cst_117 : f32 to vector<16x1xf32>
    %345 = arith.addf %343, %344 : vector<16x1xf32>
    %cst_118 = arith.constant 0.000000e+00 : f32
    %346 = vector.broadcast %cst_118 : f32 to vector<16x1xf32>
    %347 = arith.cmpf oge, %345, %346 : vector<16x1xf32>
    %cst_119 = arith.constant 7.000000e+00 : f32
    %348 = vector.broadcast %cst_119 : f32 to vector<16x1xf32>
    %349 = arith.cmpf ole, %345, %348 : vector<16x1xf32>
    %350 = arith.andi %347, %349 : vector<16x1xi1>
    %cst_120 = arith.constant 8.000000e+00 : f32
    %351 = vector.broadcast %cst_120 : f32 to vector<16x1xf32>
    %352 = arith.mulf %338, %351 : vector<16x1xf32>
    %353 = arith.addf %352, %345 : vector<16x1xf32>
    %354 = tpu.iota {dimensions = array<i32: 1>} : vector<16x16xi32>
    %355 = arith.sitofp %354 : vector<16x16xi32> to vector<16x16xf32>
    %356 = vector.broadcast %353 : vector<16x1xf32> to vector<16x16xf32>
    %357 = arith.cmpf oeq, %355, %356 : vector<16x16xf32>
    %358 = vector.broadcast %350 : vector<16x1xi1> to vector<16x16xi1>
    %359 = arith.andi %357, %358 : vector<16x16xi1>
    %360 = arith.extui %359 : vector<16x16xi1> to vector<16x16xi32>
    %361 = arith.sitofp %360 : vector<16x16xi32> to vector<16x16xf32>
    %cst_121 = arith.constant dense<0.000000e+00> : vector<16x8xf32>
    %362 = tpu.matmul %361, %257, %cst_121 {dimension_numbers = #tpu.dot_dimension_numbers<[1], [0], [0], [1], [0, 0, 1, 1], [], []>} : vector<16x16xf32>, vector<16x8xf32>, vector<16x8xf32> -> vector<16x8xf32>
    %c2_122 = arith.constant 2 : index
    %c0_123 = arith.constant 0 : index
    %c0_124 = arith.constant 0 : index
    %363 = vector.load %arg8[%c2_122, %c0_123, %c0_124] : memref<3x8x8xf32, #tpu.memory_space<vmem>>, vector<1x8x8xf32>
    %364 = vector.shape_cast %363 : vector<1x8x8xf32> to vector<8x8xf32>
    %cst_125 = arith.constant dense<0.000000e+00> : vector<16x8xf32>
    %365 = tpu.matmul %362, %364, %cst_125 {dimension_numbers = #tpu.dot_dimension_numbers<[1], [0], [0], [1], [0, 0, 1, 1], [], []>} : vector<16x8xf32>, vector<8x8xf32>, vector<16x8xf32> -> vector<16x8xf32>
    %366 = arith.addf %330, %365 : vector<16x8xf32>
    %c0_126 = arith.constant 0 : index
    %c0_127 = arith.constant 0 : index
    %367 = vector.load %arg9[%c0_126, %c0_127] : memref<1x8xf32, #tpu.memory_space<vmem>>, vector<1x8xf32>
    %368 = vector.broadcast %367 : vector<1x8xf32> to vector<16x8xf32>
    %369 = arith.addf %366, %368 : vector<16x8xf32>
    %cst_128 = arith.constant dense<0.000000e+00> : vector<8xf32>
    %370 = vector.multi_reduction <add>, %369, %cst_128 [0] : vector<16x8xf32> to vector<8xf32>
    %371 = vector.shape_cast %370 : vector<8xf32> to vector<1x8xf32>
    %cst_129 = arith.constant 1.600000e+01 : f32
    %372 = vector.broadcast %cst_129 : f32 to vector<1x8xf32>
    %373 = arith.divf %371, %372 : vector<1x8xf32>
    %374 = vector.broadcast %373 : vector<1x8xf32> to vector<16x8xf32>
    %375 = arith.subf %369, %374 : vector<16x8xf32>
    %376 = arith.mulf %375, %375 : vector<16x8xf32>
    %cst_130 = arith.constant dense<0.000000e+00> : vector<8xf32>
    %377 = vector.multi_reduction <add>, %376, %cst_130 [0] : vector<16x8xf32> to vector<8xf32>
    %378 = vector.shape_cast %377 : vector<8xf32> to vector<1x8xf32>
    %cst_131 = arith.constant 1.600000e+01 : f32
    %379 = vector.broadcast %cst_131 : f32 to vector<1x8xf32>
    %380 = arith.divf %378, %379 : vector<1x8xf32>
    %381 = vector.broadcast %373 : vector<1x8xf32> to vector<16x8xf32>
    %382 = arith.subf %369, %381 : vector<16x8xf32>
    %c0_132 = arith.constant 0 : index
    %c0_133 = arith.constant 0 : index
    %383 = vector.load %arg10[%c0_132, %c0_133] : memref<1x8xf32, #tpu.memory_space<vmem>>, vector<1x8xf32>
    %cst_134 = arith.constant 9.99999974E-6 : f32
    %384 = vector.broadcast %cst_134 : f32 to vector<1x8xf32>
    %385 = arith.addf %380, %384 : vector<1x8xf32>
    %386 = math.rsqrt %385 : vector<1x8xf32>
    %387 = arith.mulf %383, %386 : vector<1x8xf32>
    %388 = vector.broadcast %387 : vector<1x8xf32> to vector<16x8xf32>
    %389 = arith.mulf %382, %388 : vector<16x8xf32>
    %c0_135 = arith.constant 0 : index
    %c0_136 = arith.constant 0 : index
    %390 = vector.load %arg11[%c0_135, %c0_136] : memref<1x8xf32, #tpu.memory_space<vmem>>, vector<1x8xf32>
    %391 = vector.broadcast %390 : vector<1x8xf32> to vector<16x8xf32>
    %392 = arith.addf %389, %391 : vector<16x8xf32>
    %cst_137 = arith.constant 0.000000e+00 : f32
    %393 = vector.broadcast %cst_137 : f32 to vector<16x8xf32>
    %394 = arith.maximumf %392, %393 : vector<16x8xf32>
    %cst_138 = arith.constant 0.000000e+00 : f32
    %395 = vector.broadcast %cst_138 : f32 to vector<16x8xf32>
    %396 = tpu.iota {dimensions = array<i32: 0>} : vector<16x1xi32>
    %397 = arith.sitofp %396 : vector<16x1xi32> to vector<16x1xf32>
    %cst_139 = arith.constant 0.000000e+00 : f32
    %398 = vector.broadcast %cst_139 : f32 to vector<16x1xf32>
    %cst_140 = arith.constant 8.000000e+00 : f32
    %399 = vector.broadcast %cst_140 : f32 to vector<16x1xf32>
    %400 = arith.cmpf oge, %397, %399 : vector<16x1xf32>
    %401 = arith.extui %400 : vector<16x1xi1> to vector<16x1xi32>
    %402 = arith.sitofp %401 : vector<16x1xi32> to vector<16x1xf32>
    %403 = arith.addf %398, %402 : vector<16x1xf32>
    %cst_141 = arith.constant 8.000000e+00 : f32
    %404 = vector.broadcast %cst_141 : f32 to vector<16x1xf32>
    %405 = arith.mulf %403, %404 : vector<16x1xf32>
    %406 = arith.subf %397, %405 : vector<16x1xf32>
    %cst_142 = arith.constant 1.000000e+00 : f32
    %407 = vector.broadcast %cst_142 : f32 to vector<16x1xf32>
    %408 = arith.mulf %406, %407 : vector<16x1xf32>
    %cst_143 = arith.constant -1.000000e+00 : f32
    %409 = vector.broadcast %cst_143 : f32 to vector<16x1xf32>
    %410 = arith.addf %408, %409 : vector<16x1xf32>
    %cst_144 = arith.constant 0.000000e+00 : f32
    %411 = vector.broadcast %cst_144 : f32 to vector<16x1xf32>
    %412 = arith.cmpf oge, %410, %411 : vector<16x1xf32>
    %cst_145 = arith.constant 7.000000e+00 : f32
    %413 = vector.broadcast %cst_145 : f32 to vector<16x1xf32>
    %414 = arith.cmpf ole, %410, %413 : vector<16x1xf32>
    %415 = arith.andi %412, %414 : vector<16x1xi1>
    %cst_146 = arith.constant 8.000000e+00 : f32
    %416 = vector.broadcast %cst_146 : f32 to vector<16x1xf32>
    %417 = arith.mulf %403, %416 : vector<16x1xf32>
    %418 = arith.addf %417, %410 : vector<16x1xf32>
    %419 = tpu.iota {dimensions = array<i32: 1>} : vector<16x16xi32>
    %420 = arith.sitofp %419 : vector<16x16xi32> to vector<16x16xf32>
    %421 = vector.broadcast %418 : vector<16x1xf32> to vector<16x16xf32>
    %422 = arith.cmpf oeq, %420, %421 : vector<16x16xf32>
    %423 = vector.broadcast %415 : vector<16x1xi1> to vector<16x16xi1>
    %424 = arith.andi %422, %423 : vector<16x16xi1>
    %425 = arith.extui %424 : vector<16x16xi1> to vector<16x16xi32>
    %426 = arith.sitofp %425 : vector<16x16xi32> to vector<16x16xf32>
    %cst_147 = arith.constant dense<0.000000e+00> : vector<16x8xf32>
    %427 = tpu.matmul %426, %394, %cst_147 {dimension_numbers = #tpu.dot_dimension_numbers<[1], [0], [0], [1], [0, 0, 1, 1], [], []>} : vector<16x16xf32>, vector<16x8xf32>, vector<16x8xf32> -> vector<16x8xf32>
    %c0_148 = arith.constant 0 : index
    %c0_149 = arith.constant 0 : index
    %c0_150 = arith.constant 0 : index
    %428 = vector.load %arg12[%c0_148, %c0_149, %c0_150] : memref<3x8x8xf32, #tpu.memory_space<vmem>>, vector<1x8x8xf32>
    %429 = vector.shape_cast %428 : vector<1x8x8xf32> to vector<8x8xf32>
    %cst_151 = arith.constant dense<0.000000e+00> : vector<16x8xf32>
    %430 = tpu.matmul %427, %429, %cst_151 {dimension_numbers = #tpu.dot_dimension_numbers<[1], [0], [0], [1], [0, 0, 1, 1], [], []>} : vector<16x8xf32>, vector<8x8xf32>, vector<16x8xf32> -> vector<16x8xf32>
    %431 = arith.addf %395, %430 : vector<16x8xf32>
    %432 = tpu.iota {dimensions = array<i32: 0>} : vector<16x1xi32>
    %433 = arith.sitofp %432 : vector<16x1xi32> to vector<16x1xf32>
    %cst_152 = arith.constant 0.000000e+00 : f32
    %434 = vector.broadcast %cst_152 : f32 to vector<16x1xf32>
    %cst_153 = arith.constant 8.000000e+00 : f32
    %435 = vector.broadcast %cst_153 : f32 to vector<16x1xf32>
    %436 = arith.cmpf oge, %433, %435 : vector<16x1xf32>
    %437 = arith.extui %436 : vector<16x1xi1> to vector<16x1xi32>
    %438 = arith.sitofp %437 : vector<16x1xi32> to vector<16x1xf32>
    %439 = arith.addf %434, %438 : vector<16x1xf32>
    %cst_154 = arith.constant 8.000000e+00 : f32
    %440 = vector.broadcast %cst_154 : f32 to vector<16x1xf32>
    %441 = arith.mulf %439, %440 : vector<16x1xf32>
    %442 = arith.subf %433, %441 : vector<16x1xf32>
    %cst_155 = arith.constant 1.000000e+00 : f32
    %443 = vector.broadcast %cst_155 : f32 to vector<16x1xf32>
    %444 = arith.mulf %442, %443 : vector<16x1xf32>
    %cst_156 = arith.constant 0.000000e+00 : f32
    %445 = vector.broadcast %cst_156 : f32 to vector<16x1xf32>
    %446 = arith.addf %444, %445 : vector<16x1xf32>
    %cst_157 = arith.constant 0.000000e+00 : f32
    %447 = vector.broadcast %cst_157 : f32 to vector<16x1xf32>
    %448 = arith.cmpf oge, %446, %447 : vector<16x1xf32>
    %cst_158 = arith.constant 7.000000e+00 : f32
    %449 = vector.broadcast %cst_158 : f32 to vector<16x1xf32>
    %450 = arith.cmpf ole, %446, %449 : vector<16x1xf32>
    %451 = arith.andi %448, %450 : vector<16x1xi1>
    %cst_159 = arith.constant 8.000000e+00 : f32
    %452 = vector.broadcast %cst_159 : f32 to vector<16x1xf32>
    %453 = arith.mulf %439, %452 : vector<16x1xf32>
    %454 = arith.addf %453, %446 : vector<16x1xf32>
    %455 = tpu.iota {dimensions = array<i32: 1>} : vector<16x16xi32>
    %456 = arith.sitofp %455 : vector<16x16xi32> to vector<16x16xf32>
    %457 = vector.broadcast %454 : vector<16x1xf32> to vector<16x16xf32>
    %458 = arith.cmpf oeq, %456, %457 : vector<16x16xf32>
    %459 = vector.broadcast %451 : vector<16x1xi1> to vector<16x16xi1>
    %460 = arith.andi %458, %459 : vector<16x16xi1>
    %461 = arith.extui %460 : vector<16x16xi1> to vector<16x16xi32>
    %462 = arith.sitofp %461 : vector<16x16xi32> to vector<16x16xf32>
    %cst_160 = arith.constant dense<0.000000e+00> : vector<16x8xf32>
    %463 = tpu.matmul %462, %394, %cst_160 {dimension_numbers = #tpu.dot_dimension_numbers<[1], [0], [0], [1], [0, 0, 1, 1], [], []>} : vector<16x16xf32>, vector<16x8xf32>, vector<16x8xf32> -> vector<16x8xf32>
    %c1_161 = arith.constant 1 : index
    %c0_162 = arith.constant 0 : index
    %c0_163 = arith.constant 0 : index
    %464 = vector.load %arg12[%c1_161, %c0_162, %c0_163] : memref<3x8x8xf32, #tpu.memory_space<vmem>>, vector<1x8x8xf32>
    %465 = vector.shape_cast %464 : vector<1x8x8xf32> to vector<8x8xf32>
    %cst_164 = arith.constant dense<0.000000e+00> : vector<16x8xf32>
    %466 = tpu.matmul %463, %465, %cst_164 {dimension_numbers = #tpu.dot_dimension_numbers<[1], [0], [0], [1], [0, 0, 1, 1], [], []>} : vector<16x8xf32>, vector<8x8xf32>, vector<16x8xf32> -> vector<16x8xf32>
    %467 = arith.addf %431, %466 : vector<16x8xf32>
    %468 = tpu.iota {dimensions = array<i32: 0>} : vector<16x1xi32>
    %469 = arith.sitofp %468 : vector<16x1xi32> to vector<16x1xf32>
    %cst_165 = arith.constant 0.000000e+00 : f32
    %470 = vector.broadcast %cst_165 : f32 to vector<16x1xf32>
    %cst_166 = arith.constant 8.000000e+00 : f32
    %471 = vector.broadcast %cst_166 : f32 to vector<16x1xf32>
    %472 = arith.cmpf oge, %469, %471 : vector<16x1xf32>
    %473 = arith.extui %472 : vector<16x1xi1> to vector<16x1xi32>
    %474 = arith.sitofp %473 : vector<16x1xi32> to vector<16x1xf32>
    %475 = arith.addf %470, %474 : vector<16x1xf32>
    %cst_167 = arith.constant 8.000000e+00 : f32
    %476 = vector.broadcast %cst_167 : f32 to vector<16x1xf32>
    %477 = arith.mulf %475, %476 : vector<16x1xf32>
    %478 = arith.subf %469, %477 : vector<16x1xf32>
    %cst_168 = arith.constant 1.000000e+00 : f32
    %479 = vector.broadcast %cst_168 : f32 to vector<16x1xf32>
    %480 = arith.mulf %478, %479 : vector<16x1xf32>
    %cst_169 = arith.constant 1.000000e+00 : f32
    %481 = vector.broadcast %cst_169 : f32 to vector<16x1xf32>
    %482 = arith.addf %480, %481 : vector<16x1xf32>
    %cst_170 = arith.constant 0.000000e+00 : f32
    %483 = vector.broadcast %cst_170 : f32 to vector<16x1xf32>
    %484 = arith.cmpf oge, %482, %483 : vector<16x1xf32>
    %cst_171 = arith.constant 7.000000e+00 : f32
    %485 = vector.broadcast %cst_171 : f32 to vector<16x1xf32>
    %486 = arith.cmpf ole, %482, %485 : vector<16x1xf32>
    %487 = arith.andi %484, %486 : vector<16x1xi1>
    %cst_172 = arith.constant 8.000000e+00 : f32
    %488 = vector.broadcast %cst_172 : f32 to vector<16x1xf32>
    %489 = arith.mulf %475, %488 : vector<16x1xf32>
    %490 = arith.addf %489, %482 : vector<16x1xf32>
    %491 = tpu.iota {dimensions = array<i32: 1>} : vector<16x16xi32>
    %492 = arith.sitofp %491 : vector<16x16xi32> to vector<16x16xf32>
    %493 = vector.broadcast %490 : vector<16x1xf32> to vector<16x16xf32>
    %494 = arith.cmpf oeq, %492, %493 : vector<16x16xf32>
    %495 = vector.broadcast %487 : vector<16x1xi1> to vector<16x16xi1>
    %496 = arith.andi %494, %495 : vector<16x16xi1>
    %497 = arith.extui %496 : vector<16x16xi1> to vector<16x16xi32>
    %498 = arith.sitofp %497 : vector<16x16xi32> to vector<16x16xf32>
    %cst_173 = arith.constant dense<0.000000e+00> : vector<16x8xf32>
    %499 = tpu.matmul %498, %394, %cst_173 {dimension_numbers = #tpu.dot_dimension_numbers<[1], [0], [0], [1], [0, 0, 1, 1], [], []>} : vector<16x16xf32>, vector<16x8xf32>, vector<16x8xf32> -> vector<16x8xf32>
    %c2_174 = arith.constant 2 : index
    %c0_175 = arith.constant 0 : index
    %c0_176 = arith.constant 0 : index
    %500 = vector.load %arg12[%c2_174, %c0_175, %c0_176] : memref<3x8x8xf32, #tpu.memory_space<vmem>>, vector<1x8x8xf32>
    %501 = vector.shape_cast %500 : vector<1x8x8xf32> to vector<8x8xf32>
    %cst_177 = arith.constant dense<0.000000e+00> : vector<16x8xf32>
    %502 = tpu.matmul %499, %501, %cst_177 {dimension_numbers = #tpu.dot_dimension_numbers<[1], [0], [0], [1], [0, 0, 1, 1], [], []>} : vector<16x8xf32>, vector<8x8xf32>, vector<16x8xf32> -> vector<16x8xf32>
    %503 = arith.addf %467, %502 : vector<16x8xf32>
    %c0_178 = arith.constant 0 : index
    %c0_179 = arith.constant 0 : index
    %504 = vector.load %arg13[%c0_178, %c0_179] : memref<1x8xf32, #tpu.memory_space<vmem>>, vector<1x8xf32>
    %505 = vector.broadcast %504 : vector<1x8xf32> to vector<16x8xf32>
    %506 = arith.addf %503, %505 : vector<16x8xf32>
    %cst_180 = arith.constant dense<0.000000e+00> : vector<8xf32>
    %507 = vector.multi_reduction <add>, %506, %cst_180 [0] : vector<16x8xf32> to vector<8xf32>
    %508 = vector.shape_cast %507 : vector<8xf32> to vector<1x8xf32>
    %cst_181 = arith.constant 1.600000e+01 : f32
    %509 = vector.broadcast %cst_181 : f32 to vector<1x8xf32>
    %510 = arith.divf %508, %509 : vector<1x8xf32>
    %511 = vector.broadcast %510 : vector<1x8xf32> to vector<16x8xf32>
    %512 = arith.subf %506, %511 : vector<16x8xf32>
    %513 = arith.mulf %512, %512 : vector<16x8xf32>
    %cst_182 = arith.constant dense<0.000000e+00> : vector<8xf32>
    %514 = vector.multi_reduction <add>, %513, %cst_182 [0] : vector<16x8xf32> to vector<8xf32>
    %515 = vector.shape_cast %514 : vector<8xf32> to vector<1x8xf32>
    %cst_183 = arith.constant 1.600000e+01 : f32
    %516 = vector.broadcast %cst_183 : f32 to vector<1x8xf32>
    %517 = arith.divf %515, %516 : vector<1x8xf32>
    %518 = vector.broadcast %510 : vector<1x8xf32> to vector<16x8xf32>
    %519 = arith.subf %506, %518 : vector<16x8xf32>
    %c0_184 = arith.constant 0 : index
    %c0_185 = arith.constant 0 : index
    %520 = vector.load %arg14[%c0_184, %c0_185] : memref<1x8xf32, #tpu.memory_space<vmem>>, vector<1x8xf32>
    %cst_186 = arith.constant 9.99999974E-6 : f32
    %521 = vector.broadcast %cst_186 : f32 to vector<1x8xf32>
    %522 = arith.addf %517, %521 : vector<1x8xf32>
    %523 = math.rsqrt %522 : vector<1x8xf32>
    %524 = arith.mulf %520, %523 : vector<1x8xf32>
    %525 = vector.broadcast %524 : vector<1x8xf32> to vector<16x8xf32>
    %526 = arith.mulf %519, %525 : vector<16x8xf32>
    %c0_187 = arith.constant 0 : index
    %c0_188 = arith.constant 0 : index
    %527 = vector.load %arg15[%c0_187, %c0_188] : memref<1x8xf32, #tpu.memory_space<vmem>>, vector<1x8xf32>
    %528 = vector.broadcast %527 : vector<1x8xf32> to vector<16x8xf32>
    %529 = arith.addf %526, %528 : vector<16x8xf32>
    %530 = arith.addf %529, %257 : vector<16x8xf32>
    %cst_189 = arith.constant 0.000000e+00 : f32
    %531 = vector.broadcast %cst_189 : f32 to vector<16x8xf32>
    %532 = arith.maximumf %530, %531 : vector<16x8xf32>
    %cst_190 = arith.constant 0.000000e+00 : f32
    %533 = vector.broadcast %cst_190 : f32 to vector<8x16xf32>
    %534 = tpu.iota {dimensions = array<i32: 0>} : vector<8x1xi32>
    %535 = arith.sitofp %534 : vector<8x1xi32> to vector<8x1xf32>
    %cst_191 = arith.constant 0.000000e+00 : f32
    %536 = vector.broadcast %cst_191 : f32 to vector<8x1xf32>
    %cst_192 = arith.constant 4.000000e+00 : f32
    %537 = vector.broadcast %cst_192 : f32 to vector<8x1xf32>
    %538 = arith.cmpf oge, %535, %537 : vector<8x1xf32>
    %539 = arith.extui %538 : vector<8x1xi1> to vector<8x1xi32>
    %540 = arith.sitofp %539 : vector<8x1xi32> to vector<8x1xf32>
    %541 = arith.addf %536, %540 : vector<8x1xf32>
    %cst_193 = arith.constant 4.000000e+00 : f32
    %542 = vector.broadcast %cst_193 : f32 to vector<8x1xf32>
    %543 = arith.mulf %541, %542 : vector<8x1xf32>
    %544 = arith.subf %535, %543 : vector<8x1xf32>
    %cst_194 = arith.constant 2.000000e+00 : f32
    %545 = vector.broadcast %cst_194 : f32 to vector<8x1xf32>
    %546 = arith.mulf %544, %545 : vector<8x1xf32>
    %cst_195 = arith.constant -1.000000e+00 : f32
    %547 = vector.broadcast %cst_195 : f32 to vector<8x1xf32>
    %548 = arith.addf %546, %547 : vector<8x1xf32>
    %cst_196 = arith.constant 0.000000e+00 : f32
    %549 = vector.broadcast %cst_196 : f32 to vector<8x1xf32>
    %550 = arith.cmpf oge, %548, %549 : vector<8x1xf32>
    %cst_197 = arith.constant 7.000000e+00 : f32
    %551 = vector.broadcast %cst_197 : f32 to vector<8x1xf32>
    %552 = arith.cmpf ole, %548, %551 : vector<8x1xf32>
    %553 = arith.andi %550, %552 : vector<8x1xi1>
    %cst_198 = arith.constant 8.000000e+00 : f32
    %554 = vector.broadcast %cst_198 : f32 to vector<8x1xf32>
    %555 = arith.mulf %541, %554 : vector<8x1xf32>
    %556 = arith.addf %555, %548 : vector<8x1xf32>
    %557 = tpu.iota {dimensions = array<i32: 1>} : vector<8x16xi32>
    %558 = arith.sitofp %557 : vector<8x16xi32> to vector<8x16xf32>
    %559 = vector.broadcast %556 : vector<8x1xf32> to vector<8x16xf32>
    %560 = arith.cmpf oeq, %558, %559 : vector<8x16xf32>
    %561 = vector.broadcast %553 : vector<8x1xi1> to vector<8x16xi1>
    %562 = arith.andi %560, %561 : vector<8x16xi1>
    %563 = arith.extui %562 : vector<8x16xi1> to vector<8x16xi32>
    %564 = arith.sitofp %563 : vector<8x16xi32> to vector<8x16xf32>
    %cst_199 = arith.constant dense<0.000000e+00> : vector<8x8xf32>
    %565 = tpu.matmul %564, %532, %cst_199 {dimension_numbers = #tpu.dot_dimension_numbers<[1], [0], [0], [1], [0, 0, 1, 1], [], []>} : vector<8x16xf32>, vector<16x8xf32>, vector<8x8xf32> -> vector<8x8xf32>
    %c0_200 = arith.constant 0 : index
    %c0_201 = arith.constant 0 : index
    %c0_202 = arith.constant 0 : index
    %566 = vector.load %arg16[%c0_200, %c0_201, %c0_202] : memref<3x8x16xf32, #tpu.memory_space<vmem>>, vector<1x8x16xf32>
    %567 = vector.shape_cast %566 : vector<1x8x16xf32> to vector<8x16xf32>
    %cst_203 = arith.constant dense<0.000000e+00> : vector<8x16xf32>
    %568 = tpu.matmul %565, %567, %cst_203 {dimension_numbers = #tpu.dot_dimension_numbers<[1], [0], [0], [1], [0, 0, 1, 1], [], []>} : vector<8x8xf32>, vector<8x16xf32>, vector<8x16xf32> -> vector<8x16xf32>
    %569 = arith.addf %533, %568 : vector<8x16xf32>
    %570 = tpu.iota {dimensions = array<i32: 0>} : vector<8x1xi32>
    %571 = arith.sitofp %570 : vector<8x1xi32> to vector<8x1xf32>
    %cst_204 = arith.constant 0.000000e+00 : f32
    %572 = vector.broadcast %cst_204 : f32 to vector<8x1xf32>
    %cst_205 = arith.constant 4.000000e+00 : f32
    %573 = vector.broadcast %cst_205 : f32 to vector<8x1xf32>
    %574 = arith.cmpf oge, %571, %573 : vector<8x1xf32>
    %575 = arith.extui %574 : vector<8x1xi1> to vector<8x1xi32>
    %576 = arith.sitofp %575 : vector<8x1xi32> to vector<8x1xf32>
    %577 = arith.addf %572, %576 : vector<8x1xf32>
    %cst_206 = arith.constant 4.000000e+00 : f32
    %578 = vector.broadcast %cst_206 : f32 to vector<8x1xf32>
    %579 = arith.mulf %577, %578 : vector<8x1xf32>
    %580 = arith.subf %571, %579 : vector<8x1xf32>
    %cst_207 = arith.constant 2.000000e+00 : f32
    %581 = vector.broadcast %cst_207 : f32 to vector<8x1xf32>
    %582 = arith.mulf %580, %581 : vector<8x1xf32>
    %cst_208 = arith.constant 0.000000e+00 : f32
    %583 = vector.broadcast %cst_208 : f32 to vector<8x1xf32>
    %584 = arith.addf %582, %583 : vector<8x1xf32>
    %cst_209 = arith.constant 0.000000e+00 : f32
    %585 = vector.broadcast %cst_209 : f32 to vector<8x1xf32>
    %586 = arith.cmpf oge, %584, %585 : vector<8x1xf32>
    %cst_210 = arith.constant 7.000000e+00 : f32
    %587 = vector.broadcast %cst_210 : f32 to vector<8x1xf32>
    %588 = arith.cmpf ole, %584, %587 : vector<8x1xf32>
    %589 = arith.andi %586, %588 : vector<8x1xi1>
    %cst_211 = arith.constant 8.000000e+00 : f32
    %590 = vector.broadcast %cst_211 : f32 to vector<8x1xf32>
    %591 = arith.mulf %577, %590 : vector<8x1xf32>
    %592 = arith.addf %591, %584 : vector<8x1xf32>
    %593 = tpu.iota {dimensions = array<i32: 1>} : vector<8x16xi32>
    %594 = arith.sitofp %593 : vector<8x16xi32> to vector<8x16xf32>
    %595 = vector.broadcast %592 : vector<8x1xf32> to vector<8x16xf32>
    %596 = arith.cmpf oeq, %594, %595 : vector<8x16xf32>
    %597 = vector.broadcast %589 : vector<8x1xi1> to vector<8x16xi1>
    %598 = arith.andi %596, %597 : vector<8x16xi1>
    %599 = arith.extui %598 : vector<8x16xi1> to vector<8x16xi32>
    %600 = arith.sitofp %599 : vector<8x16xi32> to vector<8x16xf32>
    %cst_212 = arith.constant dense<0.000000e+00> : vector<8x8xf32>
    %601 = tpu.matmul %600, %532, %cst_212 {dimension_numbers = #tpu.dot_dimension_numbers<[1], [0], [0], [1], [0, 0, 1, 1], [], []>} : vector<8x16xf32>, vector<16x8xf32>, vector<8x8xf32> -> vector<8x8xf32>
    %c1_213 = arith.constant 1 : index
    %c0_214 = arith.constant 0 : index
    %c0_215 = arith.constant 0 : index
    %602 = vector.load %arg16[%c1_213, %c0_214, %c0_215] : memref<3x8x16xf32, #tpu.memory_space<vmem>>, vector<1x8x16xf32>
    %603 = vector.shape_cast %602 : vector<1x8x16xf32> to vector<8x16xf32>
    %cst_216 = arith.constant dense<0.000000e+00> : vector<8x16xf32>
    %604 = tpu.matmul %601, %603, %cst_216 {dimension_numbers = #tpu.dot_dimension_numbers<[1], [0], [0], [1], [0, 0, 1, 1], [], []>} : vector<8x8xf32>, vector<8x16xf32>, vector<8x16xf32> -> vector<8x16xf32>
    %605 = arith.addf %569, %604 : vector<8x16xf32>
    %606 = tpu.iota {dimensions = array<i32: 0>} : vector<8x1xi32>
    %607 = arith.sitofp %606 : vector<8x1xi32> to vector<8x1xf32>
    %cst_217 = arith.constant 0.000000e+00 : f32
    %608 = vector.broadcast %cst_217 : f32 to vector<8x1xf32>
    %cst_218 = arith.constant 4.000000e+00 : f32
    %609 = vector.broadcast %cst_218 : f32 to vector<8x1xf32>
    %610 = arith.cmpf oge, %607, %609 : vector<8x1xf32>
    %611 = arith.extui %610 : vector<8x1xi1> to vector<8x1xi32>
    %612 = arith.sitofp %611 : vector<8x1xi32> to vector<8x1xf32>
    %613 = arith.addf %608, %612 : vector<8x1xf32>
    %cst_219 = arith.constant 4.000000e+00 : f32
    %614 = vector.broadcast %cst_219 : f32 to vector<8x1xf32>
    %615 = arith.mulf %613, %614 : vector<8x1xf32>
    %616 = arith.subf %607, %615 : vector<8x1xf32>
    %cst_220 = arith.constant 2.000000e+00 : f32
    %617 = vector.broadcast %cst_220 : f32 to vector<8x1xf32>
    %618 = arith.mulf %616, %617 : vector<8x1xf32>
    %cst_221 = arith.constant 1.000000e+00 : f32
    %619 = vector.broadcast %cst_221 : f32 to vector<8x1xf32>
    %620 = arith.addf %618, %619 : vector<8x1xf32>
    %cst_222 = arith.constant 0.000000e+00 : f32
    %621 = vector.broadcast %cst_222 : f32 to vector<8x1xf32>
    %622 = arith.cmpf oge, %620, %621 : vector<8x1xf32>
    %cst_223 = arith.constant 7.000000e+00 : f32
    %623 = vector.broadcast %cst_223 : f32 to vector<8x1xf32>
    %624 = arith.cmpf ole, %620, %623 : vector<8x1xf32>
    %625 = arith.andi %622, %624 : vector<8x1xi1>
    %cst_224 = arith.constant 8.000000e+00 : f32
    %626 = vector.broadcast %cst_224 : f32 to vector<8x1xf32>
    %627 = arith.mulf %613, %626 : vector<8x1xf32>
    %628 = arith.addf %627, %620 : vector<8x1xf32>
    %629 = tpu.iota {dimensions = array<i32: 1>} : vector<8x16xi32>
    %630 = arith.sitofp %629 : vector<8x16xi32> to vector<8x16xf32>
    %631 = vector.broadcast %628 : vector<8x1xf32> to vector<8x16xf32>
    %632 = arith.cmpf oeq, %630, %631 : vector<8x16xf32>
    %633 = vector.broadcast %625 : vector<8x1xi1> to vector<8x16xi1>
    %634 = arith.andi %632, %633 : vector<8x16xi1>
    %635 = arith.extui %634 : vector<8x16xi1> to vector<8x16xi32>
    %636 = arith.sitofp %635 : vector<8x16xi32> to vector<8x16xf32>
    %cst_225 = arith.constant dense<0.000000e+00> : vector<8x8xf32>
    %637 = tpu.matmul %636, %532, %cst_225 {dimension_numbers = #tpu.dot_dimension_numbers<[1], [0], [0], [1], [0, 0, 1, 1], [], []>} : vector<8x16xf32>, vector<16x8xf32>, vector<8x8xf32> -> vector<8x8xf32>
    %c2_226 = arith.constant 2 : index
    %c0_227 = arith.constant 0 : index
    %c0_228 = arith.constant 0 : index
    %638 = vector.load %arg16[%c2_226, %c0_227, %c0_228] : memref<3x8x16xf32, #tpu.memory_space<vmem>>, vector<1x8x16xf32>
    %639 = vector.shape_cast %638 : vector<1x8x16xf32> to vector<8x16xf32>
    %cst_229 = arith.constant dense<0.000000e+00> : vector<8x16xf32>
    %640 = tpu.matmul %637, %639, %cst_229 {dimension_numbers = #tpu.dot_dimension_numbers<[1], [0], [0], [1], [0, 0, 1, 1], [], []>} : vector<8x8xf32>, vector<8x16xf32>, vector<8x16xf32> -> vector<8x16xf32>
    %641 = arith.addf %605, %640 : vector<8x16xf32>
    %c0_230 = arith.constant 0 : index
    %c0_231 = arith.constant 0 : index
    %642 = vector.load %arg17[%c0_230, %c0_231] : memref<1x16xf32, #tpu.memory_space<vmem>>, vector<1x16xf32>
    %643 = vector.broadcast %642 : vector<1x16xf32> to vector<8x16xf32>
    %644 = arith.addf %641, %643 : vector<8x16xf32>
    %cst_232 = arith.constant dense<0.000000e+00> : vector<16xf32>
    %645 = vector.multi_reduction <add>, %644, %cst_232 [0] : vector<8x16xf32> to vector<16xf32>
    %646 = vector.shape_cast %645 : vector<16xf32> to vector<1x16xf32>
    %cst_233 = arith.constant 8.000000e+00 : f32
    %647 = vector.broadcast %cst_233 : f32 to vector<1x16xf32>
    %648 = arith.divf %646, %647 : vector<1x16xf32>
    %649 = vector.broadcast %648 : vector<1x16xf32> to vector<8x16xf32>
    %650 = arith.subf %644, %649 : vector<8x16xf32>
    %651 = arith.mulf %650, %650 : vector<8x16xf32>
    %cst_234 = arith.constant dense<0.000000e+00> : vector<16xf32>
    %652 = vector.multi_reduction <add>, %651, %cst_234 [0] : vector<8x16xf32> to vector<16xf32>
    %653 = vector.shape_cast %652 : vector<16xf32> to vector<1x16xf32>
    %cst_235 = arith.constant 8.000000e+00 : f32
    %654 = vector.broadcast %cst_235 : f32 to vector<1x16xf32>
    %655 = arith.divf %653, %654 : vector<1x16xf32>
    %656 = vector.broadcast %648 : vector<1x16xf32> to vector<8x16xf32>
    %657 = arith.subf %644, %656 : vector<8x16xf32>
    %c0_236 = arith.constant 0 : index
    %c0_237 = arith.constant 0 : index
    %658 = vector.load %arg18[%c0_236, %c0_237] : memref<1x16xf32, #tpu.memory_space<vmem>>, vector<1x16xf32>
    %cst_238 = arith.constant 9.99999974E-6 : f32
    %659 = vector.broadcast %cst_238 : f32 to vector<1x16xf32>
    %660 = arith.addf %655, %659 : vector<1x16xf32>
    %661 = math.rsqrt %660 : vector<1x16xf32>
    %662 = arith.mulf %658, %661 : vector<1x16xf32>
    %663 = vector.broadcast %662 : vector<1x16xf32> to vector<8x16xf32>
    %664 = arith.mulf %657, %663 : vector<8x16xf32>
    %c0_239 = arith.constant 0 : index
    %c0_240 = arith.constant 0 : index
    %665 = vector.load %arg19[%c0_239, %c0_240] : memref<1x16xf32, #tpu.memory_space<vmem>>, vector<1x16xf32>
    %666 = vector.broadcast %665 : vector<1x16xf32> to vector<8x16xf32>
    %667 = arith.addf %664, %666 : vector<8x16xf32>
    %cst_241 = arith.constant 0.000000e+00 : f32
    %668 = vector.broadcast %cst_241 : f32 to vector<8x16xf32>
    %669 = arith.maximumf %667, %668 : vector<8x16xf32>
    %cst_242 = arith.constant 0.000000e+00 : f32
    %670 = vector.broadcast %cst_242 : f32 to vector<8x16xf32>
    %671 = tpu.iota {dimensions = array<i32: 0>} : vector<8x1xi32>
    %672 = arith.sitofp %671 : vector<8x1xi32> to vector<8x1xf32>
    %cst_243 = arith.constant 0.000000e+00 : f32
    %673 = vector.broadcast %cst_243 : f32 to vector<8x1xf32>
    %cst_244 = arith.constant 4.000000e+00 : f32
    %674 = vector.broadcast %cst_244 : f32 to vector<8x1xf32>
    %675 = arith.cmpf oge, %672, %674 : vector<8x1xf32>
    %676 = arith.extui %675 : vector<8x1xi1> to vector<8x1xi32>
    %677 = arith.sitofp %676 : vector<8x1xi32> to vector<8x1xf32>
    %678 = arith.addf %673, %677 : vector<8x1xf32>
    %cst_245 = arith.constant 4.000000e+00 : f32
    %679 = vector.broadcast %cst_245 : f32 to vector<8x1xf32>
    %680 = arith.mulf %678, %679 : vector<8x1xf32>
    %681 = arith.subf %672, %680 : vector<8x1xf32>
    %cst_246 = arith.constant 1.000000e+00 : f32
    %682 = vector.broadcast %cst_246 : f32 to vector<8x1xf32>
    %683 = arith.mulf %681, %682 : vector<8x1xf32>
    %cst_247 = arith.constant -1.000000e+00 : f32
    %684 = vector.broadcast %cst_247 : f32 to vector<8x1xf32>
    %685 = arith.addf %683, %684 : vector<8x1xf32>
    %cst_248 = arith.constant 0.000000e+00 : f32
    %686 = vector.broadcast %cst_248 : f32 to vector<8x1xf32>
    %687 = arith.cmpf oge, %685, %686 : vector<8x1xf32>
    %cst_249 = arith.constant 3.000000e+00 : f32
    %688 = vector.broadcast %cst_249 : f32 to vector<8x1xf32>
    %689 = arith.cmpf ole, %685, %688 : vector<8x1xf32>
    %690 = arith.andi %687, %689 : vector<8x1xi1>
    %cst_250 = arith.constant 4.000000e+00 : f32
    %691 = vector.broadcast %cst_250 : f32 to vector<8x1xf32>
    %692 = arith.mulf %678, %691 : vector<8x1xf32>
    %693 = arith.addf %692, %685 : vector<8x1xf32>
    %694 = tpu.iota {dimensions = array<i32: 1>} : vector<8x8xi32>
    %695 = arith.sitofp %694 : vector<8x8xi32> to vector<8x8xf32>
    %696 = vector.broadcast %693 : vector<8x1xf32> to vector<8x8xf32>
    %697 = arith.cmpf oeq, %695, %696 : vector<8x8xf32>
    %698 = vector.broadcast %690 : vector<8x1xi1> to vector<8x8xi1>
    %699 = arith.andi %697, %698 : vector<8x8xi1>
    %700 = arith.extui %699 : vector<8x8xi1> to vector<8x8xi32>
    %701 = arith.sitofp %700 : vector<8x8xi32> to vector<8x8xf32>
    %cst_251 = arith.constant dense<0.000000e+00> : vector<8x16xf32>
    %702 = tpu.matmul %701, %669, %cst_251 {dimension_numbers = #tpu.dot_dimension_numbers<[1], [0], [0], [1], [0, 0, 1, 1], [], []>} : vector<8x8xf32>, vector<8x16xf32>, vector<8x16xf32> -> vector<8x16xf32>
    %c0_252 = arith.constant 0 : index
    %c0_253 = arith.constant 0 : index
    %c0_254 = arith.constant 0 : index
    %703 = vector.load %arg20[%c0_252, %c0_253, %c0_254] : memref<3x16x16xf32, #tpu.memory_space<vmem>>, vector<1x16x16xf32>
    %704 = vector.shape_cast %703 : vector<1x16x16xf32> to vector<16x16xf32>
    %cst_255 = arith.constant dense<0.000000e+00> : vector<8x16xf32>
    %705 = tpu.matmul %702, %704, %cst_255 {dimension_numbers = #tpu.dot_dimension_numbers<[1], [0], [0], [1], [0, 0, 1, 1], [], []>} : vector<8x16xf32>, vector<16x16xf32>, vector<8x16xf32> -> vector<8x16xf32>
    %706 = arith.addf %670, %705 : vector<8x16xf32>
    %707 = tpu.iota {dimensions = array<i32: 0>} : vector<8x1xi32>
    %708 = arith.sitofp %707 : vector<8x1xi32> to vector<8x1xf32>
    %cst_256 = arith.constant 0.000000e+00 : f32
    %709 = vector.broadcast %cst_256 : f32 to vector<8x1xf32>
    %cst_257 = arith.constant 4.000000e+00 : f32
    %710 = vector.broadcast %cst_257 : f32 to vector<8x1xf32>
    %711 = arith.cmpf oge, %708, %710 : vector<8x1xf32>
    %712 = arith.extui %711 : vector<8x1xi1> to vector<8x1xi32>
    %713 = arith.sitofp %712 : vector<8x1xi32> to vector<8x1xf32>
    %714 = arith.addf %709, %713 : vector<8x1xf32>
    %cst_258 = arith.constant 4.000000e+00 : f32
    %715 = vector.broadcast %cst_258 : f32 to vector<8x1xf32>
    %716 = arith.mulf %714, %715 : vector<8x1xf32>
    %717 = arith.subf %708, %716 : vector<8x1xf32>
    %cst_259 = arith.constant 1.000000e+00 : f32
    %718 = vector.broadcast %cst_259 : f32 to vector<8x1xf32>
    %719 = arith.mulf %717, %718 : vector<8x1xf32>
    %cst_260 = arith.constant 0.000000e+00 : f32
    %720 = vector.broadcast %cst_260 : f32 to vector<8x1xf32>
    %721 = arith.addf %719, %720 : vector<8x1xf32>
    %cst_261 = arith.constant 0.000000e+00 : f32
    %722 = vector.broadcast %cst_261 : f32 to vector<8x1xf32>
    %723 = arith.cmpf oge, %721, %722 : vector<8x1xf32>
    %cst_262 = arith.constant 3.000000e+00 : f32
    %724 = vector.broadcast %cst_262 : f32 to vector<8x1xf32>
    %725 = arith.cmpf ole, %721, %724 : vector<8x1xf32>
    %726 = arith.andi %723, %725 : vector<8x1xi1>
    %cst_263 = arith.constant 4.000000e+00 : f32
    %727 = vector.broadcast %cst_263 : f32 to vector<8x1xf32>
    %728 = arith.mulf %714, %727 : vector<8x1xf32>
    %729 = arith.addf %728, %721 : vector<8x1xf32>
    %730 = tpu.iota {dimensions = array<i32: 1>} : vector<8x8xi32>
    %731 = arith.sitofp %730 : vector<8x8xi32> to vector<8x8xf32>
    %732 = vector.broadcast %729 : vector<8x1xf32> to vector<8x8xf32>
    %733 = arith.cmpf oeq, %731, %732 : vector<8x8xf32>
    %734 = vector.broadcast %726 : vector<8x1xi1> to vector<8x8xi1>
    %735 = arith.andi %733, %734 : vector<8x8xi1>
    %736 = arith.extui %735 : vector<8x8xi1> to vector<8x8xi32>
    %737 = arith.sitofp %736 : vector<8x8xi32> to vector<8x8xf32>
    %cst_264 = arith.constant dense<0.000000e+00> : vector<8x16xf32>
    %738 = tpu.matmul %737, %669, %cst_264 {dimension_numbers = #tpu.dot_dimension_numbers<[1], [0], [0], [1], [0, 0, 1, 1], [], []>} : vector<8x8xf32>, vector<8x16xf32>, vector<8x16xf32> -> vector<8x16xf32>
    %c1_265 = arith.constant 1 : index
    %c0_266 = arith.constant 0 : index
    %c0_267 = arith.constant 0 : index
    %739 = vector.load %arg20[%c1_265, %c0_266, %c0_267] : memref<3x16x16xf32, #tpu.memory_space<vmem>>, vector<1x16x16xf32>
    %740 = vector.shape_cast %739 : vector<1x16x16xf32> to vector<16x16xf32>
    %cst_268 = arith.constant dense<0.000000e+00> : vector<8x16xf32>
    %741 = tpu.matmul %738, %740, %cst_268 {dimension_numbers = #tpu.dot_dimension_numbers<[1], [0], [0], [1], [0, 0, 1, 1], [], []>} : vector<8x16xf32>, vector<16x16xf32>, vector<8x16xf32> -> vector<8x16xf32>
    %742 = arith.addf %706, %741 : vector<8x16xf32>
    %743 = tpu.iota {dimensions = array<i32: 0>} : vector<8x1xi32>
    %744 = arith.sitofp %743 : vector<8x1xi32> to vector<8x1xf32>
    %cst_269 = arith.constant 0.000000e+00 : f32
    %745 = vector.broadcast %cst_269 : f32 to vector<8x1xf32>
    %cst_270 = arith.constant 4.000000e+00 : f32
    %746 = vector.broadcast %cst_270 : f32 to vector<8x1xf32>
    %747 = arith.cmpf oge, %744, %746 : vector<8x1xf32>
    %748 = arith.extui %747 : vector<8x1xi1> to vector<8x1xi32>
    %749 = arith.sitofp %748 : vector<8x1xi32> to vector<8x1xf32>
    %750 = arith.addf %745, %749 : vector<8x1xf32>
    %cst_271 = arith.constant 4.000000e+00 : f32
    %751 = vector.broadcast %cst_271 : f32 to vector<8x1xf32>
    %752 = arith.mulf %750, %751 : vector<8x1xf32>
    %753 = arith.subf %744, %752 : vector<8x1xf32>
    %cst_272 = arith.constant 1.000000e+00 : f32
    %754 = vector.broadcast %cst_272 : f32 to vector<8x1xf32>
    %755 = arith.mulf %753, %754 : vector<8x1xf32>
    %cst_273 = arith.constant 1.000000e+00 : f32
    %756 = vector.broadcast %cst_273 : f32 to vector<8x1xf32>
    %757 = arith.addf %755, %756 : vector<8x1xf32>
    %cst_274 = arith.constant 0.000000e+00 : f32
    %758 = vector.broadcast %cst_274 : f32 to vector<8x1xf32>
    %759 = arith.cmpf oge, %757, %758 : vector<8x1xf32>
    %cst_275 = arith.constant 3.000000e+00 : f32
    %760 = vector.broadcast %cst_275 : f32 to vector<8x1xf32>
    %761 = arith.cmpf ole, %757, %760 : vector<8x1xf32>
    %762 = arith.andi %759, %761 : vector<8x1xi1>
    %cst_276 = arith.constant 4.000000e+00 : f32
    %763 = vector.broadcast %cst_276 : f32 to vector<8x1xf32>
    %764 = arith.mulf %750, %763 : vector<8x1xf32>
    %765 = arith.addf %764, %757 : vector<8x1xf32>
    %766 = tpu.iota {dimensions = array<i32: 1>} : vector<8x8xi32>
    %767 = arith.sitofp %766 : vector<8x8xi32> to vector<8x8xf32>
    %768 = vector.broadcast %765 : vector<8x1xf32> to vector<8x8xf32>
    %769 = arith.cmpf oeq, %767, %768 : vector<8x8xf32>
    %770 = vector.broadcast %762 : vector<8x1xi1> to vector<8x8xi1>
    %771 = arith.andi %769, %770 : vector<8x8xi1>
    %772 = arith.extui %771 : vector<8x8xi1> to vector<8x8xi32>
    %773 = arith.sitofp %772 : vector<8x8xi32> to vector<8x8xf32>
    %cst_277 = arith.constant dense<0.000000e+00> : vector<8x16xf32>
    %774 = tpu.matmul %773, %669, %cst_277 {dimension_numbers = #tpu.dot_dimension_numbers<[1], [0], [0], [1], [0, 0, 1, 1], [], []>} : vector<8x8xf32>, vector<8x16xf32>, vector<8x16xf32> -> vector<8x16xf32>
    %c2_278 = arith.constant 2 : index
    %c0_279 = arith.constant 0 : index
    %c0_280 = arith.constant 0 : index
    %775 = vector.load %arg20[%c2_278, %c0_279, %c0_280] : memref<3x16x16xf32, #tpu.memory_space<vmem>>, vector<1x16x16xf32>
    %776 = vector.shape_cast %775 : vector<1x16x16xf32> to vector<16x16xf32>
    %cst_281 = arith.constant dense<0.000000e+00> : vector<8x16xf32>
    %777 = tpu.matmul %774, %776, %cst_281 {dimension_numbers = #tpu.dot_dimension_numbers<[1], [0], [0], [1], [0, 0, 1, 1], [], []>} : vector<8x16xf32>, vector<16x16xf32>, vector<8x16xf32> -> vector<8x16xf32>
    %778 = arith.addf %742, %777 : vector<8x16xf32>
    %c0_282 = arith.constant 0 : index
    %c0_283 = arith.constant 0 : index
    %779 = vector.load %arg21[%c0_282, %c0_283] : memref<1x16xf32, #tpu.memory_space<vmem>>, vector<1x16xf32>
    %780 = vector.broadcast %779 : vector<1x16xf32> to vector<8x16xf32>
    %781 = arith.addf %778, %780 : vector<8x16xf32>
    %cst_284 = arith.constant 0.000000e+00 : f32
    %782 = vector.broadcast %cst_284 : f32 to vector<8x16xf32>
    %783 = tpu.iota {dimensions = array<i32: 0>} : vector<8x1xi32>
    %784 = arith.sitofp %783 : vector<8x1xi32> to vector<8x1xf32>
    %cst_285 = arith.constant 0.000000e+00 : f32
    %785 = vector.broadcast %cst_285 : f32 to vector<8x1xf32>
    %cst_286 = arith.constant 4.000000e+00 : f32
    %786 = vector.broadcast %cst_286 : f32 to vector<8x1xf32>
    %787 = arith.cmpf oge, %784, %786 : vector<8x1xf32>
    %788 = arith.extui %787 : vector<8x1xi1> to vector<8x1xi32>
    %789 = arith.sitofp %788 : vector<8x1xi32> to vector<8x1xf32>
    %790 = arith.addf %785, %789 : vector<8x1xf32>
    %cst_287 = arith.constant 4.000000e+00 : f32
    %791 = vector.broadcast %cst_287 : f32 to vector<8x1xf32>
    %792 = arith.mulf %790, %791 : vector<8x1xf32>
    %793 = arith.subf %784, %792 : vector<8x1xf32>
    %cst_288 = arith.constant 2.000000e+00 : f32
    %794 = vector.broadcast %cst_288 : f32 to vector<8x1xf32>
    %795 = arith.mulf %793, %794 : vector<8x1xf32>
    %cst_289 = arith.constant 0.000000e+00 : f32
    %796 = vector.broadcast %cst_289 : f32 to vector<8x1xf32>
    %797 = arith.addf %795, %796 : vector<8x1xf32>
    %cst_290 = arith.constant 0.000000e+00 : f32
    %798 = vector.broadcast %cst_290 : f32 to vector<8x1xf32>
    %799 = arith.cmpf oge, %797, %798 : vector<8x1xf32>
    %cst_291 = arith.constant 7.000000e+00 : f32
    %800 = vector.broadcast %cst_291 : f32 to vector<8x1xf32>
    %801 = arith.cmpf ole, %797, %800 : vector<8x1xf32>
    %802 = arith.andi %799, %801 : vector<8x1xi1>
    %cst_292 = arith.constant 8.000000e+00 : f32
    %803 = vector.broadcast %cst_292 : f32 to vector<8x1xf32>
    %804 = arith.mulf %790, %803 : vector<8x1xf32>
    %805 = arith.addf %804, %797 : vector<8x1xf32>
    %806 = tpu.iota {dimensions = array<i32: 1>} : vector<8x16xi32>
    %807 = arith.sitofp %806 : vector<8x16xi32> to vector<8x16xf32>
    %808 = vector.broadcast %805 : vector<8x1xf32> to vector<8x16xf32>
    %809 = arith.cmpf oeq, %807, %808 : vector<8x16xf32>
    %810 = vector.broadcast %802 : vector<8x1xi1> to vector<8x16xi1>
    %811 = arith.andi %809, %810 : vector<8x16xi1>
    %812 = arith.extui %811 : vector<8x16xi1> to vector<8x16xi32>
    %813 = arith.sitofp %812 : vector<8x16xi32> to vector<8x16xf32>
    %cst_293 = arith.constant dense<0.000000e+00> : vector<8x8xf32>
    %814 = tpu.matmul %813, %532, %cst_293 {dimension_numbers = #tpu.dot_dimension_numbers<[1], [0], [0], [1], [0, 0, 1, 1], [], []>} : vector<8x16xf32>, vector<16x8xf32>, vector<8x8xf32> -> vector<8x8xf32>
    %c0_294 = arith.constant 0 : index
    %c0_295 = arith.constant 0 : index
    %c0_296 = arith.constant 0 : index
    %815 = vector.load %arg24[%c0_294, %c0_295, %c0_296] : memref<1x8x16xf32, #tpu.memory_space<vmem>>, vector<1x8x16xf32>
    %816 = vector.shape_cast %815 : vector<1x8x16xf32> to vector<8x16xf32>
    %cst_297 = arith.constant dense<0.000000e+00> : vector<8x16xf32>
    %817 = tpu.matmul %814, %816, %cst_297 {dimension_numbers = #tpu.dot_dimension_numbers<[1], [0], [0], [1], [0, 0, 1, 1], [], []>} : vector<8x8xf32>, vector<8x16xf32>, vector<8x16xf32> -> vector<8x16xf32>
    %818 = arith.addf %782, %817 : vector<8x16xf32>
    %c0_298 = arith.constant 0 : index
    %c0_299 = arith.constant 0 : index
    %819 = vector.load %arg25[%c0_298, %c0_299] : memref<1x16xf32, #tpu.memory_space<vmem>>, vector<1x16xf32>
    %820 = vector.broadcast %819 : vector<1x16xf32> to vector<8x16xf32>
    %821 = arith.addf %818, %820 : vector<8x16xf32>
    %cst_300 = arith.constant dense<0.000000e+00> : vector<16xf32>
    %822 = vector.multi_reduction <add>, %821, %cst_300 [0] : vector<8x16xf32> to vector<16xf32>
    %823 = vector.shape_cast %822 : vector<16xf32> to vector<1x16xf32>
    %cst_301 = arith.constant 8.000000e+00 : f32
    %824 = vector.broadcast %cst_301 : f32 to vector<1x16xf32>
    %825 = arith.divf %823, %824 : vector<1x16xf32>
    %826 = vector.broadcast %825 : vector<1x16xf32> to vector<8x16xf32>
    %827 = arith.subf %821, %826 : vector<8x16xf32>
    %828 = arith.mulf %827, %827 : vector<8x16xf32>
    %cst_302 = arith.constant dense<0.000000e+00> : vector<16xf32>
    %829 = vector.multi_reduction <add>, %828, %cst_302 [0] : vector<8x16xf32> to vector<16xf32>
    %830 = vector.shape_cast %829 : vector<16xf32> to vector<1x16xf32>
    %cst_303 = arith.constant 8.000000e+00 : f32
    %831 = vector.broadcast %cst_303 : f32 to vector<1x16xf32>
    %832 = arith.divf %830, %831 : vector<1x16xf32>
    %833 = vector.broadcast %825 : vector<1x16xf32> to vector<8x16xf32>
    %834 = arith.subf %821, %833 : vector<8x16xf32>
    %c0_304 = arith.constant 0 : index
    %c0_305 = arith.constant 0 : index
    %835 = vector.load %arg26[%c0_304, %c0_305] : memref<1x16xf32, #tpu.memory_space<vmem>>, vector<1x16xf32>
    %cst_306 = arith.constant 9.99999974E-6 : f32
    %836 = vector.broadcast %cst_306 : f32 to vector<1x16xf32>
    %837 = arith.addf %832, %836 : vector<1x16xf32>
    %838 = math.rsqrt %837 : vector<1x16xf32>
    %839 = arith.mulf %835, %838 : vector<1x16xf32>
    %840 = vector.broadcast %839 : vector<1x16xf32> to vector<8x16xf32>
    %841 = arith.mulf %834, %840 : vector<8x16xf32>
    %c0_307 = arith.constant 0 : index
    %c0_308 = arith.constant 0 : index
    %842 = vector.load %arg27[%c0_307, %c0_308] : memref<1x16xf32, #tpu.memory_space<vmem>>, vector<1x16xf32>
    %843 = vector.broadcast %842 : vector<1x16xf32> to vector<8x16xf32>
    %844 = arith.addf %841, %843 : vector<8x16xf32>
    %cst_309 = arith.constant dense<0.000000e+00> : vector<16xf32>
    %845 = vector.multi_reduction <add>, %781, %cst_309 [0] : vector<8x16xf32> to vector<16xf32>
    %846 = vector.shape_cast %845 : vector<16xf32> to vector<1x16xf32>
    %cst_310 = arith.constant 8.000000e+00 : f32
    %847 = vector.broadcast %cst_310 : f32 to vector<1x16xf32>
    %848 = arith.divf %846, %847 : vector<1x16xf32>
    %849 = vector.broadcast %848 : vector<1x16xf32> to vector<8x16xf32>
    %850 = arith.subf %781, %849 : vector<8x16xf32>
    %851 = arith.mulf %850, %850 : vector<8x16xf32>
    %cst_311 = arith.constant dense<0.000000e+00> : vector<16xf32>
    %852 = vector.multi_reduction <add>, %851, %cst_311 [0] : vector<8x16xf32> to vector<16xf32>
    %853 = vector.shape_cast %852 : vector<16xf32> to vector<1x16xf32>
    %cst_312 = arith.constant 8.000000e+00 : f32
    %854 = vector.broadcast %cst_312 : f32 to vector<1x16xf32>
    %855 = arith.divf %853, %854 : vector<1x16xf32>
    %856 = vector.broadcast %848 : vector<1x16xf32> to vector<8x16xf32>
    %857 = arith.subf %781, %856 : vector<8x16xf32>
    %c0_313 = arith.constant 0 : index
    %c0_314 = arith.constant 0 : index
    %858 = vector.load %arg22[%c0_313, %c0_314] : memref<1x16xf32, #tpu.memory_space<vmem>>, vector<1x16xf32>
    %cst_315 = arith.constant 9.99999974E-6 : f32
    %859 = vector.broadcast %cst_315 : f32 to vector<1x16xf32>
    %860 = arith.addf %855, %859 : vector<1x16xf32>
    %861 = math.rsqrt %860 : vector<1x16xf32>
    %862 = arith.mulf %858, %861 : vector<1x16xf32>
    %863 = vector.broadcast %862 : vector<1x16xf32> to vector<8x16xf32>
    %864 = arith.mulf %857, %863 : vector<8x16xf32>
    %c0_316 = arith.constant 0 : index
    %c0_317 = arith.constant 0 : index
    %865 = vector.load %arg23[%c0_316, %c0_317] : memref<1x16xf32, #tpu.memory_space<vmem>>, vector<1x16xf32>
    %866 = vector.broadcast %865 : vector<1x16xf32> to vector<8x16xf32>
    %867 = arith.addf %864, %866 : vector<8x16xf32>
    %868 = arith.addf %867, %844 : vector<8x16xf32>
    %cst_318 = arith.constant 0.000000e+00 : f32
    %869 = vector.broadcast %cst_318 : f32 to vector<8x16xf32>
    %870 = arith.maximumf %868, %869 : vector<8x16xf32>
    %cst_319 = arith.constant 0.000000e+00 : f32
    %871 = vector.broadcast %cst_319 : f32 to vector<4x32xf32>
    %872 = tpu.iota {dimensions = array<i32: 0>} : vector<4x1xi32>
    %873 = arith.sitofp %872 : vector<4x1xi32> to vector<4x1xf32>
    %cst_320 = arith.constant 0.000000e+00 : f32
    %874 = vector.broadcast %cst_320 : f32 to vector<4x1xf32>
    %cst_321 = arith.constant 2.000000e+00 : f32
    %875 = vector.broadcast %cst_321 : f32 to vector<4x1xf32>
    %876 = arith.cmpf oge, %873, %875 : vector<4x1xf32>
    %877 = arith.extui %876 : vector<4x1xi1> to vector<4x1xi32>
    %878 = arith.sitofp %877 : vector<4x1xi32> to vector<4x1xf32>
    %879 = arith.addf %874, %878 : vector<4x1xf32>
    %cst_322 = arith.constant 2.000000e+00 : f32
    %880 = vector.broadcast %cst_322 : f32 to vector<4x1xf32>
    %881 = arith.mulf %879, %880 : vector<4x1xf32>
    %882 = arith.subf %873, %881 : vector<4x1xf32>
    %cst_323 = arith.constant 2.000000e+00 : f32
    %883 = vector.broadcast %cst_323 : f32 to vector<4x1xf32>
    %884 = arith.mulf %882, %883 : vector<4x1xf32>
    %cst_324 = arith.constant -1.000000e+00 : f32
    %885 = vector.broadcast %cst_324 : f32 to vector<4x1xf32>
    %886 = arith.addf %884, %885 : vector<4x1xf32>
    %cst_325 = arith.constant 0.000000e+00 : f32
    %887 = vector.broadcast %cst_325 : f32 to vector<4x1xf32>
    %888 = arith.cmpf oge, %886, %887 : vector<4x1xf32>
    %cst_326 = arith.constant 3.000000e+00 : f32
    %889 = vector.broadcast %cst_326 : f32 to vector<4x1xf32>
    %890 = arith.cmpf ole, %886, %889 : vector<4x1xf32>
    %891 = arith.andi %888, %890 : vector<4x1xi1>
    %cst_327 = arith.constant 4.000000e+00 : f32
    %892 = vector.broadcast %cst_327 : f32 to vector<4x1xf32>
    %893 = arith.mulf %879, %892 : vector<4x1xf32>
    %894 = arith.addf %893, %886 : vector<4x1xf32>
    %895 = tpu.iota {dimensions = array<i32: 1>} : vector<4x8xi32>
    %896 = arith.sitofp %895 : vector<4x8xi32> to vector<4x8xf32>
    %897 = vector.broadcast %894 : vector<4x1xf32> to vector<4x8xf32>
    %898 = arith.cmpf oeq, %896, %897 : vector<4x8xf32>
    %899 = vector.broadcast %891 : vector<4x1xi1> to vector<4x8xi1>
    %900 = arith.andi %898, %899 : vector<4x8xi1>
    %901 = arith.extui %900 : vector<4x8xi1> to vector<4x8xi32>
    %902 = arith.sitofp %901 : vector<4x8xi32> to vector<4x8xf32>
    %cst_328 = arith.constant dense<0.000000e+00> : vector<4x16xf32>
    %903 = tpu.matmul %902, %870, %cst_328 {dimension_numbers = #tpu.dot_dimension_numbers<[1], [0], [0], [1], [0, 0, 1, 1], [], []>} : vector<4x8xf32>, vector<8x16xf32>, vector<4x16xf32> -> vector<4x16xf32>
    %c0_329 = arith.constant 0 : index
    %c0_330 = arith.constant 0 : index
    %c0_331 = arith.constant 0 : index
    %904 = vector.load %arg28[%c0_329, %c0_330, %c0_331] : memref<3x16x32xf32, #tpu.memory_space<vmem>>, vector<1x16x32xf32>
    %905 = vector.shape_cast %904 : vector<1x16x32xf32> to vector<16x32xf32>
    %cst_332 = arith.constant dense<0.000000e+00> : vector<4x32xf32>
    %906 = tpu.matmul %903, %905, %cst_332 {dimension_numbers = #tpu.dot_dimension_numbers<[1], [0], [0], [1], [0, 0, 1, 1], [], []>} : vector<4x16xf32>, vector<16x32xf32>, vector<4x32xf32> -> vector<4x32xf32>
    %907 = arith.addf %871, %906 : vector<4x32xf32>
    %908 = tpu.iota {dimensions = array<i32: 0>} : vector<4x1xi32>
    %909 = arith.sitofp %908 : vector<4x1xi32> to vector<4x1xf32>
    %cst_333 = arith.constant 0.000000e+00 : f32
    %910 = vector.broadcast %cst_333 : f32 to vector<4x1xf32>
    %cst_334 = arith.constant 2.000000e+00 : f32
    %911 = vector.broadcast %cst_334 : f32 to vector<4x1xf32>
    %912 = arith.cmpf oge, %909, %911 : vector<4x1xf32>
    %913 = arith.extui %912 : vector<4x1xi1> to vector<4x1xi32>
    %914 = arith.sitofp %913 : vector<4x1xi32> to vector<4x1xf32>
    %915 = arith.addf %910, %914 : vector<4x1xf32>
    %cst_335 = arith.constant 2.000000e+00 : f32
    %916 = vector.broadcast %cst_335 : f32 to vector<4x1xf32>
    %917 = arith.mulf %915, %916 : vector<4x1xf32>
    %918 = arith.subf %909, %917 : vector<4x1xf32>
    %cst_336 = arith.constant 2.000000e+00 : f32
    %919 = vector.broadcast %cst_336 : f32 to vector<4x1xf32>
    %920 = arith.mulf %918, %919 : vector<4x1xf32>
    %cst_337 = arith.constant 0.000000e+00 : f32
    %921 = vector.broadcast %cst_337 : f32 to vector<4x1xf32>
    %922 = arith.addf %920, %921 : vector<4x1xf32>
    %cst_338 = arith.constant 0.000000e+00 : f32
    %923 = vector.broadcast %cst_338 : f32 to vector<4x1xf32>
    %924 = arith.cmpf oge, %922, %923 : vector<4x1xf32>
    %cst_339 = arith.constant 3.000000e+00 : f32
    %925 = vector.broadcast %cst_339 : f32 to vector<4x1xf32>
    %926 = arith.cmpf ole, %922, %925 : vector<4x1xf32>
    %927 = arith.andi %924, %926 : vector<4x1xi1>
    %cst_340 = arith.constant 4.000000e+00 : f32
    %928 = vector.broadcast %cst_340 : f32 to vector<4x1xf32>
    %929 = arith.mulf %915, %928 : vector<4x1xf32>
    %930 = arith.addf %929, %922 : vector<4x1xf32>
    %931 = tpu.iota {dimensions = array<i32: 1>} : vector<4x8xi32>
    %932 = arith.sitofp %931 : vector<4x8xi32> to vector<4x8xf32>
    %933 = vector.broadcast %930 : vector<4x1xf32> to vector<4x8xf32>
    %934 = arith.cmpf oeq, %932, %933 : vector<4x8xf32>
    %935 = vector.broadcast %927 : vector<4x1xi1> to vector<4x8xi1>
    %936 = arith.andi %934, %935 : vector<4x8xi1>
    %937 = arith.extui %936 : vector<4x8xi1> to vector<4x8xi32>
    %938 = arith.sitofp %937 : vector<4x8xi32> to vector<4x8xf32>
    %cst_341 = arith.constant dense<0.000000e+00> : vector<4x16xf32>
    %939 = tpu.matmul %938, %870, %cst_341 {dimension_numbers = #tpu.dot_dimension_numbers<[1], [0], [0], [1], [0, 0, 1, 1], [], []>} : vector<4x8xf32>, vector<8x16xf32>, vector<4x16xf32> -> vector<4x16xf32>
    %c1_342 = arith.constant 1 : index
    %c0_343 = arith.constant 0 : index
    %c0_344 = arith.constant 0 : index
    %940 = vector.load %arg28[%c1_342, %c0_343, %c0_344] : memref<3x16x32xf32, #tpu.memory_space<vmem>>, vector<1x16x32xf32>
    %941 = vector.shape_cast %940 : vector<1x16x32xf32> to vector<16x32xf32>
    %cst_345 = arith.constant dense<0.000000e+00> : vector<4x32xf32>
    %942 = tpu.matmul %939, %941, %cst_345 {dimension_numbers = #tpu.dot_dimension_numbers<[1], [0], [0], [1], [0, 0, 1, 1], [], []>} : vector<4x16xf32>, vector<16x32xf32>, vector<4x32xf32> -> vector<4x32xf32>
    %943 = arith.addf %907, %942 : vector<4x32xf32>
    %944 = tpu.iota {dimensions = array<i32: 0>} : vector<4x1xi32>
    %945 = arith.sitofp %944 : vector<4x1xi32> to vector<4x1xf32>
    %cst_346 = arith.constant 0.000000e+00 : f32
    %946 = vector.broadcast %cst_346 : f32 to vector<4x1xf32>
    %cst_347 = arith.constant 2.000000e+00 : f32
    %947 = vector.broadcast %cst_347 : f32 to vector<4x1xf32>
    %948 = arith.cmpf oge, %945, %947 : vector<4x1xf32>
    %949 = arith.extui %948 : vector<4x1xi1> to vector<4x1xi32>
    %950 = arith.sitofp %949 : vector<4x1xi32> to vector<4x1xf32>
    %951 = arith.addf %946, %950 : vector<4x1xf32>
    %cst_348 = arith.constant 2.000000e+00 : f32
    %952 = vector.broadcast %cst_348 : f32 to vector<4x1xf32>
    %953 = arith.mulf %951, %952 : vector<4x1xf32>
    %954 = arith.subf %945, %953 : vector<4x1xf32>
    %cst_349 = arith.constant 2.000000e+00 : f32
    %955 = vector.broadcast %cst_349 : f32 to vector<4x1xf32>
    %956 = arith.mulf %954, %955 : vector<4x1xf32>
    %cst_350 = arith.constant 1.000000e+00 : f32
    %957 = vector.broadcast %cst_350 : f32 to vector<4x1xf32>
    %958 = arith.addf %956, %957 : vector<4x1xf32>
    %cst_351 = arith.constant 0.000000e+00 : f32
    %959 = vector.broadcast %cst_351 : f32 to vector<4x1xf32>
    %960 = arith.cmpf oge, %958, %959 : vector<4x1xf32>
    %cst_352 = arith.constant 3.000000e+00 : f32
    %961 = vector.broadcast %cst_352 : f32 to vector<4x1xf32>
    %962 = arith.cmpf ole, %958, %961 : vector<4x1xf32>
    %963 = arith.andi %960, %962 : vector<4x1xi1>
    %cst_353 = arith.constant 4.000000e+00 : f32
    %964 = vector.broadcast %cst_353 : f32 to vector<4x1xf32>
    %965 = arith.mulf %951, %964 : vector<4x1xf32>
    %966 = arith.addf %965, %958 : vector<4x1xf32>
    %967 = tpu.iota {dimensions = array<i32: 1>} : vector<4x8xi32>
    %968 = arith.sitofp %967 : vector<4x8xi32> to vector<4x8xf32>
    %969 = vector.broadcast %966 : vector<4x1xf32> to vector<4x8xf32>
    %970 = arith.cmpf oeq, %968, %969 : vector<4x8xf32>
    %971 = vector.broadcast %963 : vector<4x1xi1> to vector<4x8xi1>
    %972 = arith.andi %970, %971 : vector<4x8xi1>
    %973 = arith.extui %972 : vector<4x8xi1> to vector<4x8xi32>
    %974 = arith.sitofp %973 : vector<4x8xi32> to vector<4x8xf32>
    %cst_354 = arith.constant dense<0.000000e+00> : vector<4x16xf32>
    %975 = tpu.matmul %974, %870, %cst_354 {dimension_numbers = #tpu.dot_dimension_numbers<[1], [0], [0], [1], [0, 0, 1, 1], [], []>} : vector<4x8xf32>, vector<8x16xf32>, vector<4x16xf32> -> vector<4x16xf32>
    %c2_355 = arith.constant 2 : index
    %c0_356 = arith.constant 0 : index
    %c0_357 = arith.constant 0 : index
    %976 = vector.load %arg28[%c2_355, %c0_356, %c0_357] : memref<3x16x32xf32, #tpu.memory_space<vmem>>, vector<1x16x32xf32>
    %977 = vector.shape_cast %976 : vector<1x16x32xf32> to vector<16x32xf32>
    %cst_358 = arith.constant dense<0.000000e+00> : vector<4x32xf32>
    %978 = tpu.matmul %975, %977, %cst_358 {dimension_numbers = #tpu.dot_dimension_numbers<[1], [0], [0], [1], [0, 0, 1, 1], [], []>} : vector<4x16xf32>, vector<16x32xf32>, vector<4x32xf32> -> vector<4x32xf32>
    %979 = arith.addf %943, %978 : vector<4x32xf32>
    %c0_359 = arith.constant 0 : index
    %c0_360 = arith.constant 0 : index
    %980 = vector.load %arg29[%c0_359, %c0_360] : memref<1x32xf32, #tpu.memory_space<vmem>>, vector<1x32xf32>
    %981 = vector.broadcast %980 : vector<1x32xf32> to vector<4x32xf32>
    %982 = arith.addf %979, %981 : vector<4x32xf32>
    %cst_361 = arith.constant dense<0.000000e+00> : vector<32xf32>
    %983 = vector.multi_reduction <add>, %982, %cst_361 [0] : vector<4x32xf32> to vector<32xf32>
    %984 = vector.shape_cast %983 : vector<32xf32> to vector<1x32xf32>
    %cst_362 = arith.constant 4.000000e+00 : f32
    %985 = vector.broadcast %cst_362 : f32 to vector<1x32xf32>
    %986 = arith.divf %984, %985 : vector<1x32xf32>
    %987 = vector.broadcast %986 : vector<1x32xf32> to vector<4x32xf32>
    %988 = arith.subf %982, %987 : vector<4x32xf32>
    %989 = arith.mulf %988, %988 : vector<4x32xf32>
    %cst_363 = arith.constant dense<0.000000e+00> : vector<32xf32>
    %990 = vector.multi_reduction <add>, %989, %cst_363 [0] : vector<4x32xf32> to vector<32xf32>
    %991 = vector.shape_cast %990 : vector<32xf32> to vector<1x32xf32>
    %cst_364 = arith.constant 4.000000e+00 : f32
    %992 = vector.broadcast %cst_364 : f32 to vector<1x32xf32>
    %993 = arith.divf %991, %992 : vector<1x32xf32>
    %994 = vector.broadcast %986 : vector<1x32xf32> to vector<4x32xf32>
    %995 = arith.subf %982, %994 : vector<4x32xf32>
    %c0_365 = arith.constant 0 : index
    %c0_366 = arith.constant 0 : index
    %996 = vector.load %arg30[%c0_365, %c0_366] : memref<1x32xf32, #tpu.memory_space<vmem>>, vector<1x32xf32>
    %cst_367 = arith.constant 9.99999974E-6 : f32
    %997 = vector.broadcast %cst_367 : f32 to vector<1x32xf32>
    %998 = arith.addf %993, %997 : vector<1x32xf32>
    %999 = math.rsqrt %998 : vector<1x32xf32>
    %1000 = arith.mulf %996, %999 : vector<1x32xf32>
    %1001 = vector.broadcast %1000 : vector<1x32xf32> to vector<4x32xf32>
    %1002 = arith.mulf %995, %1001 : vector<4x32xf32>
    %c0_368 = arith.constant 0 : index
    %c0_369 = arith.constant 0 : index
    %1003 = vector.load %arg31[%c0_368, %c0_369] : memref<1x32xf32, #tpu.memory_space<vmem>>, vector<1x32xf32>
    %1004 = vector.broadcast %1003 : vector<1x32xf32> to vector<4x32xf32>
    %1005 = arith.addf %1002, %1004 : vector<4x32xf32>
    %cst_370 = arith.constant 0.000000e+00 : f32
    %1006 = vector.broadcast %cst_370 : f32 to vector<4x32xf32>
    %1007 = arith.maximumf %1005, %1006 : vector<4x32xf32>
    %cst_371 = arith.constant 0.000000e+00 : f32
    %1008 = vector.broadcast %cst_371 : f32 to vector<4x32xf32>
    %1009 = tpu.iota {dimensions = array<i32: 0>} : vector<4x1xi32>
    %1010 = arith.sitofp %1009 : vector<4x1xi32> to vector<4x1xf32>
    %cst_372 = arith.constant 0.000000e+00 : f32
    %1011 = vector.broadcast %cst_372 : f32 to vector<4x1xf32>
    %cst_373 = arith.constant 2.000000e+00 : f32
    %1012 = vector.broadcast %cst_373 : f32 to vector<4x1xf32>
    %1013 = arith.cmpf oge, %1010, %1012 : vector<4x1xf32>
    %1014 = arith.extui %1013 : vector<4x1xi1> to vector<4x1xi32>
    %1015 = arith.sitofp %1014 : vector<4x1xi32> to vector<4x1xf32>
    %1016 = arith.addf %1011, %1015 : vector<4x1xf32>
    %cst_374 = arith.constant 2.000000e+00 : f32
    %1017 = vector.broadcast %cst_374 : f32 to vector<4x1xf32>
    %1018 = arith.mulf %1016, %1017 : vector<4x1xf32>
    %1019 = arith.subf %1010, %1018 : vector<4x1xf32>
    %cst_375 = arith.constant 1.000000e+00 : f32
    %1020 = vector.broadcast %cst_375 : f32 to vector<4x1xf32>
    %1021 = arith.mulf %1019, %1020 : vector<4x1xf32>
    %cst_376 = arith.constant -1.000000e+00 : f32
    %1022 = vector.broadcast %cst_376 : f32 to vector<4x1xf32>
    %1023 = arith.addf %1021, %1022 : vector<4x1xf32>
    %cst_377 = arith.constant 0.000000e+00 : f32
    %1024 = vector.broadcast %cst_377 : f32 to vector<4x1xf32>
    %1025 = arith.cmpf oge, %1023, %1024 : vector<4x1xf32>
    %cst_378 = arith.constant 1.000000e+00 : f32
    %1026 = vector.broadcast %cst_378 : f32 to vector<4x1xf32>
    %1027 = arith.cmpf ole, %1023, %1026 : vector<4x1xf32>
    %1028 = arith.andi %1025, %1027 : vector<4x1xi1>
    %cst_379 = arith.constant 2.000000e+00 : f32
    %1029 = vector.broadcast %cst_379 : f32 to vector<4x1xf32>
    %1030 = arith.mulf %1016, %1029 : vector<4x1xf32>
    %1031 = arith.addf %1030, %1023 : vector<4x1xf32>
    %1032 = tpu.iota {dimensions = array<i32: 1>} : vector<4x4xi32>
    %1033 = arith.sitofp %1032 : vector<4x4xi32> to vector<4x4xf32>
    %1034 = vector.broadcast %1031 : vector<4x1xf32> to vector<4x4xf32>
    %1035 = arith.cmpf oeq, %1033, %1034 : vector<4x4xf32>
    %1036 = vector.broadcast %1028 : vector<4x1xi1> to vector<4x4xi1>
    %1037 = arith.andi %1035, %1036 : vector<4x4xi1>
    %1038 = arith.extui %1037 : vector<4x4xi1> to vector<4x4xi32>
    %1039 = arith.sitofp %1038 : vector<4x4xi32> to vector<4x4xf32>
    %cst_380 = arith.constant dense<0.000000e+00> : vector<4x32xf32>
    %1040 = tpu.matmul %1039, %1007, %cst_380 {dimension_numbers = #tpu.dot_dimension_numbers<[1], [0], [0], [1], [0, 0, 1, 1], [], []>} : vector<4x4xf32>, vector<4x32xf32>, vector<4x32xf32> -> vector<4x32xf32>
    %c0_381 = arith.constant 0 : index
    %c0_382 = arith.constant 0 : index
    %c0_383 = arith.constant 0 : index
    %1041 = vector.load %arg32[%c0_381, %c0_382, %c0_383] : memref<3x32x32xf32, #tpu.memory_space<vmem>>, vector<1x32x32xf32>
    %1042 = vector.shape_cast %1041 : vector<1x32x32xf32> to vector<32x32xf32>
    %cst_384 = arith.constant dense<0.000000e+00> : vector<4x32xf32>
    %1043 = tpu.matmul %1040, %1042, %cst_384 {dimension_numbers = #tpu.dot_dimension_numbers<[1], [0], [0], [1], [0, 0, 1, 1], [], []>} : vector<4x32xf32>, vector<32x32xf32>, vector<4x32xf32> -> vector<4x32xf32>
    %1044 = arith.addf %1008, %1043 : vector<4x32xf32>
    %1045 = tpu.iota {dimensions = array<i32: 0>} : vector<4x1xi32>
    %1046 = arith.sitofp %1045 : vector<4x1xi32> to vector<4x1xf32>
    %cst_385 = arith.constant 0.000000e+00 : f32
    %1047 = vector.broadcast %cst_385 : f32 to vector<4x1xf32>
    %cst_386 = arith.constant 2.000000e+00 : f32
    %1048 = vector.broadcast %cst_386 : f32 to vector<4x1xf32>
    %1049 = arith.cmpf oge, %1046, %1048 : vector<4x1xf32>
    %1050 = arith.extui %1049 : vector<4x1xi1> to vector<4x1xi32>
    %1051 = arith.sitofp %1050 : vector<4x1xi32> to vector<4x1xf32>
    %1052 = arith.addf %1047, %1051 : vector<4x1xf32>
    %cst_387 = arith.constant 2.000000e+00 : f32
    %1053 = vector.broadcast %cst_387 : f32 to vector<4x1xf32>
    %1054 = arith.mulf %1052, %1053 : vector<4x1xf32>
    %1055 = arith.subf %1046, %1054 : vector<4x1xf32>
    %cst_388 = arith.constant 1.000000e+00 : f32
    %1056 = vector.broadcast %cst_388 : f32 to vector<4x1xf32>
    %1057 = arith.mulf %1055, %1056 : vector<4x1xf32>
    %cst_389 = arith.constant 0.000000e+00 : f32
    %1058 = vector.broadcast %cst_389 : f32 to vector<4x1xf32>
    %1059 = arith.addf %1057, %1058 : vector<4x1xf32>
    %cst_390 = arith.constant 0.000000e+00 : f32
    %1060 = vector.broadcast %cst_390 : f32 to vector<4x1xf32>
    %1061 = arith.cmpf oge, %1059, %1060 : vector<4x1xf32>
    %cst_391 = arith.constant 1.000000e+00 : f32
    %1062 = vector.broadcast %cst_391 : f32 to vector<4x1xf32>
    %1063 = arith.cmpf ole, %1059, %1062 : vector<4x1xf32>
    %1064 = arith.andi %1061, %1063 : vector<4x1xi1>
    %cst_392 = arith.constant 2.000000e+00 : f32
    %1065 = vector.broadcast %cst_392 : f32 to vector<4x1xf32>
    %1066 = arith.mulf %1052, %1065 : vector<4x1xf32>
    %1067 = arith.addf %1066, %1059 : vector<4x1xf32>
    %1068 = tpu.iota {dimensions = array<i32: 1>} : vector<4x4xi32>
    %1069 = arith.sitofp %1068 : vector<4x4xi32> to vector<4x4xf32>
    %1070 = vector.broadcast %1067 : vector<4x1xf32> to vector<4x4xf32>
    %1071 = arith.cmpf oeq, %1069, %1070 : vector<4x4xf32>
    %1072 = vector.broadcast %1064 : vector<4x1xi1> to vector<4x4xi1>
    %1073 = arith.andi %1071, %1072 : vector<4x4xi1>
    %1074 = arith.extui %1073 : vector<4x4xi1> to vector<4x4xi32>
    %1075 = arith.sitofp %1074 : vector<4x4xi32> to vector<4x4xf32>
    %cst_393 = arith.constant dense<0.000000e+00> : vector<4x32xf32>
    %1076 = tpu.matmul %1075, %1007, %cst_393 {dimension_numbers = #tpu.dot_dimension_numbers<[1], [0], [0], [1], [0, 0, 1, 1], [], []>} : vector<4x4xf32>, vector<4x32xf32>, vector<4x32xf32> -> vector<4x32xf32>
    %c1_394 = arith.constant 1 : index
    %c0_395 = arith.constant 0 : index
    %c0_396 = arith.constant 0 : index
    %1077 = vector.load %arg32[%c1_394, %c0_395, %c0_396] : memref<3x32x32xf32, #tpu.memory_space<vmem>>, vector<1x32x32xf32>
    %1078 = vector.shape_cast %1077 : vector<1x32x32xf32> to vector<32x32xf32>
    %cst_397 = arith.constant dense<0.000000e+00> : vector<4x32xf32>
    %1079 = tpu.matmul %1076, %1078, %cst_397 {dimension_numbers = #tpu.dot_dimension_numbers<[1], [0], [0], [1], [0, 0, 1, 1], [], []>} : vector<4x32xf32>, vector<32x32xf32>, vector<4x32xf32> -> vector<4x32xf32>
    %1080 = arith.addf %1044, %1079 : vector<4x32xf32>
    %1081 = tpu.iota {dimensions = array<i32: 0>} : vector<4x1xi32>
    %1082 = arith.sitofp %1081 : vector<4x1xi32> to vector<4x1xf32>
    %cst_398 = arith.constant 0.000000e+00 : f32
    %1083 = vector.broadcast %cst_398 : f32 to vector<4x1xf32>
    %cst_399 = arith.constant 2.000000e+00 : f32
    %1084 = vector.broadcast %cst_399 : f32 to vector<4x1xf32>
    %1085 = arith.cmpf oge, %1082, %1084 : vector<4x1xf32>
    %1086 = arith.extui %1085 : vector<4x1xi1> to vector<4x1xi32>
    %1087 = arith.sitofp %1086 : vector<4x1xi32> to vector<4x1xf32>
    %1088 = arith.addf %1083, %1087 : vector<4x1xf32>
    %cst_400 = arith.constant 2.000000e+00 : f32
    %1089 = vector.broadcast %cst_400 : f32 to vector<4x1xf32>
    %1090 = arith.mulf %1088, %1089 : vector<4x1xf32>
    %1091 = arith.subf %1082, %1090 : vector<4x1xf32>
    %cst_401 = arith.constant 1.000000e+00 : f32
    %1092 = vector.broadcast %cst_401 : f32 to vector<4x1xf32>
    %1093 = arith.mulf %1091, %1092 : vector<4x1xf32>
    %cst_402 = arith.constant 1.000000e+00 : f32
    %1094 = vector.broadcast %cst_402 : f32 to vector<4x1xf32>
    %1095 = arith.addf %1093, %1094 : vector<4x1xf32>
    %cst_403 = arith.constant 0.000000e+00 : f32
    %1096 = vector.broadcast %cst_403 : f32 to vector<4x1xf32>
    %1097 = arith.cmpf oge, %1095, %1096 : vector<4x1xf32>
    %cst_404 = arith.constant 1.000000e+00 : f32
    %1098 = vector.broadcast %cst_404 : f32 to vector<4x1xf32>
    %1099 = arith.cmpf ole, %1095, %1098 : vector<4x1xf32>
    %1100 = arith.andi %1097, %1099 : vector<4x1xi1>
    %cst_405 = arith.constant 2.000000e+00 : f32
    %1101 = vector.broadcast %cst_405 : f32 to vector<4x1xf32>
    %1102 = arith.mulf %1088, %1101 : vector<4x1xf32>
    %1103 = arith.addf %1102, %1095 : vector<4x1xf32>
    %1104 = tpu.iota {dimensions = array<i32: 1>} : vector<4x4xi32>
    %1105 = arith.sitofp %1104 : vector<4x4xi32> to vector<4x4xf32>
    %1106 = vector.broadcast %1103 : vector<4x1xf32> to vector<4x4xf32>
    %1107 = arith.cmpf oeq, %1105, %1106 : vector<4x4xf32>
    %1108 = vector.broadcast %1100 : vector<4x1xi1> to vector<4x4xi1>
    %1109 = arith.andi %1107, %1108 : vector<4x4xi1>
    %1110 = arith.extui %1109 : vector<4x4xi1> to vector<4x4xi32>
    %1111 = arith.sitofp %1110 : vector<4x4xi32> to vector<4x4xf32>
    %cst_406 = arith.constant dense<0.000000e+00> : vector<4x32xf32>
    %1112 = tpu.matmul %1111, %1007, %cst_406 {dimension_numbers = #tpu.dot_dimension_numbers<[1], [0], [0], [1], [0, 0, 1, 1], [], []>} : vector<4x4xf32>, vector<4x32xf32>, vector<4x32xf32> -> vector<4x32xf32>
    %c2_407 = arith.constant 2 : index
    %c0_408 = arith.constant 0 : index
    %c0_409 = arith.constant 0 : index
    %1113 = vector.load %arg32[%c2_407, %c0_408, %c0_409] : memref<3x32x32xf32, #tpu.memory_space<vmem>>, vector<1x32x32xf32>
    %1114 = vector.shape_cast %1113 : vector<1x32x32xf32> to vector<32x32xf32>
    %cst_410 = arith.constant dense<0.000000e+00> : vector<4x32xf32>
    %1115 = tpu.matmul %1112, %1114, %cst_410 {dimension_numbers = #tpu.dot_dimension_numbers<[1], [0], [0], [1], [0, 0, 1, 1], [], []>} : vector<4x32xf32>, vector<32x32xf32>, vector<4x32xf32> -> vector<4x32xf32>
    %1116 = arith.addf %1080, %1115 : vector<4x32xf32>
    %c0_411 = arith.constant 0 : index
    %c0_412 = arith.constant 0 : index
    %1117 = vector.load %arg33[%c0_411, %c0_412] : memref<1x32xf32, #tpu.memory_space<vmem>>, vector<1x32xf32>
    %1118 = vector.broadcast %1117 : vector<1x32xf32> to vector<4x32xf32>
    %1119 = arith.addf %1116, %1118 : vector<4x32xf32>
    %cst_413 = arith.constant 0.000000e+00 : f32
    %1120 = vector.broadcast %cst_413 : f32 to vector<4x32xf32>
    %1121 = tpu.iota {dimensions = array<i32: 0>} : vector<4x1xi32>
    %1122 = arith.sitofp %1121 : vector<4x1xi32> to vector<4x1xf32>
    %cst_414 = arith.constant 0.000000e+00 : f32
    %1123 = vector.broadcast %cst_414 : f32 to vector<4x1xf32>
    %cst_415 = arith.constant 2.000000e+00 : f32
    %1124 = vector.broadcast %cst_415 : f32 to vector<4x1xf32>
    %1125 = arith.cmpf oge, %1122, %1124 : vector<4x1xf32>
    %1126 = arith.extui %1125 : vector<4x1xi1> to vector<4x1xi32>
    %1127 = arith.sitofp %1126 : vector<4x1xi32> to vector<4x1xf32>
    %1128 = arith.addf %1123, %1127 : vector<4x1xf32>
    %cst_416 = arith.constant 2.000000e+00 : f32
    %1129 = vector.broadcast %cst_416 : f32 to vector<4x1xf32>
    %1130 = arith.mulf %1128, %1129 : vector<4x1xf32>
    %1131 = arith.subf %1122, %1130 : vector<4x1xf32>
    %cst_417 = arith.constant 2.000000e+00 : f32
    %1132 = vector.broadcast %cst_417 : f32 to vector<4x1xf32>
    %1133 = arith.mulf %1131, %1132 : vector<4x1xf32>
    %cst_418 = arith.constant 0.000000e+00 : f32
    %1134 = vector.broadcast %cst_418 : f32 to vector<4x1xf32>
    %1135 = arith.addf %1133, %1134 : vector<4x1xf32>
    %cst_419 = arith.constant 0.000000e+00 : f32
    %1136 = vector.broadcast %cst_419 : f32 to vector<4x1xf32>
    %1137 = arith.cmpf oge, %1135, %1136 : vector<4x1xf32>
    %cst_420 = arith.constant 3.000000e+00 : f32
    %1138 = vector.broadcast %cst_420 : f32 to vector<4x1xf32>
    %1139 = arith.cmpf ole, %1135, %1138 : vector<4x1xf32>
    %1140 = arith.andi %1137, %1139 : vector<4x1xi1>
    %cst_421 = arith.constant 4.000000e+00 : f32
    %1141 = vector.broadcast %cst_421 : f32 to vector<4x1xf32>
    %1142 = arith.mulf %1128, %1141 : vector<4x1xf32>
    %1143 = arith.addf %1142, %1135 : vector<4x1xf32>
    %1144 = tpu.iota {dimensions = array<i32: 1>} : vector<4x8xi32>
    %1145 = arith.sitofp %1144 : vector<4x8xi32> to vector<4x8xf32>
    %1146 = vector.broadcast %1143 : vector<4x1xf32> to vector<4x8xf32>
    %1147 = arith.cmpf oeq, %1145, %1146 : vector<4x8xf32>
    %1148 = vector.broadcast %1140 : vector<4x1xi1> to vector<4x8xi1>
    %1149 = arith.andi %1147, %1148 : vector<4x8xi1>
    %1150 = arith.extui %1149 : vector<4x8xi1> to vector<4x8xi32>
    %1151 = arith.sitofp %1150 : vector<4x8xi32> to vector<4x8xf32>
    %cst_422 = arith.constant dense<0.000000e+00> : vector<4x16xf32>
    %1152 = tpu.matmul %1151, %870, %cst_422 {dimension_numbers = #tpu.dot_dimension_numbers<[1], [0], [0], [1], [0, 0, 1, 1], [], []>} : vector<4x8xf32>, vector<8x16xf32>, vector<4x16xf32> -> vector<4x16xf32>
    %c0_423 = arith.constant 0 : index
    %c0_424 = arith.constant 0 : index
    %c0_425 = arith.constant 0 : index
    %1153 = vector.load %arg36[%c0_423, %c0_424, %c0_425] : memref<1x16x32xf32, #tpu.memory_space<vmem>>, vector<1x16x32xf32>
    %1154 = vector.shape_cast %1153 : vector<1x16x32xf32> to vector<16x32xf32>
    %cst_426 = arith.constant dense<0.000000e+00> : vector<4x32xf32>
    %1155 = tpu.matmul %1152, %1154, %cst_426 {dimension_numbers = #tpu.dot_dimension_numbers<[1], [0], [0], [1], [0, 0, 1, 1], [], []>} : vector<4x16xf32>, vector<16x32xf32>, vector<4x32xf32> -> vector<4x32xf32>
    %1156 = arith.addf %1120, %1155 : vector<4x32xf32>
    %c0_427 = arith.constant 0 : index
    %c0_428 = arith.constant 0 : index
    %1157 = vector.load %arg37[%c0_427, %c0_428] : memref<1x32xf32, #tpu.memory_space<vmem>>, vector<1x32xf32>
    %1158 = vector.broadcast %1157 : vector<1x32xf32> to vector<4x32xf32>
    %1159 = arith.addf %1156, %1158 : vector<4x32xf32>
    %cst_429 = arith.constant dense<0.000000e+00> : vector<32xf32>
    %1160 = vector.multi_reduction <add>, %1159, %cst_429 [0] : vector<4x32xf32> to vector<32xf32>
    %1161 = vector.shape_cast %1160 : vector<32xf32> to vector<1x32xf32>
    %cst_430 = arith.constant 4.000000e+00 : f32
    %1162 = vector.broadcast %cst_430 : f32 to vector<1x32xf32>
    %1163 = arith.divf %1161, %1162 : vector<1x32xf32>
    %1164 = vector.broadcast %1163 : vector<1x32xf32> to vector<4x32xf32>
    %1165 = arith.subf %1159, %1164 : vector<4x32xf32>
    %1166 = arith.mulf %1165, %1165 : vector<4x32xf32>
    %cst_431 = arith.constant dense<0.000000e+00> : vector<32xf32>
    %1167 = vector.multi_reduction <add>, %1166, %cst_431 [0] : vector<4x32xf32> to vector<32xf32>
    %1168 = vector.shape_cast %1167 : vector<32xf32> to vector<1x32xf32>
    %cst_432 = arith.constant 4.000000e+00 : f32
    %1169 = vector.broadcast %cst_432 : f32 to vector<1x32xf32>
    %1170 = arith.divf %1168, %1169 : vector<1x32xf32>
    %1171 = vector.broadcast %1163 : vector<1x32xf32> to vector<4x32xf32>
    %1172 = arith.subf %1159, %1171 : vector<4x32xf32>
    %c0_433 = arith.constant 0 : index
    %c0_434 = arith.constant 0 : index
    %1173 = vector.load %arg38[%c0_433, %c0_434] : memref<1x32xf32, #tpu.memory_space<vmem>>, vector<1x32xf32>
    %cst_435 = arith.constant 9.99999974E-6 : f32
    %1174 = vector.broadcast %cst_435 : f32 to vector<1x32xf32>
    %1175 = arith.addf %1170, %1174 : vector<1x32xf32>
    %1176 = math.rsqrt %1175 : vector<1x32xf32>
    %1177 = arith.mulf %1173, %1176 : vector<1x32xf32>
    %1178 = vector.broadcast %1177 : vector<1x32xf32> to vector<4x32xf32>
    %1179 = arith.mulf %1172, %1178 : vector<4x32xf32>
    %c0_436 = arith.constant 0 : index
    %c0_437 = arith.constant 0 : index
    %1180 = vector.load %arg39[%c0_436, %c0_437] : memref<1x32xf32, #tpu.memory_space<vmem>>, vector<1x32xf32>
    %1181 = vector.broadcast %1180 : vector<1x32xf32> to vector<4x32xf32>
    %1182 = arith.addf %1179, %1181 : vector<4x32xf32>
    %cst_438 = arith.constant dense<0.000000e+00> : vector<32xf32>
    %1183 = vector.multi_reduction <add>, %1119, %cst_438 [0] : vector<4x32xf32> to vector<32xf32>
    %1184 = vector.shape_cast %1183 : vector<32xf32> to vector<1x32xf32>
    %cst_439 = arith.constant 4.000000e+00 : f32
    %1185 = vector.broadcast %cst_439 : f32 to vector<1x32xf32>
    %1186 = arith.divf %1184, %1185 : vector<1x32xf32>
    %1187 = vector.broadcast %1186 : vector<1x32xf32> to vector<4x32xf32>
    %1188 = arith.subf %1119, %1187 : vector<4x32xf32>
    %1189 = arith.mulf %1188, %1188 : vector<4x32xf32>
    %cst_440 = arith.constant dense<0.000000e+00> : vector<32xf32>
    %1190 = vector.multi_reduction <add>, %1189, %cst_440 [0] : vector<4x32xf32> to vector<32xf32>
    %1191 = vector.shape_cast %1190 : vector<32xf32> to vector<1x32xf32>
    %cst_441 = arith.constant 4.000000e+00 : f32
    %1192 = vector.broadcast %cst_441 : f32 to vector<1x32xf32>
    %1193 = arith.divf %1191, %1192 : vector<1x32xf32>
    %1194 = vector.broadcast %1186 : vector<1x32xf32> to vector<4x32xf32>
    %1195 = arith.subf %1119, %1194 : vector<4x32xf32>
    %c0_442 = arith.constant 0 : index
    %c0_443 = arith.constant 0 : index
    %1196 = vector.load %arg34[%c0_442, %c0_443] : memref<1x32xf32, #tpu.memory_space<vmem>>, vector<1x32xf32>
    %cst_444 = arith.constant 9.99999974E-6 : f32
    %1197 = vector.broadcast %cst_444 : f32 to vector<1x32xf32>
    %1198 = arith.addf %1193, %1197 : vector<1x32xf32>
    %1199 = math.rsqrt %1198 : vector<1x32xf32>
    %1200 = arith.mulf %1196, %1199 : vector<1x32xf32>
    %1201 = vector.broadcast %1200 : vector<1x32xf32> to vector<4x32xf32>
    %1202 = arith.mulf %1195, %1201 : vector<4x32xf32>
    %c0_445 = arith.constant 0 : index
    %c0_446 = arith.constant 0 : index
    %1203 = vector.load %arg35[%c0_445, %c0_446] : memref<1x32xf32, #tpu.memory_space<vmem>>, vector<1x32xf32>
    %1204 = vector.broadcast %1203 : vector<1x32xf32> to vector<4x32xf32>
    %1205 = arith.addf %1202, %1204 : vector<4x32xf32>
    %1206 = arith.addf %1205, %1182 : vector<4x32xf32>
    %cst_447 = arith.constant 0.000000e+00 : f32
    %1207 = vector.broadcast %cst_447 : f32 to vector<4x32xf32>
    %1208 = arith.maximumf %1206, %1207 : vector<4x32xf32>
    %c0_448 = arith.constant 0 : index
    %c0_449 = arith.constant 0 : index
    %1209 = vector.load %arg2[%c0_448, %c0_449] : memref<4x32xf32, #tpu.memory_space<vmem>>, vector<4x32xf32>
    %c0_450 = arith.constant 0 : index
    %c0_451 = arith.constant 0 : index
    %1210 = vector.load %arg3[%c0_450, %c0_451] : memref<4x1xf32, #tpu.memory_space<vmem>>, vector<4x1xf32>
    %1211 = vector.broadcast %1210 : vector<4x1xf32> to vector<4x32xf32>
    %1212 = arith.mulf %1209, %1211 : vector<4x32xf32>
    %1213 = arith.addf %1208, %1212 : vector<4x32xf32>
    %cst_452 = arith.constant 0.000000e+00 : f32
    %1214 = vector.broadcast %cst_452 : f32 to vector<2x64xf32>
    %1215 = tpu.iota {dimensions = array<i32: 0>} : vector<2x1xi32>
    %1216 = arith.sitofp %1215 : vector<2x1xi32> to vector<2x1xf32>
    %cst_453 = arith.constant 0.000000e+00 : f32
    %1217 = vector.broadcast %cst_453 : f32 to vector<2x1xf32>
    %cst_454 = arith.constant 1.000000e+00 : f32
    %1218 = vector.broadcast %cst_454 : f32 to vector<2x1xf32>
    %1219 = arith.cmpf oge, %1216, %1218 : vector<2x1xf32>
    %1220 = arith.extui %1219 : vector<2x1xi1> to vector<2x1xi32>
    %1221 = arith.sitofp %1220 : vector<2x1xi32> to vector<2x1xf32>
    %1222 = arith.addf %1217, %1221 : vector<2x1xf32>
    %cst_455 = arith.constant 1.000000e+00 : f32
    %1223 = vector.broadcast %cst_455 : f32 to vector<2x1xf32>
    %1224 = arith.mulf %1222, %1223 : vector<2x1xf32>
    %1225 = arith.subf %1216, %1224 : vector<2x1xf32>
    %cst_456 = arith.constant 2.000000e+00 : f32
    %1226 = vector.broadcast %cst_456 : f32 to vector<2x1xf32>
    %1227 = arith.mulf %1225, %1226 : vector<2x1xf32>
    %cst_457 = arith.constant 0.000000e+00 : f32
    %1228 = vector.broadcast %cst_457 : f32 to vector<2x1xf32>
    %1229 = arith.addf %1227, %1228 : vector<2x1xf32>
    %cst_458 = arith.constant 0.000000e+00 : f32
    %1230 = vector.broadcast %cst_458 : f32 to vector<2x1xf32>
    %1231 = arith.cmpf oge, %1229, %1230 : vector<2x1xf32>
    %cst_459 = arith.constant 1.000000e+00 : f32
    %1232 = vector.broadcast %cst_459 : f32 to vector<2x1xf32>
    %1233 = arith.cmpf ole, %1229, %1232 : vector<2x1xf32>
    %1234 = arith.andi %1231, %1233 : vector<2x1xi1>
    %cst_460 = arith.constant 2.000000e+00 : f32
    %1235 = vector.broadcast %cst_460 : f32 to vector<2x1xf32>
    %1236 = arith.mulf %1222, %1235 : vector<2x1xf32>
    %1237 = arith.addf %1236, %1229 : vector<2x1xf32>
    %1238 = tpu.iota {dimensions = array<i32: 1>} : vector<2x4xi32>
    %1239 = arith.sitofp %1238 : vector<2x4xi32> to vector<2x4xf32>
    %1240 = vector.broadcast %1237 : vector<2x1xf32> to vector<2x4xf32>
    %1241 = arith.cmpf oeq, %1239, %1240 : vector<2x4xf32>
    %1242 = vector.broadcast %1234 : vector<2x1xi1> to vector<2x4xi1>
    %1243 = arith.andi %1241, %1242 : vector<2x4xi1>
    %1244 = arith.extui %1243 : vector<2x4xi1> to vector<2x4xi32>
    %1245 = arith.sitofp %1244 : vector<2x4xi32> to vector<2x4xf32>
    %cst_461 = arith.constant dense<0.000000e+00> : vector<2x32xf32>
    %1246 = tpu.matmul %1245, %1213, %cst_461 {dimension_numbers = #tpu.dot_dimension_numbers<[1], [0], [0], [1], [0, 0, 1, 1], [], []>} : vector<2x4xf32>, vector<4x32xf32>, vector<2x32xf32> -> vector<2x32xf32>
    %c1_462 = arith.constant 1 : index
    %c0_463 = arith.constant 0 : index
    %c0_464 = arith.constant 0 : index
    %1247 = vector.load %arg40[%c1_462, %c0_463, %c0_464] : memref<3x32x64xf32, #tpu.memory_space<vmem>>, vector<1x32x64xf32>
    %1248 = vector.shape_cast %1247 : vector<1x32x64xf32> to vector<32x64xf32>
    %cst_465 = arith.constant dense<0.000000e+00> : vector<2x64xf32>
    %1249 = tpu.matmul %1246, %1248, %cst_465 {dimension_numbers = #tpu.dot_dimension_numbers<[1], [0], [0], [1], [0, 0, 1, 1], [], []>} : vector<2x32xf32>, vector<32x64xf32>, vector<2x64xf32> -> vector<2x64xf32>
    %1250 = arith.addf %1214, %1249 : vector<2x64xf32>
    %1251 = tpu.iota {dimensions = array<i32: 0>} : vector<2x1xi32>
    %1252 = arith.sitofp %1251 : vector<2x1xi32> to vector<2x1xf32>
    %cst_466 = arith.constant 0.000000e+00 : f32
    %1253 = vector.broadcast %cst_466 : f32 to vector<2x1xf32>
    %cst_467 = arith.constant 1.000000e+00 : f32
    %1254 = vector.broadcast %cst_467 : f32 to vector<2x1xf32>
    %1255 = arith.cmpf oge, %1252, %1254 : vector<2x1xf32>
    %1256 = arith.extui %1255 : vector<2x1xi1> to vector<2x1xi32>
    %1257 = arith.sitofp %1256 : vector<2x1xi32> to vector<2x1xf32>
    %1258 = arith.addf %1253, %1257 : vector<2x1xf32>
    %cst_468 = arith.constant 1.000000e+00 : f32
    %1259 = vector.broadcast %cst_468 : f32 to vector<2x1xf32>
    %1260 = arith.mulf %1258, %1259 : vector<2x1xf32>
    %1261 = arith.subf %1252, %1260 : vector<2x1xf32>
    %cst_469 = arith.constant 2.000000e+00 : f32
    %1262 = vector.broadcast %cst_469 : f32 to vector<2x1xf32>
    %1263 = arith.mulf %1261, %1262 : vector<2x1xf32>
    %cst_470 = arith.constant 1.000000e+00 : f32
    %1264 = vector.broadcast %cst_470 : f32 to vector<2x1xf32>
    %1265 = arith.addf %1263, %1264 : vector<2x1xf32>
    %cst_471 = arith.constant 0.000000e+00 : f32
    %1266 = vector.broadcast %cst_471 : f32 to vector<2x1xf32>
    %1267 = arith.cmpf oge, %1265, %1266 : vector<2x1xf32>
    %cst_472 = arith.constant 1.000000e+00 : f32
    %1268 = vector.broadcast %cst_472 : f32 to vector<2x1xf32>
    %1269 = arith.cmpf ole, %1265, %1268 : vector<2x1xf32>
    %1270 = arith.andi %1267, %1269 : vector<2x1xi1>
    %cst_473 = arith.constant 2.000000e+00 : f32
    %1271 = vector.broadcast %cst_473 : f32 to vector<2x1xf32>
    %1272 = arith.mulf %1258, %1271 : vector<2x1xf32>
    %1273 = arith.addf %1272, %1265 : vector<2x1xf32>
    %1274 = tpu.iota {dimensions = array<i32: 1>} : vector<2x4xi32>
    %1275 = arith.sitofp %1274 : vector<2x4xi32> to vector<2x4xf32>
    %1276 = vector.broadcast %1273 : vector<2x1xf32> to vector<2x4xf32>
    %1277 = arith.cmpf oeq, %1275, %1276 : vector<2x4xf32>
    %1278 = vector.broadcast %1270 : vector<2x1xi1> to vector<2x4xi1>
    %1279 = arith.andi %1277, %1278 : vector<2x4xi1>
    %1280 = arith.extui %1279 : vector<2x4xi1> to vector<2x4xi32>
    %1281 = arith.sitofp %1280 : vector<2x4xi32> to vector<2x4xf32>
    %cst_474 = arith.constant dense<0.000000e+00> : vector<2x32xf32>
    %1282 = tpu.matmul %1281, %1213, %cst_474 {dimension_numbers = #tpu.dot_dimension_numbers<[1], [0], [0], [1], [0, 0, 1, 1], [], []>} : vector<2x4xf32>, vector<4x32xf32>, vector<2x32xf32> -> vector<2x32xf32>
    %c2_475 = arith.constant 2 : index
    %c0_476 = arith.constant 0 : index
    %c0_477 = arith.constant 0 : index
    %1283 = vector.load %arg40[%c2_475, %c0_476, %c0_477] : memref<3x32x64xf32, #tpu.memory_space<vmem>>, vector<1x32x64xf32>
    %1284 = vector.shape_cast %1283 : vector<1x32x64xf32> to vector<32x64xf32>
    %cst_478 = arith.constant dense<0.000000e+00> : vector<2x64xf32>
    %1285 = tpu.matmul %1282, %1284, %cst_478 {dimension_numbers = #tpu.dot_dimension_numbers<[1], [0], [0], [1], [0, 0, 1, 1], [], []>} : vector<2x32xf32>, vector<32x64xf32>, vector<2x64xf32> -> vector<2x64xf32>
    %1286 = arith.addf %1250, %1285 : vector<2x64xf32>
    %c0_479 = arith.constant 0 : index
    %c0_480 = arith.constant 0 : index
    %1287 = vector.load %arg41[%c0_479, %c0_480] : memref<1x64xf32, #tpu.memory_space<vmem>>, vector<1x64xf32>
    %1288 = vector.broadcast %1287 : vector<1x64xf32> to vector<2x64xf32>
    %1289 = arith.addf %1286, %1288 : vector<2x64xf32>
    %cst_481 = arith.constant dense<0.000000e+00> : vector<64xf32>
    %1290 = vector.multi_reduction <add>, %1289, %cst_481 [0] : vector<2x64xf32> to vector<64xf32>
    %1291 = vector.shape_cast %1290 : vector<64xf32> to vector<1x64xf32>
    %cst_482 = arith.constant 2.000000e+00 : f32
    %1292 = vector.broadcast %cst_482 : f32 to vector<1x64xf32>
    %1293 = arith.divf %1291, %1292 : vector<1x64xf32>
    %1294 = vector.broadcast %1293 : vector<1x64xf32> to vector<2x64xf32>
    %1295 = arith.subf %1289, %1294 : vector<2x64xf32>
    %1296 = arith.mulf %1295, %1295 : vector<2x64xf32>
    %cst_483 = arith.constant dense<0.000000e+00> : vector<64xf32>
    %1297 = vector.multi_reduction <add>, %1296, %cst_483 [0] : vector<2x64xf32> to vector<64xf32>
    %1298 = vector.shape_cast %1297 : vector<64xf32> to vector<1x64xf32>
    %cst_484 = arith.constant 2.000000e+00 : f32
    %1299 = vector.broadcast %cst_484 : f32 to vector<1x64xf32>
    %1300 = arith.divf %1298, %1299 : vector<1x64xf32>
    %1301 = vector.broadcast %1293 : vector<1x64xf32> to vector<2x64xf32>
    %1302 = arith.subf %1289, %1301 : vector<2x64xf32>
    %c0_485 = arith.constant 0 : index
    %c0_486 = arith.constant 0 : index
    %1303 = vector.load %arg42[%c0_485, %c0_486] : memref<1x64xf32, #tpu.memory_space<vmem>>, vector<1x64xf32>
    %cst_487 = arith.constant 9.99999974E-6 : f32
    %1304 = vector.broadcast %cst_487 : f32 to vector<1x64xf32>
    %1305 = arith.addf %1300, %1304 : vector<1x64xf32>
    %1306 = math.rsqrt %1305 : vector<1x64xf32>
    %1307 = arith.mulf %1303, %1306 : vector<1x64xf32>
    %1308 = vector.broadcast %1307 : vector<1x64xf32> to vector<2x64xf32>
    %1309 = arith.mulf %1302, %1308 : vector<2x64xf32>
    %c0_488 = arith.constant 0 : index
    %c0_489 = arith.constant 0 : index
    %1310 = vector.load %arg43[%c0_488, %c0_489] : memref<1x64xf32, #tpu.memory_space<vmem>>, vector<1x64xf32>
    %1311 = vector.broadcast %1310 : vector<1x64xf32> to vector<2x64xf32>
    %1312 = arith.addf %1309, %1311 : vector<2x64xf32>
    %cst_490 = arith.constant 0.000000e+00 : f32
    %1313 = vector.broadcast %cst_490 : f32 to vector<2x64xf32>
    %1314 = arith.maximumf %1312, %1313 : vector<2x64xf32>
    %cst_491 = arith.constant 0.000000e+00 : f32
    %1315 = vector.broadcast %cst_491 : f32 to vector<2x64xf32>
    %1316 = tpu.iota {dimensions = array<i32: 0>} : vector<2x1xi32>
    %1317 = arith.sitofp %1316 : vector<2x1xi32> to vector<2x1xf32>
    %cst_492 = arith.constant 0.000000e+00 : f32
    %1318 = vector.broadcast %cst_492 : f32 to vector<2x1xf32>
    %cst_493 = arith.constant 1.000000e+00 : f32
    %1319 = vector.broadcast %cst_493 : f32 to vector<2x1xf32>
    %1320 = arith.cmpf oge, %1317, %1319 : vector<2x1xf32>
    %1321 = arith.extui %1320 : vector<2x1xi1> to vector<2x1xi32>
    %1322 = arith.sitofp %1321 : vector<2x1xi32> to vector<2x1xf32>
    %1323 = arith.addf %1318, %1322 : vector<2x1xf32>
    %cst_494 = arith.constant 1.000000e+00 : f32
    %1324 = vector.broadcast %cst_494 : f32 to vector<2x1xf32>
    %1325 = arith.mulf %1323, %1324 : vector<2x1xf32>
    %1326 = arith.subf %1317, %1325 : vector<2x1xf32>
    %cst_495 = arith.constant 1.000000e+00 : f32
    %1327 = vector.broadcast %cst_495 : f32 to vector<2x1xf32>
    %1328 = arith.mulf %1326, %1327 : vector<2x1xf32>
    %cst_496 = arith.constant 0.000000e+00 : f32
    %1329 = vector.broadcast %cst_496 : f32 to vector<2x1xf32>
    %1330 = arith.addf %1328, %1329 : vector<2x1xf32>
    %cst_497 = arith.constant 0.000000e+00 : f32
    %1331 = vector.broadcast %cst_497 : f32 to vector<2x1xf32>
    %1332 = arith.cmpf oge, %1330, %1331 : vector<2x1xf32>
    %cst_498 = arith.constant 0.000000e+00 : f32
    %1333 = vector.broadcast %cst_498 : f32 to vector<2x1xf32>
    %1334 = arith.cmpf ole, %1330, %1333 : vector<2x1xf32>
    %1335 = arith.andi %1332, %1334 : vector<2x1xi1>
    %cst_499 = arith.constant 1.000000e+00 : f32
    %1336 = vector.broadcast %cst_499 : f32 to vector<2x1xf32>
    %1337 = arith.mulf %1323, %1336 : vector<2x1xf32>
    %1338 = arith.addf %1337, %1330 : vector<2x1xf32>
    %1339 = tpu.iota {dimensions = array<i32: 1>} : vector<2x2xi32>
    %1340 = arith.sitofp %1339 : vector<2x2xi32> to vector<2x2xf32>
    %1341 = vector.broadcast %1338 : vector<2x1xf32> to vector<2x2xf32>
    %1342 = arith.cmpf oeq, %1340, %1341 : vector<2x2xf32>
    %1343 = vector.broadcast %1335 : vector<2x1xi1> to vector<2x2xi1>
    %1344 = arith.andi %1342, %1343 : vector<2x2xi1>
    %1345 = arith.extui %1344 : vector<2x2xi1> to vector<2x2xi32>
    %1346 = arith.sitofp %1345 : vector<2x2xi32> to vector<2x2xf32>
    %cst_500 = arith.constant dense<0.000000e+00> : vector<2x64xf32>
    %1347 = tpu.matmul %1346, %1314, %cst_500 {dimension_numbers = #tpu.dot_dimension_numbers<[1], [0], [0], [1], [0, 0, 1, 1], [], []>} : vector<2x2xf32>, vector<2x64xf32>, vector<2x64xf32> -> vector<2x64xf32>
    %c1_501 = arith.constant 1 : index
    %c0_502 = arith.constant 0 : index
    %c0_503 = arith.constant 0 : index
    %1348 = vector.load %arg44[%c1_501, %c0_502, %c0_503] : memref<3x64x64xf32, #tpu.memory_space<vmem>>, vector<1x64x64xf32>
    %1349 = vector.shape_cast %1348 : vector<1x64x64xf32> to vector<64x64xf32>
    %cst_504 = arith.constant dense<0.000000e+00> : vector<2x64xf32>
    %1350 = tpu.matmul %1347, %1349, %cst_504 {dimension_numbers = #tpu.dot_dimension_numbers<[1], [0], [0], [1], [0, 0, 1, 1], [], []>} : vector<2x64xf32>, vector<64x64xf32>, vector<2x64xf32> -> vector<2x64xf32>
    %1351 = arith.addf %1315, %1350 : vector<2x64xf32>
    %c0_505 = arith.constant 0 : index
    %c0_506 = arith.constant 0 : index
    %1352 = vector.load %arg45[%c0_505, %c0_506] : memref<1x64xf32, #tpu.memory_space<vmem>>, vector<1x64xf32>
    %1353 = vector.broadcast %1352 : vector<1x64xf32> to vector<2x64xf32>
    %1354 = arith.addf %1351, %1353 : vector<2x64xf32>
    %cst_507 = arith.constant 0.000000e+00 : f32
    %1355 = vector.broadcast %cst_507 : f32 to vector<2x64xf32>
    %1356 = tpu.iota {dimensions = array<i32: 0>} : vector<2x1xi32>
    %1357 = arith.sitofp %1356 : vector<2x1xi32> to vector<2x1xf32>
    %cst_508 = arith.constant 0.000000e+00 : f32
    %1358 = vector.broadcast %cst_508 : f32 to vector<2x1xf32>
    %cst_509 = arith.constant 1.000000e+00 : f32
    %1359 = vector.broadcast %cst_509 : f32 to vector<2x1xf32>
    %1360 = arith.cmpf oge, %1357, %1359 : vector<2x1xf32>
    %1361 = arith.extui %1360 : vector<2x1xi1> to vector<2x1xi32>
    %1362 = arith.sitofp %1361 : vector<2x1xi32> to vector<2x1xf32>
    %1363 = arith.addf %1358, %1362 : vector<2x1xf32>
    %cst_510 = arith.constant 1.000000e+00 : f32
    %1364 = vector.broadcast %cst_510 : f32 to vector<2x1xf32>
    %1365 = arith.mulf %1363, %1364 : vector<2x1xf32>
    %1366 = arith.subf %1357, %1365 : vector<2x1xf32>
    %cst_511 = arith.constant 2.000000e+00 : f32
    %1367 = vector.broadcast %cst_511 : f32 to vector<2x1xf32>
    %1368 = arith.mulf %1366, %1367 : vector<2x1xf32>
    %cst_512 = arith.constant 0.000000e+00 : f32
    %1369 = vector.broadcast %cst_512 : f32 to vector<2x1xf32>
    %1370 = arith.addf %1368, %1369 : vector<2x1xf32>
    %cst_513 = arith.constant 0.000000e+00 : f32
    %1371 = vector.broadcast %cst_513 : f32 to vector<2x1xf32>
    %1372 = arith.cmpf oge, %1370, %1371 : vector<2x1xf32>
    %cst_514 = arith.constant 1.000000e+00 : f32
    %1373 = vector.broadcast %cst_514 : f32 to vector<2x1xf32>
    %1374 = arith.cmpf ole, %1370, %1373 : vector<2x1xf32>
    %1375 = arith.andi %1372, %1374 : vector<2x1xi1>
    %cst_515 = arith.constant 2.000000e+00 : f32
    %1376 = vector.broadcast %cst_515 : f32 to vector<2x1xf32>
    %1377 = arith.mulf %1363, %1376 : vector<2x1xf32>
    %1378 = arith.addf %1377, %1370 : vector<2x1xf32>
    %1379 = tpu.iota {dimensions = array<i32: 1>} : vector<2x4xi32>
    %1380 = arith.sitofp %1379 : vector<2x4xi32> to vector<2x4xf32>
    %1381 = vector.broadcast %1378 : vector<2x1xf32> to vector<2x4xf32>
    %1382 = arith.cmpf oeq, %1380, %1381 : vector<2x4xf32>
    %1383 = vector.broadcast %1375 : vector<2x1xi1> to vector<2x4xi1>
    %1384 = arith.andi %1382, %1383 : vector<2x4xi1>
    %1385 = arith.extui %1384 : vector<2x4xi1> to vector<2x4xi32>
    %1386 = arith.sitofp %1385 : vector<2x4xi32> to vector<2x4xf32>
    %cst_516 = arith.constant dense<0.000000e+00> : vector<2x32xf32>
    %1387 = tpu.matmul %1386, %1213, %cst_516 {dimension_numbers = #tpu.dot_dimension_numbers<[1], [0], [0], [1], [0, 0, 1, 1], [], []>} : vector<2x4xf32>, vector<4x32xf32>, vector<2x32xf32> -> vector<2x32xf32>
    %c0_517 = arith.constant 0 : index
    %c0_518 = arith.constant 0 : index
    %c0_519 = arith.constant 0 : index
    %1388 = vector.load %arg48[%c0_517, %c0_518, %c0_519] : memref<1x32x64xf32, #tpu.memory_space<vmem>>, vector<1x32x64xf32>
    %1389 = vector.shape_cast %1388 : vector<1x32x64xf32> to vector<32x64xf32>
    %cst_520 = arith.constant dense<0.000000e+00> : vector<2x64xf32>
    %1390 = tpu.matmul %1387, %1389, %cst_520 {dimension_numbers = #tpu.dot_dimension_numbers<[1], [0], [0], [1], [0, 0, 1, 1], [], []>} : vector<2x32xf32>, vector<32x64xf32>, vector<2x64xf32> -> vector<2x64xf32>
    %1391 = arith.addf %1355, %1390 : vector<2x64xf32>
    %c0_521 = arith.constant 0 : index
    %c0_522 = arith.constant 0 : index
    %1392 = vector.load %arg49[%c0_521, %c0_522] : memref<1x64xf32, #tpu.memory_space<vmem>>, vector<1x64xf32>
    %1393 = vector.broadcast %1392 : vector<1x64xf32> to vector<2x64xf32>
    %1394 = arith.addf %1391, %1393 : vector<2x64xf32>
    %cst_523 = arith.constant dense<0.000000e+00> : vector<64xf32>
    %1395 = vector.multi_reduction <add>, %1394, %cst_523 [0] : vector<2x64xf32> to vector<64xf32>
    %1396 = vector.shape_cast %1395 : vector<64xf32> to vector<1x64xf32>
    %cst_524 = arith.constant 2.000000e+00 : f32
    %1397 = vector.broadcast %cst_524 : f32 to vector<1x64xf32>
    %1398 = arith.divf %1396, %1397 : vector<1x64xf32>
    %1399 = vector.broadcast %1398 : vector<1x64xf32> to vector<2x64xf32>
    %1400 = arith.subf %1394, %1399 : vector<2x64xf32>
    %1401 = arith.mulf %1400, %1400 : vector<2x64xf32>
    %cst_525 = arith.constant dense<0.000000e+00> : vector<64xf32>
    %1402 = vector.multi_reduction <add>, %1401, %cst_525 [0] : vector<2x64xf32> to vector<64xf32>
    %1403 = vector.shape_cast %1402 : vector<64xf32> to vector<1x64xf32>
    %cst_526 = arith.constant 2.000000e+00 : f32
    %1404 = vector.broadcast %cst_526 : f32 to vector<1x64xf32>
    %1405 = arith.divf %1403, %1404 : vector<1x64xf32>
    %1406 = vector.broadcast %1398 : vector<1x64xf32> to vector<2x64xf32>
    %1407 = arith.subf %1394, %1406 : vector<2x64xf32>
    %c0_527 = arith.constant 0 : index
    %c0_528 = arith.constant 0 : index
    %1408 = vector.load %arg50[%c0_527, %c0_528] : memref<1x64xf32, #tpu.memory_space<vmem>>, vector<1x64xf32>
    %cst_529 = arith.constant 9.99999974E-6 : f32
    %1409 = vector.broadcast %cst_529 : f32 to vector<1x64xf32>
    %1410 = arith.addf %1405, %1409 : vector<1x64xf32>
    %1411 = math.rsqrt %1410 : vector<1x64xf32>
    %1412 = arith.mulf %1408, %1411 : vector<1x64xf32>
    %1413 = vector.broadcast %1412 : vector<1x64xf32> to vector<2x64xf32>
    %1414 = arith.mulf %1407, %1413 : vector<2x64xf32>
    %c0_530 = arith.constant 0 : index
    %c0_531 = arith.constant 0 : index
    %1415 = vector.load %arg51[%c0_530, %c0_531] : memref<1x64xf32, #tpu.memory_space<vmem>>, vector<1x64xf32>
    %1416 = vector.broadcast %1415 : vector<1x64xf32> to vector<2x64xf32>
    %1417 = arith.addf %1414, %1416 : vector<2x64xf32>
    %cst_532 = arith.constant dense<0.000000e+00> : vector<64xf32>
    %1418 = vector.multi_reduction <add>, %1354, %cst_532 [0] : vector<2x64xf32> to vector<64xf32>
    %1419 = vector.shape_cast %1418 : vector<64xf32> to vector<1x64xf32>
    %cst_533 = arith.constant 2.000000e+00 : f32
    %1420 = vector.broadcast %cst_533 : f32 to vector<1x64xf32>
    %1421 = arith.divf %1419, %1420 : vector<1x64xf32>
    %1422 = vector.broadcast %1421 : vector<1x64xf32> to vector<2x64xf32>
    %1423 = arith.subf %1354, %1422 : vector<2x64xf32>
    %1424 = arith.mulf %1423, %1423 : vector<2x64xf32>
    %cst_534 = arith.constant dense<0.000000e+00> : vector<64xf32>
    %1425 = vector.multi_reduction <add>, %1424, %cst_534 [0] : vector<2x64xf32> to vector<64xf32>
    %1426 = vector.shape_cast %1425 : vector<64xf32> to vector<1x64xf32>
    %cst_535 = arith.constant 2.000000e+00 : f32
    %1427 = vector.broadcast %cst_535 : f32 to vector<1x64xf32>
    %1428 = arith.divf %1426, %1427 : vector<1x64xf32>
    %1429 = vector.broadcast %1421 : vector<1x64xf32> to vector<2x64xf32>
    %1430 = arith.subf %1354, %1429 : vector<2x64xf32>
    %c0_536 = arith.constant 0 : index
    %c0_537 = arith.constant 0 : index
    %1431 = vector.load %arg46[%c0_536, %c0_537] : memref<1x64xf32, #tpu.memory_space<vmem>>, vector<1x64xf32>
    %cst_538 = arith.constant 9.99999974E-6 : f32
    %1432 = vector.broadcast %cst_538 : f32 to vector<1x64xf32>
    %1433 = arith.addf %1428, %1432 : vector<1x64xf32>
    %1434 = math.rsqrt %1433 : vector<1x64xf32>
    %1435 = arith.mulf %1431, %1434 : vector<1x64xf32>
    %1436 = vector.broadcast %1435 : vector<1x64xf32> to vector<2x64xf32>
    %1437 = arith.mulf %1430, %1436 : vector<2x64xf32>
    %c0_539 = arith.constant 0 : index
    %c0_540 = arith.constant 0 : index
    %1438 = vector.load %arg47[%c0_539, %c0_540] : memref<1x64xf32, #tpu.memory_space<vmem>>, vector<1x64xf32>
    %1439 = vector.broadcast %1438 : vector<1x64xf32> to vector<2x64xf32>
    %1440 = arith.addf %1437, %1439 : vector<2x64xf32>
    %1441 = arith.addf %1440, %1417 : vector<2x64xf32>
    %cst_541 = arith.constant 0.000000e+00 : f32
    %1442 = vector.broadcast %cst_541 : f32 to vector<2x64xf32>
    %1443 = arith.maximumf %1441, %1442 : vector<2x64xf32>
    %1444 = tpu.iota {dimensions = array<i32: 0>} : vector<2x2xi32>
    %1445 = arith.sitofp %1444 : vector<2x2xi32> to vector<2x2xf32>
    %1446 = tpu.iota {dimensions = array<i32: 1>} : vector<2x2xi32>
    %1447 = arith.sitofp %1446 : vector<2x2xi32> to vector<2x2xf32>
    %cst_542 = arith.constant 0.000000e+00 : f32
    %1448 = vector.broadcast %cst_542 : f32 to vector<2x2xf32>
    %cst_543 = arith.constant 1.000000e+00 : f32
    %1449 = vector.broadcast %cst_543 : f32 to vector<2x2xf32>
    %1450 = arith.cmpf oge, %1447, %1449 : vector<2x2xf32>
    %1451 = arith.extui %1450 : vector<2x2xi1> to vector<2x2xi32>
    %1452 = arith.sitofp %1451 : vector<2x2xi32> to vector<2x2xf32>
    %1453 = arith.addf %1448, %1452 : vector<2x2xf32>
    %1454 = arith.cmpf oeq, %1453, %1445 : vector<2x2xf32>
    %1455 = arith.extui %1454 : vector<2x2xi1> to vector<2x2xi32>
    %1456 = arith.sitofp %1455 : vector<2x2xi32> to vector<2x2xf32>
    %cst_544 = arith.constant 1.000000e+00 : f32
    %1457 = vector.broadcast %cst_544 : f32 to vector<2x2xf32>
    %1458 = arith.mulf %1456, %1457 : vector<2x2xf32>
    %cst_545 = arith.constant dense<0.000000e+00> : vector<2x64xf32>
    %1459 = tpu.matmul %1458, %1443, %cst_545 {dimension_numbers = #tpu.dot_dimension_numbers<[1], [0], [0], [1], [0, 0, 1, 1], [], []>} : vector<2x2xf32>, vector<2x64xf32>, vector<2x64xf32> -> vector<2x64xf32>
    %c0_546 = arith.constant 0 : index
    %c0_547 = arith.constant 0 : index
    %1460 = vector.load %arg52[%c0_546, %c0_547] : memref<64x4xf32, #tpu.memory_space<vmem>>, vector<64x4xf32>
    %cst_548 = arith.constant dense<0.000000e+00> : vector<2x4xf32>
    %1461 = tpu.matmul %1459, %1460, %cst_548 {dimension_numbers = #tpu.dot_dimension_numbers<[1], [0], [0], [1], [0, 0, 1, 1], [], []>} : vector<2x64xf32>, vector<64x4xf32>, vector<2x4xf32> -> vector<2x4xf32>
    %c0_549 = arith.constant 0 : index
    %c0_550 = arith.constant 0 : index
    %1462 = vector.load %arg53[%c0_549, %c0_550] : memref<1x4xf32, #tpu.memory_space<vmem>>, vector<1x4xf32>
    %1463 = vector.broadcast %1462 : vector<1x4xf32> to vector<2x4xf32>
    %1464 = arith.addf %1461, %1463 : vector<2x4xf32>
    %c0_551 = arith.constant 0 : index
    %c0_552 = arith.constant 0 : index
    %1465 = vector.load %arg54[%c0_551, %c0_552] : memref<2x4xf32, #tpu.memory_space<vmem>>, vector<2x4xf32>
    tpu.vector_store %arg54[%c0_551, %c0_552], %1464 {strides = array<i32>} : memref<2x4xf32, #tpu.memory_space<vmem>>, vector<2x4xf32>,
    return
  }
}

</mosaic_0001>

<llo_original>
// kernel: tpu_custom_call.1
$region0: #{tpu_custom_call.1}
  #allocation0 [shape = 'u32[]', space=smem, size = 0x4, offset = 0x4, fixed_abs, tag = 'smem constant byte address 0x4 - core index']
  #allocation1 [shape = 'u32[144,128]{1,0:T(1,128)}', space=vmem, size = 0x12000, scoped, tag = 'internal scratch']
  %s0 = inlined_call_operand.smem [shape: u32[55], index: -1, kind: input, shape index: {}]
  %s1 = sld [smem:[%s0]]
  %s2 = scalar_lea.smem %s0, 1
  %s3 = sld [smem:[%s2]]
  %s4 = scalar_lea.smem %s0, 2
  %s5 = sld [smem:[%s4]]
  %s6 = scalar_lea.smem %s0, 3
  %s7 = sld [smem:[%s6]]
  %s8 = scalar_lea.smem %s0, 4
  %s9 = sld [smem:[%s8]]
  %s10 = scalar_lea.smem %s0, 5
  %s11 = sld [smem:[%s10]]
  %s12 = scalar_lea.smem %s0, 6
  %s13 = sld [smem:[%s12]]
  %s14 = scalar_lea.smem %s0, 7
  %s15 = sld [smem:[%s14]]
  %s16 = scalar_lea.smem %s0, 8
  %s17 = sld [smem:[%s16]]
  %s18 = scalar_lea.smem %s0, 9
  %s19 = sld [smem:[%s18]]
  %s20 = scalar_lea.smem %s0, 10
  %s21 = sld [smem:[%s20]]
  %s22 = scalar_lea.smem %s0, 11
  %s23 = sld [smem:[%s22]]
  %s24 = scalar_lea.smem %s0, 12
  %s25 = sld [smem:[%s24]]
  %s26 = scalar_lea.smem %s0, 13
  %s27 = sld [smem:[%s26]]
  %s28 = scalar_lea.smem %s0, 14
  %s29 = sld [smem:[%s28]]
  %s30 = scalar_lea.smem %s0, 15
  %s31 = sld [smem:[%s30]]
  %s32 = scalar_lea.smem %s0, 16
  %s33 = sld [smem:[%s32]]
  %s34 = scalar_lea.smem %s0, 17
  %s35 = sld [smem:[%s34]]
  %s36 = scalar_lea.smem %s0, 18
  %s37 = sld [smem:[%s36]]
  %s38 = scalar_lea.smem %s0, 19
  %s39 = sld [smem:[%s38]]
  %s40 = scalar_lea.smem %s0, 20
  %s41 = sld [smem:[%s40]]
  %s42 = scalar_lea.smem %s0, 21
  %s43 = sld [smem:[%s42]]
  %s44 = scalar_lea.smem %s0, 22
  %s45 = sld [smem:[%s44]]
  %s46 = scalar_lea.smem %s0, 23
  %s47 = sld [smem:[%s46]]
  %s48 = scalar_lea.smem %s0, 24
  %s49 = sld [smem:[%s48]]
  %s50 = scalar_lea.smem %s0, 25
  %s51 = sld [smem:[%s50]]
  %s52 = scalar_lea.smem %s0, 26
  %s53 = sld [smem:[%s52]]
  %s54 = scalar_lea.smem %s0, 27
  %s55 = sld [smem:[%s54]]
  %s56 = scalar_lea.smem %s0, 28
  %s57 = sld [smem:[%s56]]
  %s58 = scalar_lea.smem %s0, 29
  %s59 = sld [smem:[%s58]]
  %s60 = scalar_lea.smem %s0, 30
  %s61 = sld [smem:[%s60]]
  %s62 = scalar_lea.smem %s0, 31
  %s63 = sld [smem:[%s62]]
  %s64 = scalar_lea.smem %s0, 32
  %s65 = sld [smem:[%s64]]
  %s66 = scalar_lea.smem %s0, 33
  %s67 = sld [smem:[%s66]]
  %s68 = scalar_lea.smem %s0, 34
  %s69 = sld [smem:[%s68]]
  %s70 = scalar_lea.smem %s0, 35
  %s71 = sld [smem:[%s70]]
  %s72 = scalar_lea.smem %s0, 36
  %s73 = sld [smem:[%s72]]
  %s74 = scalar_lea.smem %s0, 37
  %s75 = sld [smem:[%s74]]
  %s76 = scalar_lea.smem %s0, 38
  %s77 = sld [smem:[%s76]]
  %s78 = scalar_lea.smem %s0, 39
  %s79 = sld [smem:[%s78]]
  %s80 = scalar_lea.smem %s0, 40
  %s81 = sld [smem:[%s80]]
  %s82 = scalar_lea.smem %s0, 41
  %s83 = sld [smem:[%s82]]
  %s84 = scalar_lea.smem %s0, 42
  %s85 = sld [smem:[%s84]]
  %s86 = scalar_lea.smem %s0, 43
  %s87 = sld [smem:[%s86]]
  %s88 = scalar_lea.smem %s0, 44
  %s89 = sld [smem:[%s88]]
  %s90 = scalar_lea.smem %s0, 45
  %s91 = sld [smem:[%s90]]
  %s92 = scalar_lea.smem %s0, 46
  %s93 = sld [smem:[%s92]]
  %s94 = scalar_lea.smem %s0, 47
  %s95 = sld [smem:[%s94]]
  %s96 = scalar_lea.smem %s0, 48
  %s97 = sld [smem:[%s96]]
  %s98 = scalar_lea.smem %s0, 49
  %s99 = sld [smem:[%s98]]
  %s100 = scalar_lea.smem %s0, 50
  %s101 = sld [smem:[%s100]]
  %s102 = scalar_lea.smem %s0, 51
  %s103 = sld [smem:[%s102]]
  %s104 = scalar_lea.smem %s0, 52
  %s105 = sld [smem:[%s104]]
  %s106 = scalar_lea.smem %s0, 53
  %s107 = sld [smem:[%s106]]
  %s108 = scalar_lea.smem %s0, 54
  %s109 = sld [smem:[%s108]]
  %s110 = sld [smem:[#allocation0]]
  $region346: #{tpu_custom_call.1} parent=0
    _
  %s112 = ssub.s32 1, %s110
  %s113 = scalar_select 0, %s112, %s110
  $region1: #{tpu_custom_call.1} parent=0
    #allocation2 [shape = 'u8[2048]{0}', space=vmem, size = 0x800, scoped, tag = 'input window, operand 2, single buffered']
    #allocation3 [shape = 's32[1]{0}', space=sflag, size = 0x4, scoped, tag = 'scoped memory for tpu_custom_call.1']
    #allocation4 [shape = 's32[1]{0}', space=sflag, size = 0x4, scoped, tag = 'scoped memory for tpu_custom_call.1']
    #allocation5 [shape = 'u8[12288]{0}', space=vmem, size = 0x3000, scoped, tag = 'input window, operand 4, single buffered']
    #allocation6 [shape = 's32[1]{0}', space=sflag, size = 0x4, scoped, tag = 'scoped memory for tpu_custom_call.1']
    #allocation7 [shape = 'u8[512]{0}', space=vmem, size = 0x400, scoped, tag = 'input window, operand 5, single buffered']
    #allocation8 [shape = 'u8[512]{0}', space=vmem, size = 0x400, scoped, tag = 'input window, operand 6, single buffered']
    #allocation9 [shape = 's32[1]{0}', space=sflag, size = 0x4, scoped, tag = 'scoped memory for tpu_custom_call.1']
    #allocation10 [shape = 'u8[512]{0}', space=vmem, size = 0x400, scoped, tag = 'input window, operand 7, single buffered']
    #allocation11 [shape = 'u8[12288]{0}', space=vmem, size = 0x3000, scoped, tag = 'input window, operand 8, single buffered']
    #allocation12 [shape = 's32[1]{0}', space=sflag, size = 0x4, scoped, tag = 'scoped memory for tpu_custom_call.1']
    #allocation13 [shape = 'u8[512]{0}', space=vmem, size = 0x400, scoped, tag = 'input window, operand 9, single buffered']
    #allocation14 [shape = 'u8[512]{0}', space=vmem, size = 0x400, scoped, tag = 'input window, operand 10, single buffered']
    #allocation15 [shape = 's32[1]{0}', space=sflag, size = 0x4, scoped, tag = 'scoped memory for tpu_custom_call.1']
    #allocation16 [shape = 'u8[512]{0}', space=vmem, size = 0x400, scoped, tag = 'input window, operand 11, single buffered']
    #allocation17 [shape = 'u8[12288]{0}', space=vmem, size = 0x3000, scoped, tag = 'input window, operand 12, single buffered']
    #allocation18 [shape = 's32[1]{0}', space=sflag, size = 0x4, scoped, tag = 'scoped memory for tpu_custom_call.1']
    #allocation19 [shape = 'u8[512]{0}', space=vmem, size = 0x400, scoped, tag = 'input window, operand 13, single buffered']
    #allocation20 [shape = 'u8[512]{0}', space=vmem, size = 0x400, scoped, tag = 'input window, operand 14, single buffered']
    #allocation21 [shape = 's32[1]{0}', space=sflag, size = 0x4, scoped, tag = 'scoped memory for tpu_custom_call.1']
    #allocation22 [shape = 'u8[512]{0}', space=vmem, size = 0x400, scoped, tag = 'input window, operand 15, single buffered']
    #allocation23 [shape = 'u8[12288]{0}', space=vmem, size = 0x3000, scoped, tag = 'input window, operand 16, single buffered']
    #allocation24 [shape = 's32[1]{0}', space=sflag, size = 0x4, scoped, tag = 'scoped memory for tpu_custom_call.1']
    #allocation25 [shape = 'u8[512]{0}', space=vmem, size = 0x400, scoped, tag = 'input window, operand 17, single buffered']
    #allocation26 [shape = 'u8[512]{0}', space=vmem, size = 0x400, scoped, tag = 'input window, operand 18, single buffered']
    #allocation27 [shape = 's32[1]{0}', space=sflag, size = 0x4, scoped, tag = 'scoped memory for tpu_custom_call.1']
    #allocation28 [shape = 'u8[512]{0}', space=vmem, size = 0x400, scoped, tag = 'input window, operand 19, single buffered']
    #allocation29 [shape = 'u8[24576]{0}', space=vmem, size = 0x6000, scoped, tag = 'input window, operand 20, single buffered']
    #allocation30 [shape = 's32[1]{0}', space=sflag, size = 0x4, scoped, tag = 'scoped memory for tpu_custom_call.1']
    #allocation31 [shape = 'u8[512]{0}', space=vmem, size = 0x400, scoped, tag = 'input window, operand 21, single buffered']
    #allocation32 [shape = 'u8[512]{0}', space=vmem, size = 0x400, scoped, tag = 'input window, operand 22, single buffered']
    #allocation33 [shape = 's32[1]{0}', space=sflag, size = 0x4, scoped, tag = 'scoped memory for tpu_custom_call.1']
    #allocation34 [shape = 'u8[512]{0}', space=vmem, size = 0x400, scoped, tag = 'input window, operand 23, single buffered']
    #allocation35 [shape = 'u8[4096]{0}', space=vmem, size = 0x1000, scoped, tag = 'input window, operand 24, single buffered']
    #allocation36 [shape = 's32[1]{0}', space=sflag, size = 0x4, scoped, tag = 'scoped memory for tpu_custom_call.1']
    #allocation37 [shape = 'u8[512]{0}', space=vmem, size = 0x400, scoped, tag = 'input window, operand 25, single buffered']
    #allocation38 [shape = 'u8[512]{0}', space=vmem, size = 0x400, scoped, tag = 'input window, operand 26, single buffered']
    #allocation39 [shape = 's32[1]{0}', space=sflag, size = 0x4, scoped, tag = 'scoped memory for tpu_custom_call.1']
    #allocation40 [shape = 'u8[512]{0}', space=vmem, size = 0x400, scoped, tag = 'input window, operand 27, single buffered']
    #allocation41 [shape = 'u8[24576]{0}', space=vmem, size = 0x6000, scoped, tag = 'input window, operand 28, single buffered']
    #allocation42 [shape = 's32[1]{0}', space=sflag, size = 0x4, scoped, tag = 'scoped memory for tpu_custom_call.1']
    #allocation43 [shape = 'u8[512]{0}', space=vmem, size = 0x400, scoped, tag = 'input window, operand 29, single buffered']
    #allocation44 [shape = 'u8[512]{0}', space=vmem, size = 0x400, scoped, tag = 'input window, operand 30, single buffered']
    #allocation45 [shape = 's32[1]{0}', space=sflag, size = 0x4, scoped, tag = 'scoped memory for tpu_custom_call.1']
    #allocation46 [shape = 'u8[512]{0}', space=vmem, size = 0x400, scoped, tag = 'input window, operand 31, single buffered']
    #allocation47 [shape = 'u8[512]{0}', space=vmem, size = 0x400, scoped, tag = 'input window, operand 35, single buffered']
    #allocation48 [shape = 's32[1]{0}', space=sflag, size = 0x4, scoped, tag = 'scoped memory for tpu_custom_call.1']
    #allocation49 [shape = 'u8[1024]{0}', space=vmem, size = 0x400, scoped, tag = 'output window, operand 0, single buffered']
    %114 = vsyncpa [#allocation3], 0
    %115 = vsyncpa [#allocation6], 0
    %116 = vsyncpa [#allocation9], 0
    %117 = vsyncpa [#allocation12], 0
    %118 = vsyncpa [#allocation15], 0
    %119 = vsyncpa [#allocation18], 0
    %120 = vsyncpa [#allocation21], 0
    %121 = vsyncpa [#allocation24], 0
    %122 = vsyncpa [#allocation27], 0
    %123 = vsyncpa [#allocation30], 0
    %124 = vsyncpa [#allocation33], 0
    %125 = vsyncpa [#allocation36], 0
    %126 = vsyncpa [#allocation39], 0
    %127 = vsyncpa [#allocation42], 0
    %128 = vsyncpa [#allocation45], 0
    %129 = vsyncpa [#allocation48], 0
    %130 = vsyncpa [#allocation4], 0
    // Predicated region
    $region2: #{tpu_custom_call.1} parent=1 // pred_check
      _
    $region3: #{tpu_custom_call.1} parent=1 // pred_check_branch
      %132 = sbr.rel (0) target = $region5
    $region4: #{tpu_custom_call.1} parent=1 // pred_region
      _
    $region5: #{tpu_custom_call.1} parent=1 // pred_fallthru
      _
    // Predicated region
    $region6: #{tpu_custom_call.1} parent=1 // pred_check
      _
    $region7: #{tpu_custom_call.1} parent=1 // pred_check_branch
      %134 = sbr.rel (0) target = $region9
    $region8: #{tpu_custom_call.1} parent=1 // pred_region
      _
    $region9: #{tpu_custom_call.1} parent=1 // pred_fallthru
      _
    // Predicated region
    $region10: #{tpu_custom_call.1} parent=1 // pred_check
      _
    $region11: #{tpu_custom_call.1} parent=1 // pred_check_branch
      %136 = sbr.rel (0) target = $region13
    $region12: #{tpu_custom_call.1} parent=1 // pred_region
      %s138 = ssub.s32 64, 64
      %139 = vsyncadd [#allocation3], %s138
      %s141 = sshll.u32 [#allocation2], 4
      %s142 = int_to_ptr.vmem [resolvable:$true] %s141
      %144 = dma.hbm_to_vmem [thread:$0]  %s5, 64, %s142, [#allocation3]
    $region13: #{tpu_custom_call.1} parent=1 // pred_fallthru
      _
    // Predicated region
    $region14: #{tpu_custom_call.1} parent=1 // pred_check
      _
    $region15: #{tpu_custom_call.1} parent=1 // pred_check_branch
      %146 = sbr.rel (0) target = $region17
    $region16: #{tpu_custom_call.1} parent=1 // pred_region
      _
    $region17: #{tpu_custom_call.1} parent=1 // pred_fallthru
      _
    // Predicated region
    $region18: #{tpu_custom_call.1} parent=1 // pred_check
      _
    $region19: #{tpu_custom_call.1} parent=1 // pred_check_branch
      %148 = sbr.rel (0) target = $region21
    $region20: #{tpu_custom_call.1} parent=1 // pred_region
      %s150 = ssub.s32 384, 384
      %151 = vsyncadd [#allocation6], %s150
      %s152 = sshll.u32 [#allocation5], 4
      %s153 = int_to_ptr.vmem [resolvable:$true] %s152
      %158 = dma.hbm_to_vmem [thread:$0]  %s9, 384, %s153, [#allocation6], 128, 128, 8
    $region21: #{tpu_custom_call.1} parent=1 // pred_fallthru
      _
    // Predicated region
    $region22: #{tpu_custom_call.1} parent=1 // pred_check
      _
    $region23: #{tpu_custom_call.1} parent=1 // pred_check_branch
      %160 = sbr.rel (0) target = $region25
    $region24: #{tpu_custom_call.1} parent=1 // pred_region
      %s162 = ssub.s32 16, 16
      %163 = vsyncadd [#allocation6], %s162
      %s165 = sshll.u32 [#allocation7], 4
      %s166 = int_to_ptr.vmem [resolvable:$true] %s165
      %168 = dma.hbm_to_vmem [thread:$0]  %s11, 16, %s166, [#allocation6]
    $region25: #{tpu_custom_call.1} parent=1 // pred_fallthru
      _
    // Predicated region
    $region26: #{tpu_custom_call.1} parent=1 // pred_check
      _
    $region27: #{tpu_custom_call.1} parent=1 // pred_check_branch
      %170 = sbr.rel (0) target = $region29
    $region28: #{tpu_custom_call.1} parent=1 // pred_region
      %s172 = ssub.s32 16, 16
      %173 = vsyncadd [#allocation9], %s172
      %s175 = sshll.u32 [#allocation8], 4
      %s176 = int_to_ptr.vmem [resolvable:$true] %s175
      %178 = dma.hbm_to_vmem [thread:$0]  %s13, 16, %s176, [#allocation9]
    $region29: #{tpu_custom_call.1} parent=1 // pred_fallthru
      _
    // Predicated region
    $region30: #{tpu_custom_call.1} parent=1 // pred_check
      _
    $region31: #{tpu_custom_call.1} parent=1 // pred_check_branch
      %180 = sbr.rel (0) target = $region33
    $region32: #{tpu_custom_call.1} parent=1 // pred_region
      %s182 = ssub.s32 16, 16
      %183 = vsyncadd [#allocation9], %s182
      %s185 = sshll.u32 [#allocation10], 4
      %s186 = int_to_ptr.vmem [resolvable:$true] %s185
      %188 = dma.hbm_to_vmem [thread:$0]  %s15, 16, %s186, [#allocation9]
    $region33: #{tpu_custom_call.1} parent=1 // pred_fallthru
      _
    // Predicated region
    $region34: #{tpu_custom_call.1} parent=1 // pred_check
      _
    $region35: #{tpu_custom_call.1} parent=1 // pred_check_branch
      %190 = sbr.rel (0) target = $region37
    $region36: #{tpu_custom_call.1} parent=1 // pred_region
      %s192 = ssub.s32 384, 384
      %193 = vsyncadd [#allocation12], %s192
      %s194 = sshll.u32 [#allocation11], 4
      %s195 = int_to_ptr.vmem [resolvable:$true] %s194
      %200 = dma.hbm_to_vmem [thread:$0]  %s17, 384, %s195, [#allocation12], 128, 128, 8
    $region37: #{tpu_custom_call.1} parent=1 // pred_fallthru
      _
    // Predicated region
    $region38: #{tpu_custom_call.1} parent=1 // pred_check
      _
    $region39: #{tpu_custom_call.1} parent=1 // pred_check_branch
      %202 = sbr.rel (0) target = $region41
    $region40: #{tpu_custom_call.1} parent=1 // pred_region
      %s204 = ssub.s32 16, 16
      %205 = vsyncadd [#allocation12], %s204
      %s207 = sshll.u32 [#allocation13], 4
      %s208 = int_to_ptr.vmem [resolvable:$true] %s207
      %210 = dma.hbm_to_vmem [thread:$0]  %s19, 16, %s208, [#allocation12]
    $region41: #{tpu_custom_call.1} parent=1 // pred_fallthru
      _
    // Predicated region
    $region42: #{tpu_custom_call.1} parent=1 // pred_check
      _
    $region43: #{tpu_custom_call.1} parent=1 // pred_check_branch
      %212 = sbr.rel (0) target = $region45
    $region44: #{tpu_custom_call.1} parent=1 // pred_region
      %s214 = ssub.s32 16, 16
      %215 = vsyncadd [#allocation15], %s214
      %s217 = sshll.u32 [#allocation14], 4
      %s218 = int_to_ptr.vmem [resolvable:$true] %s217
      %220 = dma.hbm_to_vmem [thread:$0]  %s21, 16, %s218, [#allocation15]
    $region45: #{tpu_custom_call.1} parent=1 // pred_fallthru
      _
    // Predicated region
    $region46: #{tpu_custom_call.1} parent=1 // pred_check
      _
    $region47: #{tpu_custom_call.1} parent=1 // pred_check_branch
      %222 = sbr.rel (0) target = $region49
    $region48: #{tpu_custom_call.1} parent=1 // pred_region
      %s224 = ssub.s32 16, 16
      %225 = vsyncadd [#allocation15], %s224
      %s227 = sshll.u32 [#allocation16], 4
      %s228 = int_to_ptr.vmem [resolvable:$true] %s227
      %230 = dma.hbm_to_vmem [thread:$0]  %s23, 16, %s228, [#allocation15]
    $region49: #{tpu_custom_call.1} parent=1 // pred_fallthru
      _
    // Predicated region
    $region50: #{tpu_custom_call.1} parent=1 // pred_check
      _
    $region51: #{tpu_custom_call.1} parent=1 // pred_check_branch
      %232 = sbr.rel (0) target = $region53
    $region52: #{tpu_custom_call.1} parent=1 // pred_region
      %s234 = ssub.s32 384, 384
      %235 = vsyncadd [#allocation18], %s234
      %s236 = sshll.u32 [#allocation17], 4
      %s237 = int_to_ptr.vmem [resolvable:$true] %s236
      %242 = dma.hbm_to_vmem [thread:$0]  %s25, 384, %s237, [#allocation18], 128, 128, 8
    $region53: #{tpu_custom_call.1} parent=1 // pred_fallthru
      _
    // Predicated region
    $region54: #{tpu_custom_call.1} parent=1 // pred_check
      _
    $region55: #{tpu_custom_call.1} parent=1 // pred_check_branch
      %244 = sbr.rel (0) target = $region57
    $region56: #{tpu_custom_call.1} parent=1 // pred_region
      %s246 = ssub.s32 16, 16
      %247 = vsyncadd [#allocation18], %s246
      %s249 = sshll.u32 [#allocation19], 4
      %s250 = int_to_ptr.vmem [resolvable:$true] %s249
      %252 = dma.hbm_to_vmem [thread:$0]  %s27, 16, %s250, [#allocation18]
    $region57: #{tpu_custom_call.1} parent=1 // pred_fallthru
      _
    // Predicated region
    $region58: #{tpu_custom_call.1} parent=1 // pred_check
      _
    $region59: #{tpu_custom_call.1} parent=1 // pred_check_branch
      %254 = sbr.rel (0) target = $region61
    $region60: #{tpu_custom_call.1} parent=1 // pred_region
      %s256 = ssub.s32 16, 16
      %257 = vsyncadd [#allocation21], %s256
      %s259 = sshll.u32 [#allocation20], 4
      %s260 = int_to_ptr.vmem [resolvable:$true] %s259
      %262 = dma.hbm_to_vmem [thread:$0]  %s29, 16, %s260, [#allocation21]
    $region61: #{tpu_custom_call.1} parent=1 // pred_fallthru
      _
    // Predicated region
    $region62: #{tpu_custom_call.1} parent=1 // pred_check
      _
    $region63: #{tpu_custom_call.1} parent=1 // pred_check_branch
      %264 = sbr.rel (0) target = $region65
    $region64: #{tpu_custom_call.1} parent=1 // pred_region
      %s266 = ssub.s32 16, 16
      %267 = vsyncadd [#allocation21], %s266
      %s269 = sshll.u32 [#allocation22], 4
      %s270 = int_to_ptr.vmem [resolvable:$true] %s269
      %272 = dma.hbm_to_vmem [thread:$0]  %s31, 16, %s270, [#allocation21]
    $region65: #{tpu_custom_call.1} parent=1 // pred_fallthru
      _
    // Predicated region
    $region66: #{tpu_custom_call.1} parent=1 // pred_check
      _
    $region67: #{tpu_custom_call.1} parent=1 // pred_check_branch
      %274 = sbr.rel (0) target = $region69
    $region68: #{tpu_custom_call.1} parent=1 // pred_region
      %s276 = ssub.s32 384, 384
      %277 = vsyncadd [#allocation24], %s276
      %s278 = sshll.u32 [#allocation23], 4
      %s279 = int_to_ptr.vmem [resolvable:$true] %s278
      %284 = dma.hbm_to_vmem [thread:$0]  %s33, 384, %s279, [#allocation24], 128, 128, 8
    $region69: #{tpu_custom_call.1} parent=1 // pred_fallthru
      _
    // Predicated region
    $region70: #{tpu_custom_call.1} parent=1 // pred_check
      _
    $region71: #{tpu_custom_call.1} parent=1 // pred_check_branch
      %286 = sbr.rel (0) target = $region73
    $region72: #{tpu_custom_call.1} parent=1 // pred_region
      %s288 = ssub.s32 16, 16
      %289 = vsyncadd [#allocation24], %s288
      %s291 = sshll.u32 [#allocation25], 4
      %s292 = int_to_ptr.vmem [resolvable:$true] %s291
      %294 = dma.hbm_to_vmem [thread:$0]  %s35, 16, %s292, [#allocation24]
    $region73: #{tpu_custom_call.1} parent=1 // pred_fallthru
      _
    // Predicated region
    $region74: #{tpu_custom_call.1} parent=1 // pred_check
      _
    $region75: #{tpu_custom_call.1} parent=1 // pred_check_branch
      %296 = sbr.rel (0) target = $region77
    $region76: #{tpu_custom_call.1} parent=1 // pred_region
      %s298 = ssub.s32 16, 16
      %299 = vsyncadd [#allocation27], %s298
      %s301 = sshll.u32 [#allocation26], 4
      %s302 = int_to_ptr.vmem [resolvable:$true] %s301
      %304 = dma.hbm_to_vmem [thread:$0]  %s37, 16, %s302, [#allocation27]
    $region77: #{tpu_custom_call.1} parent=1 // pred_fallthru
      _
    // Predicated region
    $region78: #{tpu_custom_call.1} parent=1 // pred_check
      _
    $region79: #{tpu_custom_call.1} parent=1 // pred_check_branch
      %306 = sbr.rel (0) target = $region81
    $region80: #{tpu_custom_call.1} parent=1 // pred_region
      %s308 = ssub.s32 16, 16
      %309 = vsyncadd [#allocation27], %s308
      %s311 = sshll.u32 [#allocation28], 4
      %s312 = int_to_ptr.vmem [resolvable:$true] %s311
      %314 = dma.hbm_to_vmem [thread:$0]  %s39, 16, %s312, [#allocation27]
    $region81: #{tpu_custom_call.1} parent=1 // pred_fallthru
      _
    // Predicated region
    $region82: #{tpu_custom_call.1} parent=1 // pred_check
      _
    $region83: #{tpu_custom_call.1} parent=1 // pred_check_branch
      %316 = sbr.rel (0) target = $region85
    $region84: #{tpu_custom_call.1} parent=1 // pred_region
      %s318 = ssub.s32 768, 768
      %319 = vsyncadd [#allocation30], %s318
      %s320 = sshll.u32 [#allocation29], 4
      %s321 = int_to_ptr.vmem [resolvable:$true] %s320
      %326 = dma.hbm_to_vmem [thread:$0]  %s41, 768, %s321, [#allocation30], 128, 128, 8
    $region85: #{tpu_custom_call.1} parent=1 // pred_fallthru
      _
    // Predicated region
    $region86: #{tpu_custom_call.1} parent=1 // pred_check
      _
    $region87: #{tpu_custom_call.1} parent=1 // pred_check_branch
      %328 = sbr.rel (0) target = $region89
    $region88: #{tpu_custom_call.1} parent=1 // pred_region
      %s330 = ssub.s32 16, 16
      %331 = vsyncadd [#allocation30], %s330
      %s333 = sshll.u32 [#allocation31], 4
      %s334 = int_to_ptr.vmem [resolvable:$true] %s333
      %336 = dma.hbm_to_vmem [thread:$0]  %s43, 16, %s334, [#allocation30]
    $region89: #{tpu_custom_call.1} parent=1 // pred_fallthru
      _
    // Predicated region
    $region90: #{tpu_custom_call.1} parent=1 // pred_check
      _
    $region91: #{tpu_custom_call.1} parent=1 // pred_check_branch
      %338 = sbr.rel (0) target = $region93
    $region92: #{tpu_custom_call.1} parent=1 // pred_region
      %s340 = ssub.s32 16, 16
      %341 = vsyncadd [#allocation33], %s340
      %s343 = sshll.u32 [#allocation32], 4
      %s344 = int_to_ptr.vmem [resolvable:$true] %s343
      %346 = dma.hbm_to_vmem [thread:$0]  %s45, 16, %s344, [#allocation33]
    $region93: #{tpu_custom_call.1} parent=1 // pred_fallthru
      _
    // Predicated region
    $region94: #{tpu_custom_call.1} parent=1 // pred_check
      _
    $region95: #{tpu_custom_call.1} parent=1 // pred_check_branch
      %348 = sbr.rel (0) target = $region97
    $region96: #{tpu_custom_call.1} parent=1 // pred_region
      %s350 = ssub.s32 16, 16
      %351 = vsyncadd [#allocation33], %s350
      %s353 = sshll.u32 [#allocation34], 4
      %s354 = int_to_ptr.vmem [resolvable:$true] %s353
      %356 = dma.hbm_to_vmem [thread:$0]  %s47, 16, %s354, [#allocation33]
    $region97: #{tpu_custom_call.1} parent=1 // pred_fallthru
      _
    // Predicated region
    $region98: #{tpu_custom_call.1} parent=1 // pred_check
      _
    $region99: #{tpu_custom_call.1} parent=1 // pred_check_branch
      %358 = sbr.rel (0) target = $region101
    $region100: #{tpu_custom_call.1} parent=1 // pred_region
      %s360 = ssub.s32 128, 128
      %361 = vsyncadd [#allocation36], %s360
      %s363 = sshll.u32 [#allocation35], 4
      %s364 = int_to_ptr.vmem [resolvable:$true] %s363
      %366 = dma.hbm_to_vmem [thread:$0]  %s49, 128, %s364, [#allocation36]
    $region101: #{tpu_custom_call.1} parent=1 // pred_fallthru
      _
    // Predicated region
    $region102: #{tpu_custom_call.1} parent=1 // pred_check
      _
    $region103: #{tpu_custom_call.1} parent=1 // pred_check_branch
      %368 = sbr.rel (0) target = $region105
    $region104: #{tpu_custom_call.1} parent=1 // pred_region
      %s370 = ssub.s32 16, 16
      %371 = vsyncadd [#allocation36], %s370
      %s373 = sshll.u32 [#allocation37], 4
      %s374 = int_to_ptr.vmem [resolvable:$true] %s373
      %376 = dma.hbm_to_vmem [thread:$0]  %s51, 16, %s374, [#allocation36]
    $region105: #{tpu_custom_call.1} parent=1 // pred_fallthru
      _
    // Predicated region
    $region106: #{tpu_custom_call.1} parent=1 // pred_check
      _
    $region107: #{tpu_custom_call.1} parent=1 // pred_check_branch
      %378 = sbr.rel (0) target = $region109
    $region108: #{tpu_custom_call.1} parent=1 // pred_region
      %s380 = ssub.s32 16, 16
      %381 = vsyncadd [#allocation39], %s380
      %s383 = sshll.u32 [#allocation38], 4
      %s384 = int_to_ptr.vmem [resolvable:$true] %s383
      %386 = dma.hbm_to_vmem [thread:$0]  %s53, 16, %s384, [#allocation39]
    $region109: #{tpu_custom_call.1} parent=1 // pred_fallthru
      _
    // Predicated region
    $region110: #{tpu_custom_call.1} parent=1 // pred_check
      _
    $region111: #{tpu_custom_call.1} parent=1 // pred_check_branch
      %388 = sbr.rel (0) target = $region113
    $region112: #{tpu_custom_call.1} parent=1 // pred_region
      %s390 = ssub.s32 16, 16
      %391 = vsyncadd [#allocation39], %s390
      %s393 = sshll.u32 [#allocation40], 4
      %s394 = int_to_ptr.vmem [resolvable:$true] %s393
      %396 = dma.hbm_to_vmem [thread:$0]  %s55, 16, %s394, [#allocation39]
    $region113: #{tpu_custom_call.1} parent=1 // pred_fallthru
      _
    // Predicated region
    $region114: #{tpu_custom_call.1} parent=1 // pred_check
      _
    $region115: #{tpu_custom_call.1} parent=1 // pred_check_branch
      %398 = sbr.rel (0) target = $region117
    $region116: #{tpu_custom_call.1} parent=1 // pred_region
      %s400 = ssub.s32 768, 768
      %401 = vsyncadd [#allocation42], %s400
      %s402 = sshll.u32 [#allocation41], 4
      %s403 = int_to_ptr.vmem [resolvable:$true] %s402
      %408 = dma.hbm_to_vmem [thread:$0]  %s57, 768, %s403, [#allocation42], 128, 128, 8
    $region117: #{tpu_custom_call.1} parent=1 // pred_fallthru
      _
    // Predicated region
    $region118: #{tpu_custom_call.1} parent=1 // pred_check
      _
    $region119: #{tpu_custom_call.1} parent=1 // pred_check_branch
      %410 = sbr.rel (0) target = $region121
    $region120: #{tpu_custom_call.1} parent=1 // pred_region
      %s412 = ssub.s32 16, 16
      %413 = vsyncadd [#allocation42], %s412
      %s415 = sshll.u32 [#allocation43], 4
      %s416 = int_to_ptr.vmem [resolvable:$true] %s415
      %418 = dma.hbm_to_vmem [thread:$0]  %s59, 16, %s416, [#allocation42]
    $region121: #{tpu_custom_call.1} parent=1 // pred_fallthru
      _
    // Predicated region
    $region122: #{tpu_custom_call.1} parent=1 // pred_check
      _
    $region123: #{tpu_custom_call.1} parent=1 // pred_check_branch
      %420 = sbr.rel (0) target = $region125
    $region124: #{tpu_custom_call.1} parent=1 // pred_region
      %s422 = ssub.s32 16, 16
      %423 = vsyncadd [#allocation45], %s422
      %s425 = sshll.u32 [#allocation44], 4
      %s426 = int_to_ptr.vmem [resolvable:$true] %s425
      %428 = dma.hbm_to_vmem [thread:$0]  %s61, 16, %s426, [#allocation45]
    $region125: #{tpu_custom_call.1} parent=1 // pred_fallthru
      _
    // Predicated region
    $region126: #{tpu_custom_call.1} parent=1 // pred_check
      _
    $region127: #{tpu_custom_call.1} parent=1 // pred_check_branch
      %430 = sbr.rel (0) target = $region129
    $region128: #{tpu_custom_call.1} parent=1 // pred_region
      %s432 = ssub.s32 16, 16
      %433 = vsyncadd [#allocation45], %s432
      %s435 = sshll.u32 [#allocation46], 4
      %s436 = int_to_ptr.vmem [resolvable:$true] %s435
      %438 = dma.hbm_to_vmem [thread:$0]  %s63, 16, %s436, [#allocation45]
    $region129: #{tpu_custom_call.1} parent=1 // pred_fallthru
      _
    // Predicated region
    $region130: #{tpu_custom_call.1} parent=1 // pred_check
      _
    $region131: #{tpu_custom_call.1} parent=1 // pred_check_branch
      %440 = sbr.rel (0) target = $region133
    $region132: #{tpu_custom_call.1} parent=1 // pred_region
      _
    $region133: #{tpu_custom_call.1} parent=1 // pred_fallthru
      _
    // Predicated region
    $region134: #{tpu_custom_call.1} parent=1 // pred_check
      _
    $region135: #{tpu_custom_call.1} parent=1 // pred_check_branch
      %442 = sbr.rel (0) target = $region137
    $region136: #{tpu_custom_call.1} parent=1 // pred_region
      _
    $region137: #{tpu_custom_call.1} parent=1 // pred_fallthru
      _
    // Predicated region
    $region138: #{tpu_custom_call.1} parent=1 // pred_check
      _
    $region139: #{tpu_custom_call.1} parent=1 // pred_check_branch
      %444 = sbr.rel (0) target = $region141
    $region140: #{tpu_custom_call.1} parent=1 // pred_region
      _
    $region141: #{tpu_custom_call.1} parent=1 // pred_fallthru
      _
    // Predicated region
    $region142: #{tpu_custom_call.1} parent=1 // pred_check
      _
    $region143: #{tpu_custom_call.1} parent=1 // pred_check_branch
      %446 = sbr.rel (0) target = $region145
    $region144: #{tpu_custom_call.1} parent=1 // pred_region
      %s448 = ssub.s32 16, 16
      %449 = vsyncadd [#allocation48], %s448
      %s451 = sshll.u32 [#allocation47], 4
      %s452 = int_to_ptr.vmem [resolvable:$true] %s451
      %454 = dma.hbm_to_vmem [thread:$0]  %s71, 16, %s452, [#allocation48]
    $region145: #{tpu_custom_call.1} parent=1 // pred_fallthru
      _
    // Predicated region
    $region146: #{tpu_custom_call.1} parent=1 // pred_check
      _
    $region147: #{tpu_custom_call.1} parent=1 // pred_check_branch
      %456 = sbr.rel (0) target = $region149
    $region148: #{tpu_custom_call.1} parent=1 // pred_region
      _
    $region149: #{tpu_custom_call.1} parent=1 // pred_fallthru
      _
    // Predicated region
    $region150: #{tpu_custom_call.1} parent=1 // pred_check
      _
    $region151: #{tpu_custom_call.1} parent=1 // pred_check_branch
      %458 = sbr.rel (0) target = $region153
    $region152: #{tpu_custom_call.1} parent=1 // pred_region
      _
    $region153: #{tpu_custom_call.1} parent=1 // pred_fallthru
      _
    // Predicated region
    $region154: #{tpu_custom_call.1} parent=1 // pred_check
      _
    $region155: #{tpu_custom_call.1} parent=1 // pred_check_branch
      %460 = sbr.rel (0) target = $region157
    $region156: #{tpu_custom_call.1} parent=1 // pred_region
      _
    $region157: #{tpu_custom_call.1} parent=1 // pred_fallthru
      _
    // Predicated region
    $region158: #{tpu_custom_call.1} parent=1 // pred_check
      _
    $region159: #{tpu_custom_call.1} parent=1 // pred_check_branch
      %462 = sbr.rel (0) target = $region161
    $region160: #{tpu_custom_call.1} parent=1 // pred_region
      _
    $region161: #{tpu_custom_call.1} parent=1 // pred_fallthru
      _
    // Predicated region
    $region162: #{tpu_custom_call.1} parent=1 // pred_check
      _
    $region163: #{tpu_custom_call.1} parent=1 // pred_check_branch
      %464 = sbr.rel (0) target = $region165
    $region164: #{tpu_custom_call.1} parent=1 // pred_region
      _
    $region165: #{tpu_custom_call.1} parent=1 // pred_fallthru
      _
    // Predicated region
    $region166: #{tpu_custom_call.1} parent=1 // pred_check
      _
    $region167: #{tpu_custom_call.1} parent=1 // pred_check_branch
      %466 = sbr.rel (0) target = $region169
    $region168: #{tpu_custom_call.1} parent=1 // pred_region
      _
    $region169: #{tpu_custom_call.1} parent=1 // pred_fallthru
      _
    // Predicated region
    $region170: #{tpu_custom_call.1} parent=1 // pred_check
      _
    $region171: #{tpu_custom_call.1} parent=1 // pred_check_branch
      %468 = sbr.rel (0) target = $region173
    $region172: #{tpu_custom_call.1} parent=1 // pred_region
      _
    $region173: #{tpu_custom_call.1} parent=1 // pred_fallthru
      _
    // Predicated region
    $region174: #{tpu_custom_call.1} parent=1 // pred_check
      _
    $region175: #{tpu_custom_call.1} parent=1 // pred_check_branch
      %470 = sbr.rel (0) target = $region177
    $region176: #{tpu_custom_call.1} parent=1 // pred_region
      _
    $region177: #{tpu_custom_call.1} parent=1 // pred_fallthru
      _
    // Predicated region
    $region178: #{tpu_custom_call.1} parent=1 // pred_check
      _
    $region179: #{tpu_custom_call.1} parent=1 // pred_check_branch
      %472 = sbr.rel (0) target = $region181
    $region180: #{tpu_custom_call.1} parent=1 // pred_region
      _
    $region181: #{tpu_custom_call.1} parent=1 // pred_fallthru
      _
    // Predicated region
    $region182: #{tpu_custom_call.1} parent=1 // pred_check
      _
    $region183: #{tpu_custom_call.1} parent=1 // pred_check_branch
      %474 = sbr.rel (0) target = $region185
    $region184: #{tpu_custom_call.1} parent=1 // pred_region
      _
    $region185: #{tpu_custom_call.1} parent=1 // pred_fallthru
      _
    // Predicated region
    $region186: #{tpu_custom_call.1} parent=1 // pred_check
      _
    $region187: #{tpu_custom_call.1} parent=1 // pred_check_branch
      %476 = sbr.rel (0) target = $region189
    $region188: #{tpu_custom_call.1} parent=1 // pred_region
      _
    $region189: #{tpu_custom_call.1} parent=1 // pred_fallthru
      _
    // Predicated region
    $region190: #{tpu_custom_call.1} parent=1 // pred_check
      _
    $region191: #{tpu_custom_call.1} parent=1 // pred_check_branch
      %478 = sbr.rel (0) target = $region193
    $region192: #{tpu_custom_call.1} parent=1 // pred_region
      _
    $region193: #{tpu_custom_call.1} parent=1 // pred_fallthru
      _
    // Predicated region
    $region194: #{tpu_custom_call.1} parent=1 // pred_check
      _
    $region195: #{tpu_custom_call.1} parent=1 // pred_check_branch
      %480 = sbr.rel (0) target = $region197
    $region196: #{tpu_custom_call.1} parent=1 // pred_region
      _
    $region197: #{tpu_custom_call.1} parent=1 // pred_fallthru
      _
    // Predicated region
    $region198: #{tpu_custom_call.1} parent=1 // pred_check
      _
    $region199: #{tpu_custom_call.1} parent=1 // pred_check_branch
      %482 = sbr.rel (0) target = $region201
    $region200: #{tpu_custom_call.1} parent=1 // pred_region
      _
    $region201: #{tpu_custom_call.1} parent=1 // pred_fallthru
      _
    // Predicated region
    $region202: #{tpu_custom_call.1} parent=1 // pred_check
      _
    $region203: #{tpu_custom_call.1} parent=1 // pred_check_branch
      %484 = sbr.rel (0) target = $region205
    $region204: #{tpu_custom_call.1} parent=1 // pred_region
      _
    $region205: #{tpu_custom_call.1} parent=1 // pred_fallthru
      _
    // Predicated region
    $region206: #{tpu_custom_call.1} parent=1 // pred_check
      _
    $region207: #{tpu_custom_call.1} parent=1 // pred_check_branch
      %486 = sbr.rel (0) target = $region209
    $region208: #{tpu_custom_call.1} parent=1 // pred_region
      _
    $region209: #{tpu_custom_call.1} parent=1 // pred_fallthru
      _
    // Predicated region
    $region210: #{tpu_custom_call.1} parent=1 // pred_check
      _
    $region211: #{tpu_custom_call.1} parent=1 // pred_check_branch
      %488 = sbr.rel (0) target = $region213
    $region212: #{tpu_custom_call.1} parent=1 // pred_region
      _
    $region213: #{tpu_custom_call.1} parent=1 // pred_fallthru
      _
    // Predicated region
    $region214: #{tpu_custom_call.1} parent=1 // pred_check
      _
    $region215: #{tpu_custom_call.1} parent=1 // pred_check_branch
      %490 = sbr.rel (0) target = $region217
    $region216: #{tpu_custom_call.1} parent=1 // pred_region
      _
    $region217: #{tpu_custom_call.1} parent=1 // pred_fallthru
      _
    // Predicated region
    $region218: #{tpu_custom_call.1} parent=1 // pred_check
      _
    $region219: #{tpu_custom_call.1} parent=1 // pred_check_branch
      %492 = sbr.rel (0) target = $region221
    $region220: #{tpu_custom_call.1} parent=1 // pred_region
      %493 = dma.done [#allocation3], 64
    $region221: #{tpu_custom_call.1} parent=1 // pred_fallthru
      _
    // Predicated region
    $region222: #{tpu_custom_call.1} parent=1 // pred_check
      _
    $region223: #{tpu_custom_call.1} parent=1 // pred_check_branch
      %495 = sbr.rel (0) target = $region225
    $region224: #{tpu_custom_call.1} parent=1 // pred_region
      %496 = dma.done [#allocation6], 384
    $region225: #{tpu_custom_call.1} parent=1 // pred_fallthru
      _
    // Predicated region
    $region226: #{tpu_custom_call.1} parent=1 // pred_check
      _
    $region227: #{tpu_custom_call.1} parent=1 // pred_check_branch
      %498 = sbr.rel (0) target = $region229
    $region228: #{tpu_custom_call.1} parent=1 // pred_region
      %499 = dma.done [#allocation6], 16
    $region229: #{tpu_custom_call.1} parent=1 // pred_fallthru
      _
    // Predicated region
    $region230: #{tpu_custom_call.1} parent=1 // pred_check
      _
    $region231: #{tpu_custom_call.1} parent=1 // pred_check_branch
      %501 = sbr.rel (0) target = $region233
    $region232: #{tpu_custom_call.1} parent=1 // pred_region
      %502 = dma.done [#allocation9], 16
    $region233: #{tpu_custom_call.1} parent=1 // pred_fallthru
      _
    // Predicated region
    $region234: #{tpu_custom_call.1} parent=1 // pred_check
      _
    $region235: #{tpu_custom_call.1} parent=1 // pred_check_branch
      %504 = sbr.rel (0) target = $region237
    $region236: #{tpu_custom_call.1} parent=1 // pred_region
      %505 = dma.done [#allocation9], 16
    $region237: #{tpu_custom_call.1} parent=1 // pred_fallthru
      _
    // Predicated region
    $region238: #{tpu_custom_call.1} parent=1 // pred_check
      _
    $region239: #{tpu_custom_call.1} parent=1 // pred_check_branch
      %507 = sbr.rel (0) target = $region241
    $region240: #{tpu_custom_call.1} parent=1 // pred_region
      %508 = dma.done [#allocation12], 384
    $region241: #{tpu_custom_call.1} parent=1 // pred_fallthru
      _
    // Predicated region
    $region242: #{tpu_custom_call.1} parent=1 // pred_check
      _
    $region243: #{tpu_custom_call.1} parent=1 // pred_check_branch
      %510 = sbr.rel (0) target = $region245
    $region244: #{tpu_custom_call.1} parent=1 // pred_region
      %511 = dma.done [#allocation12], 16
    $region245: #{tpu_custom_call.1} parent=1 // pred_fallthru
      _
    // Predicated region
    $region246: #{tpu_custom_call.1} parent=1 // pred_check
      _
    $region247: #{tpu_custom_call.1} parent=1 // pred_check_branch
      %513 = sbr.rel (0) target = $region249
    $region248: #{tpu_custom_call.1} parent=1 // pred_region
      %514 = dma.done [#allocation15], 16
    $region249: #{tpu_custom_call.1} parent=1 // pred_fallthru
      _
    // Predicated region
    $region250: #{tpu_custom_call.1} parent=1 // pred_check
      _
    $region251: #{tpu_custom_call.1} parent=1 // pred_check_branch
      %516 = sbr.rel (0) target = $region253
    $region252: #{tpu_custom_call.1} parent=1 // pred_region
      %517 = dma.done [#allocation15], 16
    $region253: #{tpu_custom_call.1} parent=1 // pred_fallthru
      _
    // Predicated region
    $region254: #{tpu_custom_call.1} parent=1 // pred_check
      _
    $region255: #{tpu_custom_call.1} parent=1 // pred_check_branch
      %519 = sbr.rel (0) target = $region257
    $region256: #{tpu_custom_call.1} parent=1 // pred_region
      %520 = dma.done [#allocation18], 384
    $region257: #{tpu_custom_call.1} parent=1 // pred_fallthru
      _
    // Predicated region
    $region258: #{tpu_custom_call.1} parent=1 // pred_check
      _
    $region259: #{tpu_custom_call.1} parent=1 // pred_check_branch
      %522 = sbr.rel (0) target = $region261
    $region260: #{tpu_custom_call.1} parent=1 // pred_region
      %523 = dma.done [#allocation18], 16
    $region261: #{tpu_custom_call.1} parent=1 // pred_fallthru
      _
    // Predicated region
    $region262: #{tpu_custom_call.1} parent=1 // pred_check
      _
    $region263: #{tpu_custom_call.1} parent=1 // pred_check_branch
      %525 = sbr.rel (0) target = $region265
    $region264: #{tpu_custom_call.1} parent=1 // pred_region
      %526 = dma.done [#allocation21], 16
    $region265: #{tpu_custom_call.1} parent=1 // pred_fallthru
      _
    // Predicated region
    $region266: #{tpu_custom_call.1} parent=1 // pred_check
      _
    $region267: #{tpu_custom_call.1} parent=1 // pred_check_branch
      %528 = sbr.rel (0) target = $region269
    $region268: #{tpu_custom_call.1} parent=1 // pred_region
      %529 = dma.done [#allocation21], 16
    $region269: #{tpu_custom_call.1} parent=1 // pred_fallthru
      _
    // Predicated region
    $region270: #{tpu_custom_call.1} parent=1 // pred_check
      _
    $region271: #{tpu_custom_call.1} parent=1 // pred_check_branch
      %531 = sbr.rel (0) target = $region273
    $region272: #{tpu_custom_call.1} parent=1 // pred_region
      %532 = dma.done [#allocation24], 384
    $region273: #{tpu_custom_call.1} parent=1 // pred_fallthru
      _
    // Predicated region
    $region274: #{tpu_custom_call.1} parent=1 // pred_check
      _
    $region275: #{tpu_custom_call.1} parent=1 // pred_check_branch
      %534 = sbr.rel (0) target = $region277
    $region276: #{tpu_custom_call.1} parent=1 // pred_region
      %535 = dma.done [#allocation24], 16
    $region277: #{tpu_custom_call.1} parent=1 // pred_fallthru
      _
    // Predicated region
    $region278: #{tpu_custom_call.1} parent=1 // pred_check
      _
    $region279: #{tpu_custom_call.1} parent=1 // pred_check_branch
      %537 = sbr.rel (0) target = $region281
    $region280: #{tpu_custom_call.1} parent=1 // pred_region
      %538 = dma.done [#allocation27], 16
    $region281: #{tpu_custom_call.1} parent=1 // pred_fallthru
      _
    // Predicated region
    $region282: #{tpu_custom_call.1} parent=1 // pred_check
      _
    $region283: #{tpu_custom_call.1} parent=1 // pred_check_branch
      %540 = sbr.rel (0) target = $region285
    $region284: #{tpu_custom_call.1} parent=1 // pred_region
      %541 = dma.done [#allocation27], 16
    $region285: #{tpu_custom_call.1} parent=1 // pred_fallthru
      _
    // Predicated region
    $region286: #{tpu_custom_call.1} parent=1 // pred_check
      _
    $region287: #{tpu_custom_call.1} parent=1 // pred_check_branch
      %543 = sbr.rel (0) target = $region289
    $region288: #{tpu_custom_call.1} parent=1 // pred_region
      %544 = dma.done [#allocation30], 768
    $region289: #{tpu_custom_call.1} parent=1 // pred_fallthru
      _
    // Predicated region
    $region290: #{tpu_custom_call.1} parent=1 // pred_check
      _
    $region291: #{tpu_custom_call.1} parent=1 // pred_check_branch
      %546 = sbr.rel (0) target = $region293
    $region292: #{tpu_custom_call.1} parent=1 // pred_region
      %547 = dma.done [#allocation30], 16
    $region293: #{tpu_custom_call.1} parent=1 // pred_fallthru
      _
    // Predicated region
    $region294: #{tpu_custom_call.1} parent=1 // pred_check
      _
    $region295: #{tpu_custom_call.1} parent=1 // pred_check_branch
      %549 = sbr.rel (0) target = $region297
    $region296: #{tpu_custom_call.1} parent=1 // pred_region
      %550 = dma.done [#allocation33], 16
    $region297: #{tpu_custom_call.1} parent=1 // pred_fallthru
      _
    // Predicated region
    $region298: #{tpu_custom_call.1} parent=1 // pred_check
      _
    $region299: #{tpu_custom_call.1} parent=1 // pred_check_branch
      %552 = sbr.rel (0) target = $region301
    $region300: #{tpu_custom_call.1} parent=1 // pred_region
      %553 = dma.done [#allocation33], 16
    $region301: #{tpu_custom_call.1} parent=1 // pred_fallthru
      _
    // Predicated region
    $region302: #{tpu_custom_call.1} parent=1 // pred_check
      _
    $region303: #{tpu_custom_call.1} parent=1 // pred_check_branch
      %555 = sbr.rel (0) target = $region305
    $region304: #{tpu_custom_call.1} parent=1 // pred_region
      %556 = dma.done [#allocation36], 128
    $region305: #{tpu_custom_call.1} parent=1 // pred_fallthru
      _
    // Predicated region
    $region306: #{tpu_custom_call.1} parent=1 // pred_check
      _
    $region307: #{tpu_custom_call.1} parent=1 // pred_check_branch
      %558 = sbr.rel (0) target = $region309
    $region308: #{tpu_custom_call.1} parent=1 // pred_region
      %559 = dma.done [#allocation36], 16
    $region309: #{tpu_custom_call.1} parent=1 // pred_fallthru
      _
    // Predicated region
    $region310: #{tpu_custom_call.1} parent=1 // pred_check
      _
    $region311: #{tpu_custom_call.1} parent=1 // pred_check_branch
      %561 = sbr.rel (0) target = $region313
    $region312: #{tpu_custom_call.1} parent=1 // pred_region
      %562 = dma.done [#allocation39], 16
    $region313: #{tpu_custom_call.1} parent=1 // pred_fallthru
      _
    // Predicated region
    $region314: #{tpu_custom_call.1} parent=1 // pred_check
      _
    $region315: #{tpu_custom_call.1} parent=1 // pred_check_branch
      %564 = sbr.rel (0) target = $region317
    $region316: #{tpu_custom_call.1} parent=1 // pred_region
      %565 = dma.done [#allocation39], 16
    $region317: #{tpu_custom_call.1} parent=1 // pred_fallthru
      _
    // Predicated region
    $region318: #{tpu_custom_call.1} parent=1 // pred_check
      _
    $region319: #{tpu_custom_call.1} parent=1 // pred_check_branch
      %567 = sbr.rel (0) target = $region321
    $region320: #{tpu_custom_call.1} parent=1 // pred_region
      %568 = dma.done [#allocation42], 768
    $region321: #{tpu_custom_call.1} parent=1 // pred_fallthru
      _
    // Predicated region
    $region322: #{tpu_custom_call.1} parent=1 // pred_check
      _
    $region323: #{tpu_custom_call.1} parent=1 // pred_check_branch
      %570 = sbr.rel (0) target = $region325
    $region324: #{tpu_custom_call.1} parent=1 // pred_region
      %571 = dma.done [#allocation42], 16
    $region325: #{tpu_custom_call.1} parent=1 // pred_fallthru
      _
    // Predicated region
    $region326: #{tpu_custom_call.1} parent=1 // pred_check
      _
    $region327: #{tpu_custom_call.1} parent=1 // pred_check_branch
      %573 = sbr.rel (0) target = $region329
    $region328: #{tpu_custom_call.1} parent=1 // pred_region
      %574 = dma.done [#allocation45], 16
    $region329: #{tpu_custom_call.1} parent=1 // pred_fallthru
      _
    // Predicated region
    $region330: #{tpu_custom_call.1} parent=1 // pred_check
      _
    $region331: #{tpu_custom_call.1} parent=1 // pred_check_branch
      %576 = sbr.rel (0) target = $region333
    $region332: #{tpu_custom_call.1} parent=1 // pred_region
      %577 = dma.done [#allocation45], 16
    $region333: #{tpu_custom_call.1} parent=1 // pred_fallthru
      _
    // Predicated region
    $region334: #{tpu_custom_call.1} parent=1 // pred_check
      _
    $region335: #{tpu_custom_call.1} parent=1 // pred_check_branch
      %579 = sbr.rel (0) target = $region337
    $region336: #{tpu_custom_call.1} parent=1 // pred_region
      %580 = dma.done [#allocation48], 16
    $region337: #{tpu_custom_call.1} parent=1 // pred_fallthru
      _
    %v581 = vlaneseq
    %v582 = vand.u32 %v581, 127
    %v583 = vadd.s32 %v582, 128
    %v584 = vld [vmem:[%s1] sm:$0xff]
    %v585 = vld [vmem:[%s1 + $0x8] sm:$0xff]
    %v586 = vld [vmem:[%s1 + $0x10] sm:$0xff]
    %v587 = vld [vmem:[%s1 + $0x18] sm:$0xff]
    %588 = vset.pattern.permute.xlu0 0
    %589 = vperm.xlu0 %588, %v584
    %v590 = vpop.permute.xlu0 %589
    %591 = vset.pattern.permute.xlu0 0
    %592 = vperm.xlu0 %591, %v585
    %v593 = vpop.permute.xlu0 %592
    %594 = vset.pattern.permute.xlu0 0
    %595 = vperm.xlu0 %594, %v586
    %v596 = vpop.permute.xlu0 %595
    %597 = vset.pattern.permute.xlu0 0
    %598 = vperm.xlu0 %597, %v587
    %v599 = vpop.permute.xlu0 %598
    %vm600 = vcmp.eq.s32.totalorder %v590, %v582
    %vm601 = vcmp.eq.s32.totalorder %v590, %v583
    %vm602 = vcmp.eq.s32.totalorder %v593, %v582
    %vm603 = vcmp.eq.s32.totalorder %v593, %v583
    %vm604 = vcmp.eq.s32.totalorder %v596, %v582
    %vm605 = vcmp.eq.s32.totalorder %v596, %v583
    %vm606 = vcmp.eq.s32.totalorder %v599, %v582
    %vm607 = vcmp.eq.s32.totalorder %v599, %v583
    %v608 = vsel %vm600, 1, 0
    %v609 = vsel %vm601, 1, 0
    %v610 = vsel %vm602, 1, 0
    %v611 = vsel %vm603, 1, 0
    %v612 = vsel %vm604, 1, 0
    %v613 = vsel %vm605, 1, 0
    %v614 = vsel %vm606, 1, 0
    %v615 = vsel %vm607, 1, 0
    %v616 = vcvt.s32.f32 %v608
    %v617 = vcvt.s32.f32 %v609
    %v618 = vcvt.s32.f32 %v610
    %v619 = vcvt.s32.f32 %v611
    %v620 = vcvt.s32.f32 %v612
    %v621 = vcvt.s32.f32 %v613
    %v622 = vcvt.s32.f32 %v614
    %v623 = vcvt.s32.f32 %v615
    %v624 = vld [vmem:[%s3] sm:$0xff]
    %v625 = vld [vmem:[%s3 + $0x8] sm:$0xff]
    %v626 = vld [vmem:[%s3 + $0x10] sm:$0xff]
    %v627 = vld [vmem:[%s3 + $0x18] sm:$0xff]
    %v628 = vld [vmem:[%s3 + $0x20] sm:$0xff]
    %v629 = vld [vmem:[%s3 + $0x28] sm:$0xff]
    %v630 = vld [vmem:[%s3 + $0x30] sm:$0xff]
    %v631 = vld [vmem:[%s3 + $0x38] sm:$0xff]
    %v632 = vld [vmem:[%s3 + $0x40] sm:$0xff]
    %v633 = vld [vmem:[%s3 + $0x48] sm:$0xff]
    %v634 = vld [vmem:[%s3 + $0x50] sm:$0xff]
    %v635 = vld [vmem:[%s3 + $0x58] sm:$0xff]
    %v636 = vld [vmem:[%s3 + $0x60] sm:$0xff]
    %v637 = vld [vmem:[%s3 + $0x68] sm:$0xff]
    %v638 = vld [vmem:[%s3 + $0x70] sm:$0xff]
    %v639 = vld [vmem:[%s3 + $0x78] sm:$0xff]
    %v640 = vld [vmem:[%s3 + $0x80] sm:$0xff]
    %v641 = vld [vmem:[%s3 + $0x88] sm:$0xff]
    %v642 = vld [vmem:[%s3 + $0x90] sm:$0xff]
    %v643 = vld [vmem:[%s3 + $0x98] sm:$0xff]
    %v644 = vld [vmem:[%s3 + $0xa0] sm:$0xff]
    %v645 = vld [vmem:[%s3 + $0xa8] sm:$0xff]
    %v646 = vld [vmem:[%s3 + $0xb0] sm:$0xff]
    %v647 = vld [vmem:[%s3 + $0xb8] sm:$0xff]
    %v648 = vld [vmem:[%s3 + $0xc0] sm:$0xff]
    %v649 = vld [vmem:[%s3 + $0xc8] sm:$0xff]
    %v650 = vld [vmem:[%s3 + $0xd0] sm:$0xff]
    %v651 = vld [vmem:[%s3 + $0xd8] sm:$0xff]
    %v652 = vld [vmem:[%s3 + $0xe0] sm:$0xff]
    %v653 = vld [vmem:[%s3 + $0xe8] sm:$0xff]
    %v654 = vld [vmem:[%s3 + $0xf0] sm:$0xff]
    %v655 = vld [vmem:[%s3 + $0xf8] sm:$0xff]
    %656 = vmatprep.subr.mxu0 0.0
    %657 = vmatpush1.msra.mxu0 %v639
    %658 = vmatprep.subr.mxu0 0.0
    %659 = vmatpush1.msra.mxu0 %v638
    %660 = vmatprep.subr.mxu0 0.0
    %661 = vmatpush1.msra.mxu0 %v637
    %662 = vmatprep.subr.mxu0 0.0
    %663 = vmatpush1.msra.mxu0 %v636
    %664 = vmatprep.subr.mxu0 0.0
    %665 = vmatpush1.msra.mxu0 %v635
    %666 = vmatprep.subr.mxu0 0.0
    %667 = vmatpush1.msra.mxu0 %v634
    %668 = vmatprep.subr.mxu0 0.0
    %669 = vmatpush1.msra.mxu0 %v633
    %670 = vmatprep.subr.mxu0 0.0
    %671 = vmatpush1.msra.mxu0 %v632
    %672 = vmatprep.subr.mxu0 0.0
    %673 = vmatpush1.msra.mxu0 %v631
    %674 = vmatprep.subr.mxu0 0.0
    %675 = vmatpush1.msra.mxu0 %v630
    %676 = vmatprep.subr.mxu0 0.0
    %677 = vmatpush1.msra.mxu0 %v629
    %678 = vmatprep.subr.mxu0 0.0
    %679 = vmatpush1.msra.mxu0 %v628
    %680 = vmatprep.subr.mxu0 0.0
    %681 = vmatpush1.msra.mxu0 %v627
    %682 = vmatprep.subr.mxu0 0.0
    %683 = vmatpush1.msra.mxu0 %v626
    %684 = vmatprep.subr.mxu0 0.0
    %685 = vmatpush1.msra.mxu0 %v625
    %686 = vmatprep.subr.mxu0 0.0
    %687 = vmatpush1.msra.mxu0 %v624
    %688 = vmatprep.subr.mxu0 0.0
    %689 = vmatpush2.msra.mxu0 %v655
    %690 = vmatprep.subr.mxu0 0.0
    %691 = vmatpush2.msra.mxu0 %v654
    %692 = vmatprep.subr.mxu0 0.0
    %693 = vmatpush2.msra.mxu0 %v653
    %694 = vmatprep.subr.mxu0 0.0
    %695 = vmatpush2.msra.mxu0 %v652
    %696 = vmatprep.subr.mxu0 0.0
    %697 = vmatpush2.msra.mxu0 %v651
    %698 = vmatprep.subr.mxu0 0.0
    %699 = vmatpush2.msra.mxu0 %v650
    %700 = vmatprep.subr.mxu0 0.0
    %701 = vmatpush2.msra.mxu0 %v649
    %702 = vmatprep.subr.mxu0 0.0
    %703 = vmatpush2.msra.mxu0 %v648
    %704 = vmatprep.subr.mxu0 0.0
    %705 = vmatpush2.msra.mxu0 %v647
    %706 = vmatprep.subr.mxu0 0.0
    %707 = vmatpush2.msra.mxu0 %v646
    %708 = vmatprep.subr.mxu0 0.0
    %709 = vmatpush2.msra.mxu0 %v645
    %710 = vmatprep.subr.mxu0 0.0
    %711 = vmatpush2.msra.mxu0 %v644
    %712 = vmatprep.subr.mxu0 0.0
    %713 = vmatpush2.msra.mxu0 %v643
    %714 = vmatprep.subr.mxu0 0.0
    %715 = vmatpush2.msra.mxu0 %v642
    %716 = vmatprep.subr.mxu0 0.0
    %717 = vmatpush2.msra.mxu0 %v641
    %718 = vmatprep.subr.mxu0 0.0
    %719 = vmatpush2.msra.mxu0 %v640
    %720 = vmatprep.mubr.f32.mxu0 %v617
    %721 = vmatmul.mubr.f32.gmra.mxu0 %v616
    %v722 = vpop.f32.mrf.mxu0
    %v723 = vadd.f32 0.0, %v722
    %v724 = vpop.f32.mrf.mxu0
    %725 = vmatprep.mubr.f32.mxu0 %v619
    %726 = vmatmul.mubr.f32.gmra.mxu0 %v618
    %v727 = vpop.f32.mrf.mxu0
    %v728 = vadd.f32 0.0, %v727
    %v729 = vpop.f32.mrf.mxu0
    %730 = vmatprep.mubr.f32.mxu0 %v621
    %731 = vmatmul.mubr.f32.gmra.mxu0 %v620
    %v732 = vpop.f32.mrf.mxu0
    %v733 = vadd.f32 0.0, %v732
    %v734 = vpop.f32.mrf.mxu0
    %735 = vmatprep.mubr.f32.mxu0 %v623
    %736 = vmatmul.mubr.f32.gmra.mxu0 %v622
    %v737 = vpop.f32.mrf.mxu0
    %v738 = vadd.f32 0.0, %v737
    %v739 = vpop.f32.mrf.mxu0
    %740 = vdwg.mxu0
    %v741 = vlaneseq
    %v742 = vshrl.u32 %v741, 7
    %v743 = vadd.s32 %v742, 8
    %v744 = vadd.s32 %v742, 16
    %v745 = vadd.s32 %v742, 24
    %v746 = vcvt.s32.f32 %v742
    %v747 = vcvt.s32.f32 %v743
    %v748 = vcvt.s32.f32 %v744
    %v749 = vcvt.s32.f32 %v745
    %vm750 = vcmp.ge.f32.partialorder %v746, 16.0
    %vm751 = vcmp.ge.f32.partialorder %v747, 16.0
    %vm752 = vcmp.ge.f32.partialorder %v748, 16.0
    %vm753 = vcmp.ge.f32.partialorder %v749, 16.0
    %v754 = vsel %vm750, 1, 0
    %v755 = vsel %vm751, 1, 0
    %v756 = vsel %vm752, 1, 0
    %v757 = vsel %vm753, 1, 0
    %v758 = vcvt.s32.f32 %v754
    %v759 = vcvt.s32.f32 %v755
    %v760 = vcvt.s32.f32 %v756
    %v761 = vcvt.s32.f32 %v757
    %v762 = vadd.f32 %v758, 0.0
    %v763 = vadd.f32 %v759, 0.0
    %v764 = vadd.f32 %v760, 0.0
    %v765 = vadd.f32 %v761, 0.0
    %v766 = vmul.f32 %v762, 16.0
    %v767 = vmul.f32 %v763, 16.0
    %v768 = vmul.f32 %v764, 16.0
    %v769 = vmul.f32 %v765, 16.0
    %v770 = vsub.f32 %v746, %v766
    %v771 = vsub.f32 %v747, %v767
    %v772 = vsub.f32 %v748, %v768
    %v773 = vsub.f32 %v749, %v769
    %v774 = vadd.f32 %v770, -1.0
    %v775 = vadd.f32 %v771, -1.0
    %v776 = vadd.f32 %v772, -1.0
    %v777 = vadd.f32 %v773, -1.0
    %vm778 = vcmp.ge.f32.partialorder %v774, 0.0
    %vm779 = vcmp.ge.f32.partialorder %v775, 0.0
    %vm780 = vcmp.ge.f32.partialorder %v776, 0.0
    %vm781 = vcmp.ge.f32.partialorder %v777, 0.0
    %vm782 = vcmp.le.f32.partialorder %v774, 15.0
    %vm783 = vcmp.le.f32.partialorder %v775, 15.0
    %vm784 = vcmp.le.f32.partialorder %v776, 15.0
    %vm785 = vcmp.le.f32.partialorder %v777, 15.0
    %vm786 = vmand %vm778, %vm782
    %vm787 = vmand %vm779, %vm783
    %vm788 = vmand %vm780, %vm784
    %vm789 = vmand %vm781, %vm785
    %v790 = vadd.f32 %v766, %v774
    %v791 = vadd.f32 %v767, %v775
    %v792 = vadd.f32 %v768, %v776
    %v793 = vadd.f32 %v769, %v777
    %v794 = vcvt.s32.f32 %v582
    %vm795 = vcmp.eq.f32.partialorder %v794, %v790
    %vm796 = vcmp.eq.f32.partialorder %v794, %v791
    %vm797 = vcmp.eq.f32.partialorder %v794, %v792
    %vm798 = vcmp.eq.f32.partialorder %v794, %v793
    %v799 = vsel %vm786, 1, 0
    %v800 = vsel %vm787, 1, 0
    %v801 = vsel %vm788, 1, 0
    %v802 = vsel %vm789, 1, 0
    %vm803 = vcmp.eq.s32.totalorder %v799, 1
    %vm804 = vcmp.eq.s32.totalorder %v800, 1
    %vm805 = vcmp.eq.s32.totalorder %v801, 1
    %vm806 = vcmp.eq.s32.totalorder %v802, 1
    %vm807 = vmand %vm795, %vm803
    %vm808 = vmand %vm796, %vm804
    %vm809 = vmand %vm797, %vm805
    %vm810 = vmand %vm798, %vm806
    %v811 = vsel %vm807, 1, 0
    %v812 = vsel %vm808, 1, 0
    %v813 = vsel %vm809, 1, 0
    %v814 = vsel %vm810, 1, 0
    %v815 = vcvt.s32.f32 %v811
    %v816 = vcvt.s32.f32 %v812
    %v817 = vcvt.s32.f32 %v813
    %v818 = vcvt.s32.f32 %v814
    %vm819 = vcmask 261120
    %v821 = vsel %vm819, %v815, 0
    %v824 = vsel %vm819, %v816, 0
    %v827 = vsel %vm819, %v817, 0
    %v830 = vsel %vm819, %v818, 0
    %832 = vmatprep.subr.mxu0 0.0
    %833 = vmatpush1.msra.mxu0 0.0
    %834 = vmatprep.subr.mxu0 0.0
    %835 = vmatpush1.msra.mxu0 0.0
    %836 = vmatprep.subr.mxu0 0.0
    %837 = vmatpush1.msra.mxu0 0.0
    %838 = vmatprep.subr.mxu0 0.0
    %839 = vmatpush1.msra.mxu0 0.0
    %840 = vmatprep.subr.mxu0 0.0
    %841 = vmatpush1.msra.mxu0 0.0
    %842 = vmatprep.subr.mxu0 0.0
    %843 = vmatpush1.msra.mxu0 0.0
    %844 = vmatprep.subr.mxu0 0.0
    %845 = vmatpush1.msra.mxu0 0.0
    %846 = vmatprep.subr.mxu0 0.0
    %847 = vmatpush1.msra.mxu0 0.0
    %848 = vmatprep.subr.mxu0 0.0
    %849 = vmatpush1.msra.mxu0 0.0
    %850 = vmatprep.subr.mxu0 0.0
    %851 = vmatpush1.msra.mxu0 0.0
    %852 = vmatprep.subr.mxu0 0.0
    %853 = vmatpush1.msra.mxu0 0.0
    %854 = vmatprep.subr.mxu0 0.0
    %855 = vmatpush1.msra.mxu0 0.0
    %856 = vmatprep.subr.mxu0 0.0
    %857 = vmatpush1.msra.mxu0 %v738
    %858 = vmatprep.subr.mxu0 0.0
    %859 = vmatpush1.msra.mxu0 %v733
    %860 = vmatprep.subr.mxu0 0.0
    %861 = vmatpush1.msra.mxu0 %v728
    %862 = vmatprep.subr.mxu0 0.0
    %863 = vmatpush1.msra.mxu0 %v723
    %864 = vmatprep.subr.mxu0 0.0
    %865 = vmatpush2.msra.mxu0 0.0
    %866 = vmatprep.subr.mxu0 0.0
    %867 = vmatpush2.msra.mxu0 0.0
    %868 = vmatprep.subr.mxu0 0.0
    %869 = vmatpush2.msra.mxu0 0.0
    %870 = vmatprep.subr.mxu0 0.0
    %871 = vmatpush2.msra.mxu0 0.0
    %872 = vmatprep.subr.mxu0 0.0
    %873 = vmatpush2.msra.mxu0 0.0
    %874 = vmatprep.subr.mxu0 0.0
    %875 = vmatpush2.msra.mxu0 0.0
    %876 = vmatprep.subr.mxu0 0.0
    %877 = vmatpush2.msra.mxu0 0.0
    %878 = vmatprep.subr.mxu0 0.0
    %879 = vmatpush2.msra.mxu0 0.0
    %880 = vmatprep.subr.mxu0 0.0
    %881 = vmatpush2.msra.mxu0 0.0
    %882 = vmatprep.subr.mxu0 0.0
    %883 = vmatpush2.msra.mxu0 0.0
    %884 = vmatprep.subr.mxu0 0.0
    %885 = vmatpush2.msra.mxu0 0.0
    %886 = vmatprep.subr.mxu0 0.0
    %887 = vmatpush2.msra.mxu0 0.0
    %888 = vmatprep.subr.mxu0 0.0
    %889 = vmatpush2.msra.mxu0 0.0
    %890 = vmatprep.subr.mxu0 0.0
    %891 = vmatpush2.msra.mxu0 0.0
    %892 = vmatprep.subr.mxu0 0.0
    %893 = vmatpush2.msra.mxu0 0.0
    %894 = vmatprep.subr.mxu0 0.0
    %895 = vmatpush2.msra.mxu0 0.0
    %896 = vmatprep.mubr.f32.mxu0 0.0
    %897 = vmatmul.mubr.f32.gmra.mxu0 %v821
    %v898 = vpop.f32.mrf.mxu0
    %v899 = vadd.f32 0.0, %v898
    %v900 = vpop.f32.mrf.mxu0
    %901 = vmatprep.mubr.f32.mxu0 0.0
    %902 = vmatmul.mubr.f32.gmra.mxu0 %v824
    %v903 = vpop.f32.mrf.mxu0
    %v904 = vadd.f32 0.0, %v903
    %v905 = vpop.f32.mrf.mxu0
    %906 = vmatprep.mubr.f32.mxu0 0.0
    %907 = vmatmul.mubr.f32.gmra.mxu0 %v827
    %v908 = vpop.f32.mrf.mxu0
    %v909 = vadd.f32 0.0, %v908
    %v910 = vpop.f32.mrf.mxu0
    %911 = vmatprep.mubr.f32.mxu0 0.0
    %912 = vmatmul.mubr.f32.gmra.mxu0 %v830
    %v913 = vpop.f32.mrf.mxu0
    %v914 = vadd.f32 0.0, %v913
    %v915 = vpop.f32.mrf.mxu0
    %916 = vdwg.mxu0
    %v917 = vld [vmem:[#allocation5] sm:$0xff]
    %v918 = vadd.f32 %v770, 0.0
    %v919 = vadd.f32 %v771, 0.0
    %v920 = vadd.f32 %v772, 0.0
    %v921 = vadd.f32 %v773, 0.0
    %vm922 = vcmp.ge.f32.partialorder %v918, 0.0
    %vm923 = vcmp.ge.f32.partialorder %v919, 0.0
    %vm924 = vcmp.ge.f32.partialorder %v920, 0.0
    %vm925 = vcmp.ge.f32.partialorder %v921, 0.0
    %vm926 = vcmp.le.f32.partialorder %v918, 15.0
    %vm927 = vcmp.le.f32.partialorder %v919, 15.0
    %vm928 = vcmp.le.f32.partialorder %v920, 15.0
    %vm929 = vcmp.le.f32.partialorder %v921, 15.0
    %vm930 = vmand %vm922, %vm926
    %vm931 = vmand %vm923, %vm927
    %vm932 = vmand %vm924, %vm928
    %vm933 = vmand %vm925, %vm929
    %v934 = vadd.f32 %v766, %v918
    %v935 = vadd.f32 %v767, %v919
    %v936 = vadd.f32 %v768, %v920
    %v937 = vadd.f32 %v769, %v921
    %vm938 = vcmp.eq.f32.partialorder %v794, %v934
    %vm939 = vcmp.eq.f32.partialorder %v794, %v935
    %vm940 = vcmp.eq.f32.partialorder %v794, %v936
    %vm941 = vcmp.eq.f32.partialorder %v794, %v937
    %v942 = vsel %vm930, 1, 0
    %v943 = vsel %vm931, 1, 0
    %v944 = vsel %vm932, 1, 0
    %v945 = vsel %vm933, 1, 0
    %vm946 = vcmp.eq.s32.totalorder %v942, 1
    %vm947 = vcmp.eq.s32.totalorder %v943, 1
    %vm948 = vcmp.eq.s32.totalorder %v944, 1
    %vm949 = vcmp.eq.s32.totalorder %v945, 1
    %vm950 = vmand %vm938, %vm946
    %vm951 = vmand %vm939, %vm947
    %vm952 = vmand %vm940, %vm948
    %vm953 = vmand %vm941, %vm949
    %v954 = vsel %vm950, 1, 0
    %v955 = vsel %vm951, 1, 0
    %v956 = vsel %vm952, 1, 0
    %v957 = vsel %vm953, 1, 0
    %v958 = vcvt.s32.f32 %v954
    %v959 = vcvt.s32.f32 %v955
    %v960 = vcvt.s32.f32 %v956
    %v961 = vcvt.s32.f32 %v957
    %v963 = vsel %vm819, %v958, 0
    %v966 = vsel %vm819, %v959, 0
    %v969 = vsel %vm819, %v960, 0
    %v972 = vsel %vm819, %v961, 0
    %974 = vmatprep.subr.mxu0 0.0
    %975 = vmatpush1.msra.mxu0 0.0
    %976 = vmatprep.subr.mxu0 0.0
    %977 = vmatpush1.msra.mxu0 0.0
    %978 = vmatprep.subr.mxu0 0.0
    %979 = vmatpush1.msra.mxu0 0.0
    %980 = vmatprep.subr.mxu0 0.0
    %981 = vmatpush1.msra.mxu0 0.0
    %982 = vmatprep.subr.mxu0 0.0
    %983 = vmatpush1.msra.mxu0 0.0
    %984 = vmatprep.subr.mxu0 0.0
    %985 = vmatpush1.msra.mxu0 0.0
    %986 = vmatprep.subr.mxu0 0.0
    %987 = vmatpush1.msra.mxu0 0.0
    %988 = vmatprep.subr.mxu0 0.0
    %989 = vmatpush1.msra.mxu0 0.0
    %990 = vmatprep.subr.mxu0 0.0
    %991 = vmatpush1.msra.mxu0 0.0
    %992 = vmatprep.subr.mxu0 0.0
    %993 = vmatpush1.msra.mxu0 0.0
    %994 = vmatprep.subr.mxu0 0.0
    %995 = vmatpush1.msra.mxu0 0.0
    %996 = vmatprep.subr.mxu0 0.0
    %997 = vmatpush1.msra.mxu0 0.0
    %998 = vmatprep.subr.mxu0 0.0
    %999 = vmatpush1.msra.mxu0 %v738
    %1000 = vmatprep.subr.mxu0 0.0
    %1001 = vmatpush1.msra.mxu0 %v733
    %1002 = vmatprep.subr.mxu0 0.0
    %1003 = vmatpush1.msra.mxu0 %v728
    %1004 = vmatprep.subr.mxu0 0.0
    %1005 = vmatpush1.msra.mxu0 %v723
    %1006 = vmatprep.subr.mxu0 0.0
    %1007 = vmatpush2.msra.mxu0 0.0
    %1008 = vmatprep.subr.mxu0 0.0
    %1009 = vmatpush2.msra.mxu0 0.0
    %1010 = vmatprep.subr.mxu0 0.0
    %1011 = vmatpush2.msra.mxu0 0.0
    %1012 = vmatprep.subr.mxu0 0.0
    %1013 = vmatpush2.msra.mxu0 0.0
    %1014 = vmatprep.subr.mxu0 0.0
    %1015 = vmatpush2.msra.mxu0 0.0
    %1016 = vmatprep.subr.mxu0 0.0
    %1017 = vmatpush2.msra.mxu0 0.0
    %1018 = vmatprep.subr.mxu0 0.0
    %1019 = vmatpush2.msra.mxu0 0.0
    %1020 = vmatprep.subr.mxu0 0.0
    %1021 = vmatpush2.msra.mxu0 0.0
    %1022 = vmatprep.subr.mxu0 0.0
    %1023 = vmatpush2.msra.mxu0 0.0
    %1024 = vmatprep.subr.mxu0 0.0
    %1025 = vmatpush2.msra.mxu0 0.0
    %1026 = vmatprep.subr.mxu0 0.0
    %1027 = vmatpush2.msra.mxu0 0.0
    %1028 = vmatprep.subr.mxu0 0.0
    %1029 = vmatpush2.msra.mxu0 0.0
    %1030 = vmatprep.subr.mxu0 0.0
    %1031 = vmatpush2.msra.mxu0 0.0
    %1032 = vmatprep.subr.mxu0 0.0
    %1033 = vmatpush2.msra.mxu0 0.0
    %1034 = vmatprep.subr.mxu0 0.0
    %1035 = vmatpush2.msra.mxu0 0.0
    %1036 = vmatprep.subr.mxu0 0.0
    %1037 = vmatpush2.msra.mxu0 0.0
    %1038 = vmatprep.mubr.f32.mxu0 0.0
    %1039 = vmatmul.mubr.f32.gmra.mxu0 %v963
    %v1040 = vpop.f32.mrf.mxu0
    %v1041 = vadd.f32 0.0, %v1040
    %v1042 = vpop.f32.mrf.mxu0
    %1043 = vmatprep.mubr.f32.mxu0 0.0
    %1044 = vmatmul.mubr.f32.gmra.mxu0 %v966
    %v1045 = vpop.f32.mrf.mxu0
    %v1046 = vadd.f32 0.0, %v1045
    %v1047 = vpop.f32.mrf.mxu0
    %1048 = vmatprep.mubr.f32.mxu0 0.0
    %1049 = vmatmul.mubr.f32.gmra.mxu0 %v969
    %v1050 = vpop.f32.mrf.mxu0
    %v1051 = vadd.f32 0.0, %v1050
    %v1052 = vpop.f32.mrf.mxu0
    %1053 = vmatprep.mubr.f32.mxu0 0.0
    %1054 = vmatmul.mubr.f32.gmra.mxu0 %v972
    %v1055 = vpop.f32.mrf.mxu0
    %v1056 = vadd.f32 0.0, %v1055
    %v1057 = vpop.f32.mrf.mxu0
    %1058 = vdwg.mxu0
    %s1059 = scalar_lea.vmem [#allocation5], 8
    %v1060 = vld [vmem:[%s1059] sm:$0xff]
    %vm1061 = vcmask 64512
    %v1063 = vsel %vm1061, %v1041, 0
    %v1066 = vsel %vm1061, %v1046, 0
    %v1069 = vsel %vm1061, %v1051, 0
    %v1072 = vsel %vm1061, %v1056, 0
    %1074 = vmatprep.subr.mxu0 0.0
    %1075 = vmatpush1.msra.mxu0 0.0
    %1076 = vmatprep.subr.mxu0 0.0
    %1077 = vmatpush1.msra.mxu0 0.0
    %1078 = vmatprep.subr.mxu0 0.0
    %1079 = vmatpush1.msra.mxu0 0.0
    %1080 = vmatprep.subr.mxu0 0.0
    %1081 = vmatpush1.msra.mxu0 0.0
    %1082 = vmatprep.subr.mxu0 0.0
    %1083 = vmatpush1.msra.mxu0 0.0
    %1084 = vmatprep.subr.mxu0 0.0
    %1085 = vmatpush1.msra.mxu0 0.0
    %1086 = vmatprep.subr.mxu0 0.0
    %1087 = vmatpush1.msra.mxu0 0.0
    %1088 = vmatprep.subr.mxu0 0.0
    %1089 = vmatpush1.msra.mxu0 0.0
    %1090 = vmatprep.subr.mxu0 0.0
    %1091 = vmatpush1.msra.mxu0 0.0
    %1092 = vmatprep.subr.mxu0 0.0
    %1093 = vmatpush1.msra.mxu0 0.0
    %1094 = vmatprep.subr.mxu0 0.0
    %1095 = vmatpush1.msra.mxu0 0.0
    %1096 = vmatprep.subr.mxu0 0.0
    %1097 = vmatpush1.msra.mxu0 0.0
    %1098 = vmatprep.subr.mxu0 0.0
    %1099 = vmatpush1.msra.mxu0 0.0
    %1100 = vmatprep.subr.mxu0 0.0
    %1101 = vmatpush1.msra.mxu0 0.0
    %1102 = vmatprep.subr.mxu0 0.0
    %1103 = vmatpush1.msra.mxu0 0.0
    %1104 = vmatprep.subr.mxu0 0.0
    %1105 = vmatpush1.msra.mxu0 %v1060
    %1106 = vmatprep.subr.mxu0 0.0
    %1107 = vmatpush2.msra.mxu0 0.0
    %1108 = vmatprep.subr.mxu0 0.0
    %1109 = vmatpush2.msra.mxu0 0.0
    %1110 = vmatprep.subr.mxu0 0.0
    %1111 = vmatpush2.msra.mxu0 0.0
    %1112 = vmatprep.subr.mxu0 0.0
    %1113 = vmatpush2.msra.mxu0 0.0
    %1114 = vmatprep.subr.mxu0 0.0
    %1115 = vmatpush2.msra.mxu0 0.0
    %1116 = vmatprep.subr.mxu0 0.0
    %1117 = vmatpush2.msra.mxu0 0.0
    %1118 = vmatprep.subr.mxu0 0.0
    %1119 = vmatpush2.msra.mxu0 0.0
    %1120 = vmatprep.subr.mxu0 0.0
    %1121 = vmatpush2.msra.mxu0 0.0
    %1122 = vmatprep.subr.mxu0 0.0
    %1123 = vmatpush2.msra.mxu0 0.0
    %1124 = vmatprep.subr.mxu0 0.0
    %1125 = vmatpush2.msra.mxu0 0.0
    %1126 = vmatprep.subr.mxu0 0.0
    %1127 = vmatpush2.msra.mxu0 0.0
    %1128 = vmatprep.subr.mxu0 0.0
    %1129 = vmatpush2.msra.mxu0 0.0
    %1130 = vmatprep.subr.mxu0 0.0
    %1131 = vmatpush2.msra.mxu0 0.0
    %1132 = vmatprep.subr.mxu0 0.0
    %1133 = vmatpush2.msra.mxu0 0.0
    %1134 = vmatprep.subr.mxu0 0.0
    %1135 = vmatpush2.msra.mxu0 0.0
    %1136 = vmatprep.subr.mxu0 0.0
    %1137 = vmatpush2.msra.mxu0 0.0
    %1138 = vmatprep.mubr.f32.mxu0 0.0
    %1139 = vmatmul.mubr.f32.gmra.mxu0 %v1063
    %v1140 = vpop.f32.mrf.mxu0
    %v1141 = vadd.f32 0.0, %v1140
    %v1142 = vpop.f32.mrf.mxu0
    %1143 = vmatprep.mubr.f32.mxu0 0.0
    %1144 = vmatmul.mubr.f32.gmra.mxu0 %v1066
    %v1145 = vpop.f32.mrf.mxu0
    %v1146 = vadd.f32 0.0, %v1145
    %v1147 = vpop.f32.mrf.mxu0
    %1148 = vmatprep.mubr.f32.mxu0 0.0
    %1149 = vmatmul.mubr.f32.gmra.mxu0 %v1069
    %v1150 = vpop.f32.mrf.mxu0
    %v1151 = vadd.f32 0.0, %v1150
    %v1152 = vpop.f32.mrf.mxu0
    %1153 = vmatprep.mubr.f32.mxu0 0.0
    %1154 = vmatmul.mubr.f32.gmra.mxu0 %v1072
    %v1155 = vpop.f32.mrf.mxu0
    %v1156 = vadd.f32 0.0, %v1155
    %v1157 = vpop.f32.mrf.mxu0
    %1158 = vdwg.mxu0
    %v1160 = vsel %vm1061, %v899, 0
    %v1163 = vsel %vm1061, %v904, 0
    %v1166 = vsel %vm1061, %v909, 0
    %v1169 = vsel %vm1061, %v914, 0
    %1171 = vmatprep.subr.mxu0 0.0
    %1172 = vmatpush1.msra.mxu0 0.0
    %1173 = vmatprep.subr.mxu0 0.0
    %1174 = vmatpush1.msra.mxu0 0.0
    %1175 = vmatprep.subr.mxu0 0.0
    %1176 = vmatpush1.msra.mxu0 0.0
    %1177 = vmatprep.subr.mxu0 0.0
    %1178 = vmatpush1.msra.mxu0 0.0
    %1179 = vmatprep.subr.mxu0 0.0
    %1180 = vmatpush1.msra.mxu0 0.0
    %1181 = vmatprep.subr.mxu0 0.0
    %1182 = vmatpush1.msra.mxu0 0.0
    %1183 = vmatprep.subr.mxu0 0.0
    %1184 = vmatpush1.msra.mxu0 0.0
    %1185 = vmatprep.subr.mxu0 0.0
    %1186 = vmatpush1.msra.mxu0 0.0
    %1187 = vmatprep.subr.mxu0 0.0
    %1188 = vmatpush1.msra.mxu0 0.0
    %1189 = vmatprep.subr.mxu0 0.0
    %1190 = vmatpush1.msra.mxu0 0.0
    %1191 = vmatprep.subr.mxu0 0.0
    %1192 = vmatpush1.msra.mxu0 0.0
    %1193 = vmatprep.subr.mxu0 0.0
    %1194 = vmatpush1.msra.mxu0 0.0
    %1195 = vmatprep.subr.mxu0 0.0
    %1196 = vmatpush1.msra.mxu0 0.0
    %1197 = vmatprep.subr.mxu0 0.0
    %1198 = vmatpush1.msra.mxu0 0.0
    %1199 = vmatprep.subr.mxu0 0.0
    %1200 = vmatpush1.msra.mxu0 0.0
    %1201 = vmatprep.subr.mxu0 0.0
    %1202 = vmatpush1.msra.mxu0 %v917
    %1203 = vmatprep.subr.mxu0 0.0
    %1204 = vmatpush2.msra.mxu0 0.0
    %1205 = vmatprep.subr.mxu0 0.0
    %1206 = vmatpush2.msra.mxu0 0.0
    %1207 = vmatprep.subr.mxu0 0.0
    %1208 = vmatpush2.msra.mxu0 0.0
    %1209 = vmatprep.subr.mxu0 0.0
    %1210 = vmatpush2.msra.mxu0 0.0
    %1211 = vmatprep.subr.mxu0 0.0
    %1212 = vmatpush2.msra.mxu0 0.0
    %1213 = vmatprep.subr.mxu0 0.0
    %1214 = vmatpush2.msra.mxu0 0.0
    %1215 = vmatprep.subr.mxu0 0.0
    %1216 = vmatpush2.msra.mxu0 0.0
    %1217 = vmatprep.subr.mxu0 0.0
    %1218 = vmatpush2.msra.mxu0 0.0
    %1219 = vmatprep.subr.mxu0 0.0
    %1220 = vmatpush2.msra.mxu0 0.0
    %1221 = vmatprep.subr.mxu0 0.0
    %1222 = vmatpush2.msra.mxu0 0.0
    %1223 = vmatprep.subr.mxu0 0.0
    %1224 = vmatpush2.msra.mxu0 0.0
    %1225 = vmatprep.subr.mxu0 0.0
    %1226 = vmatpush2.msra.mxu0 0.0
    %1227 = vmatprep.subr.mxu0 0.0
    %1228 = vmatpush2.msra.mxu0 0.0
    %1229 = vmatprep.subr.mxu0 0.0
    %1230 = vmatpush2.msra.mxu0 0.0
    %1231 = vmatprep.subr.mxu0 0.0
    %1232 = vmatpush2.msra.mxu0 0.0
    %1233 = vmatprep.subr.mxu0 0.0
    %1234 = vmatpush2.msra.mxu0 0.0
    %1235 = vmatprep.mubr.f32.mxu0 0.0
    %1236 = vmatmul.mubr.f32.gmra.mxu0 %v1160
    %v1237 = vpop.f32.mrf.mxu0
    %v1238 = vadd.f32 %v1141, %v1237
    %v1239 = vpop.f32.mrf.mxu0
    %1240 = vmatprep.mubr.f32.mxu0 0.0
    %1241 = vmatmul.mubr.f32.gmra.mxu0 %v1163
    %v1242 = vpop.f32.mrf.mxu0
    %v1243 = vadd.f32 %v1146, %v1242
    %v1244 = vpop.f32.mrf.mxu0
    %1245 = vmatprep.mubr.f32.mxu0 0.0
    %1246 = vmatmul.mubr.f32.gmra.mxu0 %v1166
    %v1247 = vpop.f32.mrf.mxu0
    %v1248 = vadd.f32 %v1151, %v1247
    %v1249 = vpop.f32.mrf.mxu0
    %1250 = vmatprep.mubr.f32.mxu0 0.0
    %1251 = vmatmul.mubr.f32.gmra.mxu0 %v1169
    %v1252 = vpop.f32.mrf.mxu0
    %v1253 = vadd.f32 %v1156, %v1252
    %v1254 = vpop.f32.mrf.mxu0
    %1255 = vdwg.mxu0
    %v1256 = vadd.f32 %v770, 1.0
    %v1257 = vadd.f32 %v771, 1.0
    %v1258 = vadd.f32 %v772, 1.0
    %v1259 = vadd.f32 %v773, 1.0
    %vm1260 = vcmp.ge.f32.partialorder %v1256, 0.0
    %vm1261 = vcmp.ge.f32.partialorder %v1257, 0.0
    %vm1262 = vcmp.ge.f32.partialorder %v1258, 0.0
    %vm1263 = vcmp.ge.f32.partialorder %v1259, 0.0
    %vm1264 = vcmp.le.f32.partialorder %v1256, 15.0
    %vm1265 = vcmp.le.f32.partialorder %v1257, 15.0
    %vm1266 = vcmp.le.f32.partialorder %v1258, 15.0
    %vm1267 = vcmp.le.f32.partialorder %v1259, 15.0
    %vm1268 = vmand %vm1260, %vm1264
    %vm1269 = vmand %vm1261, %vm1265
    %vm1270 = vmand %vm1262, %vm1266
    %vm1271 = vmand %vm1263, %vm1267
    %v1272 = vadd.f32 %v766, %v1256
    %v1273 = vadd.f32 %v767, %v1257
    %v1274 = vadd.f32 %v768, %v1258
    %v1275 = vadd.f32 %v769, %v1259
    %vm1276 = vcmp.eq.f32.partialorder %v794, %v1272
    %vm1277 = vcmp.eq.f32.partialorder %v794, %v1273
    %vm1278 = vcmp.eq.f32.partialorder %v794, %v1274
    %vm1279 = vcmp.eq.f32.partialorder %v794, %v1275
    %v1280 = vsel %vm1268, 1, 0
    %v1281 = vsel %vm1269, 1, 0
    %v1282 = vsel %vm1270, 1, 0
    %v1283 = vsel %vm1271, 1, 0
    %vm1284 = vcmp.eq.s32.totalorder %v1280, 1
    %vm1285 = vcmp.eq.s32.totalorder %v1281, 1
    %vm1286 = vcmp.eq.s32.totalorder %v1282, 1
    %vm1287 = vcmp.eq.s32.totalorder %v1283, 1
    %vm1288 = vmand %vm1276, %vm1284
    %vm1289 = vmand %vm1277, %vm1285
    %vm1290 = vmand %vm1278, %vm1286
    %vm1291 = vmand %vm1279, %vm1287
    %v1292 = vsel %vm1288, 1, 0
    %v1293 = vsel %vm1289, 1, 0
    %v1294 = vsel %vm1290, 1, 0
    %v1295 = vsel %vm1291, 1, 0
    %v1296 = vcvt.s32.f32 %v1292
    %v1297 = vcvt.s32.f32 %v1293
    %v1298 = vcvt.s32.f32 %v1294
    %v1299 = vcvt.s32.f32 %v1295
    %v1301 = vsel %vm819, %v1296, 0
    %v1304 = vsel %vm819, %v1297, 0
    %v1307 = vsel %vm819, %v1298, 0
    %v1310 = vsel %vm819, %v1299, 0
    %1312 = vmatprep.subr.mxu0 0.0
    %1313 = vmatpush1.msra.mxu0 0.0
    %1314 = vmatprep.subr.mxu0 0.0
    %1315 = vmatpush1.msra.mxu0 0.0
    %1316 = vmatprep.subr.mxu0 0.0
    %1317 = vmatpush1.msra.mxu0 0.0
    %1318 = vmatprep.subr.mxu0 0.0
    %1319 = vmatpush1.msra.mxu0 0.0
    %1320 = vmatprep.subr.mxu0 0.0
    %1321 = vmatpush1.msra.mxu0 0.0
    %1322 = vmatprep.subr.mxu0 0.0
    %1323 = vmatpush1.msra.mxu0 0.0
    %1324 = vmatprep.subr.mxu0 0.0
    %1325 = vmatpush1.msra.mxu0 0.0
    %1326 = vmatprep.subr.mxu0 0.0
    %1327 = vmatpush1.msra.mxu0 0.0
    %1328 = vmatprep.subr.mxu0 0.0
    %1329 = vmatpush1.msra.mxu0 0.0
    %1330 = vmatprep.subr.mxu0 0.0
    %1331 = vmatpush1.msra.mxu0 0.0
    %1332 = vmatprep.subr.mxu0 0.0
    %1333 = vmatpush1.msra.mxu0 0.0
    %1334 = vmatprep.subr.mxu0 0.0
    %1335 = vmatpush1.msra.mxu0 0.0
    %1336 = vmatprep.subr.mxu0 0.0
    %1337 = vmatpush1.msra.mxu0 %v738
    %1338 = vmatprep.subr.mxu0 0.0
    %1339 = vmatpush1.msra.mxu0 %v733
    %1340 = vmatprep.subr.mxu0 0.0
    %1341 = vmatpush1.msra.mxu0 %v728
    %1342 = vmatprep.subr.mxu0 0.0
    %1343 = vmatpush1.msra.mxu0 %v723
    %1344 = vmatprep.subr.mxu0 0.0
    %1345 = vmatpush2.msra.mxu0 0.0
    %1346 = vmatprep.subr.mxu0 0.0
    %1347 = vmatpush2.msra.mxu0 0.0
    %1348 = vmatprep.subr.mxu0 0.0
    %1349 = vmatpush2.msra.mxu0 0.0
    %1350 = vmatprep.subr.mxu0 0.0
    %1351 = vmatpush2.msra.mxu0 0.0
    %1352 = vmatprep.subr.mxu0 0.0
    %1353 = vmatpush2.msra.mxu0 0.0
    %1354 = vmatprep.subr.mxu0 0.0
    %1355 = vmatpush2.msra.mxu0 0.0
    %1356 = vmatprep.subr.mxu0 0.0
    %1357 = vmatpush2.msra.mxu0 0.0
    %1358 = vmatprep.subr.mxu0 0.0
    %1359 = vmatpush2.msra.mxu0 0.0
    %1360 = vmatprep.subr.mxu0 0.0
    %1361 = vmatpush2.msra.mxu0 0.0
    %1362 = vmatprep.subr.mxu0 0.0
    %1363 = vmatpush2.msra.mxu0 0.0
    %1364 = vmatprep.subr.mxu0 0.0
    %1365 = vmatpush2.msra.mxu0 0.0
    %1366 = vmatprep.subr.mxu0 0.0
    %1367 = vmatpush2.msra.mxu0 0.0
    %1368 = vmatprep.subr.mxu0 0.0
    %1369 = vmatpush2.msra.mxu0 0.0
    %1370 = vmatprep.subr.mxu0 0.0
    %1371 = vmatpush2.msra.mxu0 0.0
    %1372 = vmatprep.subr.mxu0 0.0
    %1373 = vmatpush2.msra.mxu0 0.0
    %1374 = vmatprep.subr.mxu0 0.0
    %1375 = vmatpush2.msra.mxu0 0.0
    %1376 = vmatprep.mubr.f32.mxu0 0.0
    %1377 = vmatmul.mubr.f32.gmra.mxu0 %v1301
    %v1378 = vpop.f32.mrf.mxu0
    %v1379 = vadd.f32 0.0, %v1378
    %v1380 = vpop.f32.mrf.mxu0
    %1381 = vmatprep.mubr.f32.mxu0 0.0
    %1382 = vmatmul.mubr.f32.gmra.mxu0 %v1304
    %v1383 = vpop.f32.mrf.mxu0
    %v1384 = vadd.f32 0.0, %v1383
    %v1385 = vpop.f32.mrf.mxu0
    %1386 = vmatprep.mubr.f32.mxu0 0.0
    %1387 = vmatmul.mubr.f32.gmra.mxu0 %v1307
    %v1388 = vpop.f32.mrf.mxu0
    %v1389 = vadd.f32 0.0, %v1388
    %v1390 = vpop.f32.mrf.mxu0
    %1391 = vmatprep.mubr.f32.mxu0 0.0
    %1392 = vmatmul.mubr.f32.gmra.mxu0 %v1310
    %v1393 = vpop.f32.mrf.mxu0
    %v1394 = vadd.f32 0.0, %v1393
    %v1395 = vpop.f32.mrf.mxu0
    %1396 = vdwg.mxu0
    %s1397 = scalar_lea.vmem [#allocation5], 16
    %v1398 = vld [vmem:[%s1397] sm:$0xff]
    %v1400 = vsel %vm1061, %v1379, 0
    %v1403 = vsel %vm1061, %v1384, 0
    %v1406 = vsel %vm1061, %v1389, 0
    %v1409 = vsel %vm1061, %v1394, 0
    %1411 = vmatprep.subr.mxu0 0.0
    %1412 = vmatpush1.msra.mxu0 0.0
    %1413 = vmatprep.subr.mxu0 0.0
    %1414 = vmatpush1.msra.mxu0 0.0
    %1415 = vmatprep.subr.mxu0 0.0
    %1416 = vmatpush1.msra.mxu0 0.0
    %1417 = vmatprep.subr.mxu0 0.0
    %1418 = vmatpush1.msra.mxu0 0.0
    %1419 = vmatprep.subr.mxu0 0.0
    %1420 = vmatpush1.msra.mxu0 0.0
    %1421 = vmatprep.subr.mxu0 0.0
    %1422 = vmatpush1.msra.mxu0 0.0
    %1423 = vmatprep.subr.mxu0 0.0
    %1424 = vmatpush1.msra.mxu0 0.0
    %1425 = vmatprep.subr.mxu0 0.0
    %1426 = vmatpush1.msra.mxu0 0.0
    %1427 = vmatprep.subr.mxu0 0.0
    %1428 = vmatpush1.msra.mxu0 0.0
    %1429 = vmatprep.subr.mxu0 0.0
    %1430 = vmatpush1.msra.mxu0 0.0
    %1431 = vmatprep.subr.mxu0 0.0
    %1432 = vmatpush1.msra.mxu0 0.0
    %1433 = vmatprep.subr.mxu0 0.0
    %1434 = vmatpush1.msra.mxu0 0.0
    %1435 = vmatprep.subr.mxu0 0.0
    %1436 = vmatpush1.msra.mxu0 0.0
    %1437 = vmatprep.subr.mxu0 0.0
    %1438 = vmatpush1.msra.mxu0 0.0
    %1439 = vmatprep.subr.mxu0 0.0
    %1440 = vmatpush1.msra.mxu0 0.0
    %1441 = vmatprep.subr.mxu0 0.0
    %1442 = vmatpush1.msra.mxu0 %v1398
    %1443 = vmatprep.subr.mxu0 0.0
    %1444 = vmatpush2.msra.mxu0 0.0
    %1445 = vmatprep.subr.mxu0 0.0
    %1446 = vmatpush2.msra.mxu0 0.0
    %1447 = vmatprep.subr.mxu0 0.0
    %1448 = vmatpush2.msra.mxu0 0.0
    %1449 = vmatprep.subr.mxu0 0.0
    %1450 = vmatpush2.msra.mxu0 0.0
    %1451 = vmatprep.subr.mxu0 0.0
    %1452 = vmatpush2.msra.mxu0 0.0
    %1453 = vmatprep.subr.mxu0 0.0
    %1454 = vmatpush2.msra.mxu0 0.0
    %1455 = vmatprep.subr.mxu0 0.0
    %1456 = vmatpush2.msra.mxu0 0.0
    %1457 = vmatprep.subr.mxu0 0.0
    %1458 = vmatpush2.msra.mxu0 0.0
    %1459 = vmatprep.subr.mxu0 0.0
    %1460 = vmatpush2.msra.mxu0 0.0
    %1461 = vmatprep.subr.mxu0 0.0
    %1462 = vmatpush2.msra.mxu0 0.0
    %1463 = vmatprep.subr.mxu0 0.0
    %1464 = vmatpush2.msra.mxu0 0.0
    %1465 = vmatprep.subr.mxu0 0.0
    %1466 = vmatpush2.msra.mxu0 0.0
    %1467 = vmatprep.subr.mxu0 0.0
    %1468 = vmatpush2.msra.mxu0 0.0
    %1469 = vmatprep.subr.mxu0 0.0
    %1470 = vmatpush2.msra.mxu0 0.0
    %1471 = vmatprep.subr.mxu0 0.0
    %1472 = vmatpush2.msra.mxu0 0.0
    %1473 = vmatprep.subr.mxu0 0.0
    %1474 = vmatpush2.msra.mxu0 0.0
    %1475 = vmatprep.mubr.f32.mxu0 0.0
    %1476 = vmatmul.mubr.f32.gmra.mxu0 %v1400
    %v1477 = vpop.f32.mrf.mxu0
    %v1478 = vadd.f32 0.0, %v1477
    %v1479 = vpop.f32.mrf.mxu0
    %1480 = vmatprep.mubr.f32.mxu0 0.0
    %1481 = vmatmul.mubr.f32.gmra.mxu0 %v1403
    %v1482 = vpop.f32.mrf.mxu0
    %v1483 = vadd.f32 0.0, %v1482
    %v1484 = vpop.f32.mrf.mxu0
    %1485 = vmatprep.mubr.f32.mxu0 0.0
    %1486 = vmatmul.mubr.f32.gmra.mxu0 %v1406
    %v1487 = vpop.f32.mrf.mxu0
    %v1488 = vadd.f32 0.0, %v1487
    %v1489 = vpop.f32.mrf.mxu0
    %1490 = vmatprep.mubr.f32.mxu0 0.0
    %1491 = vmatmul.mubr.f32.gmra.mxu0 %v1409
    %v1492 = vpop.f32.mrf.mxu0
    %v1493 = vadd.f32 0.0, %v1492
    %v1494 = vpop.f32.mrf.mxu0
    %1495 = vdwg.mxu0
    %v1496 = vadd.f32 %v1238, %v1478
    %v1497 = vadd.f32 %v1243, %v1483
    %v1498 = vadd.f32 %v1248, %v1488
    %v1499 = vadd.f32 %v1253, %v1493
    %v1500 = vld [vmem:[#allocation7] sm:$0x1]
    %v1502 = vlaneseq
    %v1503 = vshrl.u32 %v1502, 7
    %v1504 = vsub.s32 0, %v1503
    %v1505 = vrot.slane %v1500, %v1504
    %v1507 = vadd.f32 %v1496, %v1505
    %v1508 = vadd.f32 %v1497, %v1505
    %v1509 = vadd.f32 %v1498, %v1505
    %v1510 = vadd.f32 %v1499, %v1505
    %v1511 = vsel %vm1061, %v1507, 0.0
    %v1512 = vsel %vm1061, %v1508, 0.0
    %v1513 = vadd.f32 %v1511, %v1512
    %v1514 = vsel %vm1061, %v1509, 0.0
    %v1515 = vadd.f32 %v1513, %v1514
    %v1516 = vsel %vm1061, %v1510, 0.0
    %v1517 = vadd.f32 %v1515, %v1516
    %v1518 = vrot.slane %v1517, 4
    %v1519 = vadd.f32 %v1517, %v1518
    %v1520 = vrot.slane %v1519, 2
    %v1521 = vadd.f32 %v1519, %v1520
    %v1522 = vrot.slane %v1521, 1
    %v1523 = vadd.f32 %v1521, %v1522
    %v1524 = vrcp.pop 32.0
    %v1525 = vmul.f32 %v1523, %v1524
    %v1526 = vsub.f32 %v1507, %v1525
    %v1527 = vsub.f32 %v1508, %v1525
    %v1528 = vsub.f32 %v1509, %v1525
    %v1529 = vsub.f32 %v1510, %v1525
    %v1530 = vmul.f32 %v1526, %v1526
    %v1531 = vmul.f32 %v1527, %v1527
    %v1532 = vmul.f32 %v1528, %v1528
    %v1533 = vmul.f32 %v1529, %v1529
    %v1534 = vsel %vm1061, %v1530, 0.0
    %v1535 = vsel %vm1061, %v1531, 0.0
    %v1536 = vadd.f32 %v1534, %v1535
    %v1537 = vsel %vm1061, %v1532, 0.0
    %v1538 = vadd.f32 %v1536, %v1537
    %v1539 = vsel %vm1061, %v1533, 0.0
    %v1540 = vadd.f32 %v1538, %v1539
    %v1541 = vrot.slane %v1540, 4
    %v1542 = vadd.f32 %v1540, %v1541
    %v1543 = vrot.slane %v1542, 2
    %v1544 = vadd.f32 %v1542, %v1543
    %v1545 = vrot.slane %v1544, 1
    %v1546 = vadd.f32 %v1544, %v1545
    %v1547 = vmul.f32 %v1546, %v1524
    %v1548 = vld [vmem:[#allocation8] sm:$0x1]
    %v1549 = vadd.f32 %v1547, 1e-05
    %v1550 = vrsqrt.pop %v1549
    %v1551 = vmul.f32 %v1548, %v1550
    %v1553 = vlaneseq
    %v1554 = vshrl.u32 %v1553, 7
    %v1555 = vsub.s32 0, %v1554
    %v1556 = vrot.slane %v1551, %v1555
    %v1558 = vmul.f32 %v1526, %v1556
    %v1559 = vmul.f32 %v1527, %v1556
    %v1560 = vmul.f32 %v1528, %v1556
    %v1561 = vmul.f32 %v1529, %v1556
    %v1562 = vld [vmem:[#allocation10] sm:$0x1]
    %v1564 = vlaneseq
    %v1565 = vshrl.u32 %v1564, 7
    %v1566 = vsub.s32 0, %v1565
    %v1567 = vrot.slane %v1562, %v1566
    %v1569 = vadd.f32 %v1558, %v1567
    %v1570 = vadd.f32 %v1559, %v1567
    %v1571 = vadd.f32 %v1560, %v1567
    %v1572 = vadd.f32 %v1561, %v1567
    %v1573 = vmax.f32 %v1569, 0.0
    %v1574 = vmax.f32 %v1570, 0.0
    %v1575 = vmax.f32 %v1571, 0.0
    %v1576 = vmax.f32 %v1572, 0.0
    %vm1577 = vcmp.ge.f32.partialorder %v746, 8.0
    %vm1578 = vcmp.ge.f32.partialorder %v747, 8.0
    %v1579 = vsel %vm1577, 1, 0
    %v1580 = vsel %vm1578, 1, 0
    %v1581 = vcvt.s32.f32 %v1579
    %v1582 = vcvt.s32.f32 %v1580
    %v1583 = vadd.f32 %v1581, 0.0
    %v1584 = vadd.f32 %v1582, 0.0
    %v1585 = vmul.f32 %v1583, 8.0
    %v1586 = vmul.f32 %v1584, 8.0
    %v1587 = vsub.f32 %v746, %v1585
    %v1588 = vsub.f32 %v747, %v1586
    %v1589 = vmul.f32 %v1587, 2.0
    %v1590 = vmul.f32 %v1588, 2.0
    %v1591 = vadd.f32 %v1589, -1.0
    %v1592 = vadd.f32 %v1590, -1.0
    %vm1593 = vcmp.ge.f32.partialorder %v1591, 0.0
    %vm1594 = vcmp.ge.f32.partialorder %v1592, 0.0
    %vm1595 = vcmp.le.f32.partialorder %v1591, 15.0
    %vm1596 = vcmp.le.f32.partialorder %v1592, 15.0
    %vm1597 = vmand %vm1593, %vm1595
    %vm1598 = vmand %vm1594, %vm1596
    %v1599 = vmul.f32 %v1583, 16.0
    %v1600 = vmul.f32 %v1584, 16.0
    %v1601 = vadd.f32 %v1599, %v1591
    %v1602 = vadd.f32 %v1600, %v1592
    %vm1603 = vcmp.eq.f32.partialorder %v794, %v1601
    %vm1604 = vcmp.eq.f32.partialorder %v794, %v1602
    %v1605 = vsel %vm1597, 1, 0
    %v1606 = vsel %vm1598, 1, 0
    %vm1607 = vcmp.eq.s32.totalorder %v1605, 1
    %vm1608 = vcmp.eq.s32.totalorder %v1606, 1
    %vm1609 = vmand %vm1603, %vm1607
    %vm1610 = vmand %vm1604, %vm1608
    %v1611 = vsel %vm1609, 1, 0
    %v1612 = vsel %vm1610, 1, 0
    %v1613 = vcvt.s32.f32 %v1611
    %v1614 = vcvt.s32.f32 %v1612
    %v1615 = vsel %vm1597, 0.0, -1e+30
    %v1616 = vsel %vm1598, 0.0, -1e+30
    %v1618 = vsel %vm819, %v1613, 0
    %v1621 = vsel %vm819, %v1614, 0
    %1623 = vmatprep.subr.mxu0 0.0
    %1624 = vmatpush1.msra.mxu0 0.0
    %1625 = vmatprep.subr.mxu0 0.0
    %1626 = vmatpush1.msra.mxu0 0.0
    %1627 = vmatprep.subr.mxu0 0.0
    %1628 = vmatpush1.msra.mxu0 0.0
    %1629 = vmatprep.subr.mxu0 0.0
    %1630 = vmatpush1.msra.mxu0 0.0
    %1631 = vmatprep.subr.mxu0 0.0
    %1632 = vmatpush1.msra.mxu0 0.0
    %1633 = vmatprep.subr.mxu0 0.0
    %1634 = vmatpush1.msra.mxu0 0.0
    %1635 = vmatprep.subr.mxu0 0.0
    %1636 = vmatpush1.msra.mxu0 0.0
    %1637 = vmatprep.subr.mxu0 0.0
    %1638 = vmatpush1.msra.mxu0 0.0
    %1639 = vmatprep.subr.mxu0 0.0
    %1640 = vmatpush1.msra.mxu0 0.0
    %1641 = vmatprep.subr.mxu0 0.0
    %1642 = vmatpush1.msra.mxu0 0.0
    %1643 = vmatprep.subr.mxu0 0.0
    %1644 = vmatpush1.msra.mxu0 0.0
    %1645 = vmatprep.subr.mxu0 0.0
    %1646 = vmatpush1.msra.mxu0 0.0
    %1647 = vmatprep.subr.mxu0 0.0
    %1648 = vmatpush1.msra.mxu0 %v1576
    %1649 = vmatprep.subr.mxu0 0.0
    %1650 = vmatpush1.msra.mxu0 %v1575
    %1651 = vmatprep.subr.mxu0 0.0
    %1652 = vmatpush1.msra.mxu0 %v1574
    %1653 = vmatprep.subr.mxu0 0.0
    %1654 = vmatpush1.msra.mxu0 %v1573
    %1655 = vmatprep.subr.mxu0 0.0
    %1656 = vmatpush2.msra.mxu0 0.0
    %1657 = vmatprep.subr.mxu0 0.0
    %1658 = vmatpush2.msra.mxu0 0.0
    %1659 = vmatprep.subr.mxu0 0.0
    %1660 = vmatpush2.msra.mxu0 0.0
    %1661 = vmatprep.subr.mxu0 0.0
    %1662 = vmatpush2.msra.mxu0 0.0
    %1663 = vmatprep.subr.mxu0 0.0
    %1664 = vmatpush2.msra.mxu0 0.0
    %1665 = vmatprep.subr.mxu0 0.0
    %1666 = vmatpush2.msra.mxu0 0.0
    %1667 = vmatprep.subr.mxu0 0.0
    %1668 = vmatpush2.msra.mxu0 0.0
    %1669 = vmatprep.subr.mxu0 0.0
    %1670 = vmatpush2.msra.mxu0 0.0
    %1671 = vmatprep.subr.mxu0 0.0
    %1672 = vmatpush2.msra.mxu0 0.0
    %1673 = vmatprep.subr.mxu0 0.0
    %1674 = vmatpush2.msra.mxu0 0.0
    %1675 = vmatprep.subr.mxu0 0.0
    %1676 = vmatpush2.msra.mxu0 0.0
    %1677 = vmatprep.subr.mxu0 0.0
    %1678 = vmatpush2.msra.mxu0 0.0
    %1679 = vmatprep.subr.mxu0 0.0
    %1680 = vmatpush2.msra.mxu0 0.0
    %1681 = vmatprep.subr.mxu0 0.0
    %1682 = vmatpush2.msra.mxu0 0.0
    %1683 = vmatprep.subr.mxu0 0.0
    %1684 = vmatpush2.msra.mxu0 0.0
    %1685 = vmatprep.subr.mxu0 0.0
    %1686 = vmatpush2.msra.mxu0 0.0
    %1687 = vmatprep.mubr.f32.mxu0 0.0
    %1688 = vmatmul.mubr.f32.gmra.mxu0 %v1618
    %v1689 = vpop.f32.mrf.mxu0
    %v1690 = vadd.f32 %v1615, %v1689
    %v1691 = vpop.f32.mrf.mxu0
    %1692 = vmatprep.mubr.f32.mxu0 0.0
    %1693 = vmatmul.mubr.f32.gmra.mxu0 %v1621
    %v1694 = vpop.f32.mrf.mxu0
    %v1695 = vadd.f32 %v1616, %v1694
    %v1696 = vpop.f32.mrf.mxu0
    %1697 = vdwg.mxu0
    %v1698 = vadd.f32 %v1589, 0.0
    %v1699 = vadd.f32 %v1590, 0.0
    %vm1700 = vcmp.ge.f32.partialorder %v1698, 0.0
    %vm1701 = vcmp.ge.f32.partialorder %v1699, 0.0
    %vm1702 = vcmp.le.f32.partialorder %v1698, 15.0
    %vm1703 = vcmp.le.f32.partialorder %v1699, 15.0
    %vm1704 = vmand %vm1700, %vm1702
    %vm1705 = vmand %vm1701, %vm1703
    %v1706 = vadd.f32 %v1599, %v1698
    %v1707 = vadd.f32 %v1600, %v1699
    %vm1708 = vcmp.eq.f32.partialorder %v794, %v1706
    %vm1709 = vcmp.eq.f32.partialorder %v794, %v1707
    %v1710 = vsel %vm1704, 1, 0
    %v1711 = vsel %vm1705, 1, 0
    %vm1712 = vcmp.eq.s32.totalorder %v1710, 1
    %vm1713 = vcmp.eq.s32.totalorder %v1711, 1
    %vm1714 = vmand %vm1708, %vm1712
    %vm1715 = vmand %vm1709, %vm1713
    %v1716 = vsel %vm1714, 1, 0
    %v1717 = vsel %vm1715, 1, 0
    %v1718 = vcvt.s32.f32 %v1716
    %v1719 = vcvt.s32.f32 %v1717
    %v1720 = vsel %vm1704, 0.0, -1e+30
    %v1721 = vsel %vm1705, 0.0, -1e+30
    %v1723 = vsel %vm819, %v1718, 0
    %v1726 = vsel %vm819, %v1719, 0
    %1728 = vmatprep.subr.mxu0 0.0
    %1729 = vmatpush1.msra.mxu0 0.0
    %1730 = vmatprep.subr.mxu0 0.0
    %1731 = vmatpush1.msra.mxu0 0.0
    %1732 = vmatprep.subr.mxu0 0.0
    %1733 = vmatpush1.msra.mxu0 0.0
    %1734 = vmatprep.subr.mxu0 0.0
    %1735 = vmatpush1.msra.mxu0 0.0
    %1736 = vmatprep.subr.mxu0 0.0
    %1737 = vmatpush1.msra.mxu0 0.0
    %1738 = vmatprep.subr.mxu0 0.0
    %1739 = vmatpush1.msra.mxu0 0.0
    %1740 = vmatprep.subr.mxu0 0.0
    %1741 = vmatpush1.msra.mxu0 0.0
    %1742 = vmatprep.subr.mxu0 0.0
    %1743 = vmatpush1.msra.mxu0 0.0
    %1744 = vmatprep.subr.mxu0 0.0
    %1745 = vmatpush1.msra.mxu0 0.0
    %1746 = vmatprep.subr.mxu0 0.0
    %1747 = vmatpush1.msra.mxu0 0.0
    %1748 = vmatprep.subr.mxu0 0.0
    %1749 = vmatpush1.msra.mxu0 0.0
    %1750 = vmatprep.subr.mxu0 0.0
    %1751 = vmatpush1.msra.mxu0 0.0
    %1752 = vmatprep.subr.mxu0 0.0
    %1753 = vmatpush1.msra.mxu0 %v1576
    %1754 = vmatprep.subr.mxu0 0.0
    %1755 = vmatpush1.msra.mxu0 %v1575
    %1756 = vmatprep.subr.mxu0 0.0
    %1757 = vmatpush1.msra.mxu0 %v1574
    %1758 = vmatprep.subr.mxu0 0.0
    %1759 = vmatpush1.msra.mxu0 %v1573
    %1760 = vmatprep.subr.mxu0 0.0
    %1761 = vmatpush2.msra.mxu0 0.0
    %1762 = vmatprep.subr.mxu0 0.0
    %1763 = vmatpush2.msra.mxu0 0.0
    %1764 = vmatprep.subr.mxu0 0.0
    %1765 = vmatpush2.msra.mxu0 0.0
    %1766 = vmatprep.subr.mxu0 0.0
    %1767 = vmatpush2.msra.mxu0 0.0
    %1768 = vmatprep.subr.mxu0 0.0
    %1769 = vmatpush2.msra.mxu0 0.0
    %1770 = vmatprep.subr.mxu0 0.0
    %1771 = vmatpush2.msra.mxu0 0.0
    %1772 = vmatprep.subr.mxu0 0.0
    %1773 = vmatpush2.msra.mxu0 0.0
    %1774 = vmatprep.subr.mxu0 0.0
    %1775 = vmatpush2.msra.mxu0 0.0
    %1776 = vmatprep.subr.mxu0 0.0
    %1777 = vmatpush2.msra.mxu0 0.0
    %1778 = vmatprep.subr.mxu0 0.0
    %1779 = vmatpush2.msra.mxu0 0.0
    %1780 = vmatprep.subr.mxu0 0.0
    %1781 = vmatpush2.msra.mxu0 0.0
    %1782 = vmatprep.subr.mxu0 0.0
    %1783 = vmatpush2.msra.mxu0 0.0
    %1784 = vmatprep.subr.mxu0 0.0
    %1785 = vmatpush2.msra.mxu0 0.0
    %1786 = vmatprep.subr.mxu0 0.0
    %1787 = vmatpush2.msra.mxu0 0.0
    %1788 = vmatprep.subr.mxu0 0.0
    %1789 = vmatpush2.msra.mxu0 0.0
    %1790 = vmatprep.subr.mxu0 0.0
    %1791 = vmatpush2.msra.mxu0 0.0
    %1792 = vmatprep.mubr.f32.mxu0 0.0
    %1793 = vmatmul.mubr.f32.gmra.mxu0 %v1723
    %v1794 = vpop.f32.mrf.mxu0
    %v1795 = vadd.f32 %v1720, %v1794
    %v1796 = vpop.f32.mrf.mxu0
    %1797 = vmatprep.mubr.f32.mxu0 0.0
    %1798 = vmatmul.mubr.f32.gmra.mxu0 %v1726
    %v1799 = vpop.f32.mrf.mxu0
    %v1800 = vadd.f32 %v1721, %v1799
    %v1801 = vpop.f32.mrf.mxu0
    %1802 = vdwg.mxu0
    %v1803 = vmax.f32 %v1690, %v1795
    %v1804 = vmax.f32 %v1695, %v1800
    %v1805 = vadd.f32 %v1589, 1.0
    %v1806 = vadd.f32 %v1590, 1.0
    %vm1807 = vcmp.ge.f32.partialorder %v1805, 0.0
    %vm1808 = vcmp.ge.f32.partialorder %v1806, 0.0
    %vm1809 = vcmp.le.f32.partialorder %v1805, 15.0
    %vm1810 = vcmp.le.f32.partialorder %v1806, 15.0
    %vm1811 = vmand %vm1807, %vm1809
    %vm1812 = vmand %vm1808, %vm1810
    %v1813 = vadd.f32 %v1599, %v1805
    %v1814 = vadd.f32 %v1600, %v1806
    %vm1815 = vcmp.eq.f32.partialorder %v794, %v1813
    %vm1816 = vcmp.eq.f32.partialorder %v794, %v1814
    %v1817 = vsel %vm1811, 1, 0
    %v1818 = vsel %vm1812, 1, 0
    %vm1819 = vcmp.eq.s32.totalorder %v1817, 1
    %vm1820 = vcmp.eq.s32.totalorder %v1818, 1
    %vm1821 = vmand %vm1815, %vm1819
    %vm1822 = vmand %vm1816, %vm1820
    %v1823 = vsel %vm1821, 1, 0
    %v1824 = vsel %vm1822, 1, 0
    %v1825 = vcvt.s32.f32 %v1823
    %v1826 = vcvt.s32.f32 %v1824
    %v1827 = vsel %vm1811, 0.0, -1e+30
    %v1828 = vsel %vm1812, 0.0, -1e+30
    %v1830 = vsel %vm819, %v1825, 0
    %v1833 = vsel %vm819, %v1826, 0
    %1835 = vmatprep.subr.mxu0 0.0
    %1836 = vmatpush1.msra.mxu0 0.0
    %1837 = vmatprep.subr.mxu0 0.0
    %1838 = vmatpush1.msra.mxu0 0.0
    %1839 = vmatprep.subr.mxu0 0.0
    %1840 = vmatpush1.msra.mxu0 0.0
    %1841 = vmatprep.subr.mxu0 0.0
    %1842 = vmatpush1.msra.mxu0 0.0
    %1843 = vmatprep.subr.mxu0 0.0
    %1844 = vmatpush1.msra.mxu0 0.0
    %1845 = vmatprep.subr.mxu0 0.0
    %1846 = vmatpush1.msra.mxu0 0.0
    %1847 = vmatprep.subr.mxu0 0.0
    %1848 = vmatpush1.msra.mxu0 0.0
    %1849 = vmatprep.subr.mxu0 0.0
    %1850 = vmatpush1.msra.mxu0 0.0
    %1851 = vmatprep.subr.mxu0 0.0
    %1852 = vmatpush1.msra.mxu0 0.0
    %1853 = vmatprep.subr.mxu0 0.0
    %1854 = vmatpush1.msra.mxu0 0.0
    %1855 = vmatprep.subr.mxu0 0.0
    %1856 = vmatpush1.msra.mxu0 0.0
    %1857 = vmatprep.subr.mxu0 0.0
    %1858 = vmatpush1.msra.mxu0 0.0
    %1859 = vmatprep.subr.mxu0 0.0
    %1860 = vmatpush1.msra.mxu0 %v1576
    %1861 = vmatprep.subr.mxu0 0.0
    %1862 = vmatpush1.msra.mxu0 %v1575
    %1863 = vmatprep.subr.mxu0 0.0
    %1864 = vmatpush1.msra.mxu0 %v1574
    %1865 = vmatprep.subr.mxu0 0.0
    %1866 = vmatpush1.msra.mxu0 %v1573
    %1867 = vmatprep.subr.mxu0 0.0
    %1868 = vmatpush2.msra.mxu0 0.0
    %1869 = vmatprep.subr.mxu0 0.0
    %1870 = vmatpush2.msra.mxu0 0.0
    %1871 = vmatprep.subr.mxu0 0.0
    %1872 = vmatpush2.msra.mxu0 0.0
    %1873 = vmatprep.subr.mxu0 0.0
    %1874 = vmatpush2.msra.mxu0 0.0
    %1875 = vmatprep.subr.mxu0 0.0
    %1876 = vmatpush2.msra.mxu0 0.0
    %1877 = vmatprep.subr.mxu0 0.0
    %1878 = vmatpush2.msra.mxu0 0.0
    %1879 = vmatprep.subr.mxu0 0.0
    %1880 = vmatpush2.msra.mxu0 0.0
    %1881 = vmatprep.subr.mxu0 0.0
    %1882 = vmatpush2.msra.mxu0 0.0
    %1883 = vmatprep.subr.mxu0 0.0
    %1884 = vmatpush2.msra.mxu0 0.0
    %1885 = vmatprep.subr.mxu0 0.0
    %1886 = vmatpush2.msra.mxu0 0.0
    %1887 = vmatprep.subr.mxu0 0.0
    %1888 = vmatpush2.msra.mxu0 0.0
    %1889 = vmatprep.subr.mxu0 0.0
    %1890 = vmatpush2.msra.mxu0 0.0
    %1891 = vmatprep.subr.mxu0 0.0
    %1892 = vmatpush2.msra.mxu0 0.0
    %1893 = vmatprep.subr.mxu0 0.0
    %1894 = vmatpush2.msra.mxu0 0.0
    %1895 = vmatprep.subr.mxu0 0.0
    %1896 = vmatpush2.msra.mxu0 0.0
    %1897 = vmatprep.subr.mxu0 0.0
    %1898 = vmatpush2.msra.mxu0 0.0
    %1899 = vmatprep.mubr.f32.mxu0 0.0
    %1900 = vmatmul.mubr.f32.gmra.mxu0 %v1830
    %v1901 = vpop.f32.mrf.mxu0
    %v1902 = vadd.f32 %v1827, %v1901
    %v1903 = vpop.f32.mrf.mxu0
    %1904 = vmatprep.mubr.f32.mxu0 0.0
    %1905 = vmatmul.mubr.f32.gmra.mxu0 %v1833
    %v1906 = vpop.f32.mrf.mxu0
    %v1907 = vadd.f32 %v1828, %v1906
    %v1908 = vpop.f32.mrf.mxu0
    %1909 = vdwg.mxu0
    %v1910 = vmax.f32 %v1803, %v1902
    %v1911 = vmax.f32 %v1804, %v1907
    %v1912 = vadd.f32 %v1587, -1.0
    %v1913 = vadd.f32 %v1588, -1.0
    %vm1914 = vcmp.ge.f32.partialorder %v1912, 0.0
    %vm1915 = vcmp.ge.f32.partialorder %v1913, 0.0
    %vm1916 = vcmp.le.f32.partialorder %v1912, 7.0
    %vm1917 = vcmp.le.f32.partialorder %v1913, 7.0
    %vm1918 = vmand %vm1914, %vm1916
    %vm1919 = vmand %vm1915, %vm1917
    %v1920 = vadd.f32 %v1585, %v1912
    %v1921 = vadd.f32 %v1586, %v1913
    %vm1922 = vcmp.eq.f32.partialorder %v794, %v1920
    %vm1923 = vcmp.eq.f32.partialorder %v794, %v1921
    %v1924 = vsel %vm1918, 1, 0
    %v1925 = vsel %vm1919, 1, 0
    %vm1926 = vcmp.eq.s32.totalorder %v1924, 1
    %vm1927 = vcmp.eq.s32.totalorder %v1925, 1
    %vm1928 = vmand %vm1922, %vm1926
    %vm1929 = vmand %vm1923, %vm1927
    %v1930 = vsel %vm1928, 1, 0
    %v1931 = vsel %vm1929, 1, 0
    %v1932 = vcvt.s32.f32 %v1930
    %v1933 = vcvt.s32.f32 %v1931
    %vm1934 = vcmask 130048
    %v1936 = vsel %vm1934, %v1932, 0
    %v1939 = vsel %vm1934, %v1933, 0
    %1941 = vmatprep.subr.mxu0 0.0
    %1942 = vmatpush1.msra.mxu0 0.0
    %1943 = vmatprep.subr.mxu0 0.0
    %1944 = vmatpush1.msra.mxu0 0.0
    %1945 = vmatprep.subr.mxu0 0.0
    %1946 = vmatpush1.msra.mxu0 0.0
    %1947 = vmatprep.subr.mxu0 0.0
    %1948 = vmatpush1.msra.mxu0 0.0
    %1949 = vmatprep.subr.mxu0 0.0
    %1950 = vmatpush1.msra.mxu0 0.0
    %1951 = vmatprep.subr.mxu0 0.0
    %1952 = vmatpush1.msra.mxu0 0.0
    %1953 = vmatprep.subr.mxu0 0.0
    %1954 = vmatpush1.msra.mxu0 0.0
    %1955 = vmatprep.subr.mxu0 0.0
    %1956 = vmatpush1.msra.mxu0 0.0
    %1957 = vmatprep.subr.mxu0 0.0
    %1958 = vmatpush1.msra.mxu0 0.0
    %1959 = vmatprep.subr.mxu0 0.0
    %1960 = vmatpush1.msra.mxu0 0.0
    %1961 = vmatprep.subr.mxu0 0.0
    %1962 = vmatpush1.msra.mxu0 0.0
    %1963 = vmatprep.subr.mxu0 0.0
    %1964 = vmatpush1.msra.mxu0 0.0
    %1965 = vmatprep.subr.mxu0 0.0
    %1966 = vmatpush1.msra.mxu0 0.0
    %1967 = vmatprep.subr.mxu0 0.0
    %1968 = vmatpush1.msra.mxu0 0.0
    %1969 = vmatprep.subr.mxu0 0.0
    %1970 = vmatpush1.msra.mxu0 %v1911
    %1971 = vmatprep.subr.mxu0 0.0
    %1972 = vmatpush1.msra.mxu0 %v1910
    %1973 = vmatprep.subr.mxu0 0.0
    %1974 = vmatpush2.msra.mxu0 0.0
    %1975 = vmatprep.subr.mxu0 0.0
    %1976 = vmatpush2.msra.mxu0 0.0
    %1977 = vmatprep.subr.mxu0 0.0
    %1978 = vmatpush2.msra.mxu0 0.0
    %1979 = vmatprep.subr.mxu0 0.0
    %1980 = vmatpush2.msra.mxu0 0.0
    %1981 = vmatprep.subr.mxu0 0.0
    %1982 = vmatpush2.msra.mxu0 0.0
    %1983 = vmatprep.subr.mxu0 0.0
    %1984 = vmatpush2.msra.mxu0 0.0
    %1985 = vmatprep.subr.mxu0 0.0
    %1986 = vmatpush2.msra.mxu0 0.0
    %1987 = vmatprep.subr.mxu0 0.0
    %1988 = vmatpush2.msra.mxu0 0.0
    %1989 = vmatprep.subr.mxu0 0.0
    %1990 = vmatpush2.msra.mxu0 0.0
    %1991 = vmatprep.subr.mxu0 0.0
    %1992 = vmatpush2.msra.mxu0 0.0
    %1993 = vmatprep.subr.mxu0 0.0
    %1994 = vmatpush2.msra.mxu0 0.0
    %1995 = vmatprep.subr.mxu0 0.0
    %1996 = vmatpush2.msra.mxu0 0.0
    %1997 = vmatprep.subr.mxu0 0.0
    %1998 = vmatpush2.msra.mxu0 0.0
    %1999 = vmatprep.subr.mxu0 0.0
    %2000 = vmatpush2.msra.mxu0 0.0
    %2001 = vmatprep.subr.mxu0 0.0
    %2002 = vmatpush2.msra.mxu0 0.0
    %2003 = vmatprep.subr.mxu0 0.0
    %2004 = vmatpush2.msra.mxu0 0.0
    %2005 = vmatprep.mubr.f32.mxu0 0.0
    %2006 = vmatmul.mubr.f32.gmra.mxu0 %v1936
    %v2007 = vpop.f32.mrf.mxu0
    %v2008 = vadd.f32 0.0, %v2007
    %v2009 = vpop.f32.mrf.mxu0
    %2010 = vmatprep.mubr.f32.mxu0 0.0
    %2011 = vmatmul.mubr.f32.gmra.mxu0 %v1939
    %v2012 = vpop.f32.mrf.mxu0
    %v2013 = vadd.f32 0.0, %v2012
    %v2014 = vpop.f32.mrf.mxu0
    %2015 = vdwg.mxu0
    %v2016 = vld [vmem:[#allocation11] sm:$0xff]
    %v2017 = vadd.f32 %v1587, 0.0
    %v2018 = vadd.f32 %v1588, 0.0
    %vm2019 = vcmp.ge.f32.partialorder %v2017, 0.0
    %vm2020 = vcmp.ge.f32.partialorder %v2018, 0.0
    %vm2021 = vcmp.le.f32.partialorder %v2017, 7.0
    %vm2022 = vcmp.le.f32.partialorder %v2018, 7.0
    %vm2023 = vmand %vm2019, %vm2021
    %vm2024 = vmand %vm2020, %vm2022
    %v2025 = vadd.f32 %v1585, %v2017
    %v2026 = vadd.f32 %v1586, %v2018
    %vm2027 = vcmp.eq.f32.partialorder %v794, %v2025
    %vm2028 = vcmp.eq.f32.partialorder %v794, %v2026
    %v2029 = vsel %vm2023, 1, 0
    %v2030 = vsel %vm2024, 1, 0
    %vm2031 = vcmp.eq.s32.totalorder %v2029, 1
    %vm2032 = vcmp.eq.s32.totalorder %v2030, 1
    %vm2033 = vmand %vm2027, %vm2031
    %vm2034 = vmand %vm2028, %vm2032
    %v2035 = vsel %vm2033, 1, 0
    %v2036 = vsel %vm2034, 1, 0
    %v2037 = vcvt.s32.f32 %v2035
    %v2038 = vcvt.s32.f32 %v2036
    %v2040 = vsel %vm1934, %v2037, 0
    %v2043 = vsel %vm1934, %v2038, 0
    %2045 = vmatprep.subr.mxu0 0.0
    %2046 = vmatpush1.msra.mxu0 0.0
    %2047 = vmatprep.subr.mxu0 0.0
    %2048 = vmatpush1.msra.mxu0 0.0
    %2049 = vmatprep.subr.mxu0 0.0
    %2050 = vmatpush1.msra.mxu0 0.0
    %2051 = vmatprep.subr.mxu0 0.0
    %2052 = vmatpush1.msra.mxu0 0.0
    %2053 = vmatprep.subr.mxu0 0.0
    %2054 = vmatpush1.msra.mxu0 0.0
    %2055 = vmatprep.subr.mxu0 0.0
    %2056 = vmatpush1.msra.mxu0 0.0
    %2057 = vmatprep.subr.mxu0 0.0
    %2058 = vmatpush1.msra.mxu0 0.0
    %2059 = vmatprep.subr.mxu0 0.0
    %2060 = vmatpush1.msra.mxu0 0.0
    %2061 = vmatprep.subr.mxu0 0.0
    %2062 = vmatpush1.msra.mxu0 0.0
    %2063 = vmatprep.subr.mxu0 0.0
    %2064 = vmatpush1.msra.mxu0 0.0
    %2065 = vmatprep.subr.mxu0 0.0
    %2066 = vmatpush1.msra.mxu0 0.0
    %2067 = vmatprep.subr.mxu0 0.0
    %2068 = vmatpush1.msra.mxu0 0.0
    %2069 = vmatprep.subr.mxu0 0.0
    %2070 = vmatpush1.msra.mxu0 0.0
    %2071 = vmatprep.subr.mxu0 0.0
    %2072 = vmatpush1.msra.mxu0 0.0
    %2073 = vmatprep.subr.mxu0 0.0
    %2074 = vmatpush1.msra.mxu0 %v1911
    %2075 = vmatprep.subr.mxu0 0.0
    %2076 = vmatpush1.msra.mxu0 %v1910
    %2077 = vmatprep.subr.mxu0 0.0
    %2078 = vmatpush2.msra.mxu0 0.0
    %2079 = vmatprep.subr.mxu0 0.0
    %2080 = vmatpush2.msra.mxu0 0.0
    %2081 = vmatprep.subr.mxu0 0.0
    %2082 = vmatpush2.msra.mxu0 0.0
    %2083 = vmatprep.subr.mxu0 0.0
    %2084 = vmatpush2.msra.mxu0 0.0
    %2085 = vmatprep.subr.mxu0 0.0
    %2086 = vmatpush2.msra.mxu0 0.0
    %2087 = vmatprep.subr.mxu0 0.0
    %2088 = vmatpush2.msra.mxu0 0.0
    %2089 = vmatprep.subr.mxu0 0.0
    %2090 = vmatpush2.msra.mxu0 0.0
    %2091 = vmatprep.subr.mxu0 0.0
    %2092 = vmatpush2.msra.mxu0 0.0
    %2093 = vmatprep.subr.mxu0 0.0
    %2094 = vmatpush2.msra.mxu0 0.0
    %2095 = vmatprep.subr.mxu0 0.0
    %2096 = vmatpush2.msra.mxu0 0.0
    %2097 = vmatprep.subr.mxu0 0.0
    %2098 = vmatpush2.msra.mxu0 0.0
    %2099 = vmatprep.subr.mxu0 0.0
    %2100 = vmatpush2.msra.mxu0 0.0
    %2101 = vmatprep.subr.mxu0 0.0
    %2102 = vmatpush2.msra.mxu0 0.0
    %2103 = vmatprep.subr.mxu0 0.0
    %2104 = vmatpush2.msra.mxu0 0.0
    %2105 = vmatprep.subr.mxu0 0.0
    %2106 = vmatpush2.msra.mxu0 0.0
    %2107 = vmatprep.subr.mxu0 0.0
    %2108 = vmatpush2.msra.mxu0 0.0
    %2109 = vmatprep.mubr.f32.mxu0 0.0
    %2110 = vmatmul.mubr.f32.gmra.mxu0 %v2040
    %v2111 = vpop.f32.mrf.mxu0
    %v2112 = vadd.f32 0.0, %v2111
    %v2113 = vpop.f32.mrf.mxu0
    %2114 = vmatprep.mubr.f32.mxu0 0.0
    %2115 = vmatmul.mubr.f32.gmra.mxu0 %v2043
    %v2116 = vpop.f32.mrf.mxu0
    %v2117 = vadd.f32 0.0, %v2116
    %v2118 = vpop.f32.mrf.mxu0
    %2119 = vdwg.mxu0
    %s2120 = scalar_lea.vmem [#allocation11], 8
    %v2121 = vld [vmem:[%s2120] sm:$0xff]
    %v2123 = vsel %vm1061, %v2112, 0
    %v2126 = vsel %vm1061, %v2117, 0
    %2128 = vmatprep.subr.mxu0 0.0
    %2129 = vmatpush1.msra.mxu0 0.0
    %2130 = vmatprep.subr.mxu0 0.0
    %2131 = vmatpush1.msra.mxu0 0.0
    %2132 = vmatprep.subr.mxu0 0.0
    %2133 = vmatpush1.msra.mxu0 0.0
    %2134 = vmatprep.subr.mxu0 0.0
    %2135 = vmatpush1.msra.mxu0 0.0
    %2136 = vmatprep.subr.mxu0 0.0
    %2137 = vmatpush1.msra.mxu0 0.0
    %2138 = vmatprep.subr.mxu0 0.0
    %2139 = vmatpush1.msra.mxu0 0.0
    %2140 = vmatprep.subr.mxu0 0.0
    %2141 = vmatpush1.msra.mxu0 0.0
    %2142 = vmatprep.subr.mxu0 0.0
    %2143 = vmatpush1.msra.mxu0 0.0
    %2144 = vmatprep.subr.mxu0 0.0
    %2145 = vmatpush1.msra.mxu0 0.0
    %2146 = vmatprep.subr.mxu0 0.0
    %2147 = vmatpush1.msra.mxu0 0.0
    %2148 = vmatprep.subr.mxu0 0.0
    %2149 = vmatpush1.msra.mxu0 0.0
    %2150 = vmatprep.subr.mxu0 0.0
    %2151 = vmatpush1.msra.mxu0 0.0
    %2152 = vmatprep.subr.mxu0 0.0
    %2153 = vmatpush1.msra.mxu0 0.0
    %2154 = vmatprep.subr.mxu0 0.0
    %2155 = vmatpush1.msra.mxu0 0.0
    %2156 = vmatprep.subr.mxu0 0.0
    %2157 = vmatpush1.msra.mxu0 0.0
    %2158 = vmatprep.subr.mxu0 0.0
    %2159 = vmatpush1.msra.mxu0 %v2121
    %2160 = vmatprep.subr.mxu0 0.0
    %2161 = vmatpush2.msra.mxu0 0.0
    %2162 = vmatprep.subr.mxu0 0.0
    %2163 = vmatpush2.msra.mxu0 0.0
    %2164 = vmatprep.subr.mxu0 0.0
    %2165 = vmatpush2.msra.mxu0 0.0
    %2166 = vmatprep.subr.mxu0 0.0
    %2167 = vmatpush2.msra.mxu0 0.0
    %2168 = vmatprep.subr.mxu0 0.0
    %2169 = vmatpush2.msra.mxu0 0.0
    %2170 = vmatprep.subr.mxu0 0.0
    %2171 = vmatpush2.msra.mxu0 0.0
    %2172 = vmatprep.subr.mxu0 0.0
    %2173 = vmatpush2.msra.mxu0 0.0
    %2174 = vmatprep.subr.mxu0 0.0
    %2175 = vmatpush2.msra.mxu0 0.0
    %2176 = vmatprep.subr.mxu0 0.0
    %2177 = vmatpush2.msra.mxu0 0.0
    %2178 = vmatprep.subr.mxu0 0.0
    %2179 = vmatpush2.msra.mxu0 0.0
    %2180 = vmatprep.subr.mxu0 0.0
    %2181 = vmatpush2.msra.mxu0 0.0
    %2182 = vmatprep.subr.mxu0 0.0
    %2183 = vmatpush2.msra.mxu0 0.0
    %2184 = vmatprep.subr.mxu0 0.0
    %2185 = vmatpush2.msra.mxu0 0.0
    %2186 = vmatprep.subr.mxu0 0.0
    %2187 = vmatpush2.msra.mxu0 0.0
    %2188 = vmatprep.subr.mxu0 0.0
    %2189 = vmatpush2.msra.mxu0 0.0
    %2190 = vmatprep.subr.mxu0 0.0
    %2191 = vmatpush2.msra.mxu0 0.0
    %2192 = vmatprep.mubr.f32.mxu0 0.0
    %2193 = vmatmul.mubr.f32.gmra.mxu0 %v2123
    %v2194 = vpop.f32.mrf.mxu0
    %v2195 = vadd.f32 0.0, %v2194
    %v2196 = vpop.f32.mrf.mxu0
    %2197 = vmatprep.mubr.f32.mxu0 0.0
    %2198 = vmatmul.mubr.f32.gmra.mxu0 %v2126
    %v2199 = vpop.f32.mrf.mxu0
    %v2200 = vadd.f32 0.0, %v2199
    %v2201 = vpop.f32.mrf.mxu0
    %2202 = vdwg.mxu0
    %v2204 = vsel %vm1061, %v2008, 0
    %v2207 = vsel %vm1061, %v2013, 0
    %2209 = vmatprep.subr.mxu0 0.0
    %2210 = vmatpush1.msra.mxu0 0.0
    %2211 = vmatprep.subr.mxu0 0.0
    %2212 = vmatpush1.msra.mxu0 0.0
    %2213 = vmatprep.subr.mxu0 0.0
    %2214 = vmatpush1.msra.mxu0 0.0
    %2215 = vmatprep.subr.mxu0 0.0
    %2216 = vmatpush1.msra.mxu0 0.0
    %2217 = vmatprep.subr.mxu0 0.0
    %2218 = vmatpush1.msra.mxu0 0.0
    %2219 = vmatprep.subr.mxu0 0.0
    %2220 = vmatpush1.msra.mxu0 0.0
    %2221 = vmatprep.subr.mxu0 0.0
    %2222 = vmatpush1.msra.mxu0 0.0
    %2223 = vmatprep.subr.mxu0 0.0
    %2224 = vmatpush1.msra.mxu0 0.0
    %2225 = vmatprep.subr.mxu0 0.0
    %2226 = vmatpush1.msra.mxu0 0.0
    %2227 = vmatprep.subr.mxu0 0.0
    %2228 = vmatpush1.msra.mxu0 0.0
    %2229 = vmatprep.subr.mxu0 0.0
    %2230 = vmatpush1.msra.mxu0 0.0
    %2231 = vmatprep.subr.mxu0 0.0
    %2232 = vmatpush1.msra.mxu0 0.0
    %2233 = vmatprep.subr.mxu0 0.0
    %2234 = vmatpush1.msra.mxu0 0.0
    %2235 = vmatprep.subr.mxu0 0.0
    %2236 = vmatpush1.msra.mxu0 0.0
    %2237 = vmatprep.subr.mxu0 0.0
    %2238 = vmatpush1.msra.mxu0 0.0
    %2239 = vmatprep.subr.mxu0 0.0
    %2240 = vmatpush1.msra.mxu0 %v2016
    %2241 = vmatprep.subr.mxu0 0.0
    %2242 = vmatpush2.msra.mxu0 0.0
    %2243 = vmatprep.subr.mxu0 0.0
    %2244 = vmatpush2.msra.mxu0 0.0
    %2245 = vmatprep.subr.mxu0 0.0
    %2246 = vmatpush2.msra.mxu0 0.0
    %2247 = vmatprep.subr.mxu0 0.0
    %2248 = vmatpush2.msra.mxu0 0.0
    %2249 = vmatprep.subr.mxu0 0.0
    %2250 = vmatpush2.msra.mxu0 0.0
    %2251 = vmatprep.subr.mxu0 0.0
    %2252 = vmatpush2.msra.mxu0 0.0
    %2253 = vmatprep.subr.mxu0 0.0
    %2254 = vmatpush2.msra.mxu0 0.0
    %2255 = vmatprep.subr.mxu0 0.0
    %2256 = vmatpush2.msra.mxu0 0.0
    %2257 = vmatprep.subr.mxu0 0.0
    %2258 = vmatpush2.msra.mxu0 0.0
    %2259 = vmatprep.subr.mxu0 0.0
    %2260 = vmatpush2.msra.mxu0 0.0
    %2261 = vmatprep.subr.mxu0 0.0
    %2262 = vmatpush2.msra.mxu0 0.0
    %2263 = vmatprep.subr.mxu0 0.0
    %2264 = vmatpush2.msra.mxu0 0.0
    %2265 = vmatprep.subr.mxu0 0.0
    %2266 = vmatpush2.msra.mxu0 0.0
    %2267 = vmatprep.subr.mxu0 0.0
    %2268 = vmatpush2.msra.mxu0 0.0
    %2269 = vmatprep.subr.mxu0 0.0
    %2270 = vmatpush2.msra.mxu0 0.0
    %2271 = vmatprep.subr.mxu0 0.0
    %2272 = vmatpush2.msra.mxu0 0.0
    %2273 = vmatprep.mubr.f32.mxu0 0.0
    %2274 = vmatmul.mubr.f32.gmra.mxu0 %v2204
    %v2275 = vpop.f32.mrf.mxu0
    %v2276 = vadd.f32 %v2195, %v2275
    %v2277 = vpop.f32.mrf.mxu0
    %2278 = vmatprep.mubr.f32.mxu0 0.0
    %2279 = vmatmul.mubr.f32.gmra.mxu0 %v2207
    %v2280 = vpop.f32.mrf.mxu0
    %v2281 = vadd.f32 %v2200, %v2280
    %v2282 = vpop.f32.mrf.mxu0
    %2283 = vdwg.mxu0
    %v2284 = vadd.f32 %v1587, 1.0
    %v2285 = vadd.f32 %v1588, 1.0
    %vm2286 = vcmp.ge.f32.partialorder %v2284, 0.0
    %vm2287 = vcmp.ge.f32.partialorder %v2285, 0.0
    %vm2288 = vcmp.le.f32.partialorder %v2284, 7.0
    %vm2289 = vcmp.le.f32.partialorder %v2285, 7.0
    %vm2290 = vmand %vm2286, %vm2288
    %vm2291 = vmand %vm2287, %vm2289
    %v2292 = vadd.f32 %v1585, %v2284
    %v2293 = vadd.f32 %v1586, %v2285
    %vm2294 = vcmp.eq.f32.partialorder %v794, %v2292
    %vm2295 = vcmp.eq.f32.partialorder %v794, %v2293
    %v2296 = vsel %vm2290, 1, 0
    %v2297 = vsel %vm2291, 1, 0
    %vm2298 = vcmp.eq.s32.totalorder %v2296, 1
    %vm2299 = vcmp.eq.s32.totalorder %v2297, 1
    %vm2300 = vmand %vm2294, %vm2298
    %vm2301 = vmand %vm2295, %vm2299
    %v2302 = vsel %vm2300, 1, 0
    %v2303 = vsel %vm2301, 1, 0
    %v2304 = vcvt.s32.f32 %v2302
    %v2305 = vcvt.s32.f32 %v2303
    %v2307 = vsel %vm1934, %v2304, 0
    %v2310 = vsel %vm1934, %v2305, 0
    %2312 = vmatprep.subr.mxu0 0.0
    %2313 = vmatpush1.msra.mxu0 0.0
    %2314 = vmatprep.subr.mxu0 0.0
    %2315 = vmatpush1.msra.mxu0 0.0
    %2316 = vmatprep.subr.mxu0 0.0
    %2317 = vmatpush1.msra.mxu0 0.0
    %2318 = vmatprep.subr.mxu0 0.0
    %2319 = vmatpush1.msra.mxu0 0.0
    %2320 = vmatprep.subr.mxu0 0.0
    %2321 = vmatpush1.msra.mxu0 0.0
    %2322 = vmatprep.subr.mxu0 0.0
    %2323 = vmatpush1.msra.mxu0 0.0
    %2324 = vmatprep.subr.mxu0 0.0
    %2325 = vmatpush1.msra.mxu0 0.0
    %2326 = vmatprep.subr.mxu0 0.0
    %2327 = vmatpush1.msra.mxu0 0.0
    %2328 = vmatprep.subr.mxu0 0.0
    %2329 = vmatpush1.msra.mxu0 0.0
    %2330 = vmatprep.subr.mxu0 0.0
    %2331 = vmatpush1.msra.mxu0 0.0
    %2332 = vmatprep.subr.mxu0 0.0
    %2333 = vmatpush1.msra.mxu0 0.0
    %2334 = vmatprep.subr.mxu0 0.0
    %2335 = vmatpush1.msra.mxu0 0.0
    %2336 = vmatprep.subr.mxu0 0.0
    %2337 = vmatpush1.msra.mxu0 0.0
    %2338 = vmatprep.subr.mxu0 0.0
    %2339 = vmatpush1.msra.mxu0 0.0
    %2340 = vmatprep.subr.mxu0 0.0
    %2341 = vmatpush1.msra.mxu0 %v1911
    %2342 = vmatprep.subr.mxu0 0.0
    %2343 = vmatpush1.msra.mxu0 %v1910
    %2344 = vmatprep.subr.mxu0 0.0
    %2345 = vmatpush2.msra.mxu0 0.0
    %2346 = vmatprep.subr.mxu0 0.0
    %2347 = vmatpush2.msra.mxu0 0.0
    %2348 = vmatprep.subr.mxu0 0.0
    %2349 = vmatpush2.msra.mxu0 0.0
    %2350 = vmatprep.subr.mxu0 0.0
    %2351 = vmatpush2.msra.mxu0 0.0
    %2352 = vmatprep.subr.mxu0 0.0
    %2353 = vmatpush2.msra.mxu0 0.0
    %2354 = vmatprep.subr.mxu0 0.0
    %2355 = vmatpush2.msra.mxu0 0.0
    %2356 = vmatprep.subr.mxu0 0.0
    %2357 = vmatpush2.msra.mxu0 0.0
    %2358 = vmatprep.subr.mxu0 0.0
    %2359 = vmatpush2.msra.mxu0 0.0
    %2360 = vmatprep.subr.mxu0 0.0
    %2361 = vmatpush2.msra.mxu0 0.0
    %2362 = vmatprep.subr.mxu0 0.0
    %2363 = vmatpush2.msra.mxu0 0.0
    %2364 = vmatprep.subr.mxu0 0.0
    %2365 = vmatpush2.msra.mxu0 0.0
    %2366 = vmatprep.subr.mxu0 0.0
    %2367 = vmatpush2.msra.mxu0 0.0
    %2368 = vmatprep.subr.mxu0 0.0
    %2369 = vmatpush2.msra.mxu0 0.0
    %2370 = vmatprep.subr.mxu0 0.0
    %2371 = vmatpush2.msra.mxu0 0.0
    %2372 = vmatprep.subr.mxu0 0.0
    %2373 = vmatpush2.msra.mxu0 0.0
    %2374 = vmatprep.subr.mxu0 0.0
    %2375 = vmatpush2.msra.mxu0 0.0
    %2376 = vmatprep.mubr.f32.mxu0 0.0
    %2377 = vmatmul.mubr.f32.gmra.mxu0 %v2307
    %v2378 = vpop.f32.mrf.mxu0
    %v2379 = vadd.f32 0.0, %v2378
    %v2380 = vpop.f32.mrf.mxu0
    %2381 = vmatprep.mubr.f32.mxu0 0.0
    %2382 = vmatmul.mubr.f32.gmra.mxu0 %v2310
    %v2383 = vpop.f32.mrf.mxu0
    %v2384 = vadd.f32 0.0, %v2383
    %v2385 = vpop.f32.mrf.mxu0
    %2386 = vdwg.mxu0
    %s2387 = scalar_lea.vmem [#allocation11], 16
    %v2388 = vld [vmem:[%s2387] sm:$0xff]
    %v2390 = vsel %vm1061, %v2379, 0
    %v2393 = vsel %vm1061, %v2384, 0
    %2395 = vmatprep.subr.mxu0 0.0
    %2396 = vmatpush1.msra.mxu0 0.0
    %2397 = vmatprep.subr.mxu0 0.0
    %2398 = vmatpush1.msra.mxu0 0.0
    %2399 = vmatprep.subr.mxu0 0.0
    %2400 = vmatpush1.msra.mxu0 0.0
    %2401 = vmatprep.subr.mxu0 0.0
    %2402 = vmatpush1.msra.mxu0 0.0
    %2403 = vmatprep.subr.mxu0 0.0
    %2404 = vmatpush1.msra.mxu0 0.0
    %2405 = vmatprep.subr.mxu0 0.0
    %2406 = vmatpush1.msra.mxu0 0.0
    %2407 = vmatprep.subr.mxu0 0.0
    %2408 = vmatpush1.msra.mxu0 0.0
    %2409 = vmatprep.subr.mxu0 0.0
    %2410 = vmatpush1.msra.mxu0 0.0
    %2411 = vmatprep.subr.mxu0 0.0
    %2412 = vmatpush1.msra.mxu0 0.0
    %2413 = vmatprep.subr.mxu0 0.0
    %2414 = vmatpush1.msra.mxu0 0.0
    %2415 = vmatprep.subr.mxu0 0.0
    %2416 = vmatpush1.msra.mxu0 0.0
    %2417 = vmatprep.subr.mxu0 0.0
    %2418 = vmatpush1.msra.mxu0 0.0
    %2419 = vmatprep.subr.mxu0 0.0
    %2420 = vmatpush1.msra.mxu0 0.0
    %2421 = vmatprep.subr.mxu0 0.0
    %2422 = vmatpush1.msra.mxu0 0.0
    %2423 = vmatprep.subr.mxu0 0.0
    %2424 = vmatpush1.msra.mxu0 0.0
    %2425 = vmatprep.subr.mxu0 0.0
    %2426 = vmatpush1.msra.mxu0 %v2388
    %2427 = vmatprep.subr.mxu0 0.0
    %2428 = vmatpush2.msra.mxu0 0.0
    %2429 = vmatprep.subr.mxu0 0.0
    %2430 = vmatpush2.msra.mxu0 0.0
    %2431 = vmatprep.subr.mxu0 0.0
    %2432 = vmatpush2.msra.mxu0 0.0
    %2433 = vmatprep.subr.mxu0 0.0
    %2434 = vmatpush2.msra.mxu0 0.0
    %2435 = vmatprep.subr.mxu0 0.0
    %2436 = vmatpush2.msra.mxu0 0.0
    %2437 = vmatprep.subr.mxu0 0.0
    %2438 = vmatpush2.msra.mxu0 0.0
    %2439 = vmatprep.subr.mxu0 0.0
    %2440 = vmatpush2.msra.mxu0 0.0
    %2441 = vmatprep.subr.mxu0 0.0
    %2442 = vmatpush2.msra.mxu0 0.0
    %2443 = vmatprep.subr.mxu0 0.0
    %2444 = vmatpush2.msra.mxu0 0.0
    %2445 = vmatprep.subr.mxu0 0.0
    %2446 = vmatpush2.msra.mxu0 0.0
    %2447 = vmatprep.subr.mxu0 0.0
    %2448 = vmatpush2.msra.mxu0 0.0
    %2449 = vmatprep.subr.mxu0 0.0
    %2450 = vmatpush2.msra.mxu0 0.0
    %2451 = vmatprep.subr.mxu0 0.0
    %2452 = vmatpush2.msra.mxu0 0.0
    %2453 = vmatprep.subr.mxu0 0.0
    %2454 = vmatpush2.msra.mxu0 0.0
    %2455 = vmatprep.subr.mxu0 0.0
    %2456 = vmatpush2.msra.mxu0 0.0
    %2457 = vmatprep.subr.mxu0 0.0
    %2458 = vmatpush2.msra.mxu0 0.0
    %2459 = vmatprep.mubr.f32.mxu0 0.0
    %2460 = vmatmul.mubr.f32.gmra.mxu0 %v2390
    %v2461 = vpop.f32.mrf.mxu0
    %v2462 = vadd.f32 0.0, %v2461
    %v2463 = vpop.f32.mrf.mxu0
    %2464 = vmatprep.mubr.f32.mxu0 0.0
    %2465 = vmatmul.mubr.f32.gmra.mxu0 %v2393
    %v2466 = vpop.f32.mrf.mxu0
    %v2467 = vadd.f32 0.0, %v2466
    %v2468 = vpop.f32.mrf.mxu0
    %2469 = vdwg.mxu0
    %v2470 = vadd.f32 %v2276, %v2462
    %v2471 = vadd.f32 %v2281, %v2467
    %v2472 = vld [vmem:[#allocation13] sm:$0x1]
    %v2474 = vlaneseq
    %v2475 = vshrl.u32 %v2474, 7
    %v2476 = vsub.s32 0, %v2475
    %v2477 = vrot.slane %v2472, %v2476
    %v2479 = vadd.f32 %v2470, %v2477
    %v2480 = vadd.f32 %v2471, %v2477
    %v2481 = vsel %vm1061, %v2479, 0.0
    %v2482 = vsel %vm1061, %v2480, 0.0
    %v2483 = vadd.f32 %v2481, %v2482
    %v2484 = vrot.slane %v2483, 4
    %v2485 = vadd.f32 %v2483, %v2484
    %v2486 = vrot.slane %v2485, 2
    %v2487 = vadd.f32 %v2485, %v2486
    %v2488 = vrot.slane %v2487, 1
    %v2489 = vadd.f32 %v2487, %v2488
    %v2490 = vrcp.pop 16.0
    %v2491 = vmul.f32 %v2489, %v2490
    %v2492 = vsub.f32 %v2479, %v2491
    %v2493 = vsub.f32 %v2480, %v2491
    %v2494 = vmul.f32 %v2492, %v2492
    %v2495 = vmul.f32 %v2493, %v2493
    %v2496 = vsel %vm1061, %v2494, 0.0
    %v2497 = vsel %vm1061, %v2495, 0.0
    %v2498 = vadd.f32 %v2496, %v2497
    %v2499 = vrot.slane %v2498, 4
    %v2500 = vadd.f32 %v2498, %v2499
    %v2501 = vrot.slane %v2500, 2
    %v2502 = vadd.f32 %v2500, %v2501
    %v2503 = vrot.slane %v2502, 1
    %v2504 = vadd.f32 %v2502, %v2503
    %v2505 = vmul.f32 %v2504, %v2490
    %v2506 = vld [vmem:[#allocation14] sm:$0x1]
    %v2507 = vadd.f32 %v2505, 1e-05
    %v2508 = vrsqrt.pop %v2507
    %v2509 = vmul.f32 %v2506, %v2508
    %v2511 = vlaneseq
    %v2512 = vshrl.u32 %v2511, 7
    %v2513 = vsub.s32 0, %v2512
    %v2514 = vrot.slane %v2509, %v2513
    %v2516 = vmul.f32 %v2492, %v2514
    %v2517 = vmul.f32 %v2493, %v2514
    %v2518 = vld [vmem:[#allocation16] sm:$0x1]
    %v2520 = vlaneseq
    %v2521 = vshrl.u32 %v2520, 7
    %v2522 = vsub.s32 0, %v2521
    %v2523 = vrot.slane %v2518, %v2522
    %v2525 = vadd.f32 %v2516, %v2523
    %v2526 = vadd.f32 %v2517, %v2523
    %v2527 = vmax.f32 %v2525, 0.0
    %v2528 = vmax.f32 %v2526, 0.0
    %2529 = vmatprep.subr.mxu0 0.0
    %2530 = vmatpush1.msra.mxu0 0.0
    %2531 = vmatprep.subr.mxu0 0.0
    %2532 = vmatpush1.msra.mxu0 0.0
    %2533 = vmatprep.subr.mxu0 0.0
    %2534 = vmatpush1.msra.mxu0 0.0
    %2535 = vmatprep.subr.mxu0 0.0
    %2536 = vmatpush1.msra.mxu0 0.0
    %2537 = vmatprep.subr.mxu0 0.0
    %2538 = vmatpush1.msra.mxu0 0.0
    %2539 = vmatprep.subr.mxu0 0.0
    %2540 = vmatpush1.msra.mxu0 0.0
    %2541 = vmatprep.subr.mxu0 0.0
    %2542 = vmatpush1.msra.mxu0 0.0
    %2543 = vmatprep.subr.mxu0 0.0
    %2544 = vmatpush1.msra.mxu0 0.0
    %2545 = vmatprep.subr.mxu0 0.0
    %2546 = vmatpush1.msra.mxu0 0.0
    %2547 = vmatprep.subr.mxu0 0.0
    %2548 = vmatpush1.msra.mxu0 0.0
    %2549 = vmatprep.subr.mxu0 0.0
    %2550 = vmatpush1.msra.mxu0 0.0
    %2551 = vmatprep.subr.mxu0 0.0
    %2552 = vmatpush1.msra.mxu0 0.0
    %2553 = vmatprep.subr.mxu0 0.0
    %2554 = vmatpush1.msra.mxu0 0.0
    %2555 = vmatprep.subr.mxu0 0.0
    %2556 = vmatpush1.msra.mxu0 0.0
    %2557 = vmatprep.subr.mxu0 0.0
    %2558 = vmatpush1.msra.mxu0 %v2528
    %2559 = vmatprep.subr.mxu0 0.0
    %2560 = vmatpush1.msra.mxu0 %v2527
    %2561 = vmatprep.subr.mxu0 0.0
    %2562 = vmatpush2.msra.mxu0 0.0
    %2563 = vmatprep.subr.mxu0 0.0
    %2564 = vmatpush2.msra.mxu0 0.0
    %2565 = vmatprep.subr.mxu0 0.0
    %2566 = vmatpush2.msra.mxu0 0.0
    %2567 = vmatprep.subr.mxu0 0.0
    %2568 = vmatpush2.msra.mxu0 0.0
    %2569 = vmatprep.subr.mxu0 0.0
    %2570 = vmatpush2.msra.mxu0 0.0
    %2571 = vmatprep.subr.mxu0 0.0
    %2572 = vmatpush2.msra.mxu0 0.0
    %2573 = vmatprep.subr.mxu0 0.0
    %2574 = vmatpush2.msra.mxu0 0.0
    %2575 = vmatprep.subr.mxu0 0.0
    %2576 = vmatpush2.msra.mxu0 0.0
    %2577 = vmatprep.subr.mxu0 0.0
    %2578 = vmatpush2.msra.mxu0 0.0
    %2579 = vmatprep.subr.mxu0 0.0
    %2580 = vmatpush2.msra.mxu0 0.0
    %2581 = vmatprep.subr.mxu0 0.0
    %2582 = vmatpush2.msra.mxu0 0.0
    %2583 = vmatprep.subr.mxu0 0.0
    %2584 = vmatpush2.msra.mxu0 0.0
    %2585 = vmatprep.subr.mxu0 0.0
    %2586 = vmatpush2.msra.mxu0 0.0
    %2587 = vmatprep.subr.mxu0 0.0
    %2588 = vmatpush2.msra.mxu0 0.0
    %2589 = vmatprep.subr.mxu0 0.0
    %2590 = vmatpush2.msra.mxu0 0.0
    %2591 = vmatprep.subr.mxu0 0.0
    %2592 = vmatpush2.msra.mxu0 0.0
    %2593 = vmatprep.mubr.f32.mxu0 0.0
    %2594 = vmatmul.mubr.f32.gmra.mxu0 %v1936
    %v2595 = vpop.f32.mrf.mxu0
    %v2596 = vadd.f32 0.0, %v2595
    %v2597 = vpop.f32.mrf.mxu0
    %2598 = vmatprep.mubr.f32.mxu0 0.0
    %2599 = vmatmul.mubr.f32.gmra.mxu0 %v1939
    %v2600 = vpop.f32.mrf.mxu0
    %v2601 = vadd.f32 0.0, %v2600
    %v2602 = vpop.f32.mrf.mxu0
    %2603 = vdwg.mxu0
    %v2604 = vld [vmem:[#allocation17] sm:$0xff]
    %2605 = vmatprep.subr.mxu0 0.0
    %2606 = vmatpush1.msra.mxu0 0.0
    %2607 = vmatprep.subr.mxu0 0.0
    %2608 = vmatpush1.msra.mxu0 0.0
    %2609 = vmatprep.subr.mxu0 0.0
    %2610 = vmatpush1.msra.mxu0 0.0
    %2611 = vmatprep.subr.mxu0 0.0
    %2612 = vmatpush1.msra.mxu0 0.0
    %2613 = vmatprep.subr.mxu0 0.0
    %2614 = vmatpush1.msra.mxu0 0.0
    %2615 = vmatprep.subr.mxu0 0.0
    %2616 = vmatpush1.msra.mxu0 0.0
    %2617 = vmatprep.subr.mxu0 0.0
    %2618 = vmatpush1.msra.mxu0 0.0
    %2619 = vmatprep.subr.mxu0 0.0
    %2620 = vmatpush1.msra.mxu0 0.0
    %2621 = vmatprep.subr.mxu0 0.0
    %2622 = vmatpush1.msra.mxu0 0.0
    %2623 = vmatprep.subr.mxu0 0.0
    %2624 = vmatpush1.msra.mxu0 0.0
    %2625 = vmatprep.subr.mxu0 0.0
    %2626 = vmatpush1.msra.mxu0 0.0
    %2627 = vmatprep.subr.mxu0 0.0
    %2628 = vmatpush1.msra.mxu0 0.0
    %2629 = vmatprep.subr.mxu0 0.0
    %2630 = vmatpush1.msra.mxu0 0.0
    %2631 = vmatprep.subr.mxu0 0.0
    %2632 = vmatpush1.msra.mxu0 0.0
    %2633 = vmatprep.subr.mxu0 0.0
    %2634 = vmatpush1.msra.mxu0 %v2528
    %2635 = vmatprep.subr.mxu0 0.0
    %2636 = vmatpush1.msra.mxu0 %v2527
    %2637 = vmatprep.subr.mxu0 0.0
    %2638 = vmatpush2.msra.mxu0 0.0
    %2639 = vmatprep.subr.mxu0 0.0
    %2640 = vmatpush2.msra.mxu0 0.0
    %2641 = vmatprep.subr.mxu0 0.0
    %2642 = vmatpush2.msra.mxu0 0.0
    %2643 = vmatprep.subr.mxu0 0.0
    %2644 = vmatpush2.msra.mxu0 0.0
    %2645 = vmatprep.subr.mxu0 0.0
    %2646 = vmatpush2.msra.mxu0 0.0
    %2647 = vmatprep.subr.mxu0 0.0
    %2648 = vmatpush2.msra.mxu0 0.0
    %2649 = vmatprep.subr.mxu0 0.0
    %2650 = vmatpush2.msra.mxu0 0.0
    %2651 = vmatprep.subr.mxu0 0.0
    %2652 = vmatpush2.msra.mxu0 0.0
    %2653 = vmatprep.subr.mxu0 0.0
    %2654 = vmatpush2.msra.mxu0 0.0
    %2655 = vmatprep.subr.mxu0 0.0
    %2656 = vmatpush2.msra.mxu0 0.0
    %2657 = vmatprep.subr.mxu0 0.0
    %2658 = vmatpush2.msra.mxu0 0.0
    %2659 = vmatprep.subr.mxu0 0.0
    %2660 = vmatpush2.msra.mxu0 0.0
    %2661 = vmatprep.subr.mxu0 0.0
    %2662 = vmatpush2.msra.mxu0 0.0
    %2663 = vmatprep.subr.mxu0 0.0
    %2664 = vmatpush2.msra.mxu0 0.0
    %2665 = vmatprep.subr.mxu0 0.0
    %2666 = vmatpush2.msra.mxu0 0.0
    %2667 = vmatprep.subr.mxu0 0.0
    %2668 = vmatpush2.msra.mxu0 0.0
    %2669 = vmatprep.mubr.f32.mxu0 0.0
    %2670 = vmatmul.mubr.f32.gmra.mxu0 %v2040
    %v2671 = vpop.f32.mrf.mxu0
    %v2672 = vadd.f32 0.0, %v2671
    %v2673 = vpop.f32.mrf.mxu0
    %2674 = vmatprep.mubr.f32.mxu0 0.0
    %2675 = vmatmul.mubr.f32.gmra.mxu0 %v2043
    %v2676 = vpop.f32.mrf.mxu0
    %v2677 = vadd.f32 0.0, %v2676
    %v2678 = vpop.f32.mrf.mxu0
    %2679 = vdwg.mxu0
    %s2680 = scalar_lea.vmem [#allocation17], 8
    %v2681 = vld [vmem:[%s2680] sm:$0xff]
    %v2683 = vsel %vm1061, %v2672, 0
    %v2686 = vsel %vm1061, %v2677, 0
    %2688 = vmatprep.subr.mxu0 0.0
    %2689 = vmatpush1.msra.mxu0 0.0
    %2690 = vmatprep.subr.mxu0 0.0
    %2691 = vmatpush1.msra.mxu0 0.0
    %2692 = vmatprep.subr.mxu0 0.0
    %2693 = vmatpush1.msra.mxu0 0.0
    %2694 = vmatprep.subr.mxu0 0.0
    %2695 = vmatpush1.msra.mxu0 0.0
    %2696 = vmatprep.subr.mxu0 0.0
    %2697 = vmatpush1.msra.mxu0 0.0
    %2698 = vmatprep.subr.mxu0 0.0
    %2699 = vmatpush1.msra.mxu0 0.0
    %2700 = vmatprep.subr.mxu0 0.0
    %2701 = vmatpush1.msra.mxu0 0.0
    %2702 = vmatprep.subr.mxu0 0.0
    %2703 = vmatpush1.msra.mxu0 0.0
    %2704 = vmatprep.subr.mxu0 0.0
    %2705 = vmatpush1.msra.mxu0 0.0
    %2706 = vmatprep.subr.mxu0 0.0
    %2707 = vmatpush1.msra.mxu0 0.0
    %2708 = vmatprep.subr.mxu0 0.0
    %2709 = vmatpush1.msra.mxu0 0.0
    %2710 = vmatprep.subr.mxu0 0.0
    %2711 = vmatpush1.msra.mxu0 0.0
    %2712 = vmatprep.subr.mxu0 0.0
    %2713 = vmatpush1.msra.mxu0 0.0
    %2714 = vmatprep.subr.mxu0 0.0
    %2715 = vmatpush1.msra.mxu0 0.0
    %2716 = vmatprep.subr.mxu0 0.0
    %2717 = vmatpush1.msra.mxu0 0.0
    %2718 = vmatprep.subr.mxu0 0.0
    %2719 = vmatpush1.msra.mxu0 %v2681
    %2720 = vmatprep.subr.mxu0 0.0
    %2721 = vmatpush2.msra.mxu0 0.0
    %2722 = vmatprep.subr.mxu0 0.0
    %2723 = vmatpush2.msra.mxu0 0.0
    %2724 = vmatprep.subr.mxu0 0.0
    %2725 = vmatpush2.msra.mxu0 0.0
    %2726 = vmatprep.subr.mxu0 0.0
    %2727 = vmatpush2.msra.mxu0 0.0
    %2728 = vmatprep.subr.mxu0 0.0
    %2729 = vmatpush2.msra.mxu0 0.0
    %2730 = vmatprep.subr.mxu0 0.0
    %2731 = vmatpush2.msra.mxu0 0.0
    %2732 = vmatprep.subr.mxu0 0.0
    %2733 = vmatpush2.msra.mxu0 0.0
    %2734 = vmatprep.subr.mxu0 0.0
    %2735 = vmatpush2.msra.mxu0 0.0
    %2736 = vmatprep.subr.mxu0 0.0
    %2737 = vmatpush2.msra.mxu0 0.0
    %2738 = vmatprep.subr.mxu0 0.0
    %2739 = vmatpush2.msra.mxu0 0.0
    %2740 = vmatprep.subr.mxu0 0.0
    %2741 = vmatpush2.msra.mxu0 0.0
    %2742 = vmatprep.subr.mxu0 0.0
    %2743 = vmatpush2.msra.mxu0 0.0
    %2744 = vmatprep.subr.mxu0 0.0
    %2745 = vmatpush2.msra.mxu0 0.0
    %2746 = vmatprep.subr.mxu0 0.0
    %2747 = vmatpush2.msra.mxu0 0.0
    %2748 = vmatprep.subr.mxu0 0.0
    %2749 = vmatpush2.msra.mxu0 0.0
    %2750 = vmatprep.subr.mxu0 0.0
    %2751 = vmatpush2.msra.mxu0 0.0
    %2752 = vmatprep.mubr.f32.mxu0 0.0
    %2753 = vmatmul.mubr.f32.gmra.mxu0 %v2683
    %v2754 = vpop.f32.mrf.mxu0
    %v2755 = vadd.f32 0.0, %v2754
    %v2756 = vpop.f32.mrf.mxu0
    %2757 = vmatprep.mubr.f32.mxu0 0.0
    %2758 = vmatmul.mubr.f32.gmra.mxu0 %v2686
    %v2759 = vpop.f32.mrf.mxu0
    %v2760 = vadd.f32 0.0, %v2759
    %v2761 = vpop.f32.mrf.mxu0
    %2762 = vdwg.mxu0
    %v2764 = vsel %vm1061, %v2596, 0
    %v2767 = vsel %vm1061, %v2601, 0
    %2769 = vmatprep.subr.mxu0 0.0
    %2770 = vmatpush1.msra.mxu0 0.0
    %2771 = vmatprep.subr.mxu0 0.0
    %2772 = vmatpush1.msra.mxu0 0.0
    %2773 = vmatprep.subr.mxu0 0.0
    %2774 = vmatpush1.msra.mxu0 0.0
    %2775 = vmatprep.subr.mxu0 0.0
    %2776 = vmatpush1.msra.mxu0 0.0
    %2777 = vmatprep.subr.mxu0 0.0
    %2778 = vmatpush1.msra.mxu0 0.0
    %2779 = vmatprep.subr.mxu0 0.0
    %2780 = vmatpush1.msra.mxu0 0.0
    %2781 = vmatprep.subr.mxu0 0.0
    %2782 = vmatpush1.msra.mxu0 0.0
    %2783 = vmatprep.subr.mxu0 0.0
    %2784 = vmatpush1.msra.mxu0 0.0
    %2785 = vmatprep.subr.mxu0 0.0
    %2786 = vmatpush1.msra.mxu0 0.0
    %2787 = vmatprep.subr.mxu0 0.0
    %2788 = vmatpush1.msra.mxu0 0.0
    %2789 = vmatprep.subr.mxu0 0.0
    %2790 = vmatpush1.msra.mxu0 0.0
    %2791 = vmatprep.subr.mxu0 0.0
    %2792 = vmatpush1.msra.mxu0 0.0
    %2793 = vmatprep.subr.mxu0 0.0
    %2794 = vmatpush1.msra.mxu0 0.0
    %2795 = vmatprep.subr.mxu0 0.0
    %2796 = vmatpush1.msra.mxu0 0.0
    %2797 = vmatprep.subr.mxu0 0.0
    %2798 = vmatpush1.msra.mxu0 0.0
    %2799 = vmatprep.subr.mxu0 0.0
    %2800 = vmatpush1.msra.mxu0 %v2604
    %2801 = vmatprep.subr.mxu0 0.0
    %2802 = vmatpush2.msra.mxu0 0.0
    %2803 = vmatprep.subr.mxu0 0.0
    %2804 = vmatpush2.msra.mxu0 0.0
    %2805 = vmatprep.subr.mxu0 0.0
    %2806 = vmatpush2.msra.mxu0 0.0
    %2807 = vmatprep.subr.mxu0 0.0
    %2808 = vmatpush2.msra.mxu0 0.0
    %2809 = vmatprep.subr.mxu0 0.0
    %2810 = vmatpush2.msra.mxu0 0.0
    %2811 = vmatprep.subr.mxu0 0.0
    %2812 = vmatpush2.msra.mxu0 0.0
    %2813 = vmatprep.subr.mxu0 0.0
    %2814 = vmatpush2.msra.mxu0 0.0
    %2815 = vmatprep.subr.mxu0 0.0
    %2816 = vmatpush2.msra.mxu0 0.0
    %2817 = vmatprep.subr.mxu0 0.0
    %2818 = vmatpush2.msra.mxu0 0.0
    %2819 = vmatprep.subr.mxu0 0.0
    %2820 = vmatpush2.msra.mxu0 0.0
    %2821 = vmatprep.subr.mxu0 0.0
    %2822 = vmatpush2.msra.mxu0 0.0
    %2823 = vmatprep.subr.mxu0 0.0
    %2824 = vmatpush2.msra.mxu0 0.0
    %2825 = vmatprep.subr.mxu0 0.0
    %2826 = vmatpush2.msra.mxu0 0.0
    %2827 = vmatprep.subr.mxu0 0.0
    %2828 = vmatpush2.msra.mxu0 0.0
    %2829 = vmatprep.subr.mxu0 0.0
    %2830 = vmatpush2.msra.mxu0 0.0
    %2831 = vmatprep.subr.mxu0 0.0
    %2832 = vmatpush2.msra.mxu0 0.0
    %2833 = vmatprep.mubr.f32.mxu0 0.0
    %2834 = vmatmul.mubr.f32.gmra.mxu0 %v2764
    %v2835 = vpop.f32.mrf.mxu0
    %v2836 = vadd.f32 %v2755, %v2835
    %v2837 = vpop.f32.mrf.mxu0
    %2838 = vmatprep.mubr.f32.mxu0 0.0
    %2839 = vmatmul.mubr.f32.gmra.mxu0 %v2767
    %v2840 = vpop.f32.mrf.mxu0
    %v2841 = vadd.f32 %v2760, %v2840
    %v2842 = vpop.f32.mrf.mxu0
    %2843 = vdwg.mxu0
    %2844 = vmatprep.subr.mxu0 0.0
    %2845 = vmatpush1.msra.mxu0 0.0
    %2846 = vmatprep.subr.mxu0 0.0
    %2847 = vmatpush1.msra.mxu0 0.0
    %2848 = vmatprep.subr.mxu0 0.0
    %2849 = vmatpush1.msra.mxu0 0.0
    %2850 = vmatprep.subr.mxu0 0.0
    %2851 = vmatpush1.msra.mxu0 0.0
    %2852 = vmatprep.subr.mxu0 0.0
    %2853 = vmatpush1.msra.mxu0 0.0
    %2854 = vmatprep.subr.mxu0 0.0
    %2855 = vmatpush1.msra.mxu0 0.0
    %2856 = vmatprep.subr.mxu0 0.0
    %2857 = vmatpush1.msra.mxu0 0.0
    %2858 = vmatprep.subr.mxu0 0.0
    %2859 = vmatpush1.msra.mxu0 0.0
    %2860 = vmatprep.subr.mxu0 0.0
    %2861 = vmatpush1.msra.mxu0 0.0
    %2862 = vmatprep.subr.mxu0 0.0
    %2863 = vmatpush1.msra.mxu0 0.0
    %2864 = vmatprep.subr.mxu0 0.0
    %2865 = vmatpush1.msra.mxu0 0.0
    %2866 = vmatprep.subr.mxu0 0.0
    %2867 = vmatpush1.msra.mxu0 0.0
    %2868 = vmatprep.subr.mxu0 0.0
    %2869 = vmatpush1.msra.mxu0 0.0
    %2870 = vmatprep.subr.mxu0 0.0
    %2871 = vmatpush1.msra.mxu0 0.0
    %2872 = vmatprep.subr.mxu0 0.0
    %2873 = vmatpush1.msra.mxu0 %v2528
    %2874 = vmatprep.subr.mxu0 0.0
    %2875 = vmatpush1.msra.mxu0 %v2527
    %2876 = vmatprep.subr.mxu0 0.0
    %2877 = vmatpush2.msra.mxu0 0.0
    %2878 = vmatprep.subr.mxu0 0.0
    %2879 = vmatpush2.msra.mxu0 0.0
    %2880 = vmatprep.subr.mxu0 0.0
    %2881 = vmatpush2.msra.mxu0 0.0
    %2882 = vmatprep.subr.mxu0 0.0
    %2883 = vmatpush2.msra.mxu0 0.0
    %2884 = vmatprep.subr.mxu0 0.0
    %2885 = vmatpush2.msra.mxu0 0.0
    %2886 = vmatprep.subr.mxu0 0.0
    %2887 = vmatpush2.msra.mxu0 0.0
    %2888 = vmatprep.subr.mxu0 0.0
    %2889 = vmatpush2.msra.mxu0 0.0
    %2890 = vmatprep.subr.mxu0 0.0
    %2891 = vmatpush2.msra.mxu0 0.0
    %2892 = vmatprep.subr.mxu0 0.0
    %2893 = vmatpush2.msra.mxu0 0.0
    %2894 = vmatprep.subr.mxu0 0.0
    %2895 = vmatpush2.msra.mxu0 0.0
    %2896 = vmatprep.subr.mxu0 0.0
    %2897 = vmatpush2.msra.mxu0 0.0
    %2898 = vmatprep.subr.mxu0 0.0
    %2899 = vmatpush2.msra.mxu0 0.0
    %2900 = vmatprep.subr.mxu0 0.0
    %2901 = vmatpush2.msra.mxu0 0.0
    %2902 = vmatprep.subr.mxu0 0.0
    %2903 = vmatpush2.msra.mxu0 0.0
    %2904 = vmatprep.subr.mxu0 0.0
    %2905 = vmatpush2.msra.mxu0 0.0
    %2906 = vmatprep.subr.mxu0 0.0
    %2907 = vmatpush2.msra.mxu0 0.0
    %2908 = vmatprep.mubr.f32.mxu0 0.0
    %2909 = vmatmul.mubr.f32.gmra.mxu0 %v2307
    %v2910 = vpop.f32.mrf.mxu0
    %v2911 = vadd.f32 0.0, %v2910
    %v2912 = vpop.f32.mrf.mxu0
    %2913 = vmatprep.mubr.f32.mxu0 0.0
    %2914 = vmatmul.mubr.f32.gmra.mxu0 %v2310
    %v2915 = vpop.f32.mrf.mxu0
    %v2916 = vadd.f32 0.0, %v2915
    %v2917 = vpop.f32.mrf.mxu0
    %2918 = vdwg.mxu0
    %s2919 = scalar_lea.vmem [#allocation17], 16
    %v2920 = vld [vmem:[%s2919] sm:$0xff]
    %v2922 = vsel %vm1061, %v2911, 0
    %v2925 = vsel %vm1061, %v2916, 0
    %2927 = vmatprep.subr.mxu0 0.0
    %2928 = vmatpush1.msra.mxu0 0.0
    %2929 = vmatprep.subr.mxu0 0.0
    %2930 = vmatpush1.msra.mxu0 0.0
    %2931 = vmatprep.subr.mxu0 0.0
    %2932 = vmatpush1.msra.mxu0 0.0
    %2933 = vmatprep.subr.mxu0 0.0
    %2934 = vmatpush1.msra.mxu0 0.0
    %2935 = vmatprep.subr.mxu0 0.0
    %2936 = vmatpush1.msra.mxu0 0.0
    %2937 = vmatprep.subr.mxu0 0.0
    %2938 = vmatpush1.msra.mxu0 0.0
    %2939 = vmatprep.subr.mxu0 0.0
    %2940 = vmatpush1.msra.mxu0 0.0
    %2941 = vmatprep.subr.mxu0 0.0
    %2942 = vmatpush1.msra.mxu0 0.0
    %2943 = vmatprep.subr.mxu0 0.0
    %2944 = vmatpush1.msra.mxu0 0.0
    %2945 = vmatprep.subr.mxu0 0.0
    %2946 = vmatpush1.msra.mxu0 0.0
    %2947 = vmatprep.subr.mxu0 0.0
    %2948 = vmatpush1.msra.mxu0 0.0
    %2949 = vmatprep.subr.mxu0 0.0
    %2950 = vmatpush1.msra.mxu0 0.0
    %2951 = vmatprep.subr.mxu0 0.0
    %2952 = vmatpush1.msra.mxu0 0.0
    %2953 = vmatprep.subr.mxu0 0.0
    %2954 = vmatpush1.msra.mxu0 0.0
    %2955 = vmatprep.subr.mxu0 0.0
    %2956 = vmatpush1.msra.mxu0 0.0
    %2957 = vmatprep.subr.mxu0 0.0
    %2958 = vmatpush1.msra.mxu0 %v2920
    %2959 = vmatprep.subr.mxu0 0.0
    %2960 = vmatpush2.msra.mxu0 0.0
    %2961 = vmatprep.subr.mxu0 0.0
    %2962 = vmatpush2.msra.mxu0 0.0
    %2963 = vmatprep.subr.mxu0 0.0
    %2964 = vmatpush2.msra.mxu0 0.0
    %2965 = vmatprep.subr.mxu0 0.0
    %2966 = vmatpush2.msra.mxu0 0.0
    %2967 = vmatprep.subr.mxu0 0.0
    %2968 = vmatpush2.msra.mxu0 0.0
    %2969 = vmatprep.subr.mxu0 0.0
    %2970 = vmatpush2.msra.mxu0 0.0
    %2971 = vmatprep.subr.mxu0 0.0
    %2972 = vmatpush2.msra.mxu0 0.0
    %2973 = vmatprep.subr.mxu0 0.0
    %2974 = vmatpush2.msra.mxu0 0.0
    %2975 = vmatprep.subr.mxu0 0.0
    %2976 = vmatpush2.msra.mxu0 0.0
    %2977 = vmatprep.subr.mxu0 0.0
    %2978 = vmatpush2.msra.mxu0 0.0
    %2979 = vmatprep.subr.mxu0 0.0
    %2980 = vmatpush2.msra.mxu0 0.0
    %2981 = vmatprep.subr.mxu0 0.0
    %2982 = vmatpush2.msra.mxu0 0.0
    %2983 = vmatprep.subr.mxu0 0.0
    %2984 = vmatpush2.msra.mxu0 0.0
    %2985 = vmatprep.subr.mxu0 0.0
    %2986 = vmatpush2.msra.mxu0 0.0
    %2987 = vmatprep.subr.mxu0 0.0
    %2988 = vmatpush2.msra.mxu0 0.0
    %2989 = vmatprep.subr.mxu0 0.0
    %2990 = vmatpush2.msra.mxu0 0.0
    %2991 = vmatprep.mubr.f32.mxu0 0.0
    %2992 = vmatmul.mubr.f32.gmra.mxu0 %v2922
    %v2993 = vpop.f32.mrf.mxu0
    %v2994 = vadd.f32 0.0, %v2993
    %v2995 = vpop.f32.mrf.mxu0
    %2996 = vmatprep.mubr.f32.mxu0 0.0
    %2997 = vmatmul.mubr.f32.gmra.mxu0 %v2925
    %v2998 = vpop.f32.mrf.mxu0
    %v2999 = vadd.f32 0.0, %v2998
    %v3000 = vpop.f32.mrf.mxu0
    %3001 = vdwg.mxu0
    %v3002 = vadd.f32 %v2836, %v2994
    %v3003 = vadd.f32 %v2841, %v2999
    %v3004 = vld [vmem:[#allocation19] sm:$0x1]
    %v3006 = vlaneseq
    %v3007 = vshrl.u32 %v3006, 7
    %v3008 = vsub.s32 0, %v3007
    %v3009 = vrot.slane %v3004, %v3008
    %v3011 = vadd.f32 %v3002, %v3009
    %v3012 = vadd.f32 %v3003, %v3009
    %v3013 = vsel %vm1061, %v3011, 0.0
    %v3014 = vsel %vm1061, %v3012, 0.0
    %v3015 = vadd.f32 %v3013, %v3014
    %v3016 = vrot.slane %v3015, 4
    %v3017 = vadd.f32 %v3015, %v3016
    %v3018 = vrot.slane %v3017, 2
    %v3019 = vadd.f32 %v3017, %v3018
    %v3020 = vrot.slane %v3019, 1
    %v3021 = vadd.f32 %v3019, %v3020
    %v3022 = vmul.f32 %v3021, %v2490
    %v3023 = vsub.f32 %v3011, %v3022
    %v3024 = vsub.f32 %v3012, %v3022
    %v3025 = vmul.f32 %v3023, %v3023
    %v3026 = vmul.f32 %v3024, %v3024
    %v3027 = vsel %vm1061, %v3025, 0.0
    %v3028 = vsel %vm1061, %v3026, 0.0
    %v3029 = vadd.f32 %v3027, %v3028
    %v3030 = vrot.slane %v3029, 4
    %v3031 = vadd.f32 %v3029, %v3030
    %v3032 = vrot.slane %v3031, 2
    %v3033 = vadd.f32 %v3031, %v3032
    %v3034 = vrot.slane %v3033, 1
    %v3035 = vadd.f32 %v3033, %v3034
    %v3036 = vmul.f32 %v3035, %v2490
    %v3037 = vld [vmem:[#allocation20] sm:$0x1]
    %v3038 = vadd.f32 %v3036, 1e-05
    %v3039 = vrsqrt.pop %v3038
    %v3040 = vmul.f32 %v3037, %v3039
    %v3042 = vlaneseq
    %v3043 = vshrl.u32 %v3042, 7
    %v3044 = vsub.s32 0, %v3043
    %v3045 = vrot.slane %v3040, %v3044
    %v3047 = vmul.f32 %v3023, %v3045
    %v3048 = vmul.f32 %v3024, %v3045
    %v3049 = vld [vmem:[#allocation22] sm:$0x1]
    %v3051 = vlaneseq
    %v3052 = vshrl.u32 %v3051, 7
    %v3053 = vsub.s32 0, %v3052
    %v3054 = vrot.slane %v3049, %v3053
    %v3056 = vadd.f32 %v3047, %v3054
    %v3057 = vadd.f32 %v3048, %v3054
    %v3058 = vadd.f32 %v3056, %v1910
    %v3059 = vadd.f32 %v3057, %v1911
    %v3060 = vmax.f32 %v3058, 0.0
    %v3061 = vmax.f32 %v3059, 0.0
    %vm3062 = vcmp.ge.f32.partialorder %v746, 4.0
    %v3063 = vsel %vm3062, 1, 0
    %v3064 = vcvt.s32.f32 %v3063
    %v3065 = vadd.f32 %v3064, 0.0
    %v3066 = vmul.f32 %v3065, 4.0
    %v3067 = vsub.f32 %v746, %v3066
    %v3068 = vmul.f32 %v3067, 2.0
    %v3069 = vadd.f32 %v3068, -1.0
    %vm3070 = vcmp.ge.f32.partialorder %v3069, 0.0
    %vm3071 = vcmp.le.f32.partialorder %v3069, 7.0
    %vm3072 = vmand %vm3070, %vm3071
    %v3073 = vmul.f32 %v3065, 8.0
    %v3074 = vadd.f32 %v3073, %v3069
    %vm3075 = vcmp.eq.f32.partialorder %v794, %v3074
    %v3076 = vsel %vm3072, 1, 0
    %vm3077 = vcmp.eq.s32.totalorder %v3076, 1
    %vm3078 = vmand %vm3075, %vm3077
    %v3079 = vsel %vm3078, 1, 0
    %v3080 = vcvt.s32.f32 %v3079
    %v3082 = vsel %vm1934, %v3080, 0
    %3084 = vmatprep.subr.mxu0 0.0
    %3085 = vmatpush1.msra.mxu0 0.0
    %3086 = vmatprep.subr.mxu0 0.0
    %3087 = vmatpush1.msra.mxu0 0.0
    %3088 = vmatprep.subr.mxu0 0.0
    %3089 = vmatpush1.msra.mxu0 0.0
    %3090 = vmatprep.subr.mxu0 0.0
    %3091 = vmatpush1.msra.mxu0 0.0
    %3092 = vmatprep.subr.mxu0 0.0
    %3093 = vmatpush1.msra.mxu0 0.0
    %3094 = vmatprep.subr.mxu0 0.0
    %3095 = vmatpush1.msra.mxu0 0.0
    %3096 = vmatprep.subr.mxu0 0.0
    %3097 = vmatpush1.msra.mxu0 0.0
    %3098 = vmatprep.subr.mxu0 0.0
    %3099 = vmatpush1.msra.mxu0 0.0
    %3100 = vmatprep.subr.mxu0 0.0
    %3101 = vmatpush1.msra.mxu0 0.0
    %3102 = vmatprep.subr.mxu0 0.0
    %3103 = vmatpush1.msra.mxu0 0.0
    %3104 = vmatprep.subr.mxu0 0.0
    %3105 = vmatpush1.msra.mxu0 0.0
    %3106 = vmatprep.subr.mxu0 0.0
    %3107 = vmatpush1.msra.mxu0 0.0
    %3108 = vmatprep.subr.mxu0 0.0
    %3109 = vmatpush1.msra.mxu0 0.0
    %3110 = vmatprep.subr.mxu0 0.0
    %3111 = vmatpush1.msra.mxu0 0.0
    %3112 = vmatprep.subr.mxu0 0.0
    %3113 = vmatpush1.msra.mxu0 %v3061
    %3114 = vmatprep.subr.mxu0 0.0
    %3115 = vmatpush1.msra.mxu0 %v3060
    %3116 = vmatprep.subr.mxu0 0.0
    %3117 = vmatpush2.msra.mxu0 0.0
    %3118 = vmatprep.subr.mxu0 0.0
    %3119 = vmatpush2.msra.mxu0 0.0
    %3120 = vmatprep.subr.mxu0 0.0
    %3121 = vmatpush2.msra.mxu0 0.0
    %3122 = vmatprep.subr.mxu0 0.0
    %3123 = vmatpush2.msra.mxu0 0.0
    %3124 = vmatprep.subr.mxu0 0.0
    %3125 = vmatpush2.msra.mxu0 0.0
    %3126 = vmatprep.subr.mxu0 0.0
    %3127 = vmatpush2.msra.mxu0 0.0
    %3128 = vmatprep.subr.mxu0 0.0
    %3129 = vmatpush2.msra.mxu0 0.0
    %3130 = vmatprep.subr.mxu0 0.0
    %3131 = vmatpush2.msra.mxu0 0.0
    %3132 = vmatprep.subr.mxu0 0.0
    %3133 = vmatpush2.msra.mxu0 0.0
    %3134 = vmatprep.subr.mxu0 0.0
    %3135 = vmatpush2.msra.mxu0 0.0
    %3136 = vmatprep.subr.mxu0 0.0
    %3137 = vmatpush2.msra.mxu0 0.0
    %3138 = vmatprep.subr.mxu0 0.0
    %3139 = vmatpush2.msra.mxu0 0.0
    %3140 = vmatprep.subr.mxu0 0.0
    %3141 = vmatpush2.msra.mxu0 0.0
    %3142 = vmatprep.subr.mxu0 0.0
    %3143 = vmatpush2.msra.mxu0 0.0
    %3144 = vmatprep.subr.mxu0 0.0
    %3145 = vmatpush2.msra.mxu0 0.0
    %3146 = vmatprep.subr.mxu0 0.0
    %3147 = vmatpush2.msra.mxu0 0.0
    %3148 = vmatprep.mubr.f32.mxu0 0.0
    %3149 = vmatmul.mubr.f32.gmra.mxu0 %v3082
    %v3150 = vpop.f32.mrf.mxu0
    %v3151 = vadd.f32 0.0, %v3150
    %v3152 = vpop.f32.mrf.mxu0
    %3153 = vdwg.mxu0
    %v3154 = vld [vmem:[#allocation23] sm:$0xff]
    %v3155 = vadd.f32 %v3068, 0.0
    %vm3156 = vcmp.ge.f32.partialorder %v3155, 0.0
    %vm3157 = vcmp.le.f32.partialorder %v3155, 7.0
    %vm3158 = vmand %vm3156, %vm3157
    %v3159 = vadd.f32 %v3073, %v3155
    %vm3160 = vcmp.eq.f32.partialorder %v794, %v3159
    %v3161 = vsel %vm3158, 1, 0
    %vm3162 = vcmp.eq.s32.totalorder %v3161, 1
    %vm3163 = vmand %vm3160, %vm3162
    %v3164 = vsel %vm3163, 1, 0
    %v3165 = vcvt.s32.f32 %v3164
    %v3167 = vsel %vm1934, %v3165, 0
    %3169 = vmatprep.subr.mxu0 0.0
    %3170 = vmatpush1.msra.mxu0 0.0
    %3171 = vmatprep.subr.mxu0 0.0
    %3172 = vmatpush1.msra.mxu0 0.0
    %3173 = vmatprep.subr.mxu0 0.0
    %3174 = vmatpush1.msra.mxu0 0.0
    %3175 = vmatprep.subr.mxu0 0.0
    %3176 = vmatpush1.msra.mxu0 0.0
    %3177 = vmatprep.subr.mxu0 0.0
    %3178 = vmatpush1.msra.mxu0 0.0
    %3179 = vmatprep.subr.mxu0 0.0
    %3180 = vmatpush1.msra.mxu0 0.0
    %3181 = vmatprep.subr.mxu0 0.0
    %3182 = vmatpush1.msra.mxu0 0.0
    %3183 = vmatprep.subr.mxu0 0.0
    %3184 = vmatpush1.msra.mxu0 0.0
    %3185 = vmatprep.subr.mxu0 0.0
    %3186 = vmatpush1.msra.mxu0 0.0
    %3187 = vmatprep.subr.mxu0 0.0
    %3188 = vmatpush1.msra.mxu0 0.0
    %3189 = vmatprep.subr.mxu0 0.0
    %3190 = vmatpush1.msra.mxu0 0.0
    %3191 = vmatprep.subr.mxu0 0.0
    %3192 = vmatpush1.msra.mxu0 0.0
    %3193 = vmatprep.subr.mxu0 0.0
    %3194 = vmatpush1.msra.mxu0 0.0
    %3195 = vmatprep.subr.mxu0 0.0
    %3196 = vmatpush1.msra.mxu0 0.0
    %3197 = vmatprep.subr.mxu0 0.0
    %3198 = vmatpush1.msra.mxu0 %v3061
    %3199 = vmatprep.subr.mxu0 0.0
    %3200 = vmatpush1.msra.mxu0 %v3060
    %3201 = vmatprep.subr.mxu0 0.0
    %3202 = vmatpush2.msra.mxu0 0.0
    %3203 = vmatprep.subr.mxu0 0.0
    %3204 = vmatpush2.msra.mxu0 0.0
    %3205 = vmatprep.subr.mxu0 0.0
    %3206 = vmatpush2.msra.mxu0 0.0
    %3207 = vmatprep.subr.mxu0 0.0
    %3208 = vmatpush2.msra.mxu0 0.0
    %3209 = vmatprep.subr.mxu0 0.0
    %3210 = vmatpush2.msra.mxu0 0.0
    %3211 = vmatprep.subr.mxu0 0.0
    %3212 = vmatpush2.msra.mxu0 0.0
    %3213 = vmatprep.subr.mxu0 0.0
    %3214 = vmatpush2.msra.mxu0 0.0
    %3215 = vmatprep.subr.mxu0 0.0
    %3216 = vmatpush2.msra.mxu0 0.0
    %3217 = vmatprep.subr.mxu0 0.0
    %3218 = vmatpush2.msra.mxu0 0.0
    %3219 = vmatprep.subr.mxu0 0.0
    %3220 = vmatpush2.msra.mxu0 0.0
    %3221 = vmatprep.subr.mxu0 0.0
    %3222 = vmatpush2.msra.mxu0 0.0
    %3223 = vmatprep.subr.mxu0 0.0
    %3224 = vmatpush2.msra.mxu0 0.0
    %3225 = vmatprep.subr.mxu0 0.0
    %3226 = vmatpush2.msra.mxu0 0.0
    %3227 = vmatprep.subr.mxu0 0.0
    %3228 = vmatpush2.msra.mxu0 0.0
    %3229 = vmatprep.subr.mxu0 0.0
    %3230 = vmatpush2.msra.mxu0 0.0
    %3231 = vmatprep.subr.mxu0 0.0
    %3232 = vmatpush2.msra.mxu0 0.0
    %3233 = vmatprep.mubr.f32.mxu0 0.0
    %3234 = vmatmul.mubr.f32.gmra.mxu0 %v3167
    %v3235 = vpop.f32.mrf.mxu0
    %v3236 = vadd.f32 0.0, %v3235
    %v3237 = vpop.f32.mrf.mxu0
    %3238 = vdwg.mxu0
    %s3239 = scalar_lea.vmem [#allocation23], 8
    %v3240 = vld [vmem:[%s3239] sm:$0xff]
    %v3242 = vsel %vm1061, %v3236, 0
    %3244 = vmatprep.subr.mxu0 0.0
    %3245 = vmatpush1.msra.mxu0 0.0
    %3246 = vmatprep.subr.mxu0 0.0
    %3247 = vmatpush1.msra.mxu0 0.0
    %3248 = vmatprep.subr.mxu0 0.0
    %3249 = vmatpush1.msra.mxu0 0.0
    %3250 = vmatprep.subr.mxu0 0.0
    %3251 = vmatpush1.msra.mxu0 0.0
    %3252 = vmatprep.subr.mxu0 0.0
    %3253 = vmatpush1.msra.mxu0 0.0
    %3254 = vmatprep.subr.mxu0 0.0
    %3255 = vmatpush1.msra.mxu0 0.0
    %3256 = vmatprep.subr.mxu0 0.0
    %3257 = vmatpush1.msra.mxu0 0.0
    %3258 = vmatprep.subr.mxu0 0.0
    %3259 = vmatpush1.msra.mxu0 0.0
    %3260 = vmatprep.subr.mxu0 0.0
    %3261 = vmatpush1.msra.mxu0 0.0
    %3262 = vmatprep.subr.mxu0 0.0
    %3263 = vmatpush1.msra.mxu0 0.0
    %3264 = vmatprep.subr.mxu0 0.0
    %3265 = vmatpush1.msra.mxu0 0.0
    %3266 = vmatprep.subr.mxu0 0.0
    %3267 = vmatpush1.msra.mxu0 0.0
    %3268 = vmatprep.subr.mxu0 0.0
    %3269 = vmatpush1.msra.mxu0 0.0
    %3270 = vmatprep.subr.mxu0 0.0
    %3271 = vmatpush1.msra.mxu0 0.0
    %3272 = vmatprep.subr.mxu0 0.0
    %3273 = vmatpush1.msra.mxu0 0.0
    %3274 = vmatprep.subr.mxu0 0.0
    %3275 = vmatpush1.msra.mxu0 %v3240
    %3276 = vmatprep.subr.mxu0 0.0
    %3277 = vmatpush2.msra.mxu0 0.0
    %3278 = vmatprep.subr.mxu0 0.0
    %3279 = vmatpush2.msra.mxu0 0.0
    %3280 = vmatprep.subr.mxu0 0.0
    %3281 = vmatpush2.msra.mxu0 0.0
    %3282 = vmatprep.subr.mxu0 0.0
    %3283 = vmatpush2.msra.mxu0 0.0
    %3284 = vmatprep.subr.mxu0 0.0
    %3285 = vmatpush2.msra.mxu0 0.0
    %3286 = vmatprep.subr.mxu0 0.0
    %3287 = vmatpush2.msra.mxu0 0.0
    %3288 = vmatprep.subr.mxu0 0.0
    %3289 = vmatpush2.msra.mxu0 0.0
    %3290 = vmatprep.subr.mxu0 0.0
    %3291 = vmatpush2.msra.mxu0 0.0
    %3292 = vmatprep.subr.mxu0 0.0
    %3293 = vmatpush2.msra.mxu0 0.0
    %3294 = vmatprep.subr.mxu0 0.0
    %3295 = vmatpush2.msra.mxu0 0.0
    %3296 = vmatprep.subr.mxu0 0.0
    %3297 = vmatpush2.msra.mxu0 0.0
    %3298 = vmatprep.subr.mxu0 0.0
    %3299 = vmatpush2.msra.mxu0 0.0
    %3300 = vmatprep.subr.mxu0 0.0
    %3301 = vmatpush2.msra.mxu0 0.0
    %3302 = vmatprep.subr.mxu0 0.0
    %3303 = vmatpush2.msra.mxu0 0.0
    %3304 = vmatprep.subr.mxu0 0.0
    %3305 = vmatpush2.msra.mxu0 0.0
    %3306 = vmatprep.subr.mxu0 0.0
    %3307 = vmatpush2.msra.mxu0 0.0
    %3308 = vmatprep.mubr.f32.mxu0 0.0
    %3309 = vmatmul.mubr.f32.gmra.mxu0 %v3242
    %v3310 = vpop.f32.mrf.mxu0
    %v3311 = vadd.f32 0.0, %v3310
    %v3312 = vpop.f32.mrf.mxu0
    %3313 = vdwg.mxu0
    %v3315 = vsel %vm1061, %v3151, 0
    %3317 = vmatprep.subr.mxu0 0.0
    %3318 = vmatpush1.msra.mxu0 0.0
    %3319 = vmatprep.subr.mxu0 0.0
    %3320 = vmatpush1.msra.mxu0 0.0
    %3321 = vmatprep.subr.mxu0 0.0
    %3322 = vmatpush1.msra.mxu0 0.0
    %3323 = vmatprep.subr.mxu0 0.0
    %3324 = vmatpush1.msra.mxu0 0.0
    %3325 = vmatprep.subr.mxu0 0.0
    %3326 = vmatpush1.msra.mxu0 0.0
    %3327 = vmatprep.subr.mxu0 0.0
    %3328 = vmatpush1.msra.mxu0 0.0
    %3329 = vmatprep.subr.mxu0 0.0
    %3330 = vmatpush1.msra.mxu0 0.0
    %3331 = vmatprep.subr.mxu0 0.0
    %3332 = vmatpush1.msra.mxu0 0.0
    %3333 = vmatprep.subr.mxu0 0.0
    %3334 = vmatpush1.msra.mxu0 0.0
    %3335 = vmatprep.subr.mxu0 0.0
    %3336 = vmatpush1.msra.mxu0 0.0
    %3337 = vmatprep.subr.mxu0 0.0
    %3338 = vmatpush1.msra.mxu0 0.0
    %3339 = vmatprep.subr.mxu0 0.0
    %3340 = vmatpush1.msra.mxu0 0.0
    %3341 = vmatprep.subr.mxu0 0.0
    %3342 = vmatpush1.msra.mxu0 0.0
    %3343 = vmatprep.subr.mxu0 0.0
    %3344 = vmatpush1.msra.mxu0 0.0
    %3345 = vmatprep.subr.mxu0 0.0
    %3346 = vmatpush1.msra.mxu0 0.0
    %3347 = vmatprep.subr.mxu0 0.0
    %3348 = vmatpush1.msra.mxu0 %v3154
    %3349 = vmatprep.subr.mxu0 0.0
    %3350 = vmatpush2.msra.mxu0 0.0
    %3351 = vmatprep.subr.mxu0 0.0
    %3352 = vmatpush2.msra.mxu0 0.0
    %3353 = vmatprep.subr.mxu0 0.0
    %3354 = vmatpush2.msra.mxu0 0.0
    %3355 = vmatprep.subr.mxu0 0.0
    %3356 = vmatpush2.msra.mxu0 0.0
    %3357 = vmatprep.subr.mxu0 0.0
    %3358 = vmatpush2.msra.mxu0 0.0
    %3359 = vmatprep.subr.mxu0 0.0
    %3360 = vmatpush2.msra.mxu0 0.0
    %3361 = vmatprep.subr.mxu0 0.0
    %3362 = vmatpush2.msra.mxu0 0.0
    %3363 = vmatprep.subr.mxu0 0.0
    %3364 = vmatpush2.msra.mxu0 0.0
    %3365 = vmatprep.subr.mxu0 0.0
    %3366 = vmatpush2.msra.mxu0 0.0
    %3367 = vmatprep.subr.mxu0 0.0
    %3368 = vmatpush2.msra.mxu0 0.0
    %3369 = vmatprep.subr.mxu0 0.0
    %3370 = vmatpush2.msra.mxu0 0.0
    %3371 = vmatprep.subr.mxu0 0.0
    %3372 = vmatpush2.msra.mxu0 0.0
    %3373 = vmatprep.subr.mxu0 0.0
    %3374 = vmatpush2.msra.mxu0 0.0
    %3375 = vmatprep.subr.mxu0 0.0
    %3376 = vmatpush2.msra.mxu0 0.0
    %3377 = vmatprep.subr.mxu0 0.0
    %3378 = vmatpush2.msra.mxu0 0.0
    %3379 = vmatprep.subr.mxu0 0.0
    %3380 = vmatpush2.msra.mxu0 0.0
    %3381 = vmatprep.mubr.f32.mxu0 0.0
    %3382 = vmatmul.mubr.f32.gmra.mxu0 %v3315
    %v3383 = vpop.f32.mrf.mxu0
    %v3384 = vadd.f32 %v3311, %v3383
    %v3385 = vpop.f32.mrf.mxu0
    %3386 = vdwg.mxu0
    %v3387 = vadd.f32 %v3068, 1.0
    %vm3388 = vcmp.ge.f32.partialorder %v3387, 0.0
    %vm3389 = vcmp.le.f32.partialorder %v3387, 7.0
    %vm3390 = vmand %vm3388, %vm3389
    %v3391 = vadd.f32 %v3073, %v3387
    %vm3392 = vcmp.eq.f32.partialorder %v794, %v3391
    %v3393 = vsel %vm3390, 1, 0
    %vm3394 = vcmp.eq.s32.totalorder %v3393, 1
    %vm3395 = vmand %vm3392, %vm3394
    %v3396 = vsel %vm3395, 1, 0
    %v3397 = vcvt.s32.f32 %v3396
    %v3399 = vsel %vm1934, %v3397, 0
    %3401 = vmatprep.subr.mxu0 0.0
    %3402 = vmatpush1.msra.mxu0 0.0
    %3403 = vmatprep.subr.mxu0 0.0
    %3404 = vmatpush1.msra.mxu0 0.0
    %3405 = vmatprep.subr.mxu0 0.0
    %3406 = vmatpush1.msra.mxu0 0.0
    %3407 = vmatprep.subr.mxu0 0.0
    %3408 = vmatpush1.msra.mxu0 0.0
    %3409 = vmatprep.subr.mxu0 0.0
    %3410 = vmatpush1.msra.mxu0 0.0
    %3411 = vmatprep.subr.mxu0 0.0
    %3412 = vmatpush1.msra.mxu0 0.0
    %3413 = vmatprep.subr.mxu0 0.0
    %3414 = vmatpush1.msra.mxu0 0.0
    %3415 = vmatprep.subr.mxu0 0.0
    %3416 = vmatpush1.msra.mxu0 0.0
    %3417 = vmatprep.subr.mxu0 0.0
    %3418 = vmatpush1.msra.mxu0 0.0
    %3419 = vmatprep.subr.mxu0 0.0
    %3420 = vmatpush1.msra.mxu0 0.0
    %3421 = vmatprep.subr.mxu0 0.0
    %3422 = vmatpush1.msra.mxu0 0.0
    %3423 = vmatprep.subr.mxu0 0.0
    %3424 = vmatpush1.msra.mxu0 0.0
    %3425 = vmatprep.subr.mxu0 0.0
    %3426 = vmatpush1.msra.mxu0 0.0
    %3427 = vmatprep.subr.mxu0 0.0
    %3428 = vmatpush1.msra.mxu0 0.0
    %3429 = vmatprep.subr.mxu0 0.0
    %3430 = vmatpush1.msra.mxu0 %v3061
    %3431 = vmatprep.subr.mxu0 0.0
    %3432 = vmatpush1.msra.mxu0 %v3060
    %3433 = vmatprep.subr.mxu0 0.0
    %3434 = vmatpush2.msra.mxu0 0.0
    %3435 = vmatprep.subr.mxu0 0.0
    %3436 = vmatpush2.msra.mxu0 0.0
    %3437 = vmatprep.subr.mxu0 0.0
    %3438 = vmatpush2.msra.mxu0 0.0
    %3439 = vmatprep.subr.mxu0 0.0
    %3440 = vmatpush2.msra.mxu0 0.0
    %3441 = vmatprep.subr.mxu0 0.0
    %3442 = vmatpush2.msra.mxu0 0.0
    %3443 = vmatprep.subr.mxu0 0.0
    %3444 = vmatpush2.msra.mxu0 0.0
    %3445 = vmatprep.subr.mxu0 0.0
    %3446 = vmatpush2.msra.mxu0 0.0
    %3447 = vmatprep.subr.mxu0 0.0
    %3448 = vmatpush2.msra.mxu0 0.0
    %3449 = vmatprep.subr.mxu0 0.0
    %3450 = vmatpush2.msra.mxu0 0.0
    %3451 = vmatprep.subr.mxu0 0.0
    %3452 = vmatpush2.msra.mxu0 0.0
    %3453 = vmatprep.subr.mxu0 0.0
    %3454 = vmatpush2.msra.mxu0 0.0
    %3455 = vmatprep.subr.mxu0 0.0
    %3456 = vmatpush2.msra.mxu0 0.0
    %3457 = vmatprep.subr.mxu0 0.0
    %3458 = vmatpush2.msra.mxu0 0.0
    %3459 = vmatprep.subr.mxu0 0.0
    %3460 = vmatpush2.msra.mxu0 0.0
    %3461 = vmatprep.subr.mxu0 0.0
    %3462 = vmatpush2.msra.mxu0 0.0
    %3463 = vmatprep.subr.mxu0 0.0
    %3464 = vmatpush2.msra.mxu0 0.0
    %3465 = vmatprep.mubr.f32.mxu0 0.0
    %3466 = vmatmul.mubr.f32.gmra.mxu0 %v3399
    %v3467 = vpop.f32.mrf.mxu0
    %v3468 = vadd.f32 0.0, %v3467
    %v3469 = vpop.f32.mrf.mxu0
    %3470 = vdwg.mxu0
    %s3471 = scalar_lea.vmem [#allocation23], 16
    %v3472 = vld [vmem:[%s3471] sm:$0xff]
    %v3474 = vsel %vm1061, %v3468, 0
    %3476 = vmatprep.subr.mxu0 0.0
    %3477 = vmatpush1.msra.mxu0 0.0
    %3478 = vmatprep.subr.mxu0 0.0
    %3479 = vmatpush1.msra.mxu0 0.0
    %3480 = vmatprep.subr.mxu0 0.0
    %3481 = vmatpush1.msra.mxu0 0.0
    %3482 = vmatprep.subr.mxu0 0.0
    %3483 = vmatpush1.msra.mxu0 0.0
    %3484 = vmatprep.subr.mxu0 0.0
    %3485 = vmatpush1.msra.mxu0 0.0
    %3486 = vmatprep.subr.mxu0 0.0
    %3487 = vmatpush1.msra.mxu0 0.0
    %3488 = vmatprep.subr.mxu0 0.0
    %3489 = vmatpush1.msra.mxu0 0.0
    %3490 = vmatprep.subr.mxu0 0.0
    %3491 = vmatpush1.msra.mxu0 0.0
    %3492 = vmatprep.subr.mxu0 0.0
    %3493 = vmatpush1.msra.mxu0 0.0
    %3494 = vmatprep.subr.mxu0 0.0
    %3495 = vmatpush1.msra.mxu0 0.0
    %3496 = vmatprep.subr.mxu0 0.0
    %3497 = vmatpush1.msra.mxu0 0.0
    %3498 = vmatprep.subr.mxu0 0.0
    %3499 = vmatpush1.msra.mxu0 0.0
    %3500 = vmatprep.subr.mxu0 0.0
    %3501 = vmatpush1.msra.mxu0 0.0
    %3502 = vmatprep.subr.mxu0 0.0
    %3503 = vmatpush1.msra.mxu0 0.0
    %3504 = vmatprep.subr.mxu0 0.0
    %3505 = vmatpush1.msra.mxu0 0.0
    %3506 = vmatprep.subr.mxu0 0.0
    %3507 = vmatpush1.msra.mxu0 %v3472
    %3508 = vmatprep.subr.mxu0 0.0
    %3509 = vmatpush2.msra.mxu0 0.0
    %3510 = vmatprep.subr.mxu0 0.0
    %3511 = vmatpush2.msra.mxu0 0.0
    %3512 = vmatprep.subr.mxu0 0.0
    %3513 = vmatpush2.msra.mxu0 0.0
    %3514 = vmatprep.subr.mxu0 0.0
    %3515 = vmatpush2.msra.mxu0 0.0
    %3516 = vmatprep.subr.mxu0 0.0
    %3517 = vmatpush2.msra.mxu0 0.0
    %3518 = vmatprep.subr.mxu0 0.0
    %3519 = vmatpush2.msra.mxu0 0.0
    %3520 = vmatprep.subr.mxu0 0.0
    %3521 = vmatpush2.msra.mxu0 0.0
    %3522 = vmatprep.subr.mxu0 0.0
    %3523 = vmatpush2.msra.mxu0 0.0
    %3524 = vmatprep.subr.mxu0 0.0
    %3525 = vmatpush2.msra.mxu0 0.0
    %3526 = vmatprep.subr.mxu0 0.0
    %3527 = vmatpush2.msra.mxu0 0.0
    %3528 = vmatprep.subr.mxu0 0.0
    %3529 = vmatpush2.msra.mxu0 0.0
    %3530 = vmatprep.subr.mxu0 0.0
    %3531 = vmatpush2.msra.mxu0 0.0
    %3532 = vmatprep.subr.mxu0 0.0
    %3533 = vmatpush2.msra.mxu0 0.0
    %3534 = vmatprep.subr.mxu0 0.0
    %3535 = vmatpush2.msra.mxu0 0.0
    %3536 = vmatprep.subr.mxu0 0.0
    %3537 = vmatpush2.msra.mxu0 0.0
    %3538 = vmatprep.subr.mxu0 0.0
    %3539 = vmatpush2.msra.mxu0 0.0
    %3540 = vmatprep.mubr.f32.mxu0 0.0
    %3541 = vmatmul.mubr.f32.gmra.mxu0 %v3474
    %v3542 = vpop.f32.mrf.mxu0
    %v3543 = vadd.f32 0.0, %v3542
    %v3544 = vpop.f32.mrf.mxu0
    %3545 = vdwg.mxu0
    %v3546 = vadd.f32 %v3384, %v3543
    %v3547 = vld [vmem:[#allocation25] sm:$0x1]
    %v3549 = vlaneseq
    %v3550 = vshrl.u32 %v3549, 7
    %v3551 = vsub.s32 0, %v3550
    %v3552 = vrot.slane %v3547, %v3551
    %v3554 = vadd.f32 %v3546, %v3552
    %v3555 = vsel %vm1934, %v3554, 0.0
    %v3556 = vrot.slane %v3555, 4
    %v3557 = vadd.f32 %v3555, %v3556
    %v3558 = vrot.slane %v3557, 2
    %v3559 = vadd.f32 %v3557, %v3558
    %v3560 = vrot.slane %v3559, 1
    %v3561 = vadd.f32 %v3559, %v3560
    %v3562 = vrcp.pop 8.0
    %v3563 = vmul.f32 %v3561, %v3562
    %v3564 = vsub.f32 %v3554, %v3563
    %v3565 = vmul.f32 %v3564, %v3564
    %v3566 = vsel %vm1934, %v3565, 0.0
    %v3567 = vrot.slane %v3566, 4
    %v3568 = vadd.f32 %v3566, %v3567
    %v3569 = vrot.slane %v3568, 2
    %v3570 = vadd.f32 %v3568, %v3569
    %v3571 = vrot.slane %v3570, 1
    %v3572 = vadd.f32 %v3570, %v3571
    %v3573 = vmul.f32 %v3572, %v3562
    %v3574 = vld [vmem:[#allocation26] sm:$0x1]
    %v3575 = vadd.f32 %v3573, 1e-05
    %v3576 = vrsqrt.pop %v3575
    %v3577 = vmul.f32 %v3574, %v3576
    %v3579 = vlaneseq
    %v3580 = vshrl.u32 %v3579, 7
    %v3581 = vsub.s32 0, %v3580
    %v3582 = vrot.slane %v3577, %v3581
    %v3584 = vmul.f32 %v3564, %v3582
    %v3585 = vld [vmem:[#allocation28] sm:$0x1]
    %v3587 = vlaneseq
    %v3588 = vshrl.u32 %v3587, 7
    %v3589 = vsub.s32 0, %v3588
    %v3590 = vrot.slane %v3585, %v3589
    %v3592 = vadd.f32 %v3584, %v3590
    %v3593 = vmax.f32 %v3592, 0.0
    %v3594 = vadd.f32 %v3067, -1.0
    %vm3595 = vcmp.ge.f32.partialorder %v3594, 0.0
    %vm3596 = vcmp.le.f32.partialorder %v3594, 3.0
    %vm3597 = vmand %vm3595, %vm3596
    %v3598 = vadd.f32 %v3066, %v3594
    %vm3599 = vcmp.eq.f32.partialorder %v794, %v3598
    %v3600 = vsel %vm3597, 1, 0
    %vm3601 = vcmp.eq.s32.totalorder %v3600, 1
    %vm3602 = vmand %vm3599, %vm3601
    %v3603 = vsel %vm3602, 1, 0
    %v3604 = vcvt.s32.f32 %v3603
    %v3606 = vsel %vm1061, %v3604, 0
    %3608 = vmatprep.subr.mxu0 0.0
    %3609 = vmatpush1.msra.mxu0 0.0
    %3610 = vmatprep.subr.mxu0 0.0
    %3611 = vmatpush1.msra.mxu0 0.0
    %3612 = vmatprep.subr.mxu0 0.0
    %3613 = vmatpush1.msra.mxu0 0.0
    %3614 = vmatprep.subr.mxu0 0.0
    %3615 = vmatpush1.msra.mxu0 0.0
    %3616 = vmatprep.subr.mxu0 0.0
    %3617 = vmatpush1.msra.mxu0 0.0
    %3618 = vmatprep.subr.mxu0 0.0
    %3619 = vmatpush1.msra.mxu0 0.0
    %3620 = vmatprep.subr.mxu0 0.0
    %3621 = vmatpush1.msra.mxu0 0.0
    %3622 = vmatprep.subr.mxu0 0.0
    %3623 = vmatpush1.msra.mxu0 0.0
    %3624 = vmatprep.subr.mxu0 0.0
    %3625 = vmatpush1.msra.mxu0 0.0
    %3626 = vmatprep.subr.mxu0 0.0
    %3627 = vmatpush1.msra.mxu0 0.0
    %3628 = vmatprep.subr.mxu0 0.0
    %3629 = vmatpush1.msra.mxu0 0.0
    %3630 = vmatprep.subr.mxu0 0.0
    %3631 = vmatpush1.msra.mxu0 0.0
    %3632 = vmatprep.subr.mxu0 0.0
    %3633 = vmatpush1.msra.mxu0 0.0
    %3634 = vmatprep.subr.mxu0 0.0
    %3635 = vmatpush1.msra.mxu0 0.0
    %3636 = vmatprep.subr.mxu0 0.0
    %3637 = vmatpush1.msra.mxu0 0.0
    %3638 = vmatprep.subr.mxu0 0.0
    %3639 = vmatpush1.msra.mxu0 %v3593
    %3640 = vmatprep.subr.mxu0 0.0
    %3641 = vmatpush2.msra.mxu0 0.0
    %3642 = vmatprep.subr.mxu0 0.0
    %3643 = vmatpush2.msra.mxu0 0.0
    %3644 = vmatprep.subr.mxu0 0.0
    %3645 = vmatpush2.msra.mxu0 0.0
    %3646 = vmatprep.subr.mxu0 0.0
    %3647 = vmatpush2.msra.mxu0 0.0
    %3648 = vmatprep.subr.mxu0 0.0
    %3649 = vmatpush2.msra.mxu0 0.0
    %3650 = vmatprep.subr.mxu0 0.0
    %3651 = vmatpush2.msra.mxu0 0.0
    %3652 = vmatprep.subr.mxu0 0.0
    %3653 = vmatpush2.msra.mxu0 0.0
    %3654 = vmatprep.subr.mxu0 0.0
    %3655 = vmatpush2.msra.mxu0 0.0
    %3656 = vmatprep.subr.mxu0 0.0
    %3657 = vmatpush2.msra.mxu0 0.0
    %3658 = vmatprep.subr.mxu0 0.0
    %3659 = vmatpush2.msra.mxu0 0.0
    %3660 = vmatprep.subr.mxu0 0.0
    %3661 = vmatpush2.msra.mxu0 0.0
    %3662 = vmatprep.subr.mxu0 0.0
    %3663 = vmatpush2.msra.mxu0 0.0
    %3664 = vmatprep.subr.mxu0 0.0
    %3665 = vmatpush2.msra.mxu0 0.0
    %3666 = vmatprep.subr.mxu0 0.0
    %3667 = vmatpush2.msra.mxu0 0.0
    %3668 = vmatprep.subr.mxu0 0.0
    %3669 = vmatpush2.msra.mxu0 0.0
    %3670 = vmatprep.subr.mxu0 0.0
    %3671 = vmatpush2.msra.mxu0 0.0
    %3672 = vmatprep.mubr.f32.mxu0 0.0
    %3673 = vmatmul.mubr.f32.gmra.mxu0 %v3606
    %v3674 = vpop.f32.mrf.mxu0
    %v3675 = vadd.f32 0.0, %v3674
    %v3676 = vpop.f32.mrf.mxu0
    %3677 = vdwg.mxu0
    %v3678 = vld [vmem:[#allocation29] sm:$0xff]
    %v3679 = vld [vmem:[#allocation29 + $0x8] sm:$0xff]
    %v3680 = vadd.f32 %v3067, 0.0
    %vm3681 = vcmp.ge.f32.partialorder %v3680, 0.0
    %vm3682 = vcmp.le.f32.partialorder %v3680, 3.0
    %vm3683 = vmand %vm3681, %vm3682
    %v3684 = vadd.f32 %v3066, %v3680
    %vm3685 = vcmp.eq.f32.partialorder %v794, %v3684
    %v3686 = vsel %vm3683, 1, 0
    %vm3687 = vcmp.eq.s32.totalorder %v3686, 1
    %vm3688 = vmand %vm3685, %vm3687
    %v3689 = vsel %vm3688, 1, 0
    %v3690 = vcvt.s32.f32 %v3689
    %v3692 = vsel %vm1061, %v3690, 0
    %3694 = vmatprep.subr.mxu0 0.0
    %3695 = vmatpush1.msra.mxu0 0.0
    %3696 = vmatprep.subr.mxu0 0.0
    %3697 = vmatpush1.msra.mxu0 0.0
    %3698 = vmatprep.subr.mxu0 0.0
    %3699 = vmatpush1.msra.mxu0 0.0
    %3700 = vmatprep.subr.mxu0 0.0
    %3701 = vmatpush1.msra.mxu0 0.0
    %3702 = vmatprep.subr.mxu0 0.0
    %3703 = vmatpush1.msra.mxu0 0.0
    %3704 = vmatprep.subr.mxu0 0.0
    %3705 = vmatpush1.msra.mxu0 0.0
    %3706 = vmatprep.subr.mxu0 0.0
    %3707 = vmatpush1.msra.mxu0 0.0
    %3708 = vmatprep.subr.mxu0 0.0
    %3709 = vmatpush1.msra.mxu0 0.0
    %3710 = vmatprep.subr.mxu0 0.0
    %3711 = vmatpush1.msra.mxu0 0.0
    %3712 = vmatprep.subr.mxu0 0.0
    %3713 = vmatpush1.msra.mxu0 0.0
    %3714 = vmatprep.subr.mxu0 0.0
    %3715 = vmatpush1.msra.mxu0 0.0
    %3716 = vmatprep.subr.mxu0 0.0
    %3717 = vmatpush1.msra.mxu0 0.0
    %3718 = vmatprep.subr.mxu0 0.0
    %3719 = vmatpush1.msra.mxu0 0.0
    %3720 = vmatprep.subr.mxu0 0.0
    %3721 = vmatpush1.msra.mxu0 0.0
    %3722 = vmatprep.subr.mxu0 0.0
    %3723 = vmatpush1.msra.mxu0 0.0
    %3724 = vmatprep.subr.mxu0 0.0
    %3725 = vmatpush1.msra.mxu0 %v3593
    %3726 = vmatprep.subr.mxu0 0.0
    %3727 = vmatpush2.msra.mxu0 0.0
    %3728 = vmatprep.subr.mxu0 0.0
    %3729 = vmatpush2.msra.mxu0 0.0
    %3730 = vmatprep.subr.mxu0 0.0
    %3731 = vmatpush2.msra.mxu0 0.0
    %3732 = vmatprep.subr.mxu0 0.0
    %3733 = vmatpush2.msra.mxu0 0.0
    %3734 = vmatprep.subr.mxu0 0.0
    %3735 = vmatpush2.msra.mxu0 0.0
    %3736 = vmatprep.subr.mxu0 0.0
    %3737 = vmatpush2.msra.mxu0 0.0
    %3738 = vmatprep.subr.mxu0 0.0
    %3739 = vmatpush2.msra.mxu0 0.0
    %3740 = vmatprep.subr.mxu0 0.0
    %3741 = vmatpush2.msra.mxu0 0.0
    %3742 = vmatprep.subr.mxu0 0.0
    %3743 = vmatpush2.msra.mxu0 0.0
    %3744 = vmatprep.subr.mxu0 0.0
    %3745 = vmatpush2.msra.mxu0 0.0
    %3746 = vmatprep.subr.mxu0 0.0
    %3747 = vmatpush2.msra.mxu0 0.0
    %3748 = vmatprep.subr.mxu0 0.0
    %3749 = vmatpush2.msra.mxu0 0.0
    %3750 = vmatprep.subr.mxu0 0.0
    %3751 = vmatpush2.msra.mxu0 0.0
    %3752 = vmatprep.subr.mxu0 0.0
    %3753 = vmatpush2.msra.mxu0 0.0
    %3754 = vmatprep.subr.mxu0 0.0
    %3755 = vmatpush2.msra.mxu0 0.0
    %3756 = vmatprep.subr.mxu0 0.0
    %3757 = vmatpush2.msra.mxu0 0.0
    %3758 = vmatprep.mubr.f32.mxu0 0.0
    %3759 = vmatmul.mubr.f32.gmra.mxu0 %v3692
    %v3760 = vpop.f32.mrf.mxu0
    %v3761 = vadd.f32 0.0, %v3760
    %v3762 = vpop.f32.mrf.mxu0
    %3763 = vdwg.mxu0
    %s3764 = scalar_lea.vmem [#allocation29], 16
    %v3765 = vld [vmem:[%s3764] sm:$0xff]
    %v3766 = vld [vmem:[%s3764 + $0x8] sm:$0xff]
    %v3768 = vsel %vm1934, %v3761, 0
    %3770 = vmatprep.subr.mxu0 0.0
    %3771 = vmatpush1.msra.mxu0 0.0
    %3772 = vmatprep.subr.mxu0 0.0
    %3773 = vmatpush1.msra.mxu0 0.0
    %3774 = vmatprep.subr.mxu0 0.0
    %3775 = vmatpush1.msra.mxu0 0.0
    %3776 = vmatprep.subr.mxu0 0.0
    %3777 = vmatpush1.msra.mxu0 0.0
    %3778 = vmatprep.subr.mxu0 0.0
    %3779 = vmatpush1.msra.mxu0 0.0
    %3780 = vmatprep.subr.mxu0 0.0
    %3781 = vmatpush1.msra.mxu0 0.0
    %3782 = vmatprep.subr.mxu0 0.0
    %3783 = vmatpush1.msra.mxu0 0.0
    %3784 = vmatprep.subr.mxu0 0.0
    %3785 = vmatpush1.msra.mxu0 0.0
    %3786 = vmatprep.subr.mxu0 0.0
    %3787 = vmatpush1.msra.mxu0 0.0
    %3788 = vmatprep.subr.mxu0 0.0
    %3789 = vmatpush1.msra.mxu0 0.0
    %3790 = vmatprep.subr.mxu0 0.0
    %3791 = vmatpush1.msra.mxu0 0.0
    %3792 = vmatprep.subr.mxu0 0.0
    %3793 = vmatpush1.msra.mxu0 0.0
    %3794 = vmatprep.subr.mxu0 0.0
    %3795 = vmatpush1.msra.mxu0 0.0
    %3796 = vmatprep.subr.mxu0 0.0
    %3797 = vmatpush1.msra.mxu0 0.0
    %3798 = vmatprep.subr.mxu0 0.0
    %3799 = vmatpush1.msra.mxu0 %v3766
    %3800 = vmatprep.subr.mxu0 0.0
    %3801 = vmatpush1.msra.mxu0 %v3765
    %3802 = vmatprep.subr.mxu0 0.0
    %3803 = vmatpush2.msra.mxu0 0.0
    %3804 = vmatprep.subr.mxu0 0.0
    %3805 = vmatpush2.msra.mxu0 0.0
    %3806 = vmatprep.subr.mxu0 0.0
    %3807 = vmatpush2.msra.mxu0 0.0
    %3808 = vmatprep.subr.mxu0 0.0
    %3809 = vmatpush2.msra.mxu0 0.0
    %3810 = vmatprep.subr.mxu0 0.0
    %3811 = vmatpush2.msra.mxu0 0.0
    %3812 = vmatprep.subr.mxu0 0.0
    %3813 = vmatpush2.msra.mxu0 0.0
    %3814 = vmatprep.subr.mxu0 0.0
    %3815 = vmatpush2.msra.mxu0 0.0
    %3816 = vmatprep.subr.mxu0 0.0
    %3817 = vmatpush2.msra.mxu0 0.0
    %3818 = vmatprep.subr.mxu0 0.0
    %3819 = vmatpush2.msra.mxu0 0.0
    %3820 = vmatprep.subr.mxu0 0.0
    %3821 = vmatpush2.msra.mxu0 0.0
    %3822 = vmatprep.subr.mxu0 0.0
    %3823 = vmatpush2.msra.mxu0 0.0
    %3824 = vmatprep.subr.mxu0 0.0
    %3825 = vmatpush2.msra.mxu0 0.0
    %3826 = vmatprep.subr.mxu0 0.0
    %3827 = vmatpush2.msra.mxu0 0.0
    %3828 = vmatprep.subr.mxu0 0.0
    %3829 = vmatpush2.msra.mxu0 0.0
    %3830 = vmatprep.subr.mxu0 0.0
    %3831 = vmatpush2.msra.mxu0 0.0
    %3832 = vmatprep.subr.mxu0 0.0
    %3833 = vmatpush2.msra.mxu0 0.0
    %3834 = vmatprep.mubr.f32.mxu0 0.0
    %3835 = vmatmul.mubr.f32.gmra.mxu0 %v3768
    %v3836 = vpop.f32.mrf.mxu0
    %v3837 = vadd.f32 0.0, %v3836
    %v3838 = vpop.f32.mrf.mxu0
    %3839 = vdwg.mxu0
    %v3841 = vsel %vm1934, %v3675, 0
    %3843 = vmatprep.subr.mxu0 0.0
    %3844 = vmatpush1.msra.mxu0 0.0
    %3845 = vmatprep.subr.mxu0 0.0
    %3846 = vmatpush1.msra.mxu0 0.0
    %3847 = vmatprep.subr.mxu0 0.0
    %3848 = vmatpush1.msra.mxu0 0.0
    %3849 = vmatprep.subr.mxu0 0.0
    %3850 = vmatpush1.msra.mxu0 0.0
    %3851 = vmatprep.subr.mxu0 0.0
    %3852 = vmatpush1.msra.mxu0 0.0
    %3853 = vmatprep.subr.mxu0 0.0
    %3854 = vmatpush1.msra.mxu0 0.0
    %3855 = vmatprep.subr.mxu0 0.0
    %3856 = vmatpush1.msra.mxu0 0.0
    %3857 = vmatprep.subr.mxu0 0.0
    %3858 = vmatpush1.msra.mxu0 0.0
    %3859 = vmatprep.subr.mxu0 0.0
    %3860 = vmatpush1.msra.mxu0 0.0
    %3861 = vmatprep.subr.mxu0 0.0
    %3862 = vmatpush1.msra.mxu0 0.0
    %3863 = vmatprep.subr.mxu0 0.0
    %3864 = vmatpush1.msra.mxu0 0.0
    %3865 = vmatprep.subr.mxu0 0.0
    %3866 = vmatpush1.msra.mxu0 0.0
    %3867 = vmatprep.subr.mxu0 0.0
    %3868 = vmatpush1.msra.mxu0 0.0
    %3869 = vmatprep.subr.mxu0 0.0
    %3870 = vmatpush1.msra.mxu0 0.0
    %3871 = vmatprep.subr.mxu0 0.0
    %3872 = vmatpush1.msra.mxu0 %v3679
    %3873 = vmatprep.subr.mxu0 0.0
    %3874 = vmatpush1.msra.mxu0 %v3678
    %3875 = vmatprep.subr.mxu0 0.0
    %3876 = vmatpush2.msra.mxu0 0.0
    %3877 = vmatprep.subr.mxu0 0.0
    %3878 = vmatpush2.msra.mxu0 0.0
    %3879 = vmatprep.subr.mxu0 0.0
    %3880 = vmatpush2.msra.mxu0 0.0
    %3881 = vmatprep.subr.mxu0 0.0
    %3882 = vmatpush2.msra.mxu0 0.0
    %3883 = vmatprep.subr.mxu0 0.0
    %3884 = vmatpush2.msra.mxu0 0.0
    %3885 = vmatprep.subr.mxu0 0.0
    %3886 = vmatpush2.msra.mxu0 0.0
    %3887 = vmatprep.subr.mxu0 0.0
    %3888 = vmatpush2.msra.mxu0 0.0
    %3889 = vmatprep.subr.mxu0 0.0
    %3890 = vmatpush2.msra.mxu0 0.0
    %3891 = vmatprep.subr.mxu0 0.0
    %3892 = vmatpush2.msra.mxu0 0.0
    %3893 = vmatprep.subr.mxu0 0.0
    %3894 = vmatpush2.msra.mxu0 0.0
    %3895 = vmatprep.subr.mxu0 0.0
    %3896 = vmatpush2.msra.mxu0 0.0
    %3897 = vmatprep.subr.mxu0 0.0
    %3898 = vmatpush2.msra.mxu0 0.0
    %3899 = vmatprep.subr.mxu0 0.0
    %3900 = vmatpush2.msra.mxu0 0.0
    %3901 = vmatprep.subr.mxu0 0.0
    %3902 = vmatpush2.msra.mxu0 0.0
    %3903 = vmatprep.subr.mxu0 0.0
    %3904 = vmatpush2.msra.mxu0 0.0
    %3905 = vmatprep.subr.mxu0 0.0
    %3906 = vmatpush2.msra.mxu0 0.0
    %3907 = vmatprep.mubr.f32.mxu0 0.0
    %3908 = vmatmul.mubr.f32.gmra.mxu0 %v3841
    %v3909 = vpop.f32.mrf.mxu0
    %v3910 = vadd.f32 %v3837, %v3909
    %v3911 = vpop.f32.mrf.mxu0
    %3912 = vdwg.mxu0
    %v3913 = vadd.f32 %v3067, 1.0
    %vm3914 = vcmp.ge.f32.partialorder %v3913, 0.0
    %vm3915 = vcmp.le.f32.partialorder %v3913, 3.0
    %vm3916 = vmand %vm3914, %vm3915
    %v3917 = vadd.f32 %v3066, %v3913
    %vm3918 = vcmp.eq.f32.partialorder %v794, %v3917
    %v3919 = vsel %vm3916, 1, 0
    %vm3920 = vcmp.eq.s32.totalorder %v3919, 1
    %vm3921 = vmand %vm3918, %vm3920
    %v3922 = vsel %vm3921, 1, 0
    %v3923 = vcvt.s32.f32 %v3922
    %v3925 = vsel %vm1061, %v3923, 0
    %3927 = vmatprep.subr.mxu0 0.0
    %3928 = vmatpush1.msra.mxu0 0.0
    %3929 = vmatprep.subr.mxu0 0.0
    %3930 = vmatpush1.msra.mxu0 0.0
    %3931 = vmatprep.subr.mxu0 0.0
    %3932 = vmatpush1.msra.mxu0 0.0
    %3933 = vmatprep.subr.mxu0 0.0
    %3934 = vmatpush1.msra.mxu0 0.0
    %3935 = vmatprep.subr.mxu0 0.0
    %3936 = vmatpush1.msra.mxu0 0.0
    %3937 = vmatprep.subr.mxu0 0.0
    %3938 = vmatpush1.msra.mxu0 0.0
    %3939 = vmatprep.subr.mxu0 0.0
    %3940 = vmatpush1.msra.mxu0 0.0
    %3941 = vmatprep.subr.mxu0 0.0
    %3942 = vmatpush1.msra.mxu0 0.0
    %3943 = vmatprep.subr.mxu0 0.0
    %3944 = vmatpush1.msra.mxu0 0.0
    %3945 = vmatprep.subr.mxu0 0.0
    %3946 = vmatpush1.msra.mxu0 0.0
    %3947 = vmatprep.subr.mxu0 0.0
    %3948 = vmatpush1.msra.mxu0 0.0
    %3949 = vmatprep.subr.mxu0 0.0
    %3950 = vmatpush1.msra.mxu0 0.0
    %3951 = vmatprep.subr.mxu0 0.0
    %3952 = vmatpush1.msra.mxu0 0.0
    %3953 = vmatprep.subr.mxu0 0.0
    %3954 = vmatpush1.msra.mxu0 0.0
    %3955 = vmatprep.subr.mxu0 0.0
    %3956 = vmatpush1.msra.mxu0 0.0
    %3957 = vmatprep.subr.mxu0 0.0
    %3958 = vmatpush1.msra.mxu0 %v3593
    %3959 = vmatprep.subr.mxu0 0.0
    %3960 = vmatpush2.msra.mxu0 0.0
    %3961 = vmatprep.subr.mxu0 0.0
    %3962 = vmatpush2.msra.mxu0 0.0
    %3963 = vmatprep.subr.mxu0 0.0
    %3964 = vmatpush2.msra.mxu0 0.0
    %3965 = vmatprep.subr.mxu0 0.0
    %3966 = vmatpush2.msra.mxu0 0.0
    %3967 = vmatprep.subr.mxu0 0.0
    %3968 = vmatpush2.msra.mxu0 0.0
    %3969 = vmatprep.subr.mxu0 0.0
    %3970 = vmatpush2.msra.mxu0 0.0
    %3971 = vmatprep.subr.mxu0 0.0
    %3972 = vmatpush2.msra.mxu0 0.0
    %3973 = vmatprep.subr.mxu0 0.0
    %3974 = vmatpush2.msra.mxu0 0.0
    %3975 = vmatprep.subr.mxu0 0.0
    %3976 = vmatpush2.msra.mxu0 0.0
    %3977 = vmatprep.subr.mxu0 0.0
    %3978 = vmatpush2.msra.mxu0 0.0
    %3979 = vmatprep.subr.mxu0 0.0
    %3980 = vmatpush2.msra.mxu0 0.0
    %3981 = vmatprep.subr.mxu0 0.0
    %3982 = vmatpush2.msra.mxu0 0.0
    %3983 = vmatprep.subr.mxu0 0.0
    %3984 = vmatpush2.msra.mxu0 0.0
    %3985 = vmatprep.subr.mxu0 0.0
    %3986 = vmatpush2.msra.mxu0 0.0
    %3987 = vmatprep.subr.mxu0 0.0
    %3988 = vmatpush2.msra.mxu0 0.0
    %3989 = vmatprep.subr.mxu0 0.0
    %3990 = vmatpush2.msra.mxu0 0.0
    %3991 = vmatprep.mubr.f32.mxu0 0.0
    %3992 = vmatmul.mubr.f32.gmra.mxu0 %v3925
    %v3993 = vpop.f32.mrf.mxu0
    %v3994 = vadd.f32 0.0, %v3993
    %v3995 = vpop.f32.mrf.mxu0
    %3996 = vdwg.mxu0
    %s3997 = scalar_lea.vmem [#allocation29], 32
    %v3998 = vld [vmem:[%s3997] sm:$0xff]
    %v3999 = vld [vmem:[%s3997 + $0x8] sm:$0xff]
    %v4001 = vsel %vm1934, %v3994, 0
    %4003 = vmatprep.subr.mxu0 0.0
    %4004 = vmatpush1.msra.mxu0 0.0
    %4005 = vmatprep.subr.mxu0 0.0
    %4006 = vmatpush1.msra.mxu0 0.0
    %4007 = vmatprep.subr.mxu0 0.0
    %4008 = vmatpush1.msra.mxu0 0.0
    %4009 = vmatprep.subr.mxu0 0.0
    %4010 = vmatpush1.msra.mxu0 0.0
    %4011 = vmatprep.subr.mxu0 0.0
    %4012 = vmatpush1.msra.mxu0 0.0
    %4013 = vmatprep.subr.mxu0 0.0
    %4014 = vmatpush1.msra.mxu0 0.0
    %4015 = vmatprep.subr.mxu0 0.0
    %4016 = vmatpush1.msra.mxu0 0.0
    %4017 = vmatprep.subr.mxu0 0.0
    %4018 = vmatpush1.msra.mxu0 0.0
    %4019 = vmatprep.subr.mxu0 0.0
    %4020 = vmatpush1.msra.mxu0 0.0
    %4021 = vmatprep.subr.mxu0 0.0
    %4022 = vmatpush1.msra.mxu0 0.0
    %4023 = vmatprep.subr.mxu0 0.0
    %4024 = vmatpush1.msra.mxu0 0.0
    %4025 = vmatprep.subr.mxu0 0.0
    %4026 = vmatpush1.msra.mxu0 0.0
    %4027 = vmatprep.subr.mxu0 0.0
    %4028 = vmatpush1.msra.mxu0 0.0
    %4029 = vmatprep.subr.mxu0 0.0
    %4030 = vmatpush1.msra.mxu0 0.0
    %4031 = vmatprep.subr.mxu0 0.0
    %4032 = vmatpush1.msra.mxu0 %v3999
    %4033 = vmatprep.subr.mxu0 0.0
    %4034 = vmatpush1.msra.mxu0 %v3998
    %4035 = vmatprep.subr.mxu0 0.0
    %4036 = vmatpush2.msra.mxu0 0.0
    %4037 = vmatprep.subr.mxu0 0.0
    %4038 = vmatpush2.msra.mxu0 0.0
    %4039 = vmatprep.subr.mxu0 0.0
    %4040 = vmatpush2.msra.mxu0 0.0
    %4041 = vmatprep.subr.mxu0 0.0
    %4042 = vmatpush2.msra.mxu0 0.0
    %4043 = vmatprep.subr.mxu0 0.0
    %4044 = vmatpush2.msra.mxu0 0.0
    %4045 = vmatprep.subr.mxu0 0.0
    %4046 = vmatpush2.msra.mxu0 0.0
    %4047 = vmatprep.subr.mxu0 0.0
    %4048 = vmatpush2.msra.mxu0 0.0
    %4049 = vmatprep.subr.mxu0 0.0
    %4050 = vmatpush2.msra.mxu0 0.0
    %4051 = vmatprep.subr.mxu0 0.0
    %4052 = vmatpush2.msra.mxu0 0.0
    %4053 = vmatprep.subr.mxu0 0.0
    %4054 = vmatpush2.msra.mxu0 0.0
    %4055 = vmatprep.subr.mxu0 0.0
    %4056 = vmatpush2.msra.mxu0 0.0
    %4057 = vmatprep.subr.mxu0 0.0
    %4058 = vmatpush2.msra.mxu0 0.0
    %4059 = vmatprep.subr.mxu0 0.0
    %4060 = vmatpush2.msra.mxu0 0.0
    %4061 = vmatprep.subr.mxu0 0.0
    %4062 = vmatpush2.msra.mxu0 0.0
    %4063 = vmatprep.subr.mxu0 0.0
    %4064 = vmatpush2.msra.mxu0 0.0
    %4065 = vmatprep.subr.mxu0 0.0
    %4066 = vmatpush2.msra.mxu0 0.0
    %4067 = vmatprep.mubr.f32.mxu0 0.0
    %4068 = vmatmul.mubr.f32.gmra.mxu0 %v4001
    %v4069 = vpop.f32.mrf.mxu0
    %v4070 = vadd.f32 0.0, %v4069
    %v4071 = vpop.f32.mrf.mxu0
    %4072 = vdwg.mxu0
    %v4073 = vadd.f32 %v3910, %v4070
    %v4074 = vld [vmem:[#allocation31] sm:$0x1]
    %v4076 = vlaneseq
    %v4077 = vshrl.u32 %v4076, 7
    %v4078 = vsub.s32 0, %v4077
    %v4079 = vrot.slane %v4074, %v4078
    %v4081 = vadd.f32 %v4073, %v4079
    %v4082 = vld [vmem:[#allocation35] sm:$0xff]
    %v4083 = vld [vmem:[#allocation37] sm:$0x1]
    %v4085 = vlaneseq
    %v4086 = vshrl.u32 %v4085, 7
    %v4087 = vsub.s32 0, %v4086
    %v4088 = vrot.slane %v4083, %v4087
    %4090 = vmatprep.subr.mxu0 0.0
    %4091 = vmatpush1.msra.mxu0 0.0
    %4092 = vmatprep.subr.mxu0 0.0
    %4093 = vmatpush1.msra.mxu0 0.0
    %4094 = vmatprep.subr.mxu0 0.0
    %4095 = vmatpush1.msra.mxu0 0.0
    %4096 = vmatprep.subr.mxu0 0.0
    %4097 = vmatpush1.msra.mxu0 0.0
    %4098 = vmatprep.subr.mxu0 0.0
    %4099 = vmatpush1.msra.mxu0 0.0
    %4100 = vmatprep.subr.mxu0 0.0
    %4101 = vmatpush1.msra.mxu0 0.0
    %4102 = vmatprep.subr.mxu0 0.0
    %4103 = vmatpush1.msra.mxu0 0.0
    %4104 = vmatprep.subr.mxu0 0.0
    %4105 = vmatpush1.msra.mxu0 0.0
    %4106 = vmatprep.subr.mxu0 0.0
    %4107 = vmatpush1.msra.mxu0 0.0
    %4108 = vmatprep.subr.mxu0 0.0
    %4109 = vmatpush1.msra.mxu0 0.0
    %4110 = vmatprep.subr.mxu0 0.0
    %4111 = vmatpush1.msra.mxu0 0.0
    %4112 = vmatprep.subr.mxu0 0.0
    %4113 = vmatpush1.msra.mxu0 0.0
    %4114 = vmatprep.subr.mxu0 0.0
    %4115 = vmatpush1.msra.mxu0 0.0
    %4116 = vmatprep.subr.mxu0 0.0
    %4117 = vmatpush1.msra.mxu0 0.0
    %4118 = vmatprep.subr.mxu0 0.0
    %4119 = vmatpush1.msra.mxu0 0.0
    %4120 = vmatprep.subr.mxu0 0.0
    %4121 = vmatpush1.msra.mxu0 %v4082
    %4122 = vmatprep.subr.mxu0 0.0
    %4123 = vmatpush2.msra.mxu0 0.0
    %4124 = vmatprep.subr.mxu0 0.0
    %4125 = vmatpush2.msra.mxu0 0.0
    %4126 = vmatprep.subr.mxu0 0.0
    %4127 = vmatpush2.msra.mxu0 0.0
    %4128 = vmatprep.subr.mxu0 0.0
    %4129 = vmatpush2.msra.mxu0 0.0
    %4130 = vmatprep.subr.mxu0 0.0
    %4131 = vmatpush2.msra.mxu0 0.0
    %4132 = vmatprep.subr.mxu0 0.0
    %4133 = vmatpush2.msra.mxu0 0.0
    %4134 = vmatprep.subr.mxu0 0.0
    %4135 = vmatpush2.msra.mxu0 0.0
    %4136 = vmatprep.subr.mxu0 0.0
    %4137 = vmatpush2.msra.mxu0 0.0
    %4138 = vmatprep.subr.mxu0 0.0
    %4139 = vmatpush2.msra.mxu0 0.0
    %4140 = vmatprep.subr.mxu0 0.0
    %4141 = vmatpush2.msra.mxu0 0.0
    %4142 = vmatprep.subr.mxu0 0.0
    %4143 = vmatpush2.msra.mxu0 0.0
    %4144 = vmatprep.subr.mxu0 0.0
    %4145 = vmatpush2.msra.mxu0 0.0
    %4146 = vmatprep.subr.mxu0 0.0
    %4147 = vmatpush2.msra.mxu0 0.0
    %4148 = vmatprep.subr.mxu0 0.0
    %4149 = vmatpush2.msra.mxu0 0.0
    %4150 = vmatprep.subr.mxu0 0.0
    %4151 = vmatpush2.msra.mxu0 0.0
    %4152 = vmatprep.subr.mxu0 0.0
    %4153 = vmatpush2.msra.mxu0 0.0
    %4154 = vmatprep.mubr.f32.mxu0 0.0
    %4155 = vmatmul.mubr.f32.gmra.mxu0 %v3242
    %v4156 = vpop.f32.mrf.mxu0
    %v4157 = vadd.f32 %v4088, %v4156
    %v4158 = vpop.f32.mrf.mxu0
    %4159 = vdwg.mxu0
    %v4160 = vsel %vm1934, %v4157, 0.0
    %v4161 = vrot.slane %v4160, 4
    %v4162 = vadd.f32 %v4160, %v4161
    %v4163 = vrot.slane %v4162, 2
    %v4164 = vadd.f32 %v4162, %v4163
    %v4165 = vrot.slane %v4164, 1
    %v4166 = vadd.f32 %v4164, %v4165
    %v4167 = vmul.f32 %v4166, %v3562
    %v4168 = vsub.f32 %v4157, %v4167
    %v4169 = vmul.f32 %v4168, %v4168
    %v4170 = vsel %vm1934, %v4169, 0.0
    %v4171 = vrot.slane %v4170, 4
    %v4172 = vadd.f32 %v4170, %v4171
    %v4173 = vrot.slane %v4172, 2
    %v4174 = vadd.f32 %v4172, %v4173
    %v4175 = vrot.slane %v4174, 1
    %v4176 = vadd.f32 %v4174, %v4175
    %v4177 = vmul.f32 %v4176, %v3562
    %v4178 = vld [vmem:[#allocation38] sm:$0x1]
    %v4179 = vadd.f32 %v4177, 1e-05
    %v4180 = vrsqrt.pop %v4179
    %v4181 = vmul.f32 %v4178, %v4180
    %v4183 = vlaneseq
    %v4184 = vshrl.u32 %v4183, 7
    %v4185 = vsub.s32 0, %v4184
    %v4186 = vrot.slane %v4181, %v4185
    %v4188 = vmul.f32 %v4168, %v4186
    %v4189 = vld [vmem:[#allocation40] sm:$0x1]
    %v4191 = vlaneseq
    %v4192 = vshrl.u32 %v4191, 7
    %v4193 = vsub.s32 0, %v4192
    %v4194 = vrot.slane %v4189, %v4193
    %v4196 = vadd.f32 %v4188, %v4194
    %v4197 = vsel %vm1934, %v4081, 0.0
    %v4198 = vrot.slane %v4197, 4
    %v4199 = vadd.f32 %v4197, %v4198
    %v4200 = vrot.slane %v4199, 2
    %v4201 = vadd.f32 %v4199, %v4200
    %v4202 = vrot.slane %v4201, 1
    %v4203 = vadd.f32 %v4201, %v4202
    %v4204 = vmul.f32 %v4203, %v3562
    %v4205 = vsub.f32 %v4081, %v4204
    %v4206 = vmul.f32 %v4205, %v4205
    %v4207 = vsel %vm1934, %v4206, 0.0
    %v4208 = vrot.slane %v4207, 4
    %v4209 = vadd.f32 %v4207, %v4208
    %v4210 = vrot.slane %v4209, 2
    %v4211 = vadd.f32 %v4209, %v4210
    %v4212 = vrot.slane %v4211, 1
    %v4213 = vadd.f32 %v4211, %v4212
    %v4214 = vmul.f32 %v4213, %v3562
    %v4215 = vld [vmem:[#allocation32] sm:$0x1]
    %v4216 = vadd.f32 %v4214, 1e-05
    %v4217 = vrsqrt.pop %v4216
    %v4218 = vmul.f32 %v4215, %v4217
    %v4220 = vlaneseq
    %v4221 = vshrl.u32 %v4220, 7
    %v4222 = vsub.s32 0, %v4221
    %v4223 = vrot.slane %v4218, %v4222
    %v4225 = vmul.f32 %v4205, %v4223
    %v4226 = vld [vmem:[#allocation34] sm:$0x1]
    %v4228 = vlaneseq
    %v4229 = vshrl.u32 %v4228, 7
    %v4230 = vsub.s32 0, %v4229
    %v4231 = vrot.slane %v4226, %v4230
    %v4233 = vadd.f32 %v4225, %v4231
    %v4234 = vadd.f32 %v4233, %v4196
    %v4235 = vmax.f32 %v4234, 0.0
    %vm4236 = vcmp.ge.f32.partialorder %v746, 2.0
    %v4237 = vsel %vm4236, 1, 0
    %v4238 = vcvt.s32.f32 %v4237
    %v4239 = vadd.f32 %v4238, 0.0
    %v4240 = vmul.f32 %v4239, 2.0
    %v4241 = vsub.f32 %v746, %v4240
    %v4242 = vmul.f32 %v4241, 2.0
    %v4243 = vadd.f32 %v4242, -1.0
    %vm4244 = vcmp.ge.f32.partialorder %v4243, 0.0
    %vm4245 = vcmp.le.f32.partialorder %v4243, 3.0
    %vm4246 = vmand %vm4244, %vm4245
    %v4247 = vmul.f32 %v4239, 4.0
    %v4248 = vadd.f32 %v4247, %v4243
    %vm4249 = vcmp.eq.f32.partialorder %v794, %v4248
    %v4250 = vsel %vm4246, 1, 0
    %vm4251 = vcmp.eq.s32.totalorder %v4250, 1
    %vm4252 = vmand %vm4249, %vm4251
    %v4253 = vsel %vm4252, 1, 0
    %v4254 = vcvt.s32.f32 %v4253
    %v4256 = vsel %vm1061, %v4254, 0
    %4258 = vmatprep.subr.mxu0 0.0
    %4259 = vmatpush1.msra.mxu0 0.0
    %4260 = vmatprep.subr.mxu0 0.0
    %4261 = vmatpush1.msra.mxu0 0.0
    %4262 = vmatprep.subr.mxu0 0.0
    %4263 = vmatpush1.msra.mxu0 0.0
    %4264 = vmatprep.subr.mxu0 0.0
    %4265 = vmatpush1.msra.mxu0 0.0
    %4266 = vmatprep.subr.mxu0 0.0
    %4267 = vmatpush1.msra.mxu0 0.0
    %4268 = vmatprep.subr.mxu0 0.0
    %4269 = vmatpush1.msra.mxu0 0.0
    %4270 = vmatprep.subr.mxu0 0.0
    %4271 = vmatpush1.msra.mxu0 0.0
    %4272 = vmatprep.subr.mxu0 0.0
    %4273 = vmatpush1.msra.mxu0 0.0
    %4274 = vmatprep.subr.mxu0 0.0
    %4275 = vmatpush1.msra.mxu0 0.0
    %4276 = vmatprep.subr.mxu0 0.0
    %4277 = vmatpush1.msra.mxu0 0.0
    %4278 = vmatprep.subr.mxu0 0.0
    %4279 = vmatpush1.msra.mxu0 0.0
    %4280 = vmatprep.subr.mxu0 0.0
    %4281 = vmatpush1.msra.mxu0 0.0
    %4282 = vmatprep.subr.mxu0 0.0
    %4283 = vmatpush1.msra.mxu0 0.0
    %4284 = vmatprep.subr.mxu0 0.0
    %4285 = vmatpush1.msra.mxu0 0.0
    %4286 = vmatprep.subr.mxu0 0.0
    %4287 = vmatpush1.msra.mxu0 0.0
    %4288 = vmatprep.subr.mxu0 0.0
    %4289 = vmatpush1.msra.mxu0 %v4235
    %4290 = vmatprep.subr.mxu0 0.0
    %4291 = vmatpush2.msra.mxu0 0.0
    %4292 = vmatprep.subr.mxu0 0.0
    %4293 = vmatpush2.msra.mxu0 0.0
    %4294 = vmatprep.subr.mxu0 0.0
    %4295 = vmatpush2.msra.mxu0 0.0
    %4296 = vmatprep.subr.mxu0 0.0
    %4297 = vmatpush2.msra.mxu0 0.0
    %4298 = vmatprep.subr.mxu0 0.0
    %4299 = vmatpush2.msra.mxu0 0.0
    %4300 = vmatprep.subr.mxu0 0.0
    %4301 = vmatpush2.msra.mxu0 0.0
    %4302 = vmatprep.subr.mxu0 0.0
    %4303 = vmatpush2.msra.mxu0 0.0
    %4304 = vmatprep.subr.mxu0 0.0
    %4305 = vmatpush2.msra.mxu0 0.0
    %4306 = vmatprep.subr.mxu0 0.0
    %4307 = vmatpush2.msra.mxu0 0.0
    %4308 = vmatprep.subr.mxu0 0.0
    %4309 = vmatpush2.msra.mxu0 0.0
    %4310 = vmatprep.subr.mxu0 0.0
    %4311 = vmatpush2.msra.mxu0 0.0
    %4312 = vmatprep.subr.mxu0 0.0
    %4313 = vmatpush2.msra.mxu0 0.0
    %4314 = vmatprep.subr.mxu0 0.0
    %4315 = vmatpush2.msra.mxu0 0.0
    %4316 = vmatprep.subr.mxu0 0.0
    %4317 = vmatpush2.msra.mxu0 0.0
    %4318 = vmatprep.subr.mxu0 0.0
    %4319 = vmatpush2.msra.mxu0 0.0
    %4320 = vmatprep.subr.mxu0 0.0
    %4321 = vmatpush2.msra.mxu0 0.0
    %4322 = vmatprep.mubr.f32.mxu0 0.0
    %4323 = vmatmul.mubr.f32.gmra.mxu0 %v4256
    %v4324 = vpop.f32.mrf.mxu0
    %v4325 = vadd.f32 0.0, %v4324
    %v4326 = vpop.f32.mrf.mxu0
    %4327 = vdwg.mxu0
    %v4328 = vld [vmem:[#allocation41] sm:$0xff]
    %v4329 = vld [vmem:[#allocation41 + $0x8] sm:$0xff]
    %v4330 = vadd.f32 %v4242, 0.0
    %vm4331 = vcmp.ge.f32.partialorder %v4330, 0.0
    %vm4332 = vcmp.le.f32.partialorder %v4330, 3.0
    %vm4333 = vmand %vm4331, %vm4332
    %v4334 = vadd.f32 %v4247, %v4330
    %vm4335 = vcmp.eq.f32.partialorder %v794, %v4334
    %v4336 = vsel %vm4333, 1, 0
    %vm4337 = vcmp.eq.s32.totalorder %v4336, 1
    %vm4338 = vmand %vm4335, %vm4337
    %v4339 = vsel %vm4338, 1, 0
    %v4340 = vcvt.s32.f32 %v4339
    %v4342 = vsel %vm1061, %v4340, 0
    %4344 = vmatprep.subr.mxu0 0.0
    %4345 = vmatpush1.msra.mxu0 0.0
    %4346 = vmatprep.subr.mxu0 0.0
    %4347 = vmatpush1.msra.mxu0 0.0
    %4348 = vmatprep.subr.mxu0 0.0
    %4349 = vmatpush1.msra.mxu0 0.0
    %4350 = vmatprep.subr.mxu0 0.0
    %4351 = vmatpush1.msra.mxu0 0.0
    %4352 = vmatprep.subr.mxu0 0.0
    %4353 = vmatpush1.msra.mxu0 0.0
    %4354 = vmatprep.subr.mxu0 0.0
    %4355 = vmatpush1.msra.mxu0 0.0
    %4356 = vmatprep.subr.mxu0 0.0
    %4357 = vmatpush1.msra.mxu0 0.0
    %4358 = vmatprep.subr.mxu0 0.0
    %4359 = vmatpush1.msra.mxu0 0.0
    %4360 = vmatprep.subr.mxu0 0.0
    %4361 = vmatpush1.msra.mxu0 0.0
    %4362 = vmatprep.subr.mxu0 0.0
    %4363 = vmatpush1.msra.mxu0 0.0
    %4364 = vmatprep.subr.mxu0 0.0
    %4365 = vmatpush1.msra.mxu0 0.0
    %4366 = vmatprep.subr.mxu0 0.0
    %4367 = vmatpush1.msra.mxu0 0.0
    %4368 = vmatprep.subr.mxu0 0.0
    %4369 = vmatpush1.msra.mxu0 0.0
    %4370 = vmatprep.subr.mxu0 0.0
    %4371 = vmatpush1.msra.mxu0 0.0
    %4372 = vmatprep.subr.mxu0 0.0
    %4373 = vmatpush1.msra.mxu0 0.0
    %4374 = vmatprep.subr.mxu0 0.0
    %4375 = vmatpush1.msra.mxu0 %v4235
    %4376 = vmatprep.subr.mxu0 0.0
    %4377 = vmatpush2.msra.mxu0 0.0
    %4378 = vmatprep.subr.mxu0 0.0
    %4379 = vmatpush2.msra.mxu0 0.0
    %4380 = vmatprep.subr.mxu0 0.0
    %4381 = vmatpush2.msra.mxu0 0.0
    %4382 = vmatprep.subr.mxu0 0.0
    %4383 = vmatpush2.msra.mxu0 0.0
    %4384 = vmatprep.subr.mxu0 0.0
    %4385 = vmatpush2.msra.mxu0 0.0
    %4386 = vmatprep.subr.mxu0 0.0
    %4387 = vmatpush2.msra.mxu0 0.0
    %4388 = vmatprep.subr.mxu0 0.0
    %4389 = vmatpush2.msra.mxu0 0.0
    %4390 = vmatprep.subr.mxu0 0.0
    %4391 = vmatpush2.msra.mxu0 0.0
    %4392 = vmatprep.subr.mxu0 0.0
    %4393 = vmatpush2.msra.mxu0 0.0
    %4394 = vmatprep.subr.mxu0 0.0
    %4395 = vmatpush2.msra.mxu0 0.0
    %4396 = vmatprep.subr.mxu0 0.0
    %4397 = vmatpush2.msra.mxu0 0.0
    %4398 = vmatprep.subr.mxu0 0.0
    %4399 = vmatpush2.msra.mxu0 0.0
    %4400 = vmatprep.subr.mxu0 0.0
    %4401 = vmatpush2.msra.mxu0 0.0
    %4402 = vmatprep.subr.mxu0 0.0
    %4403 = vmatpush2.msra.mxu0 0.0
    %4404 = vmatprep.subr.mxu0 0.0
    %4405 = vmatpush2.msra.mxu0 0.0
    %4406 = vmatprep.subr.mxu0 0.0
    %4407 = vmatpush2.msra.mxu0 0.0
    %4408 = vmatprep.mubr.f32.mxu0 0.0
    %4409 = vmatmul.mubr.f32.gmra.mxu0 %v4342
    %v4410 = vpop.f32.mrf.mxu0
    %v4411 = vadd.f32 0.0, %v4410
    %v4412 = vpop.f32.mrf.mxu0
    %4413 = vdwg.mxu0
    %s4414 = scalar_lea.vmem [#allocation41], 16
    %v4415 = vld [vmem:[%s4414] sm:$0xff]
    %v4416 = vld [vmem:[%s4414 + $0x8] sm:$0xff]
    %v4418 = vsel %vm1934, %v4411, 0
    %4420 = vmatprep.subr.mxu0 0.0
    %4421 = vmatpush1.msra.mxu0 0.0
    %4422 = vmatprep.subr.mxu0 0.0
    %4423 = vmatpush1.msra.mxu0 0.0
    %4424 = vmatprep.subr.mxu0 0.0
    %4425 = vmatpush1.msra.mxu0 0.0
    %4426 = vmatprep.subr.mxu0 0.0
    %4427 = vmatpush1.msra.mxu0 0.0
    %4428 = vmatprep.subr.mxu0 0.0
    %4429 = vmatpush1.msra.mxu0 0.0
    %4430 = vmatprep.subr.mxu0 0.0
    %4431 = vmatpush1.msra.mxu0 0.0
    %4432 = vmatprep.subr.mxu0 0.0
    %4433 = vmatpush1.msra.mxu0 0.0
    %4434 = vmatprep.subr.mxu0 0.0
    %4435 = vmatpush1.msra.mxu0 0.0
    %4436 = vmatprep.subr.mxu0 0.0
    %4437 = vmatpush1.msra.mxu0 0.0
    %4438 = vmatprep.subr.mxu0 0.0
    %4439 = vmatpush1.msra.mxu0 0.0
    %4440 = vmatprep.subr.mxu0 0.0
    %4441 = vmatpush1.msra.mxu0 0.0
    %4442 = vmatprep.subr.mxu0 0.0
    %4443 = vmatpush1.msra.mxu0 0.0
    %4444 = vmatprep.subr.mxu0 0.0
    %4445 = vmatpush1.msra.mxu0 0.0
    %4446 = vmatprep.subr.mxu0 0.0
    %4447 = vmatpush1.msra.mxu0 0.0
    %4448 = vmatprep.subr.mxu0 0.0
    %4449 = vmatpush1.msra.mxu0 %v4416
    %4450 = vmatprep.subr.mxu0 0.0
    %4451 = vmatpush1.msra.mxu0 %v4415
    %4452 = vmatprep.subr.mxu0 0.0
    %4453 = vmatpush2.msra.mxu0 0.0
    %4454 = vmatprep.subr.mxu0 0.0
    %4455 = vmatpush2.msra.mxu0 0.0
    %4456 = vmatprep.subr.mxu0 0.0
    %4457 = vmatpush2.msra.mxu0 0.0
    %4458 = vmatprep.subr.mxu0 0.0
    %4459 = vmatpush2.msra.mxu0 0.0
    %4460 = vmatprep.subr.mxu0 0.0
    %4461 = vmatpush2.msra.mxu0 0.0
    %4462 = vmatprep.subr.mxu0 0.0
    %4463 = vmatpush2.msra.mxu0 0.0
    %4464 = vmatprep.subr.mxu0 0.0
    %4465 = vmatpush2.msra.mxu0 0.0
    %4466 = vmatprep.subr.mxu0 0.0
    %4467 = vmatpush2.msra.mxu0 0.0
    %4468 = vmatprep.subr.mxu0 0.0
    %4469 = vmatpush2.msra.mxu0 0.0
    %4470 = vmatprep.subr.mxu0 0.0
    %4471 = vmatpush2.msra.mxu0 0.0
    %4472 = vmatprep.subr.mxu0 0.0
    %4473 = vmatpush2.msra.mxu0 0.0
    %4474 = vmatprep.subr.mxu0 0.0
    %4475 = vmatpush2.msra.mxu0 0.0
    %4476 = vmatprep.subr.mxu0 0.0
    %4477 = vmatpush2.msra.mxu0 0.0
    %4478 = vmatprep.subr.mxu0 0.0
    %4479 = vmatpush2.msra.mxu0 0.0
    %4480 = vmatprep.subr.mxu0 0.0
    %4481 = vmatpush2.msra.mxu0 0.0
    %4482 = vmatprep.subr.mxu0 0.0
    %4483 = vmatpush2.msra.mxu0 0.0
    %4484 = vmatprep.mubr.f32.mxu0 0.0
    %4485 = vmatmul.mubr.f32.gmra.mxu0 %v4418
    %v4486 = vpop.f32.mrf.mxu0
    %v4487 = vadd.f32 0.0, %v4486
    %v4488 = vpop.f32.mrf.mxu0
    %4489 = vdwg.mxu0
    %v4491 = vsel %vm1934, %v4325, 0
    %4493 = vmatprep.subr.mxu0 0.0
    %4494 = vmatpush1.msra.mxu0 0.0
    %4495 = vmatprep.subr.mxu0 0.0
    %4496 = vmatpush1.msra.mxu0 0.0
    %4497 = vmatprep.subr.mxu0 0.0
    %4498 = vmatpush1.msra.mxu0 0.0
    %4499 = vmatprep.subr.mxu0 0.0
    %4500 = vmatpush1.msra.mxu0 0.0
    %4501 = vmatprep.subr.mxu0 0.0
    %4502 = vmatpush1.msra.mxu0 0.0
    %4503 = vmatprep.subr.mxu0 0.0
    %4504 = vmatpush1.msra.mxu0 0.0
    %4505 = vmatprep.subr.mxu0 0.0
    %4506 = vmatpush1.msra.mxu0 0.0
    %4507 = vmatprep.subr.mxu0 0.0
    %4508 = vmatpush1.msra.mxu0 0.0
    %4509 = vmatprep.subr.mxu0 0.0
    %4510 = vmatpush1.msra.mxu0 0.0
    %4511 = vmatprep.subr.mxu0 0.0
    %4512 = vmatpush1.msra.mxu0 0.0
    %4513 = vmatprep.subr.mxu0 0.0
    %4514 = vmatpush1.msra.mxu0 0.0
    %4515 = vmatprep.subr.mxu0 0.0
    %4516 = vmatpush1.msra.mxu0 0.0
    %4517 = vmatprep.subr.mxu0 0.0
    %4518 = vmatpush1.msra.mxu0 0.0
    %4519 = vmatprep.subr.mxu0 0.0
    %4520 = vmatpush1.msra.mxu0 0.0
    %4521 = vmatprep.subr.mxu0 0.0
    %4522 = vmatpush1.msra.mxu0 %v4329
    %4523 = vmatprep.subr.mxu0 0.0
    %4524 = vmatpush1.msra.mxu0 %v4328
    %4525 = vmatprep.subr.mxu0 0.0
    %4526 = vmatpush2.msra.mxu0 0.0
    %4527 = vmatprep.subr.mxu0 0.0
    %4528 = vmatpush2.msra.mxu0 0.0
    %4529 = vmatprep.subr.mxu0 0.0
    %4530 = vmatpush2.msra.mxu0 0.0
    %4531 = vmatprep.subr.mxu0 0.0
    %4532 = vmatpush2.msra.mxu0 0.0
    %4533 = vmatprep.subr.mxu0 0.0
    %4534 = vmatpush2.msra.mxu0 0.0
    %4535 = vmatprep.subr.mxu0 0.0
    %4536 = vmatpush2.msra.mxu0 0.0
    %4537 = vmatprep.subr.mxu0 0.0
    %4538 = vmatpush2.msra.mxu0 0.0
    %4539 = vmatprep.subr.mxu0 0.0
    %4540 = vmatpush2.msra.mxu0 0.0
    %4541 = vmatprep.subr.mxu0 0.0
    %4542 = vmatpush2.msra.mxu0 0.0
    %4543 = vmatprep.subr.mxu0 0.0
    %4544 = vmatpush2.msra.mxu0 0.0
    %4545 = vmatprep.subr.mxu0 0.0
    %4546 = vmatpush2.msra.mxu0 0.0
    %4547 = vmatprep.subr.mxu0 0.0
    %4548 = vmatpush2.msra.mxu0 0.0
    %4549 = vmatprep.subr.mxu0 0.0
    %4550 = vmatpush2.msra.mxu0 0.0
    %4551 = vmatprep.subr.mxu0 0.0
    %4552 = vmatpush2.msra.mxu0 0.0
    %4553 = vmatprep.subr.mxu0 0.0
    %4554 = vmatpush2.msra.mxu0 0.0
    %4555 = vmatprep.subr.mxu0 0.0
    %4556 = vmatpush2.msra.mxu0 0.0
    %4557 = vmatprep.mubr.f32.mxu0 0.0
    %4558 = vmatmul.mubr.f32.gmra.mxu0 %v4491
    %v4559 = vpop.f32.mrf.mxu0
    %v4560 = vadd.f32 %v4487, %v4559
    %v4561 = vpop.f32.mrf.mxu0
    %4562 = vdwg.mxu0
    %v4563 = vadd.f32 %v4242, 1.0
    %vm4564 = vcmp.ge.f32.partialorder %v4563, 0.0
    %vm4565 = vcmp.le.f32.partialorder %v4563, 3.0
    %vm4566 = vmand %vm4564, %vm4565
    %v4567 = vadd.f32 %v4247, %v4563
    %vm4568 = vcmp.eq.f32.partialorder %v794, %v4567
    %v4569 = vsel %vm4566, 1, 0
    %vm4570 = vcmp.eq.s32.totalorder %v4569, 1
    %vm4571 = vmand %vm4568, %vm4570
    %v4572 = vsel %vm4571, 1, 0
    %v4573 = vcvt.s32.f32 %v4572
    %v4575 = vsel %vm1061, %v4573, 0
    %4577 = vmatprep.subr.mxu0 0.0
    %4578 = vmatpush1.msra.mxu0 0.0
    %4579 = vmatprep.subr.mxu0 0.0
    %4580 = vmatpush1.msra.mxu0 0.0
    %4581 = vmatprep.subr.mxu0 0.0
    %4582 = vmatpush1.msra.mxu0 0.0
    %4583 = vmatprep.subr.mxu0 0.0
    %4584 = vmatpush1.msra.mxu0 0.0
    %4585 = vmatprep.subr.mxu0 0.0
    %4586 = vmatpush1.msra.mxu0 0.0
    %4587 = vmatprep.subr.mxu0 0.0
    %4588 = vmatpush1.msra.mxu0 0.0
    %4589 = vmatprep.subr.mxu0 0.0
    %4590 = vmatpush1.msra.mxu0 0.0
    %4591 = vmatprep.subr.mxu0 0.0
    %4592 = vmatpush1.msra.mxu0 0.0
    %4593 = vmatprep.subr.mxu0 0.0
    %4594 = vmatpush1.msra.mxu0 0.0
    %4595 = vmatprep.subr.mxu0 0.0
    %4596 = vmatpush1.msra.mxu0 0.0
    %4597 = vmatprep.subr.mxu0 0.0
    %4598 = vmatpush1.msra.mxu0 0.0
    %4599 = vmatprep.subr.mxu0 0.0
    %4600 = vmatpush1.msra.mxu0 0.0
    %4601 = vmatprep.subr.mxu0 0.0
    %4602 = vmatpush1.msra.mxu0 0.0
    %4603 = vmatprep.subr.mxu0 0.0
    %4604 = vmatpush1.msra.mxu0 0.0
    %4605 = vmatprep.subr.mxu0 0.0
    %4606 = vmatpush1.msra.mxu0 0.0
    %4607 = vmatprep.subr.mxu0 0.0
    %4608 = vmatpush1.msra.mxu0 %v4235
    %4609 = vmatprep.subr.mxu0 0.0
    %4610 = vmatpush2.msra.mxu0 0.0
    %4611 = vmatprep.subr.mxu0 0.0
    %4612 = vmatpush2.msra.mxu0 0.0
    %4613 = vmatprep.subr.mxu0 0.0
    %4614 = vmatpush2.msra.mxu0 0.0
    %4615 = vmatprep.subr.mxu0 0.0
    %4616 = vmatpush2.msra.mxu0 0.0
    %4617 = vmatprep.subr.mxu0 0.0
    %4618 = vmatpush2.msra.mxu0 0.0
    %4619 = vmatprep.subr.mxu0 0.0
    %4620 = vmatpush2.msra.mxu0 0.0
    %4621 = vmatprep.subr.mxu0 0.0
    %4622 = vmatpush2.msra.mxu0 0.0
    %4623 = vmatprep.subr.mxu0 0.0
    %4624 = vmatpush2.msra.mxu0 0.0
    %4625 = vmatprep.subr.mxu0 0.0
    %4626 = vmatpush2.msra.mxu0 0.0
    %4627 = vmatprep.subr.mxu0 0.0
    %4628 = vmatpush2.msra.mxu0 0.0
    %4629 = vmatprep.subr.mxu0 0.0
    %4630 = vmatpush2.msra.mxu0 0.0
    %4631 = vmatprep.subr.mxu0 0.0
    %4632 = vmatpush2.msra.mxu0 0.0
    %4633 = vmatprep.subr.mxu0 0.0
    %4634 = vmatpush2.msra.mxu0 0.0
    %4635 = vmatprep.subr.mxu0 0.0
    %4636 = vmatpush2.msra.mxu0 0.0
    %4637 = vmatprep.subr.mxu0 0.0
    %4638 = vmatpush2.msra.mxu0 0.0
    %4639 = vmatprep.subr.mxu0 0.0
    %4640 = vmatpush2.msra.mxu0 0.0
    %4641 = vmatprep.mubr.f32.mxu0 0.0
    %4642 = vmatmul.mubr.f32.gmra.mxu0 %v4575
    %v4643 = vpop.f32.mrf.mxu0
    %v4644 = vadd.f32 0.0, %v4643
    %v4645 = vpop.f32.mrf.mxu0
    %4646 = vdwg.mxu0
    %s4647 = scalar_lea.vmem [#allocation41], 32
    %v4648 = vld [vmem:[%s4647] sm:$0xff]
    %v4649 = vld [vmem:[%s4647 + $0x8] sm:$0xff]
    %v4651 = vsel %vm1934, %v4644, 0
    %4653 = vmatprep.subr.mxu0 0.0
    %4654 = vmatpush1.msra.mxu0 0.0
    %4655 = vmatprep.subr.mxu0 0.0
    %4656 = vmatpush1.msra.mxu0 0.0
    %4657 = vmatprep.subr.mxu0 0.0
    %4658 = vmatpush1.msra.mxu0 0.0
    %4659 = vmatprep.subr.mxu0 0.0
    %4660 = vmatpush1.msra.mxu0 0.0
    %4661 = vmatprep.subr.mxu0 0.0
    %4662 = vmatpush1.msra.mxu0 0.0
    %4663 = vmatprep.subr.mxu0 0.0
    %4664 = vmatpush1.msra.mxu0 0.0
    %4665 = vmatprep.subr.mxu0 0.0
    %4666 = vmatpush1.msra.mxu0 0.0
    %4667 = vmatprep.subr.mxu0 0.0
    %4668 = vmatpush1.msra.mxu0 0.0
    %4669 = vmatprep.subr.mxu0 0.0
    %4670 = vmatpush1.msra.mxu0 0.0
    %4671 = vmatprep.subr.mxu0 0.0
    %4672 = vmatpush1.msra.mxu0 0.0
    %4673 = vmatprep.subr.mxu0 0.0
    %4674 = vmatpush1.msra.mxu0 0.0
    %4675 = vmatprep.subr.mxu0 0.0
    %4676 = vmatpush1.msra.mxu0 0.0
    %4677 = vmatprep.subr.mxu0 0.0
    %4678 = vmatpush1.msra.mxu0 0.0
    %4679 = vmatprep.subr.mxu0 0.0
    %4680 = vmatpush1.msra.mxu0 0.0
    %4681 = vmatprep.subr.mxu0 0.0
    %4682 = vmatpush1.msra.mxu0 %v4649
    %4683 = vmatprep.subr.mxu0 0.0
    %4684 = vmatpush1.msra.mxu0 %v4648
    %4685 = vmatprep.subr.mxu0 0.0
    %4686 = vmatpush2.msra.mxu0 0.0
    %4687 = vmatprep.subr.mxu0 0.0
    %4688 = vmatpush2.msra.mxu0 0.0
    %4689 = vmatprep.subr.mxu0 0.0
    %4690 = vmatpush2.msra.mxu0 0.0
    %4691 = vmatprep.subr.mxu0 0.0
    %4692 = vmatpush2.msra.mxu0 0.0
    %4693 = vmatprep.subr.mxu0 0.0
    %4694 = vmatpush2.msra.mxu0 0.0
    %4695 = vmatprep.subr.mxu0 0.0
    %4696 = vmatpush2.msra.mxu0 0.0
    %4697 = vmatprep.subr.mxu0 0.0
    %4698 = vmatpush2.msra.mxu0 0.0
    %4699 = vmatprep.subr.mxu0 0.0
    %4700 = vmatpush2.msra.mxu0 0.0
    %4701 = vmatprep.subr.mxu0 0.0
    %4702 = vmatpush2.msra.mxu0 0.0
    %4703 = vmatprep.subr.mxu0 0.0
    %4704 = vmatpush2.msra.mxu0 0.0
    %4705 = vmatprep.subr.mxu0 0.0
    %4706 = vmatpush2.msra.mxu0 0.0
    %4707 = vmatprep.subr.mxu0 0.0
    %4708 = vmatpush2.msra.mxu0 0.0
    %4709 = vmatprep.subr.mxu0 0.0
    %4710 = vmatpush2.msra.mxu0 0.0
    %4711 = vmatprep.subr.mxu0 0.0
    %4712 = vmatpush2.msra.mxu0 0.0
    %4713 = vmatprep.subr.mxu0 0.0
    %4714 = vmatpush2.msra.mxu0 0.0
    %4715 = vmatprep.subr.mxu0 0.0
    %4716 = vmatpush2.msra.mxu0 0.0
    %4717 = vmatprep.mubr.f32.mxu0 0.0
    %4718 = vmatmul.mubr.f32.gmra.mxu0 %v4651
    %v4719 = vpop.f32.mrf.mxu0
    %v4720 = vadd.f32 0.0, %v4719
    %v4721 = vpop.f32.mrf.mxu0
    %4722 = vdwg.mxu0
    %v4723 = vadd.f32 %v4560, %v4720
    %v4724 = vld [vmem:[#allocation43] sm:$0x1]
    %v4726 = vlaneseq
    %v4727 = vshrl.u32 %v4726, 7
    %v4728 = vsub.s32 0, %v4727
    %v4729 = vrot.slane %v4724, %v4728
    %v4731 = vadd.f32 %v4723, %v4729
    %vm4732 = vcmask 257024
    %v4733 = vsel %vm4732, %v4731, 0.0
    %v4734 = vrot.slane %v4733, 4
    %v4735 = vadd.f32 %v4733, %v4734
    %v4736 = vrot.slane %v4735, 2
    %v4737 = vadd.f32 %v4735, %v4736
    %v4738 = vrot.slane %v4737, 1
    %v4739 = vadd.f32 %v4737, %v4738
    %v4740 = vrcp.pop 4.0
    %v4741 = vmul.f32 %v4739, %v4740
    %v4742 = vsub.f32 %v4731, %v4741
    %v4743 = vmul.f32 %v4742, %v4742
    %v4744 = vsel %vm4732, %v4743, 0.0
    %v4745 = vrot.slane %v4744, 4
    %v4746 = vadd.f32 %v4744, %v4745
    %v4747 = vrot.slane %v4746, 2
    %v4748 = vadd.f32 %v4746, %v4747
    %v4749 = vrot.slane %v4748, 1
    %v4750 = vadd.f32 %v4748, %v4749
    %v4751 = vmul.f32 %v4750, %v4740
    %v4752 = vld [vmem:[#allocation44] sm:$0x1]
    %v4753 = vadd.f32 %v4751, 1e-05
    %v4754 = vrsqrt.pop %v4753
    %v4755 = vmul.f32 %v4752, %v4754
    %v4757 = vlaneseq
    %v4758 = vshrl.u32 %v4757, 7
    %v4759 = vsub.s32 0, %v4758
    %v4760 = vrot.slane %v4755, %v4759
    %v4762 = vmul.f32 %v4742, %v4760
    %v4763 = vld [vmem:[#allocation46] sm:$0x1]
    %v4765 = vlaneseq
    %v4766 = vshrl.u32 %v4765, 7
    %v4767 = vsub.s32 0, %v4766
    %v4768 = vrot.slane %v4763, %v4767
    %v4770 = vadd.f32 %v4762, %v4768
    %v4771 = vmax.f32 %v4770, 0.0
    %v4772 = vadd.f32 %v4241, -1.0
    %vm4773 = vcmp.ge.f32.partialorder %v4772, 0.0
    %vm4774 = vcmp.le.f32.partialorder %v4772, 1.0
    %vm4775 = vmand %vm4773, %vm4774
    %v4776 = vadd.f32 %v4240, %v4772
    %vm4777 = vcmp.eq.f32.partialorder %v794, %v4776
    %v4778 = vsel %vm4775, 1, 0
    %vm4779 = vcmp.eq.s32.totalorder %v4778, 1
    %vm4780 = vmand %vm4777, %vm4779
    %v4781 = vsel %vm4780, 1, 0
    %v4782 = vcvt.s32.f32 %v4781
    %vm4783 = vcmask 31744
    %v4785 = vsel %vm4783, %v4782, 0
    %vm4787 = vcmask 1043456
    %v4789 = vsel %vm4787, %v4771, 0
    %4791 = vmatprep.subr.mxu0 0.0
    %4792 = vmatpush1.msra.mxu0 0.0
    %4793 = vmatprep.subr.mxu0 0.0
    %4794 = vmatpush1.msra.mxu0 0.0
    %4795 = vmatprep.subr.mxu0 0.0
    %4796 = vmatpush1.msra.mxu0 0.0
    %4797 = vmatprep.subr.mxu0 0.0
    %4798 = vmatpush1.msra.mxu0 0.0
    %4799 = vmatprep.subr.mxu0 0.0
    %4800 = vmatpush1.msra.mxu0 0.0
    %4801 = vmatprep.subr.mxu0 0.0
    %4802 = vmatpush1.msra.mxu0 0.0
    %4803 = vmatprep.subr.mxu0 0.0
    %4804 = vmatpush1.msra.mxu0 0.0
    %4805 = vmatprep.subr.mxu0 0.0
    %4806 = vmatpush1.msra.mxu0 0.0
    %4807 = vmatprep.subr.mxu0 0.0
    %4808 = vmatpush1.msra.mxu0 0.0
    %4809 = vmatprep.subr.mxu0 0.0
    %4810 = vmatpush1.msra.mxu0 0.0
    %4811 = vmatprep.subr.mxu0 0.0
    %4812 = vmatpush1.msra.mxu0 0.0
    %4813 = vmatprep.subr.mxu0 0.0
    %4814 = vmatpush1.msra.mxu0 0.0
    %4815 = vmatprep.subr.mxu0 0.0
    %4816 = vmatpush1.msra.mxu0 0.0
    %4817 = vmatprep.subr.mxu0 0.0
    %4818 = vmatpush1.msra.mxu0 0.0
    %4819 = vmatprep.subr.mxu0 0.0
    %4820 = vmatpush1.msra.mxu0 0.0
    %4821 = vmatprep.subr.mxu0 0.0
    %4822 = vmatpush1.msra.mxu0 %v4789
    %4823 = vmatprep.subr.mxu0 0.0
    %4824 = vmatpush2.msra.mxu0 0.0
    %4825 = vmatprep.subr.mxu0 0.0
    %4826 = vmatpush2.msra.mxu0 0.0
    %4827 = vmatprep.subr.mxu0 0.0
    %4828 = vmatpush2.msra.mxu0 0.0
    %4829 = vmatprep.subr.mxu0 0.0
    %4830 = vmatpush2.msra.mxu0 0.0
    %4831 = vmatprep.subr.mxu0 0.0
    %4832 = vmatpush2.msra.mxu0 0.0
    %4833 = vmatprep.subr.mxu0 0.0
    %4834 = vmatpush2.msra.mxu0 0.0
    %4835 = vmatprep.subr.mxu0 0.0
    %4836 = vmatpush2.msra.mxu0 0.0
    %4837 = vmatprep.subr.mxu0 0.0
    %4838 = vmatpush2.msra.mxu0 0.0
    %4839 = vmatprep.subr.mxu0 0.0
    %4840 = vmatpush2.msra.mxu0 0.0
    %4841 = vmatprep.subr.mxu0 0.0
    %4842 = vmatpush2.msra.mxu0 0.0
    %4843 = vmatprep.subr.mxu0 0.0
    %4844 = vmatpush2.msra.mxu0 0.0
    %4845 = vmatprep.subr.mxu0 0.0
    %4846 = vmatpush2.msra.mxu0 0.0
    %4847 = vmatprep.subr.mxu0 0.0
    %4848 = vmatpush2.msra.mxu0 0.0
    %4849 = vmatprep.subr.mxu0 0.0
    %4850 = vmatpush2.msra.mxu0 0.0
    %4851 = vmatprep.subr.mxu0 0.0
    %4852 = vmatpush2.msra.mxu0 0.0
    %4853 = vmatprep.subr.mxu0 0.0
    %4854 = vmatpush2.msra.mxu0 0.0
    %4855 = vmatprep.mubr.f32.mxu0 0.0
    %4856 = vmatmul.mubr.f32.gmra.mxu0 %v4785
    %v4857 = vpop.f32.mrf.mxu0
    %v4858 = vadd.f32 0.0, %v4857
    %v4859 = vpop.f32.mrf.mxu0
    %4860 = vdwg.mxu0
    %v4861 = vld [vmem:[%s65] sm:$0xff]
    %v4862 = vld [vmem:[%s65 + $0x8] sm:$0xff]
    %v4863 = vld [vmem:[%s65 + $0x10] sm:$0xff]
    %v4864 = vld [vmem:[%s65 + $0x18] sm:$0xff]
    %v4865 = vadd.f32 %v4241, 0.0
    %vm4866 = vcmp.ge.f32.partialorder %v4865, 0.0
    %vm4867 = vcmp.le.f32.partialorder %v4865, 1.0
    %vm4868 = vmand %vm4866, %vm4867
    %v4869 = vadd.f32 %v4240, %v4865
    %vm4870 = vcmp.eq.f32.partialorder %v794, %v4869
    %v4871 = vsel %vm4868, 1, 0
    %vm4872 = vcmp.eq.s32.totalorder %v4871, 1
    %vm4873 = vmand %vm4870, %vm4872
    %v4874 = vsel %vm4873, 1, 0
    %v4875 = vcvt.s32.f32 %v4874
    %v4877 = vsel %vm4783, %v4875, 0
    %4879 = vmatprep.subr.mxu0 0.0
    %4880 = vmatpush1.msra.mxu0 0.0
    %4881 = vmatprep.subr.mxu0 0.0
    %4882 = vmatpush1.msra.mxu0 0.0
    %4883 = vmatprep.subr.mxu0 0.0
    %4884 = vmatpush1.msra.mxu0 0.0
    %4885 = vmatprep.subr.mxu0 0.0
    %4886 = vmatpush1.msra.mxu0 0.0
    %4887 = vmatprep.subr.mxu0 0.0
    %4888 = vmatpush1.msra.mxu0 0.0
    %4889 = vmatprep.subr.mxu0 0.0
    %4890 = vmatpush1.msra.mxu0 0.0
    %4891 = vmatprep.subr.mxu0 0.0
    %4892 = vmatpush1.msra.mxu0 0.0
    %4893 = vmatprep.subr.mxu0 0.0
    %4894 = vmatpush1.msra.mxu0 0.0
    %4895 = vmatprep.subr.mxu0 0.0
    %4896 = vmatpush1.msra.mxu0 0.0
    %4897 = vmatprep.subr.mxu0 0.0
    %4898 = vmatpush1.msra.mxu0 0.0
    %4899 = vmatprep.subr.mxu0 0.0
    %4900 = vmatpush1.msra.mxu0 0.0
    %4901 = vmatprep.subr.mxu0 0.0
    %4902 = vmatpush1.msra.mxu0 0.0
    %4903 = vmatprep.subr.mxu0 0.0
    %4904 = vmatpush1.msra.mxu0 0.0
    %4905 = vmatprep.subr.mxu0 0.0
    %4906 = vmatpush1.msra.mxu0 0.0
    %4907 = vmatprep.subr.mxu0 0.0
    %4908 = vmatpush1.msra.mxu0 0.0
    %4909 = vmatprep.subr.mxu0 0.0
    %4910 = vmatpush1.msra.mxu0 %v4789
    %4911 = vmatprep.subr.mxu0 0.0
    %4912 = vmatpush2.msra.mxu0 0.0
    %4913 = vmatprep.subr.mxu0 0.0
    %4914 = vmatpush2.msra.mxu0 0.0
    %4915 = vmatprep.subr.mxu0 0.0
    %4916 = vmatpush2.msra.mxu0 0.0
    %4917 = vmatprep.subr.mxu0 0.0
    %4918 = vmatpush2.msra.mxu0 0.0
    %4919 = vmatprep.subr.mxu0 0.0
    %4920 = vmatpush2.msra.mxu0 0.0
    %4921 = vmatprep.subr.mxu0 0.0
    %4922 = vmatpush2.msra.mxu0 0.0
    %4923 = vmatprep.subr.mxu0 0.0
    %4924 = vmatpush2.msra.mxu0 0.0
    %4925 = vmatprep.subr.mxu0 0.0
    %4926 = vmatpush2.msra.mxu0 0.0
    %4927 = vmatprep.subr.mxu0 0.0
    %4928 = vmatpush2.msra.mxu0 0.0
    %4929 = vmatprep.subr.mxu0 0.0
    %4930 = vmatpush2.msra.mxu0 0.0
    %4931 = vmatprep.subr.mxu0 0.0
    %4932 = vmatpush2.msra.mxu0 0.0
    %4933 = vmatprep.subr.mxu0 0.0
    %4934 = vmatpush2.msra.mxu0 0.0
    %4935 = vmatprep.subr.mxu0 0.0
    %4936 = vmatpush2.msra.mxu0 0.0
    %4937 = vmatprep.subr.mxu0 0.0
    %4938 = vmatpush2.msra.mxu0 0.0
    %4939 = vmatprep.subr.mxu0 0.0
    %4940 = vmatpush2.msra.mxu0 0.0
    %4941 = vmatprep.subr.mxu0 0.0
    %4942 = vmatpush2.msra.mxu0 0.0
    %4943 = vmatprep.mubr.f32.mxu0 0.0
    %4944 = vmatmul.mubr.f32.gmra.mxu0 %v4877
    %v4945 = vpop.f32.mrf.mxu0
    %v4946 = vadd.f32 0.0, %v4945
    %v4947 = vpop.f32.mrf.mxu0
    %4948 = vdwg.mxu0
    %s4949 = scalar_lea.vmem %s65, 32
    %v4950 = vld [vmem:[%s4949] sm:$0xff]
    %v4951 = vld [vmem:[%s4949 + $0x8] sm:$0xff]
    %v4952 = vld [vmem:[%s4949 + $0x10] sm:$0xff]
    %v4953 = vld [vmem:[%s4949 + $0x18] sm:$0xff]
    %v4955 = vsel %vm819, %v4946, 0
    %4957 = vmatprep.subr.mxu0 0.0
    %4958 = vmatpush1.msra.mxu0 0.0
    %4959 = vmatprep.subr.mxu0 0.0
    %4960 = vmatpush1.msra.mxu0 0.0
    %4961 = vmatprep.subr.mxu0 0.0
    %4962 = vmatpush1.msra.mxu0 0.0
    %4963 = vmatprep.subr.mxu0 0.0
    %4964 = vmatpush1.msra.mxu0 0.0
    %4965 = vmatprep.subr.mxu0 0.0
    %4966 = vmatpush1.msra.mxu0 0.0
    %4967 = vmatprep.subr.mxu0 0.0
    %4968 = vmatpush1.msra.mxu0 0.0
    %4969 = vmatprep.subr.mxu0 0.0
    %4970 = vmatpush1.msra.mxu0 0.0
    %4971 = vmatprep.subr.mxu0 0.0
    %4972 = vmatpush1.msra.mxu0 0.0
    %4973 = vmatprep.subr.mxu0 0.0
    %4974 = vmatpush1.msra.mxu0 0.0
    %4975 = vmatprep.subr.mxu0 0.0
    %4976 = vmatpush1.msra.mxu0 0.0
    %4977 = vmatprep.subr.mxu0 0.0
    %4978 = vmatpush1.msra.mxu0 0.0
    %4979 = vmatprep.subr.mxu0 0.0
    %4980 = vmatpush1.msra.mxu0 0.0
    %4981 = vmatprep.subr.mxu0 0.0
    %4982 = vmatpush1.msra.mxu0 %v4953
    %4983 = vmatprep.subr.mxu0 0.0
    %4984 = vmatpush1.msra.mxu0 %v4952
    %4985 = vmatprep.subr.mxu0 0.0
    %4986 = vmatpush1.msra.mxu0 %v4951
    %4987 = vmatprep.subr.mxu0 0.0
    %4988 = vmatpush1.msra.mxu0 %v4950
    %4989 = vmatprep.subr.mxu0 0.0
    %4990 = vmatpush2.msra.mxu0 0.0
    %4991 = vmatprep.subr.mxu0 0.0
    %4992 = vmatpush2.msra.mxu0 0.0
    %4993 = vmatprep.subr.mxu0 0.0
    %4994 = vmatpush2.msra.mxu0 0.0
    %4995 = vmatprep.subr.mxu0 0.0
    %4996 = vmatpush2.msra.mxu0 0.0
    %4997 = vmatprep.subr.mxu0 0.0
    %4998 = vmatpush2.msra.mxu0 0.0
    %4999 = vmatprep.subr.mxu0 0.0
    %5000 = vmatpush2.msra.mxu0 0.0
    %5001 = vmatprep.subr.mxu0 0.0
    %5002 = vmatpush2.msra.mxu0 0.0
    %5003 = vmatprep.subr.mxu0 0.0
    %5004 = vmatpush2.msra.mxu0 0.0
    %5005 = vmatprep.subr.mxu0 0.0
    %5006 = vmatpush2.msra.mxu0 0.0
    %5007 = vmatprep.subr.mxu0 0.0
    %5008 = vmatpush2.msra.mxu0 0.0
    %5009 = vmatprep.subr.mxu0 0.0
    %5010 = vmatpush2.msra.mxu0 0.0
    %5011 = vmatprep.subr.mxu0 0.0
    %5012 = vmatpush2.msra.mxu0 0.0
    %5013 = vmatprep.subr.mxu0 0.0
    %5014 = vmatpush2.msra.mxu0 0.0
    %5015 = vmatprep.subr.mxu0 0.0
    %5016 = vmatpush2.msra.mxu0 0.0
    %5017 = vmatprep.subr.mxu0 0.0
    %5018 = vmatpush2.msra.mxu0 0.0
    %5019 = vmatprep.subr.mxu0 0.0
    %5020 = vmatpush2.msra.mxu0 0.0
    %5021 = vmatprep.mubr.f32.mxu0 0.0
    %5022 = vmatmul.mubr.f32.gmra.mxu0 %v4955
    %v5023 = vpop.f32.mrf.mxu0
    %v5024 = vadd.f32 0.0, %v5023
    %v5025 = vpop.f32.mrf.mxu0
    %5026 = vdwg.mxu0
    %v5028 = vsel %vm819, %v4858, 0
    %5030 = vmatprep.subr.mxu0 0.0
    %5031 = vmatpush1.msra.mxu0 0.0
    %5032 = vmatprep.subr.mxu0 0.0
    %5033 = vmatpush1.msra.mxu0 0.0
    %5034 = vmatprep.subr.mxu0 0.0
    %5035 = vmatpush1.msra.mxu0 0.0
    %5036 = vmatprep.subr.mxu0 0.0
    %5037 = vmatpush1.msra.mxu0 0.0
    %5038 = vmatprep.subr.mxu0 0.0
    %5039 = vmatpush1.msra.mxu0 0.0
    %5040 = vmatprep.subr.mxu0 0.0
    %5041 = vmatpush1.msra.mxu0 0.0
    %5042 = vmatprep.subr.mxu0 0.0
    %5043 = vmatpush1.msra.mxu0 0.0
    %5044 = vmatprep.subr.mxu0 0.0
    %5045 = vmatpush1.msra.mxu0 0.0
    %5046 = vmatprep.subr.mxu0 0.0
    %5047 = vmatpush1.msra.mxu0 0.0
    %5048 = vmatprep.subr.mxu0 0.0
    %5049 = vmatpush1.msra.mxu0 0.0
    %5050 = vmatprep.subr.mxu0 0.0
    %5051 = vmatpush1.msra.mxu0 0.0
    %5052 = vmatprep.subr.mxu0 0.0
    %5053 = vmatpush1.msra.mxu0 0.0
    %5054 = vmatprep.subr.mxu0 0.0
    %5055 = vmatpush1.msra.mxu0 %v4864
    %5056 = vmatprep.subr.mxu0 0.0
    %5057 = vmatpush1.msra.mxu0 %v4863
    %5058 = vmatprep.subr.mxu0 0.0
    %5059 = vmatpush1.msra.mxu0 %v4862
    %5060 = vmatprep.subr.mxu0 0.0
    %5061 = vmatpush1.msra.mxu0 %v4861
    %5062 = vmatprep.subr.mxu0 0.0
    %5063 = vmatpush2.msra.mxu0 0.0
    %5064 = vmatprep.subr.mxu0 0.0
    %5065 = vmatpush2.msra.mxu0 0.0
    %5066 = vmatprep.subr.mxu0 0.0
    %5067 = vmatpush2.msra.mxu0 0.0
    %5068 = vmatprep.subr.mxu0 0.0
    %5069 = vmatpush2.msra.mxu0 0.0
    %5070 = vmatprep.subr.mxu0 0.0
    %5071 = vmatpush2.msra.mxu0 0.0
    %5072 = vmatprep.subr.mxu0 0.0
    %5073 = vmatpush2.msra.mxu0 0.0
    %5074 = vmatprep.subr.mxu0 0.0
    %5075 = vmatpush2.msra.mxu0 0.0
    %5076 = vmatprep.subr.mxu0 0.0
    %5077 = vmatpush2.msra.mxu0 0.0
    %5078 = vmatprep.subr.mxu0 0.0
    %5079 = vmatpush2.msra.mxu0 0.0
    %5080 = vmatprep.subr.mxu0 0.0
    %5081 = vmatpush2.msra.mxu0 0.0
    %5082 = vmatprep.subr.mxu0 0.0
    %5083 = vmatpush2.msra.mxu0 0.0
    %5084 = vmatprep.subr.mxu0 0.0
    %5085 = vmatpush2.msra.mxu0 0.0
    %5086 = vmatprep.subr.mxu0 0.0
    %5087 = vmatpush2.msra.mxu0 0.0
    %5088 = vmatprep.subr.mxu0 0.0
    %5089 = vmatpush2.msra.mxu0 0.0
    %5090 = vmatprep.subr.mxu0 0.0
    %5091 = vmatpush2.msra.mxu0 0.0
    %5092 = vmatprep.subr.mxu0 0.0
    %5093 = vmatpush2.msra.mxu0 0.0
    %5094 = vmatprep.mubr.f32.mxu0 0.0
    %5095 = vmatmul.mubr.f32.gmra.mxu0 %v5028
    %v5096 = vpop.f32.mrf.mxu0
    %v5097 = vadd.f32 %v5024, %v5096
    %v5098 = vpop.f32.mrf.mxu0
    %5099 = vdwg.mxu0
    %v5100 = vadd.f32 %v4241, 1.0
    %vm5101 = vcmp.ge.f32.partialorder %v5100, 0.0
    %vm5102 = vcmp.le.f32.partialorder %v5100, 1.0
    %vm5103 = vmand %vm5101, %vm5102
    %v5104 = vadd.f32 %v4240, %v5100
    %vm5105 = vcmp.eq.f32.partialorder %v794, %v5104
    %v5106 = vsel %vm5103, 1, 0
    %vm5107 = vcmp.eq.s32.totalorder %v5106, 1
    %vm5108 = vmand %vm5105, %vm5107
    %v5109 = vsel %vm5108, 1, 0
    %v5110 = vcvt.s32.f32 %v5109
    %v5112 = vsel %vm4783, %v5110, 0
    %5114 = vmatprep.subr.mxu0 0.0
    %5115 = vmatpush1.msra.mxu0 0.0
    %5116 = vmatprep.subr.mxu0 0.0
    %5117 = vmatpush1.msra.mxu0 0.0
    %5118 = vmatprep.subr.mxu0 0.0
    %5119 = vmatpush1.msra.mxu0 0.0
    %5120 = vmatprep.subr.mxu0 0.0
    %5121 = vmatpush1.msra.mxu0 0.0
    %5122 = vmatprep.subr.mxu0 0.0
    %5123 = vmatpush1.msra.mxu0 0.0
    %5124 = vmatprep.subr.mxu0 0.0
    %5125 = vmatpush1.msra.mxu0 0.0
    %5126 = vmatprep.subr.mxu0 0.0
    %5127 = vmatpush1.msra.mxu0 0.0
    %5128 = vmatprep.subr.mxu0 0.0
    %5129 = vmatpush1.msra.mxu0 0.0
    %5130 = vmatprep.subr.mxu0 0.0
    %5131 = vmatpush1.msra.mxu0 0.0
    %5132 = vmatprep.subr.mxu0 0.0
    %5133 = vmatpush1.msra.mxu0 0.0
    %5134 = vmatprep.subr.mxu0 0.0
    %5135 = vmatpush1.msra.mxu0 0.0
    %5136 = vmatprep.subr.mxu0 0.0
    %5137 = vmatpush1.msra.mxu0 0.0
    %5138 = vmatprep.subr.mxu0 0.0
    %5139 = vmatpush1.msra.mxu0 0.0
    %5140 = vmatprep.subr.mxu0 0.0
    %5141 = vmatpush1.msra.mxu0 0.0
    %5142 = vmatprep.subr.mxu0 0.0
    %5143 = vmatpush1.msra.mxu0 0.0
    %5144 = vmatprep.subr.mxu0 0.0
    %5145 = vmatpush1.msra.mxu0 %v4789
    %5146 = vmatprep.subr.mxu0 0.0
    %5147 = vmatpush2.msra.mxu0 0.0
    %5148 = vmatprep.subr.mxu0 0.0
    %5149 = vmatpush2.msra.mxu0 0.0
    %5150 = vmatprep.subr.mxu0 0.0
    %5151 = vmatpush2.msra.mxu0 0.0
    %5152 = vmatprep.subr.mxu0 0.0
    %5153 = vmatpush2.msra.mxu0 0.0
    %5154 = vmatprep.subr.mxu0 0.0
    %5155 = vmatpush2.msra.mxu0 0.0
    %5156 = vmatprep.subr.mxu0 0.0
    %5157 = vmatpush2.msra.mxu0 0.0
    %5158 = vmatprep.subr.mxu0 0.0
    %5159 = vmatpush2.msra.mxu0 0.0
    %5160 = vmatprep.subr.mxu0 0.0
    %5161 = vmatpush2.msra.mxu0 0.0
    %5162 = vmatprep.subr.mxu0 0.0
    %5163 = vmatpush2.msra.mxu0 0.0
    %5164 = vmatprep.subr.mxu0 0.0
    %5165 = vmatpush2.msra.mxu0 0.0
    %5166 = vmatprep.subr.mxu0 0.0
    %5167 = vmatpush2.msra.mxu0 0.0
    %5168 = vmatprep.subr.mxu0 0.0
    %5169 = vmatpush2.msra.mxu0 0.0
    %5170 = vmatprep.subr.mxu0 0.0
    %5171 = vmatpush2.msra.mxu0 0.0
    %5172 = vmatprep.subr.mxu0 0.0
    %5173 = vmatpush2.msra.mxu0 0.0
    %5174 = vmatprep.subr.mxu0 0.0
    %5175 = vmatpush2.msra.mxu0 0.0
    %5176 = vmatprep.subr.mxu0 0.0
    %5177 = vmatpush2.msra.mxu0 0.0
    %5178 = vmatprep.mubr.f32.mxu0 0.0
    %5179 = vmatmul.mubr.f32.gmra.mxu0 %v5112
    %v5180 = vpop.f32.mrf.mxu0
    %v5181 = vadd.f32 0.0, %v5180
    %v5182 = vpop.f32.mrf.mxu0
    %5183 = vdwg.mxu0
    %s5184 = scalar_lea.vmem %s65, 64
    %v5185 = vld [vmem:[%s5184] sm:$0xff]
    %v5186 = vld [vmem:[%s5184 + $0x8] sm:$0xff]
    %v5187 = vld [vmem:[%s5184 + $0x10] sm:$0xff]
    %v5188 = vld [vmem:[%s5184 + $0x18] sm:$0xff]
    %v5190 = vsel %vm819, %v5181, 0
    %5192 = vmatprep.subr.mxu0 0.0
    %5193 = vmatpush1.msra.mxu0 0.0
    %5194 = vmatprep.subr.mxu0 0.0
    %5195 = vmatpush1.msra.mxu0 0.0
    %5196 = vmatprep.subr.mxu0 0.0
    %5197 = vmatpush1.msra.mxu0 0.0
    %5198 = vmatprep.subr.mxu0 0.0
    %5199 = vmatpush1.msra.mxu0 0.0
    %5200 = vmatprep.subr.mxu0 0.0
    %5201 = vmatpush1.msra.mxu0 0.0
    %5202 = vmatprep.subr.mxu0 0.0
    %5203 = vmatpush1.msra.mxu0 0.0
    %5204 = vmatprep.subr.mxu0 0.0
    %5205 = vmatpush1.msra.mxu0 0.0
    %5206 = vmatprep.subr.mxu0 0.0
    %5207 = vmatpush1.msra.mxu0 0.0
    %5208 = vmatprep.subr.mxu0 0.0
    %5209 = vmatpush1.msra.mxu0 0.0
    %5210 = vmatprep.subr.mxu0 0.0
    %5211 = vmatpush1.msra.mxu0 0.0
    %5212 = vmatprep.subr.mxu0 0.0
    %5213 = vmatpush1.msra.mxu0 0.0
    %5214 = vmatprep.subr.mxu0 0.0
    %5215 = vmatpush1.msra.mxu0 0.0
    %5216 = vmatprep.subr.mxu0 0.0
    %5217 = vmatpush1.msra.mxu0 %v5188
    %5218 = vmatprep.subr.mxu0 0.0
    %5219 = vmatpush1.msra.mxu0 %v5187
    %5220 = vmatprep.subr.mxu0 0.0
    %5221 = vmatpush1.msra.mxu0 %v5186
    %5222 = vmatprep.subr.mxu0 0.0
    %5223 = vmatpush1.msra.mxu0 %v5185
    %5224 = vmatprep.subr.mxu0 0.0
    %5225 = vmatpush2.msra.mxu0 0.0
    %5226 = vmatprep.subr.mxu0 0.0
    %5227 = vmatpush2.msra.mxu0 0.0
    %5228 = vmatprep.subr.mxu0 0.0
    %5229 = vmatpush2.msra.mxu0 0.0
    %5230 = vmatprep.subr.mxu0 0.0
    %5231 = vmatpush2.msra.mxu0 0.0
    %5232 = vmatprep.subr.mxu0 0.0
    %5233 = vmatpush2.msra.mxu0 0.0
    %5234 = vmatprep.subr.mxu0 0.0
    %5235 = vmatpush2.msra.mxu0 0.0
    %5236 = vmatprep.subr.mxu0 0.0
    %5237 = vmatpush2.msra.mxu0 0.0
    %5238 = vmatprep.subr.mxu0 0.0
    %5239 = vmatpush2.msra.mxu0 0.0
    %5240 = vmatprep.subr.mxu0 0.0
    %5241 = vmatpush2.msra.mxu0 0.0
    %5242 = vmatprep.subr.mxu0 0.0
    %5243 = vmatpush2.msra.mxu0 0.0
    %5244 = vmatprep.subr.mxu0 0.0
    %5245 = vmatpush2.msra.mxu0 0.0
    %5246 = vmatprep.subr.mxu0 0.0
    %5247 = vmatpush2.msra.mxu0 0.0
    %5248 = vmatprep.subr.mxu0 0.0
    %5249 = vmatpush2.msra.mxu0 0.0
    %5250 = vmatprep.subr.mxu0 0.0
    %5251 = vmatpush2.msra.mxu0 0.0
    %5252 = vmatprep.subr.mxu0 0.0
    %5253 = vmatpush2.msra.mxu0 0.0
    %5254 = vmatprep.subr.mxu0 0.0
    %5255 = vmatpush2.msra.mxu0 0.0
    %5256 = vmatprep.mubr.f32.mxu0 0.0
    %5257 = vmatmul.mubr.f32.gmra.mxu0 %v5190
    %v5258 = vpop.f32.mrf.mxu0
    %v5259 = vadd.f32 0.0, %v5258
    %v5260 = vpop.f32.mrf.mxu0
    %5261 = vdwg.mxu0
    %v5262 = vadd.f32 %v5097, %v5259
    %v5263 = vld [vmem:[%s67] sm:$0x1]
    %v5265 = vlaneseq
    %v5266 = vshrl.u32 %v5265, 7
    %v5267 = vsub.s32 0, %v5266
    %v5268 = vrot.slane %v5263, %v5267
    %v5270 = vadd.f32 %v5262, %v5268
    %v5271 = vld [vmem:[%s73] sm:$0xff]
    %v5272 = vld [vmem:[%s73 + $0x8] sm:$0xff]
    %v5273 = vld [vmem:[%s75] sm:$0x1]
    %v5275 = vlaneseq
    %v5276 = vshrl.u32 %v5275, 7
    %v5277 = vsub.s32 0, %v5276
    %v5278 = vrot.slane %v5273, %v5277
    %5280 = vmatprep.subr.mxu0 0.0
    %5281 = vmatpush1.msra.mxu0 0.0
    %5282 = vmatprep.subr.mxu0 0.0
    %5283 = vmatpush1.msra.mxu0 0.0
    %5284 = vmatprep.subr.mxu0 0.0
    %5285 = vmatpush1.msra.mxu0 0.0
    %5286 = vmatprep.subr.mxu0 0.0
    %5287 = vmatpush1.msra.mxu0 0.0
    %5288 = vmatprep.subr.mxu0 0.0
    %5289 = vmatpush1.msra.mxu0 0.0
    %5290 = vmatprep.subr.mxu0 0.0
    %5291 = vmatpush1.msra.mxu0 0.0
    %5292 = vmatprep.subr.mxu0 0.0
    %5293 = vmatpush1.msra.mxu0 0.0
    %5294 = vmatprep.subr.mxu0 0.0
    %5295 = vmatpush1.msra.mxu0 0.0
    %5296 = vmatprep.subr.mxu0 0.0
    %5297 = vmatpush1.msra.mxu0 0.0
    %5298 = vmatprep.subr.mxu0 0.0
    %5299 = vmatpush1.msra.mxu0 0.0
    %5300 = vmatprep.subr.mxu0 0.0
    %5301 = vmatpush1.msra.mxu0 0.0
    %5302 = vmatprep.subr.mxu0 0.0
    %5303 = vmatpush1.msra.mxu0 0.0
    %5304 = vmatprep.subr.mxu0 0.0
    %5305 = vmatpush1.msra.mxu0 0.0
    %5306 = vmatprep.subr.mxu0 0.0
    %5307 = vmatpush1.msra.mxu0 0.0
    %5308 = vmatprep.subr.mxu0 0.0
    %5309 = vmatpush1.msra.mxu0 %v5272
    %5310 = vmatprep.subr.mxu0 0.0
    %5311 = vmatpush1.msra.mxu0 %v5271
    %5312 = vmatprep.subr.mxu0 0.0
    %5313 = vmatpush2.msra.mxu0 0.0
    %5314 = vmatprep.subr.mxu0 0.0
    %5315 = vmatpush2.msra.mxu0 0.0
    %5316 = vmatprep.subr.mxu0 0.0
    %5317 = vmatpush2.msra.mxu0 0.0
    %5318 = vmatprep.subr.mxu0 0.0
    %5319 = vmatpush2.msra.mxu0 0.0
    %5320 = vmatprep.subr.mxu0 0.0
    %5321 = vmatpush2.msra.mxu0 0.0
    %5322 = vmatprep.subr.mxu0 0.0
    %5323 = vmatpush2.msra.mxu0 0.0
    %5324 = vmatprep.subr.mxu0 0.0
    %5325 = vmatpush2.msra.mxu0 0.0
    %5326 = vmatprep.subr.mxu0 0.0
    %5327 = vmatpush2.msra.mxu0 0.0
    %5328 = vmatprep.subr.mxu0 0.0
    %5329 = vmatpush2.msra.mxu0 0.0
    %5330 = vmatprep.subr.mxu0 0.0
    %5331 = vmatpush2.msra.mxu0 0.0
    %5332 = vmatprep.subr.mxu0 0.0
    %5333 = vmatpush2.msra.mxu0 0.0
    %5334 = vmatprep.subr.mxu0 0.0
    %5335 = vmatpush2.msra.mxu0 0.0
    %5336 = vmatprep.subr.mxu0 0.0
    %5337 = vmatpush2.msra.mxu0 0.0
    %5338 = vmatprep.subr.mxu0 0.0
    %5339 = vmatpush2.msra.mxu0 0.0
    %5340 = vmatprep.subr.mxu0 0.0
    %5341 = vmatpush2.msra.mxu0 0.0
    %5342 = vmatprep.subr.mxu0 0.0
    %5343 = vmatpush2.msra.mxu0 0.0
    %5344 = vmatprep.mubr.f32.mxu0 0.0
    %5345 = vmatmul.mubr.f32.gmra.mxu0 %v4418
    %v5346 = vpop.f32.mrf.mxu0
    %v5347 = vadd.f32 %v5278, %v5346
    %v5348 = vpop.f32.mrf.mxu0
    %5349 = vdwg.mxu0
    %v5350 = vsel %vm4732, %v5347, 0.0
    %v5351 = vrot.slane %v5350, 4
    %v5352 = vadd.f32 %v5350, %v5351
    %v5353 = vrot.slane %v5352, 2
    %v5354 = vadd.f32 %v5352, %v5353
    %v5355 = vrot.slane %v5354, 1
    %v5356 = vadd.f32 %v5354, %v5355
    %v5357 = vmul.f32 %v5356, %v4740
    %v5358 = vsub.f32 %v5347, %v5357
    %v5359 = vmul.f32 %v5358, %v5358
    %v5360 = vsel %vm4732, %v5359, 0.0
    %v5361 = vrot.slane %v5360, 4
    %v5362 = vadd.f32 %v5360, %v5361
    %v5363 = vrot.slane %v5362, 2
    %v5364 = vadd.f32 %v5362, %v5363
    %v5365 = vrot.slane %v5364, 1
    %v5366 = vadd.f32 %v5364, %v5365
    %v5367 = vmul.f32 %v5366, %v4740
    %v5368 = vld [vmem:[%s77] sm:$0x1]
    %v5369 = vadd.f32 %v5367, 1e-05
    %v5370 = vrsqrt.pop %v5369
    %v5371 = vmul.f32 %v5368, %v5370
    %v5373 = vlaneseq
    %v5374 = vshrl.u32 %v5373, 7
    %v5375 = vsub.s32 0, %v5374
    %v5376 = vrot.slane %v5371, %v5375
    %v5378 = vmul.f32 %v5358, %v5376
    %v5379 = vld [vmem:[%s79] sm:$0x1]
    %v5381 = vlaneseq
    %v5382 = vshrl.u32 %v5381, 7
    %v5383 = vsub.s32 0, %v5382
    %v5384 = vrot.slane %v5379, %v5383
    %v5386 = vadd.f32 %v5378, %v5384
    %v5387 = vsel %vm4732, %v5270, 0.0
    %v5388 = vrot.slane %v5387, 4
    %v5389 = vadd.f32 %v5387, %v5388
    %v5390 = vrot.slane %v5389, 2
    %v5391 = vadd.f32 %v5389, %v5390
    %v5392 = vrot.slane %v5391, 1
    %v5393 = vadd.f32 %v5391, %v5392
    %v5394 = vmul.f32 %v5393, %v4740
    %v5395 = vsub.f32 %v5270, %v5394
    %v5396 = vmul.f32 %v5395, %v5395
    %v5397 = vsel %vm4732, %v5396, 0.0
    %v5398 = vrot.slane %v5397, 4
    %v5399 = vadd.f32 %v5397, %v5398
    %v5400 = vrot.slane %v5399, 2
    %v5401 = vadd.f32 %v5399, %v5400
    %v5402 = vrot.slane %v5401, 1
    %v5403 = vadd.f32 %v5401, %v5402
    %v5404 = vmul.f32 %v5403, %v4740
    %v5405 = vld [vmem:[%s69] sm:$0x1]
    %v5406 = vadd.f32 %v5404, 1e-05
    %v5407 = vrsqrt.pop %v5406
    %v5408 = vmul.f32 %v5405, %v5407
    %v5410 = vlaneseq
    %v5411 = vshrl.u32 %v5410, 7
    %v5412 = vsub.s32 0, %v5411
    %v5413 = vrot.slane %v5408, %v5412
    %v5415 = vmul.f32 %v5395, %v5413
    %v5416 = vld [vmem:[#allocation47] sm:$0x1]
    %v5418 = vlaneseq
    %v5419 = vshrl.u32 %v5418, 7
    %v5420 = vsub.s32 0, %v5419
    %v5421 = vrot.slane %v5416, %v5420
    %v5423 = vadd.f32 %v5415, %v5421
    %v5424 = vadd.f32 %v5423, %v5386
    %v5425 = vmax.f32 %v5424, 0.0
    %v5426 = vld [vmem:[#allocation2] sm:$0xf]
    %v5427 = vld [vmem:[%s7] sm:$0xf]
    %5429 = vset.pattern.permute.xlu0 0
    %5430 = vperm.xlu0 %5429, %v5427
    %v5431 = vpop.permute.xlu0 %5430
    %v5433 = vmul.f32 %v5426, %v5431
    %v5434 = vadd.f32 %v5425, %v5433
    %vm5435 = vcmp.ge.f32.partialorder %v746, 1.0
    %v5436 = vsel %vm5435, 1, 0
    %v5437 = vcvt.s32.f32 %v5436
    %v5438 = vadd.f32 %v5437, 0.0
    %v5439 = vsub.f32 %v746, %v5438
    %v5440 = vmul.f32 %v5439, 2.0
    %v5441 = vadd.f32 %v5440, 0.0
    %vm5442 = vcmp.ge.f32.partialorder %v5441, 0.0
    %vm5443 = vcmp.le.f32.partialorder %v5441, 1.0
    %vm5444 = vmand %vm5442, %vm5443
    %v5445 = vmul.f32 %v5438, 2.0
    %v5446 = vadd.f32 %v5445, %v5441
    %vm5447 = vcmp.eq.f32.partialorder %v794, %v5446
    %v5448 = vsel %vm5444, 1, 0
    %vm5449 = vcmp.eq.s32.totalorder %v5448, 1
    %vm5450 = vmand %vm5447, %vm5449
    %v5451 = vsel %vm5450, 1, 0
    %v5452 = vcvt.s32.f32 %v5451
    %v5454 = vsel %vm4783, %v5452, 0
    %v5457 = vsel %vm4787, %v5434, 0
    %5459 = vmatprep.subr.mxu0 0.0
    %5460 = vmatpush1.msra.mxu0 0.0
    %5461 = vmatprep.subr.mxu0 0.0
    %5462 = vmatpush1.msra.mxu0 0.0
    %5463 = vmatprep.subr.mxu0 0.0
    %5464 = vmatpush1.msra.mxu0 0.0
    %5465 = vmatprep.subr.mxu0 0.0
    %5466 = vmatpush1.msra.mxu0 0.0
    %5467 = vmatprep.subr.mxu0 0.0
    %5468 = vmatpush1.msra.mxu0 0.0
    %5469 = vmatprep.subr.mxu0 0.0
    %5470 = vmatpush1.msra.mxu0 0.0
    %5471 = vmatprep.subr.mxu0 0.0
    %5472 = vmatpush1.msra.mxu0 0.0
    %5473 = vmatprep.subr.mxu0 0.0
    %5474 = vmatpush1.msra.mxu0 0.0
    %5475 = vmatprep.subr.mxu0 0.0
    %5476 = vmatpush1.msra.mxu0 0.0
    %5477 = vmatprep.subr.mxu0 0.0
    %5478 = vmatpush1.msra.mxu0 0.0
    %5479 = vmatprep.subr.mxu0 0.0
    %5480 = vmatpush1.msra.mxu0 0.0
    %5481 = vmatprep.subr.mxu0 0.0
    %5482 = vmatpush1.msra.mxu0 0.0
    %5483 = vmatprep.subr.mxu0 0.0
    %5484 = vmatpush1.msra.mxu0 0.0
    %5485 = vmatprep.subr.mxu0 0.0
    %5486 = vmatpush1.msra.mxu0 0.0
    %5487 = vmatprep.subr.mxu0 0.0
    %5488 = vmatpush1.msra.mxu0 0.0
    %5489 = vmatprep.subr.mxu0 0.0
    %5490 = vmatpush1.msra.mxu0 %v5457
    %5491 = vmatprep.subr.mxu0 0.0
    %5492 = vmatpush2.msra.mxu0 0.0
    %5493 = vmatprep.subr.mxu0 0.0
    %5494 = vmatpush2.msra.mxu0 0.0
    %5495 = vmatprep.subr.mxu0 0.0
    %5496 = vmatpush2.msra.mxu0 0.0
    %5497 = vmatprep.subr.mxu0 0.0
    %5498 = vmatpush2.msra.mxu0 0.0
    %5499 = vmatprep.subr.mxu0 0.0
    %5500 = vmatpush2.msra.mxu0 0.0
    %5501 = vmatprep.subr.mxu0 0.0
    %5502 = vmatpush2.msra.mxu0 0.0
    %5503 = vmatprep.subr.mxu0 0.0
    %5504 = vmatpush2.msra.mxu0 0.0
    %5505 = vmatprep.subr.mxu0 0.0
    %5506 = vmatpush2.msra.mxu0 0.0
    %5507 = vmatprep.subr.mxu0 0.0
    %5508 = vmatpush2.msra.mxu0 0.0
    %5509 = vmatprep.subr.mxu0 0.0
    %5510 = vmatpush2.msra.mxu0 0.0
    %5511 = vmatprep.subr.mxu0 0.0
    %5512 = vmatpush2.msra.mxu0 0.0
    %5513 = vmatprep.subr.mxu0 0.0
    %5514 = vmatpush2.msra.mxu0 0.0
    %5515 = vmatprep.subr.mxu0 0.0
    %5516 = vmatpush2.msra.mxu0 0.0
    %5517 = vmatprep.subr.mxu0 0.0
    %5518 = vmatpush2.msra.mxu0 0.0
    %5519 = vmatprep.subr.mxu0 0.0
    %5520 = vmatpush2.msra.mxu0 0.0
    %5521 = vmatprep.subr.mxu0 0.0
    %5522 = vmatpush2.msra.mxu0 0.0
    %5523 = vmatprep.mubr.f32.mxu0 0.0
    %5524 = vmatmul.mubr.f32.gmra.mxu0 %v5454
    %v5525 = vpop.f32.mrf.mxu0
    %v5526 = vadd.f32 0.0, %v5525
    %v5527 = vpop.f32.mrf.mxu0
    %5528 = vdwg.mxu0
    %s5529 = scalar_lea.vmem %s81, 32
    %v5530 = vld [vmem:[%s5529] sm:$0xff]
    %v5531 = vld [vmem:[%s5529 + $0x8] sm:$0xff]
    %v5532 = vld [vmem:[%s5529 + $0x10] sm:$0xff]
    %v5533 = vld [vmem:[%s5529 + $0x18] sm:$0xff]
    %v5534 = vadd.f32 %v5440, 1.0
    %vm5535 = vcmp.ge.f32.partialorder %v5534, 0.0
    %vm5536 = vcmp.le.f32.partialorder %v5534, 1.0
    %vm5537 = vmand %vm5535, %vm5536
    %v5538 = vadd.f32 %v5445, %v5534
    %vm5539 = vcmp.eq.f32.partialorder %v794, %v5538
    %v5540 = vsel %vm5537, 1, 0
    %vm5541 = vcmp.eq.s32.totalorder %v5540, 1
    %vm5542 = vmand %vm5539, %vm5541
    %v5543 = vsel %vm5542, 1, 0
    %v5544 = vcvt.s32.f32 %v5543
    %v5546 = vsel %vm4783, %v5544, 0
    %5548 = vmatprep.subr.mxu0 0.0
    %5549 = vmatpush1.msra.mxu0 0.0
    %5550 = vmatprep.subr.mxu0 0.0
    %5551 = vmatpush1.msra.mxu0 0.0
    %5552 = vmatprep.subr.mxu0 0.0
    %5553 = vmatpush1.msra.mxu0 0.0
    %5554 = vmatprep.subr.mxu0 0.0
    %5555 = vmatpush1.msra.mxu0 0.0
    %5556 = vmatprep.subr.mxu0 0.0
    %5557 = vmatpush1.msra.mxu0 0.0
    %5558 = vmatprep.subr.mxu0 0.0
    %5559 = vmatpush1.msra.mxu0 0.0
    %5560 = vmatprep.subr.mxu0 0.0
    %5561 = vmatpush1.msra.mxu0 0.0
    %5562 = vmatprep.subr.mxu0 0.0
    %5563 = vmatpush1.msra.mxu0 0.0
    %5564 = vmatprep.subr.mxu0 0.0
    %5565 = vmatpush1.msra.mxu0 0.0
    %5566 = vmatprep.subr.mxu0 0.0
    %5567 = vmatpush1.msra.mxu0 0.0
    %5568 = vmatprep.subr.mxu0 0.0
    %5569 = vmatpush1.msra.mxu0 0.0
    %5570 = vmatprep.subr.mxu0 0.0
    %5571 = vmatpush1.msra.mxu0 0.0
    %5572 = vmatprep.subr.mxu0 0.0
    %5573 = vmatpush1.msra.mxu0 0.0
    %5574 = vmatprep.subr.mxu0 0.0
    %5575 = vmatpush1.msra.mxu0 0.0
    %5576 = vmatprep.subr.mxu0 0.0
    %5577 = vmatpush1.msra.mxu0 0.0
    %5578 = vmatprep.subr.mxu0 0.0
    %5579 = vmatpush1.msra.mxu0 %v5457
    %5580 = vmatprep.subr.mxu0 0.0
    %5581 = vmatpush2.msra.mxu0 0.0
    %5582 = vmatprep.subr.mxu0 0.0
    %5583 = vmatpush2.msra.mxu0 0.0
    %5584 = vmatprep.subr.mxu0 0.0
    %5585 = vmatpush2.msra.mxu0 0.0
    %5586 = vmatprep.subr.mxu0 0.0
    %5587 = vmatpush2.msra.mxu0 0.0
    %5588 = vmatprep.subr.mxu0 0.0
    %5589 = vmatpush2.msra.mxu0 0.0
    %5590 = vmatprep.subr.mxu0 0.0
    %5591 = vmatpush2.msra.mxu0 0.0
    %5592 = vmatprep.subr.mxu0 0.0
    %5593 = vmatpush2.msra.mxu0 0.0
    %5594 = vmatprep.subr.mxu0 0.0
    %5595 = vmatpush2.msra.mxu0 0.0
    %5596 = vmatprep.subr.mxu0 0.0
    %5597 = vmatpush2.msra.mxu0 0.0
    %5598 = vmatprep.subr.mxu0 0.0
    %5599 = vmatpush2.msra.mxu0 0.0
    %5600 = vmatprep.subr.mxu0 0.0
    %5601 = vmatpush2.msra.mxu0 0.0
    %5602 = vmatprep.subr.mxu0 0.0
    %5603 = vmatpush2.msra.mxu0 0.0
    %5604 = vmatprep.subr.mxu0 0.0
    %5605 = vmatpush2.msra.mxu0 0.0
    %5606 = vmatprep.subr.mxu0 0.0
    %5607 = vmatpush2.msra.mxu0 0.0
    %5608 = vmatprep.subr.mxu0 0.0
    %5609 = vmatpush2.msra.mxu0 0.0
    %5610 = vmatprep.subr.mxu0 0.0
    %5611 = vmatpush2.msra.mxu0 0.0
    %5612 = vmatprep.mubr.f32.mxu0 0.0
    %5613 = vmatmul.mubr.f32.gmra.mxu0 %v5546
    %v5614 = vpop.f32.mrf.mxu0
    %v5615 = vadd.f32 0.0, %v5614
    %v5616 = vpop.f32.mrf.mxu0
    %5617 = vdwg.mxu0
    %s5618 = scalar_lea.vmem %s81, 64
    %v5619 = vld [vmem:[%s5618] sm:$0xff]
    %v5620 = vld [vmem:[%s5618 + $0x8] sm:$0xff]
    %v5621 = vld [vmem:[%s5618 + $0x10] sm:$0xff]
    %v5622 = vld [vmem:[%s5618 + $0x18] sm:$0xff]
    %v5624 = vsel %vm819, %v5615, 0
    %5626 = vmatprep.subr.mxu0 0.0
    %5627 = vmatpush1.msra.mxu0 0.0
    %5628 = vmatprep.subr.mxu0 0.0
    %5629 = vmatpush1.msra.mxu0 0.0
    %5630 = vmatprep.subr.mxu0 0.0
    %5631 = vmatpush1.msra.mxu0 0.0
    %5632 = vmatprep.subr.mxu0 0.0
    %5633 = vmatpush1.msra.mxu0 0.0
    %5634 = vmatprep.subr.mxu0 0.0
    %5635 = vmatpush1.msra.mxu0 0.0
    %5636 = vmatprep.subr.mxu0 0.0
    %5637 = vmatpush1.msra.mxu0 0.0
    %5638 = vmatprep.subr.mxu0 0.0
    %5639 = vmatpush1.msra.mxu0 0.0
    %5640 = vmatprep.subr.mxu0 0.0
    %5641 = vmatpush1.msra.mxu0 0.0
    %5642 = vmatprep.subr.mxu0 0.0
    %5643 = vmatpush1.msra.mxu0 0.0
    %5644 = vmatprep.subr.mxu0 0.0
    %5645 = vmatpush1.msra.mxu0 0.0
    %5646 = vmatprep.subr.mxu0 0.0
    %5647 = vmatpush1.msra.mxu0 0.0
    %5648 = vmatprep.subr.mxu0 0.0
    %5649 = vmatpush1.msra.mxu0 0.0
    %5650 = vmatprep.subr.mxu0 0.0
    %5651 = vmatpush1.msra.mxu0 %v5622
    %5652 = vmatprep.subr.mxu0 0.0
    %5653 = vmatpush1.msra.mxu0 %v5621
    %5654 = vmatprep.subr.mxu0 0.0
    %5655 = vmatpush1.msra.mxu0 %v5620
    %5656 = vmatprep.subr.mxu0 0.0
    %5657 = vmatpush1.msra.mxu0 %v5619
    %5658 = vmatprep.subr.mxu0 0.0
    %5659 = vmatpush2.msra.mxu0 0.0
    %5660 = vmatprep.subr.mxu0 0.0
    %5661 = vmatpush2.msra.mxu0 0.0
    %5662 = vmatprep.subr.mxu0 0.0
    %5663 = vmatpush2.msra.mxu0 0.0
    %5664 = vmatprep.subr.mxu0 0.0
    %5665 = vmatpush2.msra.mxu0 0.0
    %5666 = vmatprep.subr.mxu0 0.0
    %5667 = vmatpush2.msra.mxu0 0.0
    %5668 = vmatprep.subr.mxu0 0.0
    %5669 = vmatpush2.msra.mxu0 0.0
    %5670 = vmatprep.subr.mxu0 0.0
    %5671 = vmatpush2.msra.mxu0 0.0
    %5672 = vmatprep.subr.mxu0 0.0
    %5673 = vmatpush2.msra.mxu0 0.0
    %5674 = vmatprep.subr.mxu0 0.0
    %5675 = vmatpush2.msra.mxu0 0.0
    %5676 = vmatprep.subr.mxu0 0.0
    %5677 = vmatpush2.msra.mxu0 0.0
    %5678 = vmatprep.subr.mxu0 0.0
    %5679 = vmatpush2.msra.mxu0 0.0
    %5680 = vmatprep.subr.mxu0 0.0
    %5681 = vmatpush2.msra.mxu0 0.0
    %5682 = vmatprep.subr.mxu0 0.0
    %5683 = vmatpush2.msra.mxu0 0.0
    %5684 = vmatprep.subr.mxu0 0.0
    %5685 = vmatpush2.msra.mxu0 0.0
    %5686 = vmatprep.subr.mxu0 0.0
    %5687 = vmatpush2.msra.mxu0 0.0
    %5688 = vmatprep.subr.mxu0 0.0
    %5689 = vmatpush2.msra.mxu0 0.0
    %5690 = vmatprep.mubr.f32.mxu0 0.0
    %5691 = vmatmul.mubr.f32.gmra.mxu0 %v5624
    %v5692 = vpop.f32.mrf.mxu0
    %v5693 = vadd.f32 0.0, %v5692
    %v5694 = vpop.f32.mrf.mxu0
    %5695 = vdwg.mxu0
    %v5697 = vsel %vm819, %v5526, 0
    %5699 = vmatprep.subr.mxu0 0.0
    %5700 = vmatpush1.msra.mxu0 0.0
    %5701 = vmatprep.subr.mxu0 0.0
    %5702 = vmatpush1.msra.mxu0 0.0
    %5703 = vmatprep.subr.mxu0 0.0
    %5704 = vmatpush1.msra.mxu0 0.0
    %5705 = vmatprep.subr.mxu0 0.0
    %5706 = vmatpush1.msra.mxu0 0.0
    %5707 = vmatprep.subr.mxu0 0.0
    %5708 = vmatpush1.msra.mxu0 0.0
    %5709 = vmatprep.subr.mxu0 0.0
    %5710 = vmatpush1.msra.mxu0 0.0
    %5711 = vmatprep.subr.mxu0 0.0
    %5712 = vmatpush1.msra.mxu0 0.0
    %5713 = vmatprep.subr.mxu0 0.0
    %5714 = vmatpush1.msra.mxu0 0.0
    %5715 = vmatprep.subr.mxu0 0.0
    %5716 = vmatpush1.msra.mxu0 0.0
    %5717 = vmatprep.subr.mxu0 0.0
    %5718 = vmatpush1.msra.mxu0 0.0
    %5719 = vmatprep.subr.mxu0 0.0
    %5720 = vmatpush1.msra.mxu0 0.0
    %5721 = vmatprep.subr.mxu0 0.0
    %5722 = vmatpush1.msra.mxu0 0.0
    %5723 = vmatprep.subr.mxu0 0.0
    %5724 = vmatpush1.msra.mxu0 %v5533
    %5725 = vmatprep.subr.mxu0 0.0
    %5726 = vmatpush1.msra.mxu0 %v5532
    %5727 = vmatprep.subr.mxu0 0.0
    %5728 = vmatpush1.msra.mxu0 %v5531
    %5729 = vmatprep.subr.mxu0 0.0
    %5730 = vmatpush1.msra.mxu0 %v5530
    %5731 = vmatprep.subr.mxu0 0.0
    %5732 = vmatpush2.msra.mxu0 0.0
    %5733 = vmatprep.subr.mxu0 0.0
    %5734 = vmatpush2.msra.mxu0 0.0
    %5735 = vmatprep.subr.mxu0 0.0
    %5736 = vmatpush2.msra.mxu0 0.0
    %5737 = vmatprep.subr.mxu0 0.0
    %5738 = vmatpush2.msra.mxu0 0.0
    %5739 = vmatprep.subr.mxu0 0.0
    %5740 = vmatpush2.msra.mxu0 0.0
    %5741 = vmatprep.subr.mxu0 0.0
    %5742 = vmatpush2.msra.mxu0 0.0
    %5743 = vmatprep.subr.mxu0 0.0
    %5744 = vmatpush2.msra.mxu0 0.0
    %5745 = vmatprep.subr.mxu0 0.0
    %5746 = vmatpush2.msra.mxu0 0.0
    %5747 = vmatprep.subr.mxu0 0.0
    %5748 = vmatpush2.msra.mxu0 0.0
    %5749 = vmatprep.subr.mxu0 0.0
    %5750 = vmatpush2.msra.mxu0 0.0
    %5751 = vmatprep.subr.mxu0 0.0
    %5752 = vmatpush2.msra.mxu0 0.0
    %5753 = vmatprep.subr.mxu0 0.0
    %5754 = vmatpush2.msra.mxu0 0.0
    %5755 = vmatprep.subr.mxu0 0.0
    %5756 = vmatpush2.msra.mxu0 0.0
    %5757 = vmatprep.subr.mxu0 0.0
    %5758 = vmatpush2.msra.mxu0 0.0
    %5759 = vmatprep.subr.mxu0 0.0
    %5760 = vmatpush2.msra.mxu0 0.0
    %5761 = vmatprep.subr.mxu0 0.0
    %5762 = vmatpush2.msra.mxu0 0.0
    %5763 = vmatprep.mubr.f32.mxu0 0.0
    %5764 = vmatmul.mubr.f32.gmra.mxu0 %v5697
    %v5765 = vpop.f32.mrf.mxu0
    %v5766 = vadd.f32 %v5693, %v5765
    %v5767 = vpop.f32.mrf.mxu0
    %5768 = vdwg.mxu0
    %v5769 = vld [vmem:[%s83] sm:$0x1]
    %v5771 = vlaneseq
    %v5772 = vshrl.u32 %v5771, 7
    %v5773 = vsub.s32 0, %v5772
    %v5774 = vrot.slane %v5769, %v5773
    %v5776 = vadd.f32 %v5766, %v5774
    %vm5777 = vcmask 517120
    %v5778 = vsel %vm5777, %v5776, 0.0
    %v5779 = vrot.slane %v5778, 4
    %v5780 = vadd.f32 %v5778, %v5779
    %v5781 = vrot.slane %v5780, 2
    %v5782 = vadd.f32 %v5780, %v5781
    %v5783 = vrot.slane %v5782, 1
    %v5784 = vadd.f32 %v5782, %v5783
    %v5785 = vrcp.pop 2.0
    %v5786 = vmul.f32 %v5784, %v5785
    %v5787 = vsub.f32 %v5776, %v5786
    %v5788 = vmul.f32 %v5787, %v5787
    %v5789 = vsel %vm5777, %v5788, 0.0
    %v5790 = vrot.slane %v5789, 4
    %v5791 = vadd.f32 %v5789, %v5790
    %v5792 = vrot.slane %v5791, 2
    %v5793 = vadd.f32 %v5791, %v5792
    %v5794 = vrot.slane %v5793, 1
    %v5795 = vadd.f32 %v5793, %v5794
    %v5796 = vmul.f32 %v5795, %v5785
    %v5797 = vld [vmem:[%s85] sm:$0x1]
    %v5798 = vadd.f32 %v5796, 1e-05
    %v5799 = vrsqrt.pop %v5798
    %v5800 = vmul.f32 %v5797, %v5799
    %v5802 = vlaneseq
    %v5803 = vshrl.u32 %v5802, 7
    %v5804 = vsub.s32 0, %v5803
    %v5805 = vrot.slane %v5800, %v5804
    %v5807 = vmul.f32 %v5787, %v5805
    %v5808 = vld [vmem:[%s87] sm:$0x1]
    %v5810 = vlaneseq
    %v5811 = vshrl.u32 %v5810, 7
    %v5812 = vsub.s32 0, %v5811
    %v5813 = vrot.slane %v5808, %v5812
    %v5815 = vadd.f32 %v5807, %v5813
    %v5816 = vmax.f32 %v5815, 0.0
    %v5817 = vadd.f32 %v5439, 0.0
    %vm5818 = vcmp.ge.f32.partialorder %v5817, 0.0
    %vm5819 = vcmp.le.f32.partialorder %v5817, 0.0
    %vm5820 = vmand %vm5818, %vm5819
    %v5821 = vadd.f32 %v5438, %v5817
    %vm5822 = vcmp.eq.f32.partialorder %v794, %v5821
    %v5823 = vsel %vm5820, 1, 0
    %vm5824 = vcmp.eq.s32.totalorder %v5823, 1
    %vm5825 = vmand %vm5822, %vm5824
    %v5826 = vsel %vm5825, 1, 0
    %v5827 = vcvt.s32.f32 %v5826
    %vm5828 = vcmask 15360
    %v5830 = vsel %vm5828, %v5827, 0
    %vm5832 = vcmask 1041408
    %v5834 = vsel %vm5832, %v5816, 0
    %5836 = vmatprep.subr.mxu0 0.0
    %5837 = vmatpush1.msra.mxu0 0.0
    %5838 = vmatprep.subr.mxu0 0.0
    %5839 = vmatpush1.msra.mxu0 0.0
    %5840 = vmatprep.subr.mxu0 0.0
    %5841 = vmatpush1.msra.mxu0 0.0
    %5842 = vmatprep.subr.mxu0 0.0
    %5843 = vmatpush1.msra.mxu0 0.0
    %5844 = vmatprep.subr.mxu0 0.0
    %5845 = vmatpush1.msra.mxu0 0.0
    %5846 = vmatprep.subr.mxu0 0.0
    %5847 = vmatpush1.msra.mxu0 0.0
    %5848 = vmatprep.subr.mxu0 0.0
    %5849 = vmatpush1.msra.mxu0 0.0
    %5850 = vmatprep.subr.mxu0 0.0
    %5851 = vmatpush1.msra.mxu0 0.0
    %5852 = vmatprep.subr.mxu0 0.0
    %5853 = vmatpush1.msra.mxu0 0.0
    %5854 = vmatprep.subr.mxu0 0.0
    %5855 = vmatpush1.msra.mxu0 0.0
    %5856 = vmatprep.subr.mxu0 0.0
    %5857 = vmatpush1.msra.mxu0 0.0
    %5858 = vmatprep.subr.mxu0 0.0
    %5859 = vmatpush1.msra.mxu0 0.0
    %5860 = vmatprep.subr.mxu0 0.0
    %5861 = vmatpush1.msra.mxu0 0.0
    %5862 = vmatprep.subr.mxu0 0.0
    %5863 = vmatpush1.msra.mxu0 0.0
    %5864 = vmatprep.subr.mxu0 0.0
    %5865 = vmatpush1.msra.mxu0 0.0
    %5866 = vmatprep.subr.mxu0 0.0
    %5867 = vmatpush1.msra.mxu0 %v5834
    %5868 = vmatprep.subr.mxu0 0.0
    %5869 = vmatpush2.msra.mxu0 0.0
    %5870 = vmatprep.subr.mxu0 0.0
    %5871 = vmatpush2.msra.mxu0 0.0
    %5872 = vmatprep.subr.mxu0 0.0
    %5873 = vmatpush2.msra.mxu0 0.0
    %5874 = vmatprep.subr.mxu0 0.0
    %5875 = vmatpush2.msra.mxu0 0.0
    %5876 = vmatprep.subr.mxu0 0.0
    %5877 = vmatpush2.msra.mxu0 0.0
    %5878 = vmatprep.subr.mxu0 0.0
    %5879 = vmatpush2.msra.mxu0 0.0
    %5880 = vmatprep.subr.mxu0 0.0
    %5881 = vmatpush2.msra.mxu0 0.0
    %5882 = vmatprep.subr.mxu0 0.0
    %5883 = vmatpush2.msra.mxu0 0.0
    %5884 = vmatprep.subr.mxu0 0.0
    %5885 = vmatpush2.msra.mxu0 0.0
    %5886 = vmatprep.subr.mxu0 0.0
    %5887 = vmatpush2.msra.mxu0 0.0
    %5888 = vmatprep.subr.mxu0 0.0
    %5889 = vmatpush2.msra.mxu0 0.0
    %5890 = vmatprep.subr.mxu0 0.0
    %5891 = vmatpush2.msra.mxu0 0.0
    %5892 = vmatprep.subr.mxu0 0.0
    %5893 = vmatpush2.msra.mxu0 0.0
    %5894 = vmatprep.subr.mxu0 0.0
    %5895 = vmatpush2.msra.mxu0 0.0
    %5896 = vmatprep.subr.mxu0 0.0
    %5897 = vmatpush2.msra.mxu0 0.0
    %5898 = vmatprep.subr.mxu0 0.0
    %5899 = vmatpush2.msra.mxu0 0.0
    %5900 = vmatprep.mubr.f32.mxu0 0.0
    %5901 = vmatmul.mubr.f32.gmra.mxu0 %v5830
    %v5902 = vpop.f32.mrf.mxu0
    %v5903 = vadd.f32 0.0, %v5902
    %v5904 = vpop.f32.mrf.mxu0
    %5905 = vdwg.mxu0
    %s5906 = scalar_lea.vmem %s89, 64
    %v5907 = vld [vmem:[%s5906] sm:$0xff]
    %v5908 = vld [vmem:[%s5906 + $0x8] sm:$0xff]
    %v5909 = vld [vmem:[%s5906 + $0x10] sm:$0xff]
    %v5910 = vld [vmem:[%s5906 + $0x18] sm:$0xff]
    %v5911 = vld [vmem:[%s5906 + $0x20] sm:$0xff]
    %v5912 = vld [vmem:[%s5906 + $0x28] sm:$0xff]
    %v5913 = vld [vmem:[%s5906 + $0x30] sm:$0xff]
    %v5914 = vld [vmem:[%s5906 + $0x38] sm:$0xff]
    %v5915 = vld [vmem:[%s91] sm:$0x1]
    %v5917 = vlaneseq
    %v5918 = vshrl.u32 %v5917, 7
    %v5919 = vsub.s32 0, %v5918
    %v5920 = vrot.slane %v5915, %v5919
    %vm5922 = vcmask 523264
    %v5924 = vsel %vm5922, %v5903, 0
    %5926 = vmatprep.subr.mxu0 0.0
    %5927 = vmatpush1.msra.mxu0 0.0
    %5928 = vmatprep.subr.mxu0 0.0
    %5929 = vmatpush1.msra.mxu0 0.0
    %5930 = vmatprep.subr.mxu0 0.0
    %5931 = vmatpush1.msra.mxu0 0.0
    %5932 = vmatprep.subr.mxu0 0.0
    %5933 = vmatpush1.msra.mxu0 0.0
    %5934 = vmatprep.subr.mxu0 0.0
    %5935 = vmatpush1.msra.mxu0 0.0
    %5936 = vmatprep.subr.mxu0 0.0
    %5937 = vmatpush1.msra.mxu0 0.0
    %5938 = vmatprep.subr.mxu0 0.0
    %5939 = vmatpush1.msra.mxu0 0.0
    %5940 = vmatprep.subr.mxu0 0.0
    %5941 = vmatpush1.msra.mxu0 0.0
    %5942 = vmatprep.subr.mxu0 0.0
    %5943 = vmatpush1.msra.mxu0 %v5914
    %5944 = vmatprep.subr.mxu0 0.0
    %5945 = vmatpush1.msra.mxu0 %v5913
    %5946 = vmatprep.subr.mxu0 0.0
    %5947 = vmatpush1.msra.mxu0 %v5912
    %5948 = vmatprep.subr.mxu0 0.0
    %5949 = vmatpush1.msra.mxu0 %v5911
    %5950 = vmatprep.subr.mxu0 0.0
    %5951 = vmatpush1.msra.mxu0 %v5910
    %5952 = vmatprep.subr.mxu0 0.0
    %5953 = vmatpush1.msra.mxu0 %v5909
    %5954 = vmatprep.subr.mxu0 0.0
    %5955 = vmatpush1.msra.mxu0 %v5908
    %5956 = vmatprep.subr.mxu0 0.0
    %5957 = vmatpush1.msra.mxu0 %v5907
    %5958 = vmatprep.subr.mxu0 0.0
    %5959 = vmatpush2.msra.mxu0 0.0
    %5960 = vmatprep.subr.mxu0 0.0
    %5961 = vmatpush2.msra.mxu0 0.0
    %5962 = vmatprep.subr.mxu0 0.0
    %5963 = vmatpush2.msra.mxu0 0.0
    %5964 = vmatprep.subr.mxu0 0.0
    %5965 = vmatpush2.msra.mxu0 0.0
    %5966 = vmatprep.subr.mxu0 0.0
    %5967 = vmatpush2.msra.mxu0 0.0
    %5968 = vmatprep.subr.mxu0 0.0
    %5969 = vmatpush2.msra.mxu0 0.0
    %5970 = vmatprep.subr.mxu0 0.0
    %5971 = vmatpush2.msra.mxu0 0.0
    %5972 = vmatprep.subr.mxu0 0.0
    %5973 = vmatpush2.msra.mxu0 0.0
    %5974 = vmatprep.subr.mxu0 0.0
    %5975 = vmatpush2.msra.mxu0 0.0
    %5976 = vmatprep.subr.mxu0 0.0
    %5977 = vmatpush2.msra.mxu0 0.0
    %5978 = vmatprep.subr.mxu0 0.0
    %5979 = vmatpush2.msra.mxu0 0.0
    %5980 = vmatprep.subr.mxu0 0.0
    %5981 = vmatpush2.msra.mxu0 0.0
    %5982 = vmatprep.subr.mxu0 0.0
    %5983 = vmatpush2.msra.mxu0 0.0
    %5984 = vmatprep.subr.mxu0 0.0
    %5985 = vmatpush2.msra.mxu0 0.0
    %5986 = vmatprep.subr.mxu0 0.0
    %5987 = vmatpush2.msra.mxu0 0.0
    %5988 = vmatprep.subr.mxu0 0.0
    %5989 = vmatpush2.msra.mxu0 0.0
    %5990 = vmatprep.mubr.f32.mxu0 0.0
    %5991 = vmatmul.mubr.f32.gmra.mxu0 %v5924
    %v5992 = vpop.f32.mrf.mxu0
    %v5993 = vadd.f32 %v5920, %v5992
    %v5994 = vpop.f32.mrf.mxu0
    %5995 = vdwg.mxu0
    %v5996 = vld [vmem:[%s97] sm:$0xff]
    %v5997 = vld [vmem:[%s97 + $0x8] sm:$0xff]
    %v5998 = vld [vmem:[%s97 + $0x10] sm:$0xff]
    %v5999 = vld [vmem:[%s97 + $0x18] sm:$0xff]
    %v6000 = vld [vmem:[%s99] sm:$0x1]
    %v6002 = vlaneseq
    %v6003 = vshrl.u32 %v6002, 7
    %v6004 = vsub.s32 0, %v6003
    %v6005 = vrot.slane %v6000, %v6004
    %6007 = vmatprep.subr.mxu0 0.0
    %6008 = vmatpush1.msra.mxu0 0.0
    %6009 = vmatprep.subr.mxu0 0.0
    %6010 = vmatpush1.msra.mxu0 0.0
    %6011 = vmatprep.subr.mxu0 0.0
    %6012 = vmatpush1.msra.mxu0 0.0
    %6013 = vmatprep.subr.mxu0 0.0
    %6014 = vmatpush1.msra.mxu0 0.0
    %6015 = vmatprep.subr.mxu0 0.0
    %6016 = vmatpush1.msra.mxu0 0.0
    %6017 = vmatprep.subr.mxu0 0.0
    %6018 = vmatpush1.msra.mxu0 0.0
    %6019 = vmatprep.subr.mxu0 0.0
    %6020 = vmatpush1.msra.mxu0 0.0
    %6021 = vmatprep.subr.mxu0 0.0
    %6022 = vmatpush1.msra.mxu0 0.0
    %6023 = vmatprep.subr.mxu0 0.0
    %6024 = vmatpush1.msra.mxu0 0.0
    %6025 = vmatprep.subr.mxu0 0.0
    %6026 = vmatpush1.msra.mxu0 0.0
    %6027 = vmatprep.subr.mxu0 0.0
    %6028 = vmatpush1.msra.mxu0 0.0
    %6029 = vmatprep.subr.mxu0 0.0
    %6030 = vmatpush1.msra.mxu0 0.0
    %6031 = vmatprep.subr.mxu0 0.0
    %6032 = vmatpush1.msra.mxu0 %v5999
    %6033 = vmatprep.subr.mxu0 0.0
    %6034 = vmatpush1.msra.mxu0 %v5998
    %6035 = vmatprep.subr.mxu0 0.0
    %6036 = vmatpush1.msra.mxu0 %v5997
    %6037 = vmatprep.subr.mxu0 0.0
    %6038 = vmatpush1.msra.mxu0 %v5996
    %6039 = vmatprep.subr.mxu0 0.0
    %6040 = vmatpush2.msra.mxu0 0.0
    %6041 = vmatprep.subr.mxu0 0.0
    %6042 = vmatpush2.msra.mxu0 0.0
    %6043 = vmatprep.subr.mxu0 0.0
    %6044 = vmatpush2.msra.mxu0 0.0
    %6045 = vmatprep.subr.mxu0 0.0
    %6046 = vmatpush2.msra.mxu0 0.0
    %6047 = vmatprep.subr.mxu0 0.0
    %6048 = vmatpush2.msra.mxu0 0.0
    %6049 = vmatprep.subr.mxu0 0.0
    %6050 = vmatpush2.msra.mxu0 0.0
    %6051 = vmatprep.subr.mxu0 0.0
    %6052 = vmatpush2.msra.mxu0 0.0
    %6053 = vmatprep.subr.mxu0 0.0
    %6054 = vmatpush2.msra.mxu0 0.0
    %6055 = vmatprep.subr.mxu0 0.0
    %6056 = vmatpush2.msra.mxu0 0.0
    %6057 = vmatprep.subr.mxu0 0.0
    %6058 = vmatpush2.msra.mxu0 0.0
    %6059 = vmatprep.subr.mxu0 0.0
    %6060 = vmatpush2.msra.mxu0 0.0
    %6061 = vmatprep.subr.mxu0 0.0
    %6062 = vmatpush2.msra.mxu0 0.0
    %6063 = vmatprep.subr.mxu0 0.0
    %6064 = vmatpush2.msra.mxu0 0.0
    %6065 = vmatprep.subr.mxu0 0.0
    %6066 = vmatpush2.msra.mxu0 0.0
    %6067 = vmatprep.subr.mxu0 0.0
    %6068 = vmatpush2.msra.mxu0 0.0
    %6069 = vmatprep.subr.mxu0 0.0
    %6070 = vmatpush2.msra.mxu0 0.0
    %6071 = vmatprep.mubr.f32.mxu0 0.0
    %6072 = vmatmul.mubr.f32.gmra.mxu0 %v5697
    %v6073 = vpop.f32.mrf.mxu0
    %v6074 = vadd.f32 %v6005, %v6073
    %v6075 = vpop.f32.mrf.mxu0
    %6076 = vdwg.mxu0
    %v6077 = vsel %vm5777, %v6074, 0.0
    %v6078 = vrot.slane %v6077, 4
    %v6079 = vadd.f32 %v6077, %v6078
    %v6080 = vrot.slane %v6079, 2
    %v6081 = vadd.f32 %v6079, %v6080
    %v6082 = vrot.slane %v6081, 1
    %v6083 = vadd.f32 %v6081, %v6082
    %v6084 = vmul.f32 %v6083, %v5785
    %v6085 = vsub.f32 %v6074, %v6084
    %v6086 = vmul.f32 %v6085, %v6085
    %v6087 = vsel %vm5777, %v6086, 0.0
    %v6088 = vrot.slane %v6087, 4
    %v6089 = vadd.f32 %v6087, %v6088
    %v6090 = vrot.slane %v6089, 2
    %v6091 = vadd.f32 %v6089, %v6090
    %v6092 = vrot.slane %v6091, 1
    %v6093 = vadd.f32 %v6091, %v6092
    %v6094 = vmul.f32 %v6093, %v5785
    %v6095 = vld [vmem:[%s101] sm:$0x1]
    %v6096 = vadd.f32 %v6094, 1e-05
    %v6097 = vrsqrt.pop %v6096
    %v6098 = vmul.f32 %v6095, %v6097
    %v6100 = vlaneseq
    %v6101 = vshrl.u32 %v6100, 7
    %v6102 = vsub.s32 0, %v6101
    %v6103 = vrot.slane %v6098, %v6102
    %v6105 = vmul.f32 %v6085, %v6103
    %v6106 = vld [vmem:[%s103] sm:$0x1]
    %v6108 = vlaneseq
    %v6109 = vshrl.u32 %v6108, 7
    %v6110 = vsub.s32 0, %v6109
    %v6111 = vrot.slane %v6106, %v6110
    %v6113 = vadd.f32 %v6105, %v6111
    %v6114 = vsel %vm5777, %v5993, 0.0
    %v6115 = vrot.slane %v6114, 4
    %v6116 = vadd.f32 %v6114, %v6115
    %v6117 = vrot.slane %v6116, 2
    %v6118 = vadd.f32 %v6116, %v6117
    %v6119 = vrot.slane %v6118, 1
    %v6120 = vadd.f32 %v6118, %v6119
    %v6121 = vmul.f32 %v6120, %v5785
    %v6122 = vsub.f32 %v5993, %v6121
    %v6123 = vmul.f32 %v6122, %v6122
    %v6124 = vsel %vm5777, %v6123, 0.0
    %v6125 = vrot.slane %v6124, 4
    %v6126 = vadd.f32 %v6124, %v6125
    %v6127 = vrot.slane %v6126, 2
    %v6128 = vadd.f32 %v6126, %v6127
    %v6129 = vrot.slane %v6128, 1
    %v6130 = vadd.f32 %v6128, %v6129
    %v6131 = vmul.f32 %v6130, %v5785
    %v6132 = vld [vmem:[%s93] sm:$0x1]
    %v6133 = vadd.f32 %v6131, 1e-05
    %v6134 = vrsqrt.pop %v6133
    %v6135 = vmul.f32 %v6132, %v6134
    %v6137 = vlaneseq
    %v6138 = vshrl.u32 %v6137, 7
    %v6139 = vsub.s32 0, %v6138
    %v6140 = vrot.slane %v6135, %v6139
    %v6142 = vmul.f32 %v6122, %v6140
    %v6143 = vld [vmem:[%s95] sm:$0x1]
    %v6145 = vlaneseq
    %v6146 = vshrl.u32 %v6145, 7
    %v6147 = vsub.s32 0, %v6146
    %v6148 = vrot.slane %v6143, %v6147
    %v6150 = vadd.f32 %v6142, %v6148
    %v6151 = vadd.f32 %v6150, %v6113
    %v6152 = vmax.f32 %v6151, 0.0
    %vm6153 = vcmp.ge.f32.partialorder %v794, 1.0
    %v6154 = vsel %vm6153, 1, 0
    %v6155 = vcvt.s32.f32 %v6154
    %v6156 = vadd.f32 %v6155, 0.0
    %vm6157 = vcmp.eq.f32.partialorder %v6156, %v746
    %v6158 = vsel %vm6157, 1, 0
    %v6159 = vcvt.s32.f32 %v6158
    %v6161 = vsel %vm5828, %v6159, 0
    %v6164 = vsel %vm5832, %v6152, 0
    %6166 = vmatprep.subr.mxu0 0.0
    %6167 = vmatpush1.msra.mxu0 0.0
    %6168 = vmatprep.subr.mxu0 0.0
    %6169 = vmatpush1.msra.mxu0 0.0
    %6170 = vmatprep.subr.mxu0 0.0
    %6171 = vmatpush1.msra.mxu0 0.0
    %6172 = vmatprep.subr.mxu0 0.0
    %6173 = vmatpush1.msra.mxu0 0.0
    %6174 = vmatprep.subr.mxu0 0.0
    %6175 = vmatpush1.msra.mxu0 0.0
    %6176 = vmatprep.subr.mxu0 0.0
    %6177 = vmatpush1.msra.mxu0 0.0
    %6178 = vmatprep.subr.mxu0 0.0
    %6179 = vmatpush1.msra.mxu0 0.0
    %6180 = vmatprep.subr.mxu0 0.0
    %6181 = vmatpush1.msra.mxu0 0.0
    %6182 = vmatprep.subr.mxu0 0.0
    %6183 = vmatpush1.msra.mxu0 0.0
    %6184 = vmatprep.subr.mxu0 0.0
    %6185 = vmatpush1.msra.mxu0 0.0
    %6186 = vmatprep.subr.mxu0 0.0
    %6187 = vmatpush1.msra.mxu0 0.0
    %6188 = vmatprep.subr.mxu0 0.0
    %6189 = vmatpush1.msra.mxu0 0.0
    %6190 = vmatprep.subr.mxu0 0.0
    %6191 = vmatpush1.msra.mxu0 0.0
    %6192 = vmatprep.subr.mxu0 0.0
    %6193 = vmatpush1.msra.mxu0 0.0
    %6194 = vmatprep.subr.mxu0 0.0
    %6195 = vmatpush1.msra.mxu0 0.0
    %6196 = vmatprep.subr.mxu0 0.0
    %6197 = vmatpush1.msra.mxu0 %v6164
    %6198 = vmatprep.subr.mxu0 0.0
    %6199 = vmatpush2.msra.mxu0 0.0
    %6200 = vmatprep.subr.mxu0 0.0
    %6201 = vmatpush2.msra.mxu0 0.0
    %6202 = vmatprep.subr.mxu0 0.0
    %6203 = vmatpush2.msra.mxu0 0.0
    %6204 = vmatprep.subr.mxu0 0.0
    %6205 = vmatpush2.msra.mxu0 0.0
    %6206 = vmatprep.subr.mxu0 0.0
    %6207 = vmatpush2.msra.mxu0 0.0
    %6208 = vmatprep.subr.mxu0 0.0
    %6209 = vmatpush2.msra.mxu0 0.0
    %6210 = vmatprep.subr.mxu0 0.0
    %6211 = vmatpush2.msra.mxu0 0.0
    %6212 = vmatprep.subr.mxu0 0.0
    %6213 = vmatpush2.msra.mxu0 0.0
    %6214 = vmatprep.subr.mxu0 0.0
    %6215 = vmatpush2.msra.mxu0 0.0
    %6216 = vmatprep.subr.mxu0 0.0
    %6217 = vmatpush2.msra.mxu0 0.0
    %6218 = vmatprep.subr.mxu0 0.0
    %6219 = vmatpush2.msra.mxu0 0.0
    %6220 = vmatprep.subr.mxu0 0.0
    %6221 = vmatpush2.msra.mxu0 0.0
    %6222 = vmatprep.subr.mxu0 0.0
    %6223 = vmatpush2.msra.mxu0 0.0
    %6224 = vmatprep.subr.mxu0 0.0
    %6225 = vmatpush2.msra.mxu0 0.0
    %6226 = vmatprep.subr.mxu0 0.0
    %6227 = vmatpush2.msra.mxu0 0.0
    %6228 = vmatprep.subr.mxu0 0.0
    %6229 = vmatpush2.msra.mxu0 0.0
    %6230 = vmatprep.mubr.f32.mxu0 0.0
    %6231 = vmatmul.mubr.f32.gmra.mxu0 %v6161
    %v6232 = vpop.f32.mrf.mxu0
    %v6233 = vadd.f32 0.0, %v6232
    %v6234 = vpop.f32.mrf.mxu0
    %6235 = vdwg.mxu0
    %v6236 = vld [vmem:[%s105] sm:$0xff]
    %v6237 = vld [vmem:[%s105 + $0x8] sm:$0xff]
    %v6238 = vld [vmem:[%s105 + $0x10] sm:$0xff]
    %v6239 = vld [vmem:[%s105 + $0x18] sm:$0xff]
    %v6240 = vld [vmem:[%s105 + $0x20] sm:$0xff]
    %v6241 = vld [vmem:[%s105 + $0x28] sm:$0xff]
    %v6242 = vld [vmem:[%s105 + $0x30] sm:$0xff]
    %v6243 = vld [vmem:[%s105 + $0x38] sm:$0xff]
    %v6244 = vld [vmem:[%s107] sm:$0x1]
    %v6246 = vlaneseq
    %v6247 = vshrl.u32 %v6246, 7
    %v6248 = vsub.s32 0, %v6247
    %v6249 = vrot.slane %v6244, %v6248
    %v6252 = vsel %vm5922, %v6233, 0
    %6254 = vmatprep.subr.mxu0 0.0
    %6255 = vmatpush1.msra.mxu0 0.0
    %6256 = vmatprep.subr.mxu0 0.0
    %6257 = vmatpush1.msra.mxu0 0.0
    %6258 = vmatprep.subr.mxu0 0.0
    %6259 = vmatpush1.msra.mxu0 0.0
    %6260 = vmatprep.subr.mxu0 0.0
    %6261 = vmatpush1.msra.mxu0 0.0
    %6262 = vmatprep.subr.mxu0 0.0
    %6263 = vmatpush1.msra.mxu0 0.0
    %6264 = vmatprep.subr.mxu0 0.0
    %6265 = vmatpush1.msra.mxu0 0.0
    %6266 = vmatprep.subr.mxu0 0.0
    %6267 = vmatpush1.msra.mxu0 0.0
    %6268 = vmatprep.subr.mxu0 0.0
    %6269 = vmatpush1.msra.mxu0 0.0
    %6270 = vmatprep.subr.mxu0 0.0
    %6271 = vmatpush1.msra.mxu0 %v6243
    %6272 = vmatprep.subr.mxu0 0.0
    %6273 = vmatpush1.msra.mxu0 %v6242
    %6274 = vmatprep.subr.mxu0 0.0
    %6275 = vmatpush1.msra.mxu0 %v6241
    %6276 = vmatprep.subr.mxu0 0.0
    %6277 = vmatpush1.msra.mxu0 %v6240
    %6278 = vmatprep.subr.mxu0 0.0
    %6279 = vmatpush1.msra.mxu0 %v6239
    %6280 = vmatprep.subr.mxu0 0.0
    %6281 = vmatpush1.msra.mxu0 %v6238
    %6282 = vmatprep.subr.mxu0 0.0
    %6283 = vmatpush1.msra.mxu0 %v6237
    %6284 = vmatprep.subr.mxu0 0.0
    %6285 = vmatpush1.msra.mxu0 %v6236
    %6286 = vmatprep.subr.mxu0 0.0
    %6287 = vmatpush2.msra.mxu0 0.0
    %6288 = vmatprep.subr.mxu0 0.0
    %6289 = vmatpush2.msra.mxu0 0.0
    %6290 = vmatprep.subr.mxu0 0.0
    %6291 = vmatpush2.msra.mxu0 0.0
    %6292 = vmatprep.subr.mxu0 0.0
    %6293 = vmatpush2.msra.mxu0 0.0
    %6294 = vmatprep.subr.mxu0 0.0
    %6295 = vmatpush2.msra.mxu0 0.0
    %6296 = vmatprep.subr.mxu0 0.0
    %6297 = vmatpush2.msra.mxu0 0.0
    %6298 = vmatprep.subr.mxu0 0.0
    %6299 = vmatpush2.msra.mxu0 0.0
    %6300 = vmatprep.subr.mxu0 0.0
    %6301 = vmatpush2.msra.mxu0 0.0
    %6302 = vmatprep.subr.mxu0 0.0
    %6303 = vmatpush2.msra.mxu0 0.0
    %6304 = vmatprep.subr.mxu0 0.0
    %6305 = vmatpush2.msra.mxu0 0.0
    %6306 = vmatprep.subr.mxu0 0.0
    %6307 = vmatpush2.msra.mxu0 0.0
    %6308 = vmatprep.subr.mxu0 0.0
    %6309 = vmatpush2.msra.mxu0 0.0
    %6310 = vmatprep.subr.mxu0 0.0
    %6311 = vmatpush2.msra.mxu0 0.0
    %6312 = vmatprep.subr.mxu0 0.0
    %6313 = vmatpush2.msra.mxu0 0.0
    %6314 = vmatprep.subr.mxu0 0.0
    %6315 = vmatpush2.msra.mxu0 0.0
    %6316 = vmatprep.subr.mxu0 0.0
    %6317 = vmatpush2.msra.mxu0 0.0
    %6318 = vmatprep.mubr.f32.mxu0 0.0
    %6319 = vmatmul.mubr.f32.gmra.mxu0 %v6252
    %v6320 = vpop.f32.mrf.mxu0
    %v6321 = vadd.f32 %v6249, %v6320
    %v6322 = vpop.f32.mrf.mxu0
    %6323 = vdwg.mxu0
    %vm6324 = vcmask 25600
    %6325 = vst.msk [vmem:[#allocation49] sm:$0x3] %vm6324, %v6321
    // Predicated region
    $region338: #{tpu_custom_call.1} parent=1 // pred_check
      _
    $region339: #{tpu_custom_call.1} parent=1 // pred_check_branch
      %6327 = sbr.rel (0) target = $region341
    $region340: #{tpu_custom_call.1} parent=1 // pred_region
      %s6329 = ssub.s32 32, 32
      %6330 = vsyncadd [#allocation4], %s6329
      %s6332 = sshll.u32 [#allocation49], 4
      %s6333 = int_to_ptr.vmem [resolvable:$true] %s6332
      %6335 = dma.vmem_to_hbm [thread:$0]  %s6333, 32, %s109, [#allocation4]
    $region341: #{tpu_custom_call.1} parent=1 // pred_fallthru
      _
    // Predicated region
    $region342: #{tpu_custom_call.1} parent=1 // pred_check
      _
    $region343: #{tpu_custom_call.1} parent=1 // pred_check_branch
      %6337 = sbr.rel (0) target = $region345
    $region344: #{tpu_custom_call.1} parent=1 // pred_region
      %6338 = dma.done [#allocation4], 32
    $region345: #{tpu_custom_call.1} parent=1 // pred_fallthru
      _
    %6339 = vsyncpa [#allocation3], 1
    %6340 = vsyncpa [#allocation6], 1
    %6341 = vsyncpa [#allocation9], 1
    %6342 = vsyncpa [#allocation12], 1
    %6343 = vsyncpa [#allocation15], 1
    %6344 = vsyncpa [#allocation18], 1
    %6345 = vsyncpa [#allocation21], 1
    %6346 = vsyncpa [#allocation24], 1
    %6347 = vsyncpa [#allocation27], 1
    %6348 = vsyncpa [#allocation30], 1
    %6349 = vsyncpa [#allocation33], 1
    %6350 = vsyncpa [#allocation36], 1
    %6351 = vsyncpa [#allocation39], 1
    %6352 = vsyncpa [#allocation42], 1
    %6353 = vsyncpa [#allocation45], 1
    %6354 = vsyncpa [#allocation48], 1
    %6355 = vsyncpa [#allocation4], 1

</llo_original>
